<compile_context>
chip_gen: v7x
topology: tpu7x:2x2x1
jax: 0.10.0
libtpu: 0.0.40
codegen_flags: <defaults>
</compile_context>

<pallas_src>
import jax
import jax.numpy as jnp
from jax import lax
from jax.experimental import pallas as pl
from jax.experimental.pallas import tpu as pltpu

EPS = 1e-5        # torch.nn.BatchNorm2d default eps
LANES = 128       # TPU lane width


def _round_up(v, mult=LANES):
    return ((v + mult - 1) // mult) * mult


def _bn_relu(acc, gamma, beta):
    """acc: f32 (m, c). Training-mode BatchNorm (batch stats, biased var) + ReLU."""
    inv_m = 1.0 / acc.shape[0]
    s1 = jnp.sum(acc, axis=0, keepdims=True)
    s2 = jnp.sum(acc * acc, axis=0, keepdims=True)
    mean = s1 * inv_m
    # Single-pass E[x^2]-mean^2 can go slightly negative from cancellation: clamp.
    var = jnp.maximum(s2 * inv_m - mean * mean, 0.0)
    scale = lax.rsqrt(var + EPS) * gamma
    shift = beta - mean * scale
    return jnp.maximum(acc * scale + shift, 0.0)


def double_conv_kernel(xcol_ref, w1_ref, g1_ref, b1_ref, w2_ref, g2_ref, b2_ref,
                       o_ref, mid_ref):
    """xcol_ref: (m, K1p) bf16   pre-packed im2col of the (spatially padded) input
       w1_ref:   (K1p, cmid) bf16  (rows = ky,kx,cin flattened, zero-padded to K1p)
       w2_ref:   (K2p, cout) bf16  (rows = ky,kx,cmid flattened, zero-padded to K2p)
       g*/b*:    (1, c) f32 BatchNorm affine params
       o_ref:    (n, h, w, cout) f32 output (valid channels only)
       mid_ref:  (n, h+2, w+2, cmid) bf16 scratch for the staged hidden."""
    n, h, w, cout = o_ref.shape
    cmid = mid_ref.shape[-1]
    k2p = w2_ref.shape[0]
    m = n * h * w

    # ---- conv1: single MXU matmul on the lane-dense im2col operand ----
    acc1 = jnp.dot(xcol_ref[...], w1_ref[...],
                   preferred_element_type=jnp.float32)        # (m, cmid) f32
    h1 = _bn_relu(acc1, g1_ref[...], b1_ref[...])             # BN + ReLU, f32

    # ---- stage hidden (bf16) in a spatially padded buffer for the "same" conv2.
    # Zero only the 1-px halo: two full-width rows + two interior-height columns
    # (corners are covered by the row stores).
    zrow = jnp.zeros((n, 1, w + 2, cmid), dtype=mid_ref.dtype)
    zcol = jnp.zeros((n, h, 1, cmid), dtype=mid_ref.dtype)
    mid_ref[:, 0:1, :, :] = zrow
    mid_ref[:, h + 1:h + 2, :, :] = zrow
    mid_ref[:, 1:h + 1, 0:1, :] = zcol
    mid_ref[:, 1:h + 1, w + 1:w + 2, :] = zcol
    mid_ref[:, 1:h + 1, 1:w + 1, :] = h1.astype(mid_ref.dtype).reshape(n, h, w, cmid)

    # ---- conv2: in-kernel im2col (K = 9*cmid, zero-padded to K2p), one matmul ----
    cols = [mid_ref[:, ky:ky + h, kx:kx + w, :].reshape(m, cmid)
            for ky in range(3) for kx in range(3)]
    if k2p > 9 * cmid:   # pad K to the lane width; matches the zero weight rows
        cols.append(jnp.zeros((m, k2p - 9 * cmid), dtype=mid_ref.dtype))
    xcol2 = jnp.concatenate(cols, axis=-1)                    # (m, K2p) bf16
    acc2 = jnp.dot(xcol2, w2_ref[...],
                   preferred_element_type=jnp.float32)        # (m, cout) f32
    o_ref[...] = _bn_relu(acc2, g2_ref[...], b2_ref[...]).reshape(n, h, w, cout)


def pack_params(w1_oihw, g1, b1, w2_oihw, g2, b2):
    """One-time relayout of module parameters into MXU-ready matrices.

    Hoisted out of the jitted per-call path (call once, reuse every forward).
    Weight rows follow the im2col order (ky, kx, cin) and are zero-padded to the
    lane width; the matching im2col K columns are zero, so padding is exact.
    """
    cmid, cin = w1_oihw.shape[0], w1_oihw.shape[1]
    cout = w2_oihw.shape[0]
    k1, k2 = 9 * cin, 9 * cmid
    k1p, k2p = _round_up(k1), _round_up(k2)

    def mat(w_oihw, k, kp, co):
        wm = jnp.transpose(w_oihw, (2, 3, 1, 0)).astype(jnp.float32).reshape(k, co)
        return jnp.pad(wm, ((0, kp - k), (0, 0))).astype(jnp.bfloat16)

    def vec(v):
        return v.astype(jnp.float32).reshape(1, -1)

    return (mat(w1_oihw, k1, k1p, cmid), vec(g1), vec(b1),
            mat(w2_oihw, k2, k2p, cout), vec(g2), vec(b2))


@jax.jit
def double_conv_apply(x_nchw, params):
    """Forward pass with pre-packed params. Returns NCHW (module parity).

    NHWC consumers should take the pallas_call result directly (the final
    transpose is the only relayout left in this wrapper besides the input one).
    """
    w1m, g1r, b1r, w2m, g2r, b2r = params
    n, cin, h, w = x_nchw.shape
    cmid, cout = w1m.shape[1], w2m.shape[1]
    k1p = w1m.shape[0]
    m = n * h * w

    # NCHW -> NHWC, 1-px spatial zero pad, K-pack the 3x3 taps (im2col) and pad
    # K to the lane width: the kernel's first matmul consumes this directly.
    x = jnp.transpose(x_nchw, (0, 2, 3, 1)).astype(jnp.float32)
    xp = jnp.pad(x, ((0, 0), (1, 1), (1, 1), (0, 0)))
    cols = [xp[:, ky:ky + h, kx:kx + w, :] for ky in range(3) for kx in range(3)]
    xcol = jnp.concatenate(cols, axis=-1).reshape(m, 9 * cin)
    xcol = jnp.pad(xcol, ((0, 0), (0, k1p - 9 * cin))).astype(jnp.bfloat16)

    out_nhwc = pl.pallas_call(
        double_conv_kernel,
        out_shape=jax.ShapeDtypeStruct((n, h, w, cout), jnp.float32),
        in_specs=[pl.BlockSpec(memory_space=pltpu.MemorySpace.VMEM)] * 7,
        out_specs=pl.BlockSpec(memory_space=pltpu.MemorySpace.VMEM),
        scratch_shapes=[pltpu.VMEM((n, h + 2, w + 2, cmid), jnp.bfloat16)],
        compiler_params=pltpu.CompilerParams(
            # v5e's default scoped VMEM is only 16 MiB; raise explicitly.
            vmem_limit_bytes=64 * 1024 * 1024),
    )(xcol, w1m, g1r, b1r, w2m, g2r, b2r)

    return jnp.transpose(out_nhwc, (0, 3, 1, 2))   # back to NCHW (module parity)


def double_conv(x_nchw, w1_oihw, g1, b1, w2_oihw, g2, b2):
    """Convenience wrapper (packs params every call; prefer pack_params + apply)."""
    return double_conv_apply(x_nchw, pack_params(w1_oihw, g1, b1, w2_oihw, g2, b2))


def reference(x_nchw, w1_oihw, g1, b1, w2_oihw, g2, b2,
              *, bf16_conv_inputs=False, bf16_hidden=False):
    """Pure-JAX reference: f32 HIGHEST-precision convs, batch-stat BN, ReLU.

    With bf16_conv_inputs / bf16_hidden it mirrors the kernel's mixed-precision
    policy (bf16 conv operands, f32 accumulation / BN / ReLU).
    """
    def conv_bn_relu(x, w_oihw, g, b):
        w_hwio = jnp.transpose(w_oihw, (2, 3, 1, 0)).astype(jnp.float32)
        if bf16_conv_inputs:
            x = x.astype(jnp.bfloat16).astype(jnp.float32)
            w_hwio = w_hwio.astype(jnp.bfloat16).astype(jnp.float32)
        y = lax.conv_general_dilated(
            x, w_hwio, (1, 1), 'SAME',
            dimension_numbers=('NHWC', 'HWIO', 'NHWC'),
            precision=lax.Precision.HIGHEST)
        mean = y.mean(axis=(0, 1, 2), keepdims=True)
        var = ((y - mean) ** 2).mean(axis=(0, 1, 2), keepdims=True)
        return jnp.maximum((y - mean) * lax.rsqrt(var + EPS) * g + b, 0.0)

    x = jnp.transpose(x_nchw, (0, 2, 3, 1)).astype(jnp.float32)
    h1 = conv_bn_relu(x, w1_oihw, g1, b1)
    if bf16_hidden:
        h1 = h1.astype(jnp.bfloat16).astype(jnp.float32)
    h2 = conv_bn_relu(h1, w2_oihw, g2, b2)
    return jnp.transpose(h2, (0, 3, 1, 2))


if __name__ == "__main__":
    N, C_IN, C_MID, C_OUT, H, W = 2, 4, 8, 8, 16, 16

    key = jax.random.PRNGKey(0)
    kx, k1, k2, k3, k4, k5, k6 = jax.random.split(key, 7)

    x = jax.random.normal(kx, (N, C_IN, H, W), dtype=jnp.float32)
    # Conv2d weights in PyTorch OIHW convention, no bias (bias=False).
    w1 = jax.random.normal(k1, (C_MID, C_IN, 3, 3), dtype=jnp.float32) * 0.1
    w2 = jax.random.normal(k2, (C_OUT, C_MID, 3, 3), dtype=jnp.float32) * 0.1
    # BatchNorm affine params (deterministic, non-trivial).
    g1 = jax.random.uniform(k3, (C_MID,), minval=0.5, maxval=1.5)
    b1 = jax.random.normal(k4, (C_MID,)) * 0.1
    g2 = jax.random.uniform(k5, (C_OUT,), minval=0.5, maxval=1.5)
    b2 = jax.random.normal(k6, (C_OUT,)) * 0.1

    # One-time parameter packing, hoisted out of the jitted per-call path.
    params = pack_params(w1, g1, b1, w2, g2, b2)

    out = jax.block_until_ready(double_conv_apply(x, params))
    assert out.shape == (N, C_OUT, H, W), out.shape

    # (a) Structural-correctness gate: reference with the same mixed precision
    #     as the kernel (bf16 conv operands / hidden, f32 acc / BN / ReLU).
    ref_mixed = reference(x, w1, g1, b1, w2, g2, b2,
                          bf16_conv_inputs=True, bf16_hidden=True)
    assert jnp.allclose(out, ref_mixed, atol=2e-2, rtol=2e-2), (
        float(jnp.max(jnp.abs(out - ref_mixed))))

    # (b) Mixed-precision drift bound vs the exact f32 module.
    ref_f32 = reference(x, w1, g1, b1, w2, g2, b2)
    assert jnp.allclose(out, ref_f32, atol=1e-1, rtol=1e-1), (
        float(jnp.max(jnp.abs(out - ref_f32))))

    print("KERNEL_OK")
</pallas_src>

<mosaic_0001>
module attributes {stable_mosaic.version = 11 : i64} {
  func.func @double_conv_kernel(%arg0: memref<512x128xbf16, #tpu.memory_space<vmem>>, %arg1: memref<128x8xbf16, #tpu.memory_space<vmem>>, %arg2: memref<1x8xf32, #tpu.memory_space<vmem>>, %arg3: memref<1x8xf32, #tpu.memory_space<vmem>>, %arg4: memref<128x8xbf16, #tpu.memory_space<vmem>>, %arg5: memref<1x8xf32, #tpu.memory_space<vmem>>, %arg6: memref<1x8xf32, #tpu.memory_space<vmem>>, %arg7: memref<2x16x16x8xf32, #tpu.memory_space<vmem>>, %arg8: memref<2x18x18x8xbf16, #tpu.memory_space<vmem>>) attributes {dimension_semantics = [], scalar_prefetch = 0 : i64, scratch_operands = 1 : i64, tpu.core_type = #tpu.core_type<tc>} {
    %c0 = arith.constant 0 : index
    %c0_0 = arith.constant 0 : index
    %0 = vector.load %arg0[%c0, %c0_0] : memref<512x128xbf16, #tpu.memory_space<vmem>>, vector<512x128xbf16>
    %c0_1 = arith.constant 0 : index
    %c0_2 = arith.constant 0 : index
    %1 = vector.load %arg1[%c0_1, %c0_2] : memref<128x8xbf16, #tpu.memory_space<vmem>>, vector<128x8xbf16>
    %cst = arith.constant dense<0.000000e+00> : vector<512x8xf32>
    %2 = tpu.matmul %0, %1, %cst {dimension_numbers = #tpu.dot_dimension_numbers<[1], [0], [0], [1], [0, 0, 1, 1], [], []>} : vector<512x128xbf16>, vector<128x8xbf16>, vector<512x8xf32> -> vector<512x8xf32>
    %c0_3 = arith.constant 0 : index
    %c0_4 = arith.constant 0 : index
    %3 = vector.load %arg2[%c0_3, %c0_4] : memref<1x8xf32, #tpu.memory_space<vmem>>, vector<1x8xf32>
    %c0_5 = arith.constant 0 : index
    %c0_6 = arith.constant 0 : index
    %4 = vector.load %arg3[%c0_5, %c0_6] : memref<1x8xf32, #tpu.memory_space<vmem>>, vector<1x8xf32>
    %cst_7 = arith.constant dense<0.000000e+00> : vector<8xf32>
    %5 = vector.multi_reduction <add>, %2, %cst_7 [0] : vector<512x8xf32> to vector<8xf32>
    %6 = vector.shape_cast %5 : vector<8xf32> to vector<1x8xf32>
    %7 = arith.mulf %2, %2 : vector<512x8xf32>
    %cst_8 = arith.constant dense<0.000000e+00> : vector<8xf32>
    %8 = vector.multi_reduction <add>, %7, %cst_8 [0] : vector<512x8xf32> to vector<8xf32>
    %9 = vector.shape_cast %8 : vector<8xf32> to vector<1x8xf32>
    %cst_9 = arith.constant 0.001953125 : f32
    %10 = vector.broadcast %cst_9 : f32 to vector<1x8xf32>
    %11 = arith.mulf %6, %10 : vector<1x8xf32>
    %cst_10 = arith.constant 0.001953125 : f32
    %12 = vector.broadcast %cst_10 : f32 to vector<1x8xf32>
    %13 = arith.mulf %9, %12 : vector<1x8xf32>
    %14 = arith.mulf %11, %11 : vector<1x8xf32>
    %15 = arith.subf %13, %14 : vector<1x8xf32>
    %cst_11 = arith.constant 0.000000e+00 : f32
    %16 = vector.broadcast %cst_11 : f32 to vector<1x8xf32>
    %17 = arith.maximumf %15, %16 : vector<1x8xf32>
    %cst_12 = arith.constant 9.99999974E-6 : f32
    %18 = vector.broadcast %cst_12 : f32 to vector<1x8xf32>
    %19 = arith.addf %17, %18 : vector<1x8xf32>
    %20 = math.rsqrt %19 : vector<1x8xf32>
    %21 = arith.mulf %20, %3 : vector<1x8xf32>
    %22 = arith.mulf %11, %21 : vector<1x8xf32>
    %23 = arith.subf %4, %22 : vector<1x8xf32>
    %24 = vector.broadcast %21 : vector<1x8xf32> to vector<512x8xf32>
    %25 = arith.mulf %2, %24 : vector<512x8xf32>
    %26 = vector.broadcast %23 : vector<1x8xf32> to vector<512x8xf32>
    %27 = arith.addf %25, %26 : vector<512x8xf32>
    %cst_13 = arith.constant 0.000000e+00 : f32
    %28 = vector.broadcast %cst_13 : f32 to vector<512x8xf32>
    %29 = arith.maximumf %27, %28 : vector<512x8xf32>
    %cst_14 = arith.constant 0.000000e+00 : bf16
    %30 = vector.broadcast %cst_14 : bf16 to vector<2x1x18x8xbf16>
    %cst_15 = arith.constant 0.000000e+00 : bf16
    %31 = vector.broadcast %cst_15 : bf16 to vector<2x16x1x8xbf16>
    %c0_16 = arith.constant 0 : index
    %c0_17 = arith.constant 0 : index
    %c0_18 = arith.constant 0 : index
    %c0_19 = arith.constant 0 : index
    %32 = vector.load %arg8[%c0_16, %c0_17, %c0_18, %c0_19] : memref<2x18x18x8xbf16, #tpu.memory_space<vmem>>, vector<2x1x18x8xbf16>
    tpu.vector_store %arg8[%c0_16, %c0_17, %c0_18, %c0_19], %30 {strides = array<i32>} : memref<2x18x18x8xbf16, #tpu.memory_space<vmem>>, vector<2x1x18x8xbf16>,
    %c0_20 = arith.constant 0 : index
    %c17 = arith.constant 17 : index
    %c0_21 = arith.constant 0 : index
    %c0_22 = arith.constant 0 : index
    %33 = vector.load %arg8[%c0_20, %c17, %c0_21, %c0_22] : memref<2x18x18x8xbf16, #tpu.memory_space<vmem>>, vector<2x1x18x8xbf16>
    tpu.vector_store %arg8[%c0_20, %c17, %c0_21, %c0_22], %30 {strides = array<i32>} : memref<2x18x18x8xbf16, #tpu.memory_space<vmem>>, vector<2x1x18x8xbf16>,
    %c0_23 = arith.constant 0 : index
    %c1 = arith.constant 1 : index
    %c0_24 = arith.constant 0 : index
    %c0_25 = arith.constant 0 : index
    %34 = vector.load %arg8[%c0_23, %c1, %c0_24, %c0_25] : memref<2x18x18x8xbf16, #tpu.memory_space<vmem>>, vector<2x16x1x8xbf16>
    tpu.vector_store %arg8[%c0_23, %c1, %c0_24, %c0_25], %31 {strides = array<i32>} : memref<2x18x18x8xbf16, #tpu.memory_space<vmem>>, vector<2x16x1x8xbf16>,
    %c0_26 = arith.constant 0 : index
    %c1_27 = arith.constant 1 : index
    %c17_28 = arith.constant 17 : index
    %c0_29 = arith.constant 0 : index
    %35 = vector.load %arg8[%c0_26, %c1_27, %c17_28, %c0_29] : memref<2x18x18x8xbf16, #tpu.memory_space<vmem>>, vector<2x16x1x8xbf16>
    tpu.vector_store %arg8[%c0_26, %c1_27, %c17_28, %c0_29], %31 {strides = array<i32>} : memref<2x18x18x8xbf16, #tpu.memory_space<vmem>>, vector<2x16x1x8xbf16>,
    %36 = arith.truncf %29 : vector<512x8xf32> to vector<512x8xbf16>
    %37 = vector.shape_cast %36 : vector<512x8xbf16> to vector<2x16x16x8xbf16>
    %c0_30 = arith.constant 0 : index
    %c1_31 = arith.constant 1 : index
    %c1_32 = arith.constant 1 : index
    %c0_33 = arith.constant 0 : index
    %38 = vector.load %arg8[%c0_30, %c1_31, %c1_32, %c0_33] : memref<2x18x18x8xbf16, #tpu.memory_space<vmem>>, vector<2x16x16x8xbf16>
    tpu.vector_store %arg8[%c0_30, %c1_31, %c1_32, %c0_33], %37 {strides = array<i32>} : memref<2x18x18x8xbf16, #tpu.memory_space<vmem>>, vector<2x16x16x8xbf16>,
    %c0_34 = arith.constant 0 : index
    %c0_35 = arith.constant 0 : index
    %c0_36 = arith.constant 0 : index
    %c0_37 = arith.constant 0 : index
    %39 = vector.load %arg8[%c0_34, %c0_35, %c0_36, %c0_37] : memref<2x18x18x8xbf16, #tpu.memory_space<vmem>>, vector<2x16x16x8xbf16>
    %40 = vector.shape_cast %39 : vector<2x16x16x8xbf16> to vector<512x8xbf16>
    %c0_38 = arith.constant 0 : index
    %c0_39 = arith.constant 0 : index
    %c1_40 = arith.constant 1 : index
    %c0_41 = arith.constant 0 : index
    %41 = vector.load %arg8[%c0_38, %c0_39, %c1_40, %c0_41] : memref<2x18x18x8xbf16, #tpu.memory_space<vmem>>, vector<2x16x16x8xbf16>
    %42 = vector.shape_cast %41 : vector<2x16x16x8xbf16> to vector<512x8xbf16>
    %c0_42 = arith.constant 0 : index
    %c0_43 = arith.constant 0 : index
    %c2 = arith.constant 2 : index
    %c0_44 = arith.constant 0 : index
    %43 = vector.load %arg8[%c0_42, %c0_43, %c2, %c0_44] : memref<2x18x18x8xbf16, #tpu.memory_space<vmem>>, vector<2x16x16x8xbf16>
    %44 = vector.shape_cast %43 : vector<2x16x16x8xbf16> to vector<512x8xbf16>
    %c0_45 = arith.constant 0 : index
    %c1_46 = arith.constant 1 : index
    %c0_47 = arith.constant 0 : index
    %c0_48 = arith.constant 0 : index
    %45 = vector.load %arg8[%c0_45, %c1_46, %c0_47, %c0_48] : memref<2x18x18x8xbf16, #tpu.memory_space<vmem>>, vector<2x16x16x8xbf16>
    %46 = vector.shape_cast %45 : vector<2x16x16x8xbf16> to vector<512x8xbf16>
    %c0_49 = arith.constant 0 : index
    %c1_50 = arith.constant 1 : index
    %c1_51 = arith.constant 1 : index
    %c0_52 = arith.constant 0 : index
    %47 = vector.load %arg8[%c0_49, %c1_50, %c1_51, %c0_52] : memref<2x18x18x8xbf16, #tpu.memory_space<vmem>>, vector<2x16x16x8xbf16>
    %48 = vector.shape_cast %47 : vector<2x16x16x8xbf16> to vector<512x8xbf16>
    %c0_53 = arith.constant 0 : index
    %c1_54 = arith.constant 1 : index
    %c2_55 = arith.constant 2 : index
    %c0_56 = arith.constant 0 : index
    %49 = vector.load %arg8[%c0_53, %c1_54, %c2_55, %c0_56] : memref<2x18x18x8xbf16, #tpu.memory_space<vmem>>, vector<2x16x16x8xbf16>
    %50 = vector.shape_cast %49 : vector<2x16x16x8xbf16> to vector<512x8xbf16>
    %c0_57 = arith.constant 0 : index
    %c2_58 = arith.constant 2 : index
    %c0_59 = arith.constant 0 : index
    %c0_60 = arith.constant 0 : index
    %51 = vector.load %arg8[%c0_57, %c2_58, %c0_59, %c0_60] : memref<2x18x18x8xbf16, #tpu.memory_space<vmem>>, vector<2x16x16x8xbf16>
    %52 = vector.shape_cast %51 : vector<2x16x16x8xbf16> to vector<512x8xbf16>
    %c0_61 = arith.constant 0 : index
    %c2_62 = arith.constant 2 : index
    %c1_63 = arith.constant 1 : index
    %c0_64 = arith.constant 0 : index
    %53 = vector.load %arg8[%c0_61, %c2_62, %c1_63, %c0_64] : memref<2x18x18x8xbf16, #tpu.memory_space<vmem>>, vector<2x16x16x8xbf16>
    %54 = vector.shape_cast %53 : vector<2x16x16x8xbf16> to vector<512x8xbf16>
    %c0_65 = arith.constant 0 : index
    %c2_66 = arith.constant 2 : index
    %c2_67 = arith.constant 2 : index
    %c0_68 = arith.constant 0 : index
    %55 = vector.load %arg8[%c0_65, %c2_66, %c2_67, %c0_68] : memref<2x18x18x8xbf16, #tpu.memory_space<vmem>>, vector<2x16x16x8xbf16>
    %56 = vector.shape_cast %55 : vector<2x16x16x8xbf16> to vector<512x8xbf16>
    %cst_69 = arith.constant 0.000000e+00 : bf16
    %57 = vector.broadcast %cst_69 : bf16 to vector<512x56xbf16>
    %58 = tpu.concatenate %40, %42, %44, %46, %48, %50, %52, %54, %56, %57 in 1 : vector<512x8xbf16>, vector<512x8xbf16>, vector<512x8xbf16>, vector<512x8xbf16>, vector<512x8xbf16>, vector<512x8xbf16>, vector<512x8xbf16>, vector<512x8xbf16>, vector<512x8xbf16>, vector<512x56xbf16> -> vector<512x128xbf16>
    %c0_70 = arith.constant 0 : index
    %c0_71 = arith.constant 0 : index
    %59 = vector.load %arg4[%c0_70, %c0_71] : memref<128x8xbf16, #tpu.memory_space<vmem>>, vector<128x8xbf16>
    %cst_72 = arith.constant dense<0.000000e+00> : vector<512x8xf32>
    %60 = tpu.matmul %58, %59, %cst_72 {dimension_numbers = #tpu.dot_dimension_numbers<[1], [0], [0], [1], [0, 0, 1, 1], [], []>} : vector<512x128xbf16>, vector<128x8xbf16>, vector<512x8xf32> -> vector<512x8xf32>
    %c0_73 = arith.constant 0 : index
    %c0_74 = arith.constant 0 : index
    %61 = vector.load %arg5[%c0_73, %c0_74] : memref<1x8xf32, #tpu.memory_space<vmem>>, vector<1x8xf32>
    %c0_75 = arith.constant 0 : index
    %c0_76 = arith.constant 0 : index
    %62 = vector.load %arg6[%c0_75, %c0_76] : memref<1x8xf32, #tpu.memory_space<vmem>>, vector<1x8xf32>
    %cst_77 = arith.constant dense<0.000000e+00> : vector<8xf32>
    %63 = vector.multi_reduction <add>, %60, %cst_77 [0] : vector<512x8xf32> to vector<8xf32>
    %64 = vector.shape_cast %63 : vector<8xf32> to vector<1x8xf32>
    %65 = arith.mulf %60, %60 : vector<512x8xf32>
    %cst_78 = arith.constant dense<0.000000e+00> : vector<8xf32>
    %66 = vector.multi_reduction <add>, %65, %cst_78 [0] : vector<512x8xf32> to vector<8xf32>
    %67 = vector.shape_cast %66 : vector<8xf32> to vector<1x8xf32>
    %cst_79 = arith.constant 0.001953125 : f32
    %68 = vector.broadcast %cst_79 : f32 to vector<1x8xf32>
    %69 = arith.mulf %64, %68 : vector<1x8xf32>
    %cst_80 = arith.constant 0.001953125 : f32
    %70 = vector.broadcast %cst_80 : f32 to vector<1x8xf32>
    %71 = arith.mulf %67, %70 : vector<1x8xf32>
    %72 = arith.mulf %69, %69 : vector<1x8xf32>
    %73 = arith.subf %71, %72 : vector<1x8xf32>
    %cst_81 = arith.constant 0.000000e+00 : f32
    %74 = vector.broadcast %cst_81 : f32 to vector<1x8xf32>
    %75 = arith.maximumf %73, %74 : vector<1x8xf32>
    %cst_82 = arith.constant 9.99999974E-6 : f32
    %76 = vector.broadcast %cst_82 : f32 to vector<1x8xf32>
    %77 = arith.addf %75, %76 : vector<1x8xf32>
    %78 = math.rsqrt %77 : vector<1x8xf32>
    %79 = arith.mulf %78, %61 : vector<1x8xf32>
    %80 = arith.mulf %69, %79 : vector<1x8xf32>
    %81 = arith.subf %62, %80 : vector<1x8xf32>
    %82 = vector.broadcast %79 : vector<1x8xf32> to vector<512x8xf32>
    %83 = arith.mulf %60, %82 : vector<512x8xf32>
    %84 = vector.broadcast %81 : vector<1x8xf32> to vector<512x8xf32>
    %85 = arith.addf %83, %84 : vector<512x8xf32>
    %cst_83 = arith.constant 0.000000e+00 : f32
    %86 = vector.broadcast %cst_83 : f32 to vector<512x8xf32>
    %87 = arith.maximumf %85, %86 : vector<512x8xf32>
    %88 = vector.shape_cast %87 : vector<512x8xf32> to vector<2x16x16x8xf32>
    %c0_84 = arith.constant 0 : index
    %c0_85 = arith.constant 0 : index
    %c0_86 = arith.constant 0 : index
    %c0_87 = arith.constant 0 : index
    %89 = vector.load %arg7[%c0_84, %c0_85, %c0_86, %c0_87] : memref<2x16x16x8xf32, #tpu.memory_space<vmem>>, vector<2x16x16x8xf32>
    tpu.vector_store %arg7[%c0_84, %c0_85, %c0_86, %c0_87], %88 {strides = array<i32>} : memref<2x16x16x8xf32, #tpu.memory_space<vmem>>, vector<2x16x16x8xf32>,
    return
  }
}

</mosaic_0001>

<llo_original>
// kernel: double_conv_apply.1
$region0: #{double_conv_apply.1}
  #allocation0 [shape = 'u32[]', space=smem, size = 0x4, offset = 0x4, fixed_abs, tag = 'smem constant byte address 0x4 - core index']
  #allocation1 [shape = 'u32[144,128]{1,0:T(1,128)}', space=vmem, size = 0x12000, scoped, tag = 'internal scratch']
  #allocation2 [shape = 'bf16[2,18,18,8]{3,2,1,0:T(8,128)(2,1)}', space=vmem, size = 0x36000, scoped, tag = 'scratch operand']
  %s0 = inlined_call_operand.hbm [shape: bf16[512,128], index: 0, kind: input, shape index: {}]
  %s1 = inlined_call_operand.hbm [shape: bf16[128,8], index: 1, kind: input, shape index: {}]
  %s2 = inlined_call_operand.hbm [shape: f32[1,8], index: 2, kind: input, shape index: {}]
  %s3 = inlined_call_operand.hbm [shape: f32[1,8], index: 3, kind: input, shape index: {}]
  %s4 = inlined_call_operand.hbm [shape: bf16[128,8], index: 4, kind: input, shape index: {}]
  %s5 = inlined_call_operand.hbm [shape: f32[1,8], index: 5, kind: input, shape index: {}]
  %s6 = inlined_call_operand.hbm [shape: f32[1,8], index: 6, kind: input, shape index: {}]
  %s7 = inlined_call_operand.hbm [shape: f32[2,16,16,8], index: 7, kind: output, shape index: {}]
  %s8 = sld [smem:[#allocation0]]
  $region66: #{double_conv_apply.1} parent=0
    _
  %s10 = ssub.s32 1, %s8
  %s11 = scalar_select 0, %s10, %s8
  $region1: #{double_conv_apply.1} parent=0
    #allocation3 [shape = 'u8[131072]{0}', space=vmem, size = 0x20000, scoped, tag = 'input window, operand 0, single buffered']
    #allocation4 [shape = 's32[1]{0}', space=sflag, size = 0x4, scoped, tag = 'scoped memory for double_conv_apply.1']
    #allocation5 [shape = 's32[1]{0}', space=sflag, size = 0x4, scoped, tag = 'scoped memory for double_conv_apply.1']
    #allocation6 [shape = 'u8[32768]{0}', space=vmem, size = 0x8000, scoped, tag = 'input window, operand 1, single buffered']
    #allocation7 [shape = 's32[1]{0}', space=sflag, size = 0x4, scoped, tag = 'scoped memory for double_conv_apply.1']
    #allocation8 [shape = 'u8[512]{0}', space=vmem, size = 0x400, scoped, tag = 'input window, operand 2, single buffered']
    #allocation9 [shape = 'u8[512]{0}', space=vmem, size = 0x400, scoped, tag = 'input window, operand 3, single buffered']
    #allocation10 [shape = 's32[1]{0}', space=sflag, size = 0x4, scoped, tag = 'scoped memory for double_conv_apply.1']
    #allocation11 [shape = 'u8[32768]{0}', space=vmem, size = 0x8000, scoped, tag = 'input window, operand 4, single buffered']
    #allocation12 [shape = 'u8[512]{0}', space=vmem, size = 0x400, scoped, tag = 'input window, operand 5, single buffered']
    #allocation13 [shape = 's32[1]{0}', space=sflag, size = 0x4, scoped, tag = 'scoped memory for double_conv_apply.1']
    #allocation14 [shape = 'u8[512]{0}', space=vmem, size = 0x400, scoped, tag = 'input window, operand 6, single buffered']
    #allocation15 [shape = 'u8[262144]{0}', space=vmem, size = 0x40000, scoped, tag = 'output window, operand 0, single buffered']
    %12 = vsyncpa [#allocation4], 0
    %13 = vsyncpa [#allocation7], 0
    %14 = vsyncpa [#allocation10], 0
    %15 = vsyncpa [#allocation13], 0
    %16 = vsyncpa [#allocation5], 0
    // Predicated region
    $region2: #{double_conv_apply.1} parent=1 // pred_check
      _
    $region3: #{double_conv_apply.1} parent=1 // pred_check_branch
      %18 = sbr.rel (0) target = $region5
    $region4: #{double_conv_apply.1} parent=1 // pred_region
      %s20 = ssub.s32 4096, 4096
      %21 = vsyncadd [#allocation4], %s20
      %s22 = sshll.u32 [#allocation3], 4
      %s23 = int_to_ptr.vmem [resolvable:$true] %s22
      %28 = dma.hbm_to_vmem [thread:$0]  %s0, 4096, %s23, [#allocation4], 64, 64, 4
    $region5: #{double_conv_apply.1} parent=1 // pred_fallthru
      _
    // Predicated region
    $region6: #{double_conv_apply.1} parent=1 // pred_check
      _
    $region7: #{double_conv_apply.1} parent=1 // pred_check_branch
      %30 = sbr.rel (0) target = $region9
    $region8: #{double_conv_apply.1} parent=1 // pred_region
      %s32 = ssub.s32 1024, 1024
      %33 = vsyncadd [#allocation7], %s32
      %s34 = sshll.u32 [#allocation6], 4
      %s35 = int_to_ptr.vmem [resolvable:$true] %s34
      %40 = dma.hbm_to_vmem [thread:$0]  %s1, 1024, %s35, [#allocation7], 64, 64, 4
    $region9: #{double_conv_apply.1} parent=1 // pred_fallthru
      _
    // Predicated region
    $region10: #{double_conv_apply.1} parent=1 // pred_check
      _
    $region11: #{double_conv_apply.1} parent=1 // pred_check_branch
      %42 = sbr.rel (0) target = $region13
    $region12: #{double_conv_apply.1} parent=1 // pred_region
      %s44 = ssub.s32 16, 16
      %45 = vsyncadd [#allocation7], %s44
      %s47 = sshll.u32 [#allocation8], 4
      %s48 = int_to_ptr.vmem [resolvable:$true] %s47
      %50 = dma.hbm_to_vmem [thread:$0]  %s2, 16, %s48, [#allocation7]
    $region13: #{double_conv_apply.1} parent=1 // pred_fallthru
      _
    // Predicated region
    $region14: #{double_conv_apply.1} parent=1 // pred_check
      _
    $region15: #{double_conv_apply.1} parent=1 // pred_check_branch
      %52 = sbr.rel (0) target = $region17
    $region16: #{double_conv_apply.1} parent=1 // pred_region
      %s54 = ssub.s32 16, 16
      %55 = vsyncadd [#allocation10], %s54
      %s57 = sshll.u32 [#allocation9], 4
      %s58 = int_to_ptr.vmem [resolvable:$true] %s57
      %60 = dma.hbm_to_vmem [thread:$0]  %s3, 16, %s58, [#allocation10]
    $region17: #{double_conv_apply.1} parent=1 // pred_fallthru
      _
    // Predicated region
    $region18: #{double_conv_apply.1} parent=1 // pred_check
      _
    $region19: #{double_conv_apply.1} parent=1 // pred_check_branch
      %62 = sbr.rel (0) target = $region21
    $region20: #{double_conv_apply.1} parent=1 // pred_region
      %s64 = ssub.s32 1024, 1024
      %65 = vsyncadd [#allocation10], %s64
      %s66 = sshll.u32 [#allocation11], 4
      %s67 = int_to_ptr.vmem [resolvable:$true] %s66
      %72 = dma.hbm_to_vmem [thread:$0]  %s4, 1024, %s67, [#allocation10], 64, 64, 4
    $region21: #{double_conv_apply.1} parent=1 // pred_fallthru
      _
    // Predicated region
    $region22: #{double_conv_apply.1} parent=1 // pred_check
      _
    $region23: #{double_conv_apply.1} parent=1 // pred_check_branch
      %74 = sbr.rel (0) target = $region25
    $region24: #{double_conv_apply.1} parent=1 // pred_region
      %s76 = ssub.s32 16, 16
      %77 = vsyncadd [#allocation13], %s76
      %s79 = sshll.u32 [#allocation12], 4
      %s80 = int_to_ptr.vmem [resolvable:$true] %s79
      %82 = dma.hbm_to_vmem [thread:$0]  %s5, 16, %s80, [#allocation13]
    $region25: #{double_conv_apply.1} parent=1 // pred_fallthru
      _
    // Predicated region
    $region26: #{double_conv_apply.1} parent=1 // pred_check
      _
    $region27: #{double_conv_apply.1} parent=1 // pred_check_branch
      %84 = sbr.rel (0) target = $region29
    $region28: #{double_conv_apply.1} parent=1 // pred_region
      %s86 = ssub.s32 16, 16
      %87 = vsyncadd [#allocation13], %s86
      %s89 = sshll.u32 [#allocation14], 4
      %s90 = int_to_ptr.vmem [resolvable:$true] %s89
      %92 = dma.hbm_to_vmem [thread:$0]  %s6, 16, %s90, [#allocation13]
    $region29: #{double_conv_apply.1} parent=1 // pred_fallthru
      _
    // Predicated region
    $region30: #{double_conv_apply.1} parent=1 // pred_check
      _
    $region31: #{double_conv_apply.1} parent=1 // pred_check_branch
      %94 = sbr.rel (0) target = $region33
    $region32: #{double_conv_apply.1} parent=1 // pred_region
      %95 = dma.done [#allocation4], 4096
    $region33: #{double_conv_apply.1} parent=1 // pred_fallthru
      _
    // Predicated region
    $region34: #{double_conv_apply.1} parent=1 // pred_check
      _
    $region35: #{double_conv_apply.1} parent=1 // pred_check_branch
      %97 = sbr.rel (0) target = $region37
    $region36: #{double_conv_apply.1} parent=1 // pred_region
      %98 = dma.done [#allocation7], 1024
    $region37: #{double_conv_apply.1} parent=1 // pred_fallthru
      _
    // Predicated region
    $region38: #{double_conv_apply.1} parent=1 // pred_check
      _
    $region39: #{double_conv_apply.1} parent=1 // pred_check_branch
      %100 = sbr.rel (0) target = $region41
    $region40: #{double_conv_apply.1} parent=1 // pred_region
      %101 = dma.done [#allocation7], 16
    $region41: #{double_conv_apply.1} parent=1 // pred_fallthru
      _
    // Predicated region
    $region42: #{double_conv_apply.1} parent=1 // pred_check
      _
    $region43: #{double_conv_apply.1} parent=1 // pred_check_branch
      %103 = sbr.rel (0) target = $region45
    $region44: #{double_conv_apply.1} parent=1 // pred_region
      %104 = dma.done [#allocation10], 16
    $region45: #{double_conv_apply.1} parent=1 // pred_fallthru
      _
    // Predicated region
    $region46: #{double_conv_apply.1} parent=1 // pred_check
      _
    $region47: #{double_conv_apply.1} parent=1 // pred_check_branch
      %106 = sbr.rel (0) target = $region49
    $region48: #{double_conv_apply.1} parent=1 // pred_region
      %107 = dma.done [#allocation10], 1024
    $region49: #{double_conv_apply.1} parent=1 // pred_fallthru
      _
    // Predicated region
    $region50: #{double_conv_apply.1} parent=1 // pred_check
      _
    $region51: #{double_conv_apply.1} parent=1 // pred_check_branch
      %109 = sbr.rel (0) target = $region53
    $region52: #{double_conv_apply.1} parent=1 // pred_region
      %110 = dma.done [#allocation13], 16
    $region53: #{double_conv_apply.1} parent=1 // pred_fallthru
      _
    // Predicated region
    $region54: #{double_conv_apply.1} parent=1 // pred_check
      _
    $region55: #{double_conv_apply.1} parent=1 // pred_check_branch
      %112 = sbr.rel (0) target = $region57
    $region56: #{double_conv_apply.1} parent=1 // pred_region
      %113 = dma.done [#allocation13], 16
    $region57: #{double_conv_apply.1} parent=1 // pred_fallthru
      _
    %v115 = vld [vmem:[#allocation3] sm:$0xf]
    %v116 = vld [vmem:[#allocation3 + $0x4] sm:$0xf]
    %v117 = vld [vmem:[#allocation3 + $0x8] sm:$0xf]
    %v118 = vld [vmem:[#allocation3 + $0xc] sm:$0xf]
    %v119 = vld [vmem:[#allocation3 + $0x10] sm:$0xf]
    %v120 = vld [vmem:[#allocation3 + $0x14] sm:$0xf]
    %v121 = vld [vmem:[#allocation3 + $0x18] sm:$0xf]
    %v122 = vld [vmem:[#allocation3 + $0x1c] sm:$0xf]
    %v123 = vld [vmem:[#allocation3 + $0x20] sm:$0xf]
    %v124 = vld [vmem:[#allocation3 + $0x24] sm:$0xf]
    %v125 = vld [vmem:[#allocation3 + $0x28] sm:$0xf]
    %v126 = vld [vmem:[#allocation3 + $0x2c] sm:$0xf]
    %v127 = vld [vmem:[#allocation3 + $0x30] sm:$0xf]
    %v128 = vld [vmem:[#allocation3 + $0x34] sm:$0xf]
    %v129 = vld [vmem:[#allocation3 + $0x38] sm:$0xf]
    %v130 = vld [vmem:[#allocation3 + $0x3c] sm:$0xf]
    %v131 = vld [vmem:[#allocation3 + $0x40] sm:$0xf]
    %v132 = vld [vmem:[#allocation3 + $0x44] sm:$0xf]
    %v133 = vld [vmem:[#allocation3 + $0x48] sm:$0xf]
    %v134 = vld [vmem:[#allocation3 + $0x4c] sm:$0xf]
    %v135 = vld [vmem:[#allocation3 + $0x50] sm:$0xf]
    %v136 = vld [vmem:[#allocation3 + $0x54] sm:$0xf]
    %v137 = vld [vmem:[#allocation3 + $0x58] sm:$0xf]
    %v138 = vld [vmem:[#allocation3 + $0x5c] sm:$0xf]
    %v139 = vld [vmem:[#allocation3 + $0x60] sm:$0xf]
    %v140 = vld [vmem:[#allocation3 + $0x64] sm:$0xf]
    %v141 = vld [vmem:[#allocation3 + $0x68] sm:$0xf]
    %v142 = vld [vmem:[#allocation3 + $0x6c] sm:$0xf]
    %v143 = vld [vmem:[#allocation3 + $0x70] sm:$0xf]
    %v144 = vld [vmem:[#allocation3 + $0x74] sm:$0xf]
    %v145 = vld [vmem:[#allocation3 + $0x78] sm:$0xf]
    %v146 = vld [vmem:[#allocation3 + $0x7c] sm:$0xf]
    %v147 = vld [vmem:[#allocation3 + $0x80] sm:$0xf]
    %v148 = vld [vmem:[#allocation3 + $0x84] sm:$0xf]
    %v149 = vld [vmem:[#allocation3 + $0x88] sm:$0xf]
    %v150 = vld [vmem:[#allocation3 + $0x8c] sm:$0xf]
    %v151 = vld [vmem:[#allocation3 + $0x90] sm:$0xf]
    %v152 = vld [vmem:[#allocation3 + $0x94] sm:$0xf]
    %v153 = vld [vmem:[#allocation3 + $0x98] sm:$0xf]
    %v154 = vld [vmem:[#allocation3 + $0x9c] sm:$0xf]
    %v155 = vld [vmem:[#allocation3 + $0xa0] sm:$0xf]
    %v156 = vld [vmem:[#allocation3 + $0xa4] sm:$0xf]
    %v157 = vld [vmem:[#allocation3 + $0xa8] sm:$0xf]
    %v158 = vld [vmem:[#allocation3 + $0xac] sm:$0xf]
    %v159 = vld [vmem:[#allocation3 + $0xb0] sm:$0xf]
    %v160 = vld [vmem:[#allocation3 + $0xb4] sm:$0xf]
    %v161 = vld [vmem:[#allocation3 + $0xb8] sm:$0xf]
    %v162 = vld [vmem:[#allocation3 + $0xbc] sm:$0xf]
    %v163 = vld [vmem:[#allocation3 + $0xc0] sm:$0xf]
    %v164 = vld [vmem:[#allocation3 + $0xc4] sm:$0xf]
    %v165 = vld [vmem:[#allocation3 + $0xc8] sm:$0xf]
    %v166 = vld [vmem:[#allocation3 + $0xcc] sm:$0xf]
    %v167 = vld [vmem:[#allocation3 + $0xd0] sm:$0xf]
    %v168 = vld [vmem:[#allocation3 + $0xd4] sm:$0xf]
    %v169 = vld [vmem:[#allocation3 + $0xd8] sm:$0xf]
    %v170 = vld [vmem:[#allocation3 + $0xdc] sm:$0xf]
    %v171 = vld [vmem:[#allocation3 + $0xe0] sm:$0xf]
    %v172 = vld [vmem:[#allocation3 + $0xe4] sm:$0xf]
    %v173 = vld [vmem:[#allocation3 + $0xe8] sm:$0xf]
    %v174 = vld [vmem:[#allocation3 + $0xec] sm:$0xf]
    %v175 = vld [vmem:[#allocation3 + $0xf0] sm:$0xf]
    %v176 = vld [vmem:[#allocation3 + $0xf4] sm:$0xf]
    %v177 = vld [vmem:[#allocation3 + $0xf8] sm:$0xf]
    %v178 = vld [vmem:[#allocation3 + $0xfc] sm:$0xf]
    %v179 = vld [vmem:[#allocation6] sm:$0xf]
    %v180 = vld [vmem:[#allocation6 + $0x4] sm:$0xf]
    %v181 = vld [vmem:[#allocation6 + $0x8] sm:$0xf]
    %v182 = vld [vmem:[#allocation6 + $0xc] sm:$0xf]
    %v183 = vld [vmem:[#allocation6 + $0x10] sm:$0xf]
    %v184 = vld [vmem:[#allocation6 + $0x14] sm:$0xf]
    %v185 = vld [vmem:[#allocation6 + $0x18] sm:$0xf]
    %v186 = vld [vmem:[#allocation6 + $0x1c] sm:$0xf]
    %v187 = vld [vmem:[#allocation6 + $0x20] sm:$0xf]
    %v188 = vld [vmem:[#allocation6 + $0x24] sm:$0xf]
    %v189 = vld [vmem:[#allocation6 + $0x28] sm:$0xf]
    %v190 = vld [vmem:[#allocation6 + $0x2c] sm:$0xf]
    %v191 = vld [vmem:[#allocation6 + $0x30] sm:$0xf]
    %v192 = vld [vmem:[#allocation6 + $0x34] sm:$0xf]
    %v193 = vld [vmem:[#allocation6 + $0x38] sm:$0xf]
    %v194 = vld [vmem:[#allocation6 + $0x3c] sm:$0xf]
    %v259 = vunpack.c.l.b16 %v115
    %v260 = vunpack.c.l.b16 %v116
    %v261 = vunpack.c.l.b16 %v117
    %v262 = vunpack.c.l.b16 %v118
    %v263 = vunpack.c.l.b16 %v119
    %v264 = vunpack.c.l.b16 %v120
    %v265 = vunpack.c.l.b16 %v121
    %v266 = vunpack.c.l.b16 %v122
    %v267 = vunpack.c.l.b16 %v123
    %v268 = vunpack.c.l.b16 %v124
    %v269 = vunpack.c.l.b16 %v125
    %v270 = vunpack.c.l.b16 %v126
    %v271 = vunpack.c.l.b16 %v127
    %v272 = vunpack.c.l.b16 %v128
    %v273 = vunpack.c.l.b16 %v129
    %v274 = vunpack.c.l.b16 %v130
    %v275 = vunpack.c.l.b16 %v131
    %v276 = vunpack.c.l.b16 %v132
    %v277 = vunpack.c.l.b16 %v133
    %v278 = vunpack.c.l.b16 %v134
    %v279 = vunpack.c.l.b16 %v135
    %v280 = vunpack.c.l.b16 %v136
    %v281 = vunpack.c.l.b16 %v137
    %v282 = vunpack.c.l.b16 %v138
    %v283 = vunpack.c.l.b16 %v139
    %v284 = vunpack.c.l.b16 %v140
    %v285 = vunpack.c.l.b16 %v141
    %v286 = vunpack.c.l.b16 %v142
    %v287 = vunpack.c.l.b16 %v143
    %v288 = vunpack.c.l.b16 %v144
    %v289 = vunpack.c.l.b16 %v145
    %v290 = vunpack.c.l.b16 %v146
    %v291 = vunpack.c.l.b16 %v147
    %v292 = vunpack.c.l.b16 %v148
    %v293 = vunpack.c.l.b16 %v149
    %v294 = vunpack.c.l.b16 %v150
    %v295 = vunpack.c.l.b16 %v151
    %v296 = vunpack.c.l.b16 %v152
    %v297 = vunpack.c.l.b16 %v153
    %v298 = vunpack.c.l.b16 %v154
    %v299 = vunpack.c.l.b16 %v155
    %v300 = vunpack.c.l.b16 %v156
    %v301 = vunpack.c.l.b16 %v157
    %v302 = vunpack.c.l.b16 %v158
    %v303 = vunpack.c.l.b16 %v159
    %v304 = vunpack.c.l.b16 %v160
    %v305 = vunpack.c.l.b16 %v161
    %v306 = vunpack.c.l.b16 %v162
    %v307 = vunpack.c.l.b16 %v163
    %v308 = vunpack.c.l.b16 %v164
    %v309 = vunpack.c.l.b16 %v165
    %v310 = vunpack.c.l.b16 %v166
    %v311 = vunpack.c.l.b16 %v167
    %v312 = vunpack.c.l.b16 %v168
    %v313 = vunpack.c.l.b16 %v169
    %v314 = vunpack.c.l.b16 %v170
    %v315 = vunpack.c.l.b16 %v171
    %v316 = vunpack.c.l.b16 %v172
    %v317 = vunpack.c.l.b16 %v173
    %v318 = vunpack.c.l.b16 %v174
    %v319 = vunpack.c.l.b16 %v175
    %v320 = vunpack.c.l.b16 %v176
    %v321 = vunpack.c.l.b16 %v177
    %v322 = vunpack.c.l.b16 %v178
    %v323 = vpack.c.b16 %v260, %v259
    %v324 = vpack.c.b16 %v262, %v261
    %v325 = vpack.c.b16 %v264, %v263
    %v326 = vpack.c.b16 %v266, %v265
    %v327 = vpack.c.b16 %v268, %v267
    %v328 = vpack.c.b16 %v270, %v269
    %v329 = vpack.c.b16 %v272, %v271
    %v330 = vpack.c.b16 %v274, %v273
    %v331 = vpack.c.b16 %v276, %v275
    %v332 = vpack.c.b16 %v278, %v277
    %v333 = vpack.c.b16 %v280, %v279
    %v334 = vpack.c.b16 %v282, %v281
    %v335 = vpack.c.b16 %v284, %v283
    %v336 = vpack.c.b16 %v286, %v285
    %v337 = vpack.c.b16 %v288, %v287
    %v338 = vpack.c.b16 %v290, %v289
    %v339 = vpack.c.b16 %v292, %v291
    %v340 = vpack.c.b16 %v294, %v293
    %v341 = vpack.c.b16 %v296, %v295
    %v342 = vpack.c.b16 %v298, %v297
    %v343 = vpack.c.b16 %v300, %v299
    %v344 = vpack.c.b16 %v302, %v301
    %v345 = vpack.c.b16 %v304, %v303
    %v346 = vpack.c.b16 %v306, %v305
    %v347 = vpack.c.b16 %v308, %v307
    %v348 = vpack.c.b16 %v310, %v309
    %v349 = vpack.c.b16 %v312, %v311
    %v350 = vpack.c.b16 %v314, %v313
    %v351 = vpack.c.b16 %v316, %v315
    %v352 = vpack.c.b16 %v318, %v317
    %v353 = vpack.c.b16 %v320, %v319
    %v354 = vpack.c.b16 %v322, %v321
    %v403 = vunpack.c.l.b16 %v179
    %v404 = vunpack.c.l.b16 %v180
    %v405 = vunpack.c.l.b16 %v181
    %v406 = vunpack.c.l.b16 %v182
    %v407 = vunpack.c.l.b16 %v183
    %v408 = vunpack.c.l.b16 %v184
    %v409 = vunpack.c.l.b16 %v185
    %v410 = vunpack.c.l.b16 %v186
    %v411 = vunpack.c.l.b16 %v187
    %v412 = vunpack.c.l.b16 %v188
    %v413 = vunpack.c.l.b16 %v189
    %v414 = vunpack.c.l.b16 %v190
    %v415 = vunpack.c.l.b16 %v191
    %v416 = vunpack.c.l.b16 %v192
    %v417 = vunpack.c.l.b16 %v193
    %v418 = vunpack.c.l.b16 %v194
    %v419 = vpack.c.b16 %v404, %v403
    %v420 = vpack.c.b16 %v406, %v405
    %v421 = vpack.c.b16 %v408, %v407
    %v422 = vpack.c.b16 %v410, %v409
    %v423 = vpack.c.b16 %v412, %v411
    %v424 = vpack.c.b16 %v414, %v413
    %v425 = vpack.c.b16 %v416, %v415
    %v426 = vpack.c.b16 %v418, %v417
    %435 = vmatprep.subr.bf16.mxu0 0
    %436 = vmatpush1.bf16.msra.mxu0 %v419
    %437 = vmatprep.subr.bf16.mxu0 0
    %438 = vmatpush1.bf16.msra.mxu0 %v420
    %439 = vmatprep.subr.bf16.mxu0 0
    %440 = vmatpush1.bf16.msra.mxu0 %v421
    %441 = vmatprep.subr.bf16.mxu0 0
    %442 = vmatpush1.bf16.msra.mxu0 %v422
    %443 = vmatprep.subr.bf16.mxu0 0
    %444 = vmatpush1.bf16.msra.mxu0 %v423
    %445 = vmatprep.subr.bf16.mxu0 0
    %446 = vmatpush1.bf16.msra.mxu0 %v424
    %447 = vmatprep.subr.bf16.mxu0 0
    %448 = vmatpush1.bf16.msra.mxu0 %v425
    %449 = vmatprep.subr.bf16.mxu0 0
    %450 = vmatpush1.bf16.msra.mxu0 %v426
    %451 = vmatprep.subr.bf16.mxu0 0
    %452 = vmatpush1.bf16.msra.mxu0 0
    %453 = vmatprep.subr.bf16.mxu0 0
    %454 = vmatpush1.bf16.msra.mxu0 0
    %455 = vmatprep.subr.bf16.mxu0 0
    %456 = vmatpush1.bf16.msra.mxu0 0
    %457 = vmatprep.subr.bf16.mxu0 0
    %458 = vmatpush1.bf16.msra.mxu0 0
    %459 = vmatprep.subr.bf16.mxu0 0
    %460 = vmatpush1.bf16.msra.mxu0 0
    %461 = vmatprep.subr.bf16.mxu0 0
    %462 = vmatpush1.bf16.msra.mxu0 0
    %463 = vmatprep.subr.bf16.mxu0 0
    %464 = vmatpush1.bf16.msra.mxu0 0
    %465 = vmatprep.subr.bf16.mxu0 0
    %466 = vmatpush1.bf16.msra.mxu0 0
    %467 = vmatprep.mubr.bf16.mxu0 0
    %468 = vmatmul.mubr.bf16.gmra.mrb[0].mxu0 %v323
    %v469 = vpop.f32.mrb[0].mxu0
    %v470 = vadd.f32 0.0, %v469
    %v471 = vpop.f32.mrb[0].mxu0
    %v472 = vpop.f32.mrb[0].mxu0
    %v473 = vadd.f32 0.0, %v472
    %v474 = vpop.f32.mrb[0].mxu0
    %475 = vmatprep.mubr.bf16.mxu0 0
    %476 = vmatmul.mubr.bf16.gmra.mrb[0].mxu0 %v324
    %v477 = vpop.f32.mrb[0].mxu0
    %v478 = vadd.f32 0.0, %v477
    %v479 = vpop.f32.mrb[0].mxu0
    %v480 = vpop.f32.mrb[0].mxu0
    %v481 = vadd.f32 0.0, %v480
    %v482 = vpop.f32.mrb[0].mxu0
    %483 = vmatprep.mubr.bf16.mxu0 0
    %484 = vmatmul.mubr.bf16.gmra.mrb[0].mxu0 %v325
    %v485 = vpop.f32.mrb[0].mxu0
    %v486 = vadd.f32 0.0, %v485
    %v487 = vpop.f32.mrb[0].mxu0
    %v488 = vpop.f32.mrb[0].mxu0
    %v489 = vadd.f32 0.0, %v488
    %v490 = vpop.f32.mrb[0].mxu0
    %491 = vmatprep.mubr.bf16.mxu0 0
    %492 = vmatmul.mubr.bf16.gmra.mrb[0].mxu0 %v326
    %v493 = vpop.f32.mrb[0].mxu0
    %v494 = vadd.f32 0.0, %v493
    %v495 = vpop.f32.mrb[0].mxu0
    %v496 = vpop.f32.mrb[0].mxu0
    %v497 = vadd.f32 0.0, %v496
    %v498 = vpop.f32.mrb[0].mxu0
    %499 = vmatprep.mubr.bf16.mxu0 0
    %500 = vmatmul.mubr.bf16.gmra.mrb[0].mxu0 %v327
    %v501 = vpop.f32.mrb[0].mxu0
    %v502 = vadd.f32 0.0, %v501
    %v503 = vpop.f32.mrb[0].mxu0
    %v504 = vpop.f32.mrb[0].mxu0
    %v505 = vadd.f32 0.0, %v504
    %v506 = vpop.f32.mrb[0].mxu0
    %507 = vmatprep.mubr.bf16.mxu0 0
    %508 = vmatmul.mubr.bf16.gmra.mrb[0].mxu0 %v328
    %v509 = vpop.f32.mrb[0].mxu0
    %v510 = vadd.f32 0.0, %v509
    %v511 = vpop.f32.mrb[0].mxu0
    %v512 = vpop.f32.mrb[0].mxu0
    %v513 = vadd.f32 0.0, %v512
    %v514 = vpop.f32.mrb[0].mxu0
    %515 = vmatprep.mubr.bf16.mxu0 0
    %516 = vmatmul.mubr.bf16.gmra.mrb[0].mxu0 %v329
    %v517 = vpop.f32.mrb[0].mxu0
    %v518 = vadd.f32 0.0, %v517
    %v519 = vpop.f32.mrb[0].mxu0
    %v520 = vpop.f32.mrb[0].mxu0
    %v521 = vadd.f32 0.0, %v520
    %v522 = vpop.f32.mrb[0].mxu0
    %523 = vmatprep.mubr.bf16.mxu0 0
    %524 = vmatmul.mubr.bf16.gmra.mrb[0].mxu0 %v330
    %v525 = vpop.f32.mrb[0].mxu0
    %v526 = vadd.f32 0.0, %v525
    %v527 = vpop.f32.mrb[0].mxu0
    %v528 = vpop.f32.mrb[0].mxu0
    %v529 = vadd.f32 0.0, %v528
    %v530 = vpop.f32.mrb[0].mxu0
    %531 = vmatprep.mubr.bf16.mxu0 0
    %532 = vmatmul.mubr.bf16.gmra.mrb[0].mxu0 %v331
    %v533 = vpop.f32.mrb[0].mxu0
    %v534 = vadd.f32 0.0, %v533
    %v535 = vpop.f32.mrb[0].mxu0
    %v536 = vpop.f32.mrb[0].mxu0
    %v537 = vadd.f32 0.0, %v536
    %v538 = vpop.f32.mrb[0].mxu0
    %539 = vmatprep.mubr.bf16.mxu0 0
    %540 = vmatmul.mubr.bf16.gmra.mrb[0].mxu0 %v332
    %v541 = vpop.f32.mrb[0].mxu0
    %v542 = vadd.f32 0.0, %v541
    %v543 = vpop.f32.mrb[0].mxu0
    %v544 = vpop.f32.mrb[0].mxu0
    %v545 = vadd.f32 0.0, %v544
    %v546 = vpop.f32.mrb[0].mxu0
    %547 = vmatprep.mubr.bf16.mxu0 0
    %548 = vmatmul.mubr.bf16.gmra.mrb[0].mxu0 %v333
    %v549 = vpop.f32.mrb[0].mxu0
    %v550 = vadd.f32 0.0, %v549
    %v551 = vpop.f32.mrb[0].mxu0
    %v552 = vpop.f32.mrb[0].mxu0
    %v553 = vadd.f32 0.0, %v552
    %v554 = vpop.f32.mrb[0].mxu0
    %555 = vmatprep.mubr.bf16.mxu0 0
    %556 = vmatmul.mubr.bf16.gmra.mrb[0].mxu0 %v334
    %v557 = vpop.f32.mrb[0].mxu0
    %v558 = vadd.f32 0.0, %v557
    %v559 = vpop.f32.mrb[0].mxu0
    %v560 = vpop.f32.mrb[0].mxu0
    %v561 = vadd.f32 0.0, %v560
    %v562 = vpop.f32.mrb[0].mxu0
    %563 = vmatprep.mubr.bf16.mxu0 0
    %564 = vmatmul.mubr.bf16.gmra.mrb[0].mxu0 %v335
    %v565 = vpop.f32.mrb[0].mxu0
    %v566 = vadd.f32 0.0, %v565
    %v567 = vpop.f32.mrb[0].mxu0
    %v568 = vpop.f32.mrb[0].mxu0
    %v569 = vadd.f32 0.0, %v568
    %v570 = vpop.f32.mrb[0].mxu0
    %571 = vmatprep.mubr.bf16.mxu0 0
    %572 = vmatmul.mubr.bf16.gmra.mrb[0].mxu0 %v336
    %v573 = vpop.f32.mrb[0].mxu0
    %v574 = vadd.f32 0.0, %v573
    %v575 = vpop.f32.mrb[0].mxu0
    %v576 = vpop.f32.mrb[0].mxu0
    %v577 = vadd.f32 0.0, %v576
    %v578 = vpop.f32.mrb[0].mxu0
    %579 = vmatprep.mubr.bf16.mxu0 0
    %580 = vmatmul.mubr.bf16.gmra.mrb[0].mxu0 %v337
    %v581 = vpop.f32.mrb[0].mxu0
    %v582 = vadd.f32 0.0, %v581
    %v583 = vpop.f32.mrb[0].mxu0
    %v584 = vpop.f32.mrb[0].mxu0
    %v585 = vadd.f32 0.0, %v584
    %v586 = vpop.f32.mrb[0].mxu0
    %587 = vmatprep.mubr.bf16.mxu0 0
    %588 = vmatmul.mubr.bf16.gmra.mrb[0].mxu0 %v338
    %v589 = vpop.f32.mrb[0].mxu0
    %v590 = vadd.f32 0.0, %v589
    %v591 = vpop.f32.mrb[0].mxu0
    %v592 = vpop.f32.mrb[0].mxu0
    %v593 = vadd.f32 0.0, %v592
    %v594 = vpop.f32.mrb[0].mxu0
    %595 = vmatprep.mubr.bf16.mxu0 0
    %596 = vmatmul.mubr.bf16.gmra.mrb[0].mxu0 %v339
    %v597 = vpop.f32.mrb[0].mxu0
    %v598 = vadd.f32 0.0, %v597
    %v599 = vpop.f32.mrb[0].mxu0
    %v600 = vpop.f32.mrb[0].mxu0
    %v601 = vadd.f32 0.0, %v600
    %v602 = vpop.f32.mrb[0].mxu0
    %603 = vmatprep.mubr.bf16.mxu0 0
    %604 = vmatmul.mubr.bf16.gmra.mrb[0].mxu0 %v340
    %v605 = vpop.f32.mrb[0].mxu0
    %v606 = vadd.f32 0.0, %v605
    %v607 = vpop.f32.mrb[0].mxu0
    %v608 = vpop.f32.mrb[0].mxu0
    %v609 = vadd.f32 0.0, %v608
    %v610 = vpop.f32.mrb[0].mxu0
    %611 = vmatprep.mubr.bf16.mxu0 0
    %612 = vmatmul.mubr.bf16.gmra.mrb[0].mxu0 %v341
    %v613 = vpop.f32.mrb[0].mxu0
    %v614 = vadd.f32 0.0, %v613
    %v615 = vpop.f32.mrb[0].mxu0
    %v616 = vpop.f32.mrb[0].mxu0
    %v617 = vadd.f32 0.0, %v616
    %v618 = vpop.f32.mrb[0].mxu0
    %619 = vmatprep.mubr.bf16.mxu0 0
    %620 = vmatmul.mubr.bf16.gmra.mrb[0].mxu0 %v342
    %v621 = vpop.f32.mrb[0].mxu0
    %v622 = vadd.f32 0.0, %v621
    %v623 = vpop.f32.mrb[0].mxu0
    %v624 = vpop.f32.mrb[0].mxu0
    %v625 = vadd.f32 0.0, %v624
    %v626 = vpop.f32.mrb[0].mxu0
    %627 = vmatprep.mubr.bf16.mxu0 0
    %628 = vmatmul.mubr.bf16.gmra.mrb[0].mxu0 %v343
    %v629 = vpop.f32.mrb[0].mxu0
    %v630 = vadd.f32 0.0, %v629
    %v631 = vpop.f32.mrb[0].mxu0
    %v632 = vpop.f32.mrb[0].mxu0
    %v633 = vadd.f32 0.0, %v632
    %v634 = vpop.f32.mrb[0].mxu0
    %635 = vmatprep.mubr.bf16.mxu0 0
    %636 = vmatmul.mubr.bf16.gmra.mrb[0].mxu0 %v344
    %v637 = vpop.f32.mrb[0].mxu0
    %v638 = vadd.f32 0.0, %v637
    %v639 = vpop.f32.mrb[0].mxu0
    %v640 = vpop.f32.mrb[0].mxu0
    %v641 = vadd.f32 0.0, %v640
    %v642 = vpop.f32.mrb[0].mxu0
    %643 = vmatprep.mubr.bf16.mxu0 0
    %644 = vmatmul.mubr.bf16.gmra.mrb[0].mxu0 %v345
    %v645 = vpop.f32.mrb[0].mxu0
    %v646 = vadd.f32 0.0, %v645
    %v647 = vpop.f32.mrb[0].mxu0
    %v648 = vpop.f32.mrb[0].mxu0
    %v649 = vadd.f32 0.0, %v648
    %v650 = vpop.f32.mrb[0].mxu0
    %651 = vmatprep.mubr.bf16.mxu0 0
    %652 = vmatmul.mubr.bf16.gmra.mrb[0].mxu0 %v346
    %v653 = vpop.f32.mrb[0].mxu0
    %v654 = vadd.f32 0.0, %v653
    %v655 = vpop.f32.mrb[0].mxu0
    %v656 = vpop.f32.mrb[0].mxu0
    %v657 = vadd.f32 0.0, %v656
    %v658 = vpop.f32.mrb[0].mxu0
    %659 = vmatprep.mubr.bf16.mxu0 0
    %660 = vmatmul.mubr.bf16.gmra.mrb[0].mxu0 %v347
    %v661 = vpop.f32.mrb[0].mxu0
    %v662 = vadd.f32 0.0, %v661
    %v663 = vpop.f32.mrb[0].mxu0
    %v664 = vpop.f32.mrb[0].mxu0
    %v665 = vadd.f32 0.0, %v664
    %v666 = vpop.f32.mrb[0].mxu0
    %667 = vmatprep.mubr.bf16.mxu0 0
    %668 = vmatmul.mubr.bf16.gmra.mrb[0].mxu0 %v348
    %v669 = vpop.f32.mrb[0].mxu0
    %v670 = vadd.f32 0.0, %v669
    %v671 = vpop.f32.mrb[0].mxu0
    %v672 = vpop.f32.mrb[0].mxu0
    %v673 = vadd.f32 0.0, %v672
    %v674 = vpop.f32.mrb[0].mxu0
    %675 = vmatprep.mubr.bf16.mxu0 0
    %676 = vmatmul.mubr.bf16.gmra.mrb[0].mxu0 %v349
    %v677 = vpop.f32.mrb[0].mxu0
    %v678 = vadd.f32 0.0, %v677
    %v679 = vpop.f32.mrb[0].mxu0
    %v680 = vpop.f32.mrb[0].mxu0
    %v681 = vadd.f32 0.0, %v680
    %v682 = vpop.f32.mrb[0].mxu0
    %683 = vmatprep.mubr.bf16.mxu0 0
    %684 = vmatmul.mubr.bf16.gmra.mrb[0].mxu0 %v350
    %v685 = vpop.f32.mrb[0].mxu0
    %v686 = vadd.f32 0.0, %v685
    %v687 = vpop.f32.mrb[0].mxu0
    %v688 = vpop.f32.mrb[0].mxu0
    %v689 = vadd.f32 0.0, %v688
    %v690 = vpop.f32.mrb[0].mxu0
    %691 = vmatprep.mubr.bf16.mxu0 0
    %692 = vmatmul.mubr.bf16.gmra.mrb[0].mxu0 %v351
    %v693 = vpop.f32.mrb[0].mxu0
    %v694 = vadd.f32 0.0, %v693
    %v695 = vpop.f32.mrb[0].mxu0
    %v696 = vpop.f32.mrb[0].mxu0
    %v697 = vadd.f32 0.0, %v696
    %v698 = vpop.f32.mrb[0].mxu0
    %699 = vmatprep.mubr.bf16.mxu0 0
    %700 = vmatmul.mubr.bf16.gmra.mrb[0].mxu0 %v352
    %v701 = vpop.f32.mrb[0].mxu0
    %v702 = vadd.f32 0.0, %v701
    %v703 = vpop.f32.mrb[0].mxu0
    %v704 = vpop.f32.mrb[0].mxu0
    %v705 = vadd.f32 0.0, %v704
    %v706 = vpop.f32.mrb[0].mxu0
    %707 = vmatprep.mubr.bf16.mxu0 0
    %708 = vmatmul.mubr.bf16.gmra.mrb[0].mxu0 %v353
    %v709 = vpop.f32.mrb[0].mxu0
    %v710 = vadd.f32 0.0, %v709
    %v711 = vpop.f32.mrb[0].mxu0
    %v712 = vpop.f32.mrb[0].mxu0
    %v713 = vadd.f32 0.0, %v712
    %v714 = vpop.f32.mrb[0].mxu0
    %715 = vmatprep.mubr.bf16.mxu0 0
    %716 = vmatmul.mubr.bf16.gmra.mrb[0].mxu0 %v354
    %v717 = vpop.f32.mrb[0].mxu0
    %v718 = vadd.f32 0.0, %v717
    %v719 = vpop.f32.mrb[0].mxu0
    %v720 = vpop.f32.mrb[0].mxu0
    %v721 = vadd.f32 0.0, %v720
    %v722 = vpop.f32.mrb[0].mxu0
    %723 = vdwg.mxu0
    %v724 = vld [vmem:[#allocation8] sm:$0x1]
    %v725 = vld [vmem:[#allocation9] sm:$0x1]
    %vm726 = vcmask 64512
    %v727 = vsel %vm726, %v470, 0.0
    %v728 = vsel %vm726, %v473, 0.0
    %v729 = vadd.f32 %v727, %v728
    %v730 = vsel %vm726, %v478, 0.0
    %v731 = vadd.f32 %v729, %v730
    %v732 = vsel %vm726, %v481, 0.0
    %v733 = vadd.f32 %v731, %v732
    %v734 = vsel %vm726, %v486, 0.0
    %v735 = vadd.f32 %v733, %v734
    %v736 = vsel %vm726, %v489, 0.0
    %v737 = vadd.f32 %v735, %v736
    %v738 = vsel %vm726, %v494, 0.0
    %v739 = vadd.f32 %v737, %v738
    %v740 = vsel %vm726, %v497, 0.0
    %v741 = vadd.f32 %v739, %v740
    %v742 = vsel %vm726, %v502, 0.0
    %v743 = vadd.f32 %v741, %v742
    %v744 = vsel %vm726, %v505, 0.0
    %v745 = vadd.f32 %v743, %v744
    %v746 = vsel %vm726, %v510, 0.0
    %v747 = vadd.f32 %v745, %v746
    %v748 = vsel %vm726, %v513, 0.0
    %v749 = vadd.f32 %v747, %v748
    %v750 = vsel %vm726, %v518, 0.0
    %v751 = vadd.f32 %v749, %v750
    %v752 = vsel %vm726, %v521, 0.0
    %v753 = vadd.f32 %v751, %v752
    %v754 = vsel %vm726, %v526, 0.0
    %v755 = vadd.f32 %v753, %v754
    %v756 = vsel %vm726, %v529, 0.0
    %v757 = vadd.f32 %v755, %v756
    %v758 = vsel %vm726, %v534, 0.0
    %v759 = vadd.f32 %v757, %v758
    %v760 = vsel %vm726, %v537, 0.0
    %v761 = vadd.f32 %v759, %v760
    %v762 = vsel %vm726, %v542, 0.0
    %v763 = vadd.f32 %v761, %v762
    %v764 = vsel %vm726, %v545, 0.0
    %v765 = vadd.f32 %v763, %v764
    %v766 = vsel %vm726, %v550, 0.0
    %v767 = vadd.f32 %v765, %v766
    %v768 = vsel %vm726, %v553, 0.0
    %v769 = vadd.f32 %v767, %v768
    %v770 = vsel %vm726, %v558, 0.0
    %v771 = vadd.f32 %v769, %v770
    %v772 = vsel %vm726, %v561, 0.0
    %v773 = vadd.f32 %v771, %v772
    %v774 = vsel %vm726, %v566, 0.0
    %v775 = vadd.f32 %v773, %v774
    %v776 = vsel %vm726, %v569, 0.0
    %v777 = vadd.f32 %v775, %v776
    %v778 = vsel %vm726, %v574, 0.0
    %v779 = vadd.f32 %v777, %v778
    %v780 = vsel %vm726, %v577, 0.0
    %v781 = vadd.f32 %v779, %v780
    %v782 = vsel %vm726, %v582, 0.0
    %v783 = vadd.f32 %v781, %v782
    %v784 = vsel %vm726, %v585, 0.0
    %v785 = vadd.f32 %v783, %v784
    %v786 = vsel %vm726, %v590, 0.0
    %v787 = vadd.f32 %v785, %v786
    %v788 = vsel %vm726, %v593, 0.0
    %v789 = vadd.f32 %v787, %v788
    %v790 = vsel %vm726, %v598, 0.0
    %v791 = vadd.f32 %v789, %v790
    %v792 = vsel %vm726, %v601, 0.0
    %v793 = vadd.f32 %v791, %v792
    %v794 = vsel %vm726, %v606, 0.0
    %v795 = vadd.f32 %v793, %v794
    %v796 = vsel %vm726, %v609, 0.0
    %v797 = vadd.f32 %v795, %v796
    %v798 = vsel %vm726, %v614, 0.0
    %v799 = vadd.f32 %v797, %v798
    %v800 = vsel %vm726, %v617, 0.0
    %v801 = vadd.f32 %v799, %v800
    %v802 = vsel %vm726, %v622, 0.0
    %v803 = vadd.f32 %v801, %v802
    %v804 = vsel %vm726, %v625, 0.0
    %v805 = vadd.f32 %v803, %v804
    %v806 = vsel %vm726, %v630, 0.0
    %v807 = vadd.f32 %v805, %v806
    %v808 = vsel %vm726, %v633, 0.0
    %v809 = vadd.f32 %v807, %v808
    %v810 = vsel %vm726, %v638, 0.0
    %v811 = vadd.f32 %v809, %v810
    %v812 = vsel %vm726, %v641, 0.0
    %v813 = vadd.f32 %v811, %v812
    %v814 = vsel %vm726, %v646, 0.0
    %v815 = vadd.f32 %v813, %v814
    %v816 = vsel %vm726, %v649, 0.0
    %v817 = vadd.f32 %v815, %v816
    %v818 = vsel %vm726, %v654, 0.0
    %v819 = vadd.f32 %v817, %v818
    %v820 = vsel %vm726, %v657, 0.0
    %v821 = vadd.f32 %v819, %v820
    %v822 = vsel %vm726, %v662, 0.0
    %v823 = vadd.f32 %v821, %v822
    %v824 = vsel %vm726, %v665, 0.0
    %v825 = vadd.f32 %v823, %v824
    %v826 = vsel %vm726, %v670, 0.0
    %v827 = vadd.f32 %v825, %v826
    %v828 = vsel %vm726, %v673, 0.0
    %v829 = vadd.f32 %v827, %v828
    %v830 = vsel %vm726, %v678, 0.0
    %v831 = vadd.f32 %v829, %v830
    %v832 = vsel %vm726, %v681, 0.0
    %v833 = vadd.f32 %v831, %v832
    %v834 = vsel %vm726, %v686, 0.0
    %v835 = vadd.f32 %v833, %v834
    %v836 = vsel %vm726, %v689, 0.0
    %v837 = vadd.f32 %v835, %v836
    %v838 = vsel %vm726, %v694, 0.0
    %v839 = vadd.f32 %v837, %v838
    %v840 = vsel %vm726, %v697, 0.0
    %v841 = vadd.f32 %v839, %v840
    %v842 = vsel %vm726, %v702, 0.0
    %v843 = vadd.f32 %v841, %v842
    %v844 = vsel %vm726, %v705, 0.0
    %v845 = vadd.f32 %v843, %v844
    %v846 = vsel %vm726, %v710, 0.0
    %v847 = vadd.f32 %v845, %v846
    %v848 = vsel %vm726, %v713, 0.0
    %v849 = vadd.f32 %v847, %v848
    %v850 = vsel %vm726, %v718, 0.0
    %v851 = vadd.f32 %v849, %v850
    %v852 = vsel %vm726, %v721, 0.0
    %v853 = vadd.f32 %v851, %v852
    %v854 = vrot.slane %v853, 4
    %v855 = vadd.f32 %v853, %v854
    %v856 = vrot.slane %v855, 2
    %v857 = vadd.f32 %v855, %v856
    %v858 = vrot.slane %v857, 1
    %v859 = vadd.f32 %v857, %v858
    %v860 = vmul.f32 %v470, %v470
    %v861 = vmul.f32 %v473, %v473
    %v862 = vmul.f32 %v478, %v478
    %v863 = vmul.f32 %v481, %v481
    %v864 = vmul.f32 %v486, %v486
    %v865 = vmul.f32 %v489, %v489
    %v866 = vmul.f32 %v494, %v494
    %v867 = vmul.f32 %v497, %v497
    %v868 = vmul.f32 %v502, %v502
    %v869 = vmul.f32 %v505, %v505
    %v870 = vmul.f32 %v510, %v510
    %v871 = vmul.f32 %v513, %v513
    %v872 = vmul.f32 %v518, %v518
    %v873 = vmul.f32 %v521, %v521
    %v874 = vmul.f32 %v526, %v526
    %v875 = vmul.f32 %v529, %v529
    %v876 = vmul.f32 %v534, %v534
    %v877 = vmul.f32 %v537, %v537
    %v878 = vmul.f32 %v542, %v542
    %v879 = vmul.f32 %v545, %v545
    %v880 = vmul.f32 %v550, %v550
    %v881 = vmul.f32 %v553, %v553
    %v882 = vmul.f32 %v558, %v558
    %v883 = vmul.f32 %v561, %v561
    %v884 = vmul.f32 %v566, %v566
    %v885 = vmul.f32 %v569, %v569
    %v886 = vmul.f32 %v574, %v574
    %v887 = vmul.f32 %v577, %v577
    %v888 = vmul.f32 %v582, %v582
    %v889 = vmul.f32 %v585, %v585
    %v890 = vmul.f32 %v590, %v590
    %v891 = vmul.f32 %v593, %v593
    %v892 = vmul.f32 %v598, %v598
    %v893 = vmul.f32 %v601, %v601
    %v894 = vmul.f32 %v606, %v606
    %v895 = vmul.f32 %v609, %v609
    %v896 = vmul.f32 %v614, %v614
    %v897 = vmul.f32 %v617, %v617
    %v898 = vmul.f32 %v622, %v622
    %v899 = vmul.f32 %v625, %v625
    %v900 = vmul.f32 %v630, %v630
    %v901 = vmul.f32 %v633, %v633
    %v902 = vmul.f32 %v638, %v638
    %v903 = vmul.f32 %v641, %v641
    %v904 = vmul.f32 %v646, %v646
    %v905 = vmul.f32 %v649, %v649
    %v906 = vmul.f32 %v654, %v654
    %v907 = vmul.f32 %v657, %v657
    %v908 = vmul.f32 %v662, %v662
    %v909 = vmul.f32 %v665, %v665
    %v910 = vmul.f32 %v670, %v670
    %v911 = vmul.f32 %v673, %v673
    %v912 = vmul.f32 %v678, %v678
    %v913 = vmul.f32 %v681, %v681
    %v914 = vmul.f32 %v686, %v686
    %v915 = vmul.f32 %v689, %v689
    %v916 = vmul.f32 %v694, %v694
    %v917 = vmul.f32 %v697, %v697
    %v918 = vmul.f32 %v702, %v702
    %v919 = vmul.f32 %v705, %v705
    %v920 = vmul.f32 %v710, %v710
    %v921 = vmul.f32 %v713, %v713
    %v922 = vmul.f32 %v718, %v718
    %v923 = vmul.f32 %v721, %v721
    %v924 = vsel %vm726, %v860, 0.0
    %v925 = vsel %vm726, %v861, 0.0
    %v926 = vadd.f32 %v924, %v925
    %v927 = vsel %vm726, %v862, 0.0
    %v928 = vadd.f32 %v926, %v927
    %v929 = vsel %vm726, %v863, 0.0
    %v930 = vadd.f32 %v928, %v929
    %v931 = vsel %vm726, %v864, 0.0
    %v932 = vadd.f32 %v930, %v931
    %v933 = vsel %vm726, %v865, 0.0
    %v934 = vadd.f32 %v932, %v933
    %v935 = vsel %vm726, %v866, 0.0
    %v936 = vadd.f32 %v934, %v935
    %v937 = vsel %vm726, %v867, 0.0
    %v938 = vadd.f32 %v936, %v937
    %v939 = vsel %vm726, %v868, 0.0
    %v940 = vadd.f32 %v938, %v939
    %v941 = vsel %vm726, %v869, 0.0
    %v942 = vadd.f32 %v940, %v941
    %v943 = vsel %vm726, %v870, 0.0
    %v944 = vadd.f32 %v942, %v943
    %v945 = vsel %vm726, %v871, 0.0
    %v946 = vadd.f32 %v944, %v945
    %v947 = vsel %vm726, %v872, 0.0
    %v948 = vadd.f32 %v946, %v947
    %v949 = vsel %vm726, %v873, 0.0
    %v950 = vadd.f32 %v948, %v949
    %v951 = vsel %vm726, %v874, 0.0
    %v952 = vadd.f32 %v950, %v951
    %v953 = vsel %vm726, %v875, 0.0
    %v954 = vadd.f32 %v952, %v953
    %v955 = vsel %vm726, %v876, 0.0
    %v956 = vadd.f32 %v954, %v955
    %v957 = vsel %vm726, %v877, 0.0
    %v958 = vadd.f32 %v956, %v957
    %v959 = vsel %vm726, %v878, 0.0
    %v960 = vadd.f32 %v958, %v959
    %v961 = vsel %vm726, %v879, 0.0
    %v962 = vadd.f32 %v960, %v961
    %v963 = vsel %vm726, %v880, 0.0
    %v964 = vadd.f32 %v962, %v963
    %v965 = vsel %vm726, %v881, 0.0
    %v966 = vadd.f32 %v964, %v965
    %v967 = vsel %vm726, %v882, 0.0
    %v968 = vadd.f32 %v966, %v967
    %v969 = vsel %vm726, %v883, 0.0
    %v970 = vadd.f32 %v968, %v969
    %v971 = vsel %vm726, %v884, 0.0
    %v972 = vadd.f32 %v970, %v971
    %v973 = vsel %vm726, %v885, 0.0
    %v974 = vadd.f32 %v972, %v973
    %v975 = vsel %vm726, %v886, 0.0
    %v976 = vadd.f32 %v974, %v975
    %v977 = vsel %vm726, %v887, 0.0
    %v978 = vadd.f32 %v976, %v977
    %v979 = vsel %vm726, %v888, 0.0
    %v980 = vadd.f32 %v978, %v979
    %v981 = vsel %vm726, %v889, 0.0
    %v982 = vadd.f32 %v980, %v981
    %v983 = vsel %vm726, %v890, 0.0
    %v984 = vadd.f32 %v982, %v983
    %v985 = vsel %vm726, %v891, 0.0
    %v986 = vadd.f32 %v984, %v985
    %v987 = vsel %vm726, %v892, 0.0
    %v988 = vadd.f32 %v986, %v987
    %v989 = vsel %vm726, %v893, 0.0
    %v990 = vadd.f32 %v988, %v989
    %v991 = vsel %vm726, %v894, 0.0
    %v992 = vadd.f32 %v990, %v991
    %v993 = vsel %vm726, %v895, 0.0
    %v994 = vadd.f32 %v992, %v993
    %v995 = vsel %vm726, %v896, 0.0
    %v996 = vadd.f32 %v994, %v995
    %v997 = vsel %vm726, %v897, 0.0
    %v998 = vadd.f32 %v996, %v997
    %v999 = vsel %vm726, %v898, 0.0
    %v1000 = vadd.f32 %v998, %v999
    %v1001 = vsel %vm726, %v899, 0.0
    %v1002 = vadd.f32 %v1000, %v1001
    %v1003 = vsel %vm726, %v900, 0.0
    %v1004 = vadd.f32 %v1002, %v1003
    %v1005 = vsel %vm726, %v901, 0.0
    %v1006 = vadd.f32 %v1004, %v1005
    %v1007 = vsel %vm726, %v902, 0.0
    %v1008 = vadd.f32 %v1006, %v1007
    %v1009 = vsel %vm726, %v903, 0.0
    %v1010 = vadd.f32 %v1008, %v1009
    %v1011 = vsel %vm726, %v904, 0.0
    %v1012 = vadd.f32 %v1010, %v1011
    %v1013 = vsel %vm726, %v905, 0.0
    %v1014 = vadd.f32 %v1012, %v1013
    %v1015 = vsel %vm726, %v906, 0.0
    %v1016 = vadd.f32 %v1014, %v1015
    %v1017 = vsel %vm726, %v907, 0.0
    %v1018 = vadd.f32 %v1016, %v1017
    %v1019 = vsel %vm726, %v908, 0.0
    %v1020 = vadd.f32 %v1018, %v1019
    %v1021 = vsel %vm726, %v909, 0.0
    %v1022 = vadd.f32 %v1020, %v1021
    %v1023 = vsel %vm726, %v910, 0.0
    %v1024 = vadd.f32 %v1022, %v1023
    %v1025 = vsel %vm726, %v911, 0.0
    %v1026 = vadd.f32 %v1024, %v1025
    %v1027 = vsel %vm726, %v912, 0.0
    %v1028 = vadd.f32 %v1026, %v1027
    %v1029 = vsel %vm726, %v913, 0.0
    %v1030 = vadd.f32 %v1028, %v1029
    %v1031 = vsel %vm726, %v914, 0.0
    %v1032 = vadd.f32 %v1030, %v1031
    %v1033 = vsel %vm726, %v915, 0.0
    %v1034 = vadd.f32 %v1032, %v1033
    %v1035 = vsel %vm726, %v916, 0.0
    %v1036 = vadd.f32 %v1034, %v1035
    %v1037 = vsel %vm726, %v917, 0.0
    %v1038 = vadd.f32 %v1036, %v1037
    %v1039 = vsel %vm726, %v918, 0.0
    %v1040 = vadd.f32 %v1038, %v1039
    %v1041 = vsel %vm726, %v919, 0.0
    %v1042 = vadd.f32 %v1040, %v1041
    %v1043 = vsel %vm726, %v920, 0.0
    %v1044 = vadd.f32 %v1042, %v1043
    %v1045 = vsel %vm726, %v921, 0.0
    %v1046 = vadd.f32 %v1044, %v1045
    %v1047 = vsel %vm726, %v922, 0.0
    %v1048 = vadd.f32 %v1046, %v1047
    %v1049 = vsel %vm726, %v923, 0.0
    %v1050 = vadd.f32 %v1048, %v1049
    %v1051 = vrot.slane %v1050, 4
    %v1052 = vadd.f32 %v1050, %v1051
    %v1053 = vrot.slane %v1052, 2
    %v1054 = vadd.f32 %v1052, %v1053
    %v1055 = vrot.slane %v1054, 1
    %v1056 = vadd.f32 %v1054, %v1055
    %v1057 = vmul.f32 %v859, 0.001953125
    %v1058 = vmul.f32 %v1056, 0.001953125
    %v1059 = vmul.f32 %v1057, %v1057
    %v1060 = vsub.f32 %v1058, %v1059
    %v1061 = vmax.f32 %v1060, 0.0
    %v1062 = vadd.f32 %v1061, 1e-05
    %v1063 = vrsqrt.pop %v1062
    %v1064 = vmul.f32 %v1063, %v724
    %v1065 = vmul.f32 %v1057, %v1064
    %v1066 = vsub.f32 %v725, %v1065
    %v1067 = vlaneseq
    %v1068 = vshrl.u32 %v1067, 7
    %v1069 = vsub.s32 0, %v1068
    %v1070 = vrot.slane %v1064, %v1069
    %v1071 = vmul.f32 %v470, %v1070
    %v1072 = vmul.f32 %v473, %v1070
    %v1073 = vmul.f32 %v478, %v1070
    %v1074 = vmul.f32 %v481, %v1070
    %v1075 = vmul.f32 %v486, %v1070
    %v1076 = vmul.f32 %v489, %v1070
    %v1077 = vmul.f32 %v494, %v1070
    %v1078 = vmul.f32 %v497, %v1070
    %v1079 = vmul.f32 %v502, %v1070
    %v1080 = vmul.f32 %v505, %v1070
    %v1081 = vmul.f32 %v510, %v1070
    %v1082 = vmul.f32 %v513, %v1070
    %v1083 = vmul.f32 %v518, %v1070
    %v1084 = vmul.f32 %v521, %v1070
    %v1085 = vmul.f32 %v526, %v1070
    %v1086 = vmul.f32 %v529, %v1070
    %v1087 = vmul.f32 %v534, %v1070
    %v1088 = vmul.f32 %v537, %v1070
    %v1089 = vmul.f32 %v542, %v1070
    %v1090 = vmul.f32 %v545, %v1070
    %v1091 = vmul.f32 %v550, %v1070
    %v1092 = vmul.f32 %v553, %v1070
    %v1093 = vmul.f32 %v558, %v1070
    %v1094 = vmul.f32 %v561, %v1070
    %v1095 = vmul.f32 %v566, %v1070
    %v1096 = vmul.f32 %v569, %v1070
    %v1097 = vmul.f32 %v574, %v1070
    %v1098 = vmul.f32 %v577, %v1070
    %v1099 = vmul.f32 %v582, %v1070
    %v1100 = vmul.f32 %v585, %v1070
    %v1101 = vmul.f32 %v590, %v1070
    %v1102 = vmul.f32 %v593, %v1070
    %v1103 = vmul.f32 %v598, %v1070
    %v1104 = vmul.f32 %v601, %v1070
    %v1105 = vmul.f32 %v606, %v1070
    %v1106 = vmul.f32 %v609, %v1070
    %v1107 = vmul.f32 %v614, %v1070
    %v1108 = vmul.f32 %v617, %v1070
    %v1109 = vmul.f32 %v622, %v1070
    %v1110 = vmul.f32 %v625, %v1070
    %v1111 = vmul.f32 %v630, %v1070
    %v1112 = vmul.f32 %v633, %v1070
    %v1113 = vmul.f32 %v638, %v1070
    %v1114 = vmul.f32 %v641, %v1070
    %v1115 = vmul.f32 %v646, %v1070
    %v1116 = vmul.f32 %v649, %v1070
    %v1117 = vmul.f32 %v654, %v1070
    %v1118 = vmul.f32 %v657, %v1070
    %v1119 = vmul.f32 %v662, %v1070
    %v1120 = vmul.f32 %v665, %v1070
    %v1121 = vmul.f32 %v670, %v1070
    %v1122 = vmul.f32 %v673, %v1070
    %v1123 = vmul.f32 %v678, %v1070
    %v1124 = vmul.f32 %v681, %v1070
    %v1125 = vmul.f32 %v686, %v1070
    %v1126 = vmul.f32 %v689, %v1070
    %v1127 = vmul.f32 %v694, %v1070
    %v1128 = vmul.f32 %v697, %v1070
    %v1129 = vmul.f32 %v702, %v1070
    %v1130 = vmul.f32 %v705, %v1070
    %v1131 = vmul.f32 %v710, %v1070
    %v1132 = vmul.f32 %v713, %v1070
    %v1133 = vmul.f32 %v718, %v1070
    %v1134 = vmul.f32 %v721, %v1070
    %v1136 = vlaneseq
    %v1137 = vshrl.u32 %v1136, 7
    %v1138 = vsub.s32 0, %v1137
    %v1139 = vrot.slane %v1066, %v1138
    %v1141 = vadd.f32 %v1071, %v1139
    %v1142 = vadd.f32 %v1072, %v1139
    %v1143 = vadd.f32 %v1073, %v1139
    %v1144 = vadd.f32 %v1074, %v1139
    %v1145 = vadd.f32 %v1075, %v1139
    %v1146 = vadd.f32 %v1076, %v1139
    %v1147 = vadd.f32 %v1077, %v1139
    %v1148 = vadd.f32 %v1078, %v1139
    %v1149 = vadd.f32 %v1079, %v1139
    %v1150 = vadd.f32 %v1080, %v1139
    %v1151 = vadd.f32 %v1081, %v1139
    %v1152 = vadd.f32 %v1082, %v1139
    %v1153 = vadd.f32 %v1083, %v1139
    %v1154 = vadd.f32 %v1084, %v1139
    %v1155 = vadd.f32 %v1085, %v1139
    %v1156 = vadd.f32 %v1086, %v1139
    %v1157 = vadd.f32 %v1087, %v1139
    %v1158 = vadd.f32 %v1088, %v1139
    %v1159 = vadd.f32 %v1089, %v1139
    %v1160 = vadd.f32 %v1090, %v1139
    %v1161 = vadd.f32 %v1091, %v1139
    %v1162 = vadd.f32 %v1092, %v1139
    %v1163 = vadd.f32 %v1093, %v1139
    %v1164 = vadd.f32 %v1094, %v1139
    %v1165 = vadd.f32 %v1095, %v1139
    %v1166 = vadd.f32 %v1096, %v1139
    %v1167 = vadd.f32 %v1097, %v1139
    %v1168 = vadd.f32 %v1098, %v1139
    %v1169 = vadd.f32 %v1099, %v1139
    %v1170 = vadd.f32 %v1100, %v1139
    %v1171 = vadd.f32 %v1101, %v1139
    %v1172 = vadd.f32 %v1102, %v1139
    %v1173 = vadd.f32 %v1103, %v1139
    %v1174 = vadd.f32 %v1104, %v1139
    %v1175 = vadd.f32 %v1105, %v1139
    %v1176 = vadd.f32 %v1106, %v1139
    %v1177 = vadd.f32 %v1107, %v1139
    %v1178 = vadd.f32 %v1108, %v1139
    %v1179 = vadd.f32 %v1109, %v1139
    %v1180 = vadd.f32 %v1110, %v1139
    %v1181 = vadd.f32 %v1111, %v1139
    %v1182 = vadd.f32 %v1112, %v1139
    %v1183 = vadd.f32 %v1113, %v1139
    %v1184 = vadd.f32 %v1114, %v1139
    %v1185 = vadd.f32 %v1115, %v1139
    %v1186 = vadd.f32 %v1116, %v1139
    %v1187 = vadd.f32 %v1117, %v1139
    %v1188 = vadd.f32 %v1118, %v1139
    %v1189 = vadd.f32 %v1119, %v1139
    %v1190 = vadd.f32 %v1120, %v1139
    %v1191 = vadd.f32 %v1121, %v1139
    %v1192 = vadd.f32 %v1122, %v1139
    %v1193 = vadd.f32 %v1123, %v1139
    %v1194 = vadd.f32 %v1124, %v1139
    %v1195 = vadd.f32 %v1125, %v1139
    %v1196 = vadd.f32 %v1126, %v1139
    %v1197 = vadd.f32 %v1127, %v1139
    %v1198 = vadd.f32 %v1128, %v1139
    %v1199 = vadd.f32 %v1129, %v1139
    %v1200 = vadd.f32 %v1130, %v1139
    %v1201 = vadd.f32 %v1131, %v1139
    %v1202 = vadd.f32 %v1132, %v1139
    %v1203 = vadd.f32 %v1133, %v1139
    %v1204 = vadd.f32 %v1134, %v1139
    %v1205 = vmax.f32 %v1141, 0.0
    %v1206 = vmax.f32 %v1142, 0.0
    %v1207 = vmax.f32 %v1143, 0.0
    %v1208 = vmax.f32 %v1144, 0.0
    %v1209 = vmax.f32 %v1145, 0.0
    %v1210 = vmax.f32 %v1146, 0.0
    %v1211 = vmax.f32 %v1147, 0.0
    %v1212 = vmax.f32 %v1148, 0.0
    %v1213 = vmax.f32 %v1149, 0.0
    %v1214 = vmax.f32 %v1150, 0.0
    %v1215 = vmax.f32 %v1151, 0.0
    %v1216 = vmax.f32 %v1152, 0.0
    %v1217 = vmax.f32 %v1153, 0.0
    %v1218 = vmax.f32 %v1154, 0.0
    %v1219 = vmax.f32 %v1155, 0.0
    %v1220 = vmax.f32 %v1156, 0.0
    %v1221 = vmax.f32 %v1157, 0.0
    %v1222 = vmax.f32 %v1158, 0.0
    %v1223 = vmax.f32 %v1159, 0.0
    %v1224 = vmax.f32 %v1160, 0.0
    %v1225 = vmax.f32 %v1161, 0.0
    %v1226 = vmax.f32 %v1162, 0.0
    %v1227 = vmax.f32 %v1163, 0.0
    %v1228 = vmax.f32 %v1164, 0.0
    %v1229 = vmax.f32 %v1165, 0.0
    %v1230 = vmax.f32 %v1166, 0.0
    %v1231 = vmax.f32 %v1167, 0.0
    %v1232 = vmax.f32 %v1168, 0.0
    %v1233 = vmax.f32 %v1169, 0.0
    %v1234 = vmax.f32 %v1170, 0.0
    %v1235 = vmax.f32 %v1171, 0.0
    %v1236 = vmax.f32 %v1172, 0.0
    %v1237 = vmax.f32 %v1173, 0.0
    %v1238 = vmax.f32 %v1174, 0.0
    %v1239 = vmax.f32 %v1175, 0.0
    %v1240 = vmax.f32 %v1176, 0.0
    %v1241 = vmax.f32 %v1177, 0.0
    %v1242 = vmax.f32 %v1178, 0.0
    %v1243 = vmax.f32 %v1179, 0.0
    %v1244 = vmax.f32 %v1180, 0.0
    %v1245 = vmax.f32 %v1181, 0.0
    %v1246 = vmax.f32 %v1182, 0.0
    %v1247 = vmax.f32 %v1183, 0.0
    %v1248 = vmax.f32 %v1184, 0.0
    %v1249 = vmax.f32 %v1185, 0.0
    %v1250 = vmax.f32 %v1186, 0.0
    %v1251 = vmax.f32 %v1187, 0.0
    %v1252 = vmax.f32 %v1188, 0.0
    %v1253 = vmax.f32 %v1189, 0.0
    %v1254 = vmax.f32 %v1190, 0.0
    %v1255 = vmax.f32 %v1191, 0.0
    %v1256 = vmax.f32 %v1192, 0.0
    %v1257 = vmax.f32 %v1193, 0.0
    %v1258 = vmax.f32 %v1194, 0.0
    %v1259 = vmax.f32 %v1195, 0.0
    %v1260 = vmax.f32 %v1196, 0.0
    %v1261 = vmax.f32 %v1197, 0.0
    %v1262 = vmax.f32 %v1198, 0.0
    %v1263 = vmax.f32 %v1199, 0.0
    %v1264 = vmax.f32 %v1200, 0.0
    %v1265 = vmax.f32 %v1201, 0.0
    %v1266 = vmax.f32 %v1202, 0.0
    %v1267 = vmax.f32 %v1203, 0.0
    %v1268 = vmax.f32 %v1204, 0.0
    %vm1269 = vcmask 60416
    %1270 = vst.msk [vmem:[#allocation2] sm:$0xf] %vm1269, 0
    %1271 = vst.msk [vmem:[#allocation2 + $0x4] sm:$0xf] %vm1269, 0
    %vm1272 = vcmask 57344
    %1273 = vst.msk [vmem:[#allocation2 + $0x8] sm:$0x1] %vm1272, 0
    %1274 = vst.msk [vmem:[#allocation2 + $0xd8] sm:$0xf] %vm1269, 0
    %1275 = vst.msk [vmem:[#allocation2 + $0xdc] sm:$0xf] %vm1269, 0
    %1276 = vst.msk [vmem:[#allocation2 + $0xe0] sm:$0x1] %vm1272, 0
    %s1277 = scalar_lea.vmem [#allocation2], 204
    %1278 = vst.msk [vmem:[%s1277] sm:$0xf] %vm1269, 0
    %1279 = vst.msk [vmem:[%s1277 + $0x4] sm:$0xf] %vm1269, 0
    %1280 = vst.msk [vmem:[%s1277 + $0x8] sm:$0x1] %vm1272, 0
    %1281 = vst.msk [vmem:[%s1277 + $0xd8] sm:$0xf] %vm1269, 0
    %1282 = vst.msk [vmem:[%s1277 + $0xdc] sm:$0xf] %vm1269, 0
    %1283 = vst.msk [vmem:[%s1277 + $0xe0] sm:$0x1] %vm1272, 0
    %s1284 = scalar_lea.vmem [#allocation2], 12
    %vm1285 = vcmask 57344
    %vm1286 = vsmask.f32 256
    %vm1287 = vmand %vm1285, %vm1286
    %v1288 = vld [vmem:[%s1284] sm:$0x1]
    %v1289 = vsel %vm1287, 0, %v1288
    %1290 = vst [vmem:[%s1284] sm:$0x1] %v1289
    %v1291 = vld [vmem:[%s1284 + $0xc] sm:$0x1]
    %v1292 = vsel %vm1287, 0, %v1291
    %1293 = vst [vmem:[%s1284 + $0xc] sm:$0x1] %v1292
    %v1294 = vld [vmem:[%s1284 + $0x18] sm:$0x1]
    %v1295 = vsel %vm1287, 0, %v1294
    %1296 = vst [vmem:[%s1284 + $0x18] sm:$0x1] %v1295
    %v1297 = vld [vmem:[%s1284 + $0x24] sm:$0x1]
    %v1298 = vsel %vm1287, 0, %v1297
    %1299 = vst [vmem:[%s1284 + $0x24] sm:$0x1] %v1298
    %v1300 = vld [vmem:[%s1284 + $0x30] sm:$0x1]
    %v1301 = vsel %vm1287, 0, %v1300
    %1302 = vst [vmem:[%s1284 + $0x30] sm:$0x1] %v1301
    %v1303 = vld [vmem:[%s1284 + $0x3c] sm:$0x1]
    %v1304 = vsel %vm1287, 0, %v1303
    %1305 = vst [vmem:[%s1284 + $0x3c] sm:$0x1] %v1304
    %v1306 = vld [vmem:[%s1284 + $0x48] sm:$0x1]
    %v1307 = vsel %vm1287, 0, %v1306
    %1308 = vst [vmem:[%s1284 + $0x48] sm:$0x1] %v1307
    %v1309 = vld [vmem:[%s1284 + $0x54] sm:$0x1]
    %v1310 = vsel %vm1287, 0, %v1309
    %1311 = vst [vmem:[%s1284 + $0x54] sm:$0x1] %v1310
    %v1312 = vld [vmem:[%s1284 + $0x60] sm:$0x1]
    %v1313 = vsel %vm1287, 0, %v1312
    %1314 = vst [vmem:[%s1284 + $0x60] sm:$0x1] %v1313
    %v1315 = vld [vmem:[%s1284 + $0x6c] sm:$0x1]
    %v1316 = vsel %vm1287, 0, %v1315
    %1317 = vst [vmem:[%s1284 + $0x6c] sm:$0x1] %v1316
    %v1318 = vld [vmem:[%s1284 + $0x78] sm:$0x1]
    %v1319 = vsel %vm1287, 0, %v1318
    %1320 = vst [vmem:[%s1284 + $0x78] sm:$0x1] %v1319
    %v1321 = vld [vmem:[%s1284 + $0x84] sm:$0x1]
    %v1322 = vsel %vm1287, 0, %v1321
    %1323 = vst [vmem:[%s1284 + $0x84] sm:$0x1] %v1322
    %v1324 = vld [vmem:[%s1284 + $0x90] sm:$0x1]
    %v1325 = vsel %vm1287, 0, %v1324
    %1326 = vst [vmem:[%s1284 + $0x90] sm:$0x1] %v1325
    %v1327 = vld [vmem:[%s1284 + $0x9c] sm:$0x1]
    %v1328 = vsel %vm1287, 0, %v1327
    %1329 = vst [vmem:[%s1284 + $0x9c] sm:$0x1] %v1328
    %v1330 = vld [vmem:[%s1284 + $0xa8] sm:$0x1]
    %v1331 = vsel %vm1287, 0, %v1330
    %1332 = vst [vmem:[%s1284 + $0xa8] sm:$0x1] %v1331
    %v1333 = vld [vmem:[%s1284 + $0xb4] sm:$0x1]
    %v1334 = vsel %vm1287, 0, %v1333
    %1335 = vst [vmem:[%s1284 + $0xb4] sm:$0x1] %v1334
    %v1336 = vld [vmem:[%s1284 + $0xd8] sm:$0x1]
    %v1337 = vsel %vm1287, 0, %v1336
    %1338 = vst [vmem:[%s1284 + $0xd8] sm:$0x1] %v1337
    %v1339 = vld [vmem:[%s1284 + $0xe4] sm:$0x1]
    %v1340 = vsel %vm1287, 0, %v1339
    %1341 = vst [vmem:[%s1284 + $0xe4] sm:$0x1] %v1340
    %v1342 = vld [vmem:[%s1284 + $0xf0] sm:$0x1]
    %v1343 = vsel %vm1287, 0, %v1342
    %1344 = vst [vmem:[%s1284 + $0xf0] sm:$0x1] %v1343
    %v1345 = vld [vmem:[%s1284 + $0xfc] sm:$0x1]
    %v1346 = vsel %vm1287, 0, %v1345
    %1347 = vst [vmem:[%s1284 + $0xfc] sm:$0x1] %v1346
    %v1348 = vld [vmem:[%s1284 + $0x108] sm:$0x1]
    %v1349 = vsel %vm1287, 0, %v1348
    %1350 = vst [vmem:[%s1284 + $0x108] sm:$0x1] %v1349
    %v1351 = vld [vmem:[%s1284 + $0x114] sm:$0x1]
    %v1352 = vsel %vm1287, 0, %v1351
    %1353 = vst [vmem:[%s1284 + $0x114] sm:$0x1] %v1352
    %v1354 = vld [vmem:[%s1284 + $0x120] sm:$0x1]
    %v1355 = vsel %vm1287, 0, %v1354
    %1356 = vst [vmem:[%s1284 + $0x120] sm:$0x1] %v1355
    %v1357 = vld [vmem:[%s1284 + $0x12c] sm:$0x1]
    %v1358 = vsel %vm1287, 0, %v1357
    %1359 = vst [vmem:[%s1284 + $0x12c] sm:$0x1] %v1358
    %v1360 = vld [vmem:[%s1284 + $0x138] sm:$0x1]
    %v1361 = vsel %vm1287, 0, %v1360
    %1362 = vst [vmem:[%s1284 + $0x138] sm:$0x1] %v1361
    %v1363 = vld [vmem:[%s1284 + $0x144] sm:$0x1]
    %v1364 = vsel %vm1287, 0, %v1363
    %1365 = vst [vmem:[%s1284 + $0x144] sm:$0x1] %v1364
    %v1366 = vld [vmem:[%s1284 + $0x150] sm:$0x1]
    %v1367 = vsel %vm1287, 0, %v1366
    %1368 = vst [vmem:[%s1284 + $0x150] sm:$0x1] %v1367
    %v1369 = vld [vmem:[%s1284 + $0x15c] sm:$0x1]
    %v1370 = vsel %vm1287, 0, %v1369
    %1371 = vst [vmem:[%s1284 + $0x15c] sm:$0x1] %v1370
    %v1372 = vld [vmem:[%s1284 + $0x168] sm:$0x1]
    %v1373 = vsel %vm1287, 0, %v1372
    %1374 = vst [vmem:[%s1284 + $0x168] sm:$0x1] %v1373
    %v1375 = vld [vmem:[%s1284 + $0x174] sm:$0x1]
    %v1376 = vsel %vm1287, 0, %v1375
    %1377 = vst [vmem:[%s1284 + $0x174] sm:$0x1] %v1376
    %v1378 = vld [vmem:[%s1284 + $0x180] sm:$0x1]
    %v1379 = vsel %vm1287, 0, %v1378
    %1380 = vst [vmem:[%s1284 + $0x180] sm:$0x1] %v1379
    %v1381 = vld [vmem:[%s1284 + $0x18c] sm:$0x1]
    %v1382 = vsel %vm1287, 0, %v1381
    %1383 = vst [vmem:[%s1284 + $0x18c] sm:$0x1] %v1382
    %vm1384 = vsmask.f32 7938
    %vm1385 = vmand %vm1285, %vm1384
    %v1386 = vld [vmem:[%s1284 + $0x8] sm:$0x1]
    %v1387 = vsel %vm1385, 0, %v1386
    %1388 = vst [vmem:[%s1284 + $0x8] sm:$0x1] %v1387
    %v1389 = vld [vmem:[%s1284 + $0x14] sm:$0x1]
    %v1390 = vsel %vm1385, 0, %v1389
    %1391 = vst [vmem:[%s1284 + $0x14] sm:$0x1] %v1390
    %v1392 = vld [vmem:[%s1284 + $0x20] sm:$0x1]
    %v1393 = vsel %vm1385, 0, %v1392
    %1394 = vst [vmem:[%s1284 + $0x20] sm:$0x1] %v1393
    %v1395 = vld [vmem:[%s1284 + $0x2c] sm:$0x1]
    %v1396 = vsel %vm1385, 0, %v1395
    %1397 = vst [vmem:[%s1284 + $0x2c] sm:$0x1] %v1396
    %v1398 = vld [vmem:[%s1284 + $0x38] sm:$0x1]
    %v1399 = vsel %vm1385, 0, %v1398
    %1400 = vst [vmem:[%s1284 + $0x38] sm:$0x1] %v1399
    %v1401 = vld [vmem:[%s1284 + $0x44] sm:$0x1]
    %v1402 = vsel %vm1385, 0, %v1401
    %1403 = vst [vmem:[%s1284 + $0x44] sm:$0x1] %v1402
    %v1404 = vld [vmem:[%s1284 + $0x50] sm:$0x1]
    %v1405 = vsel %vm1385, 0, %v1404
    %1406 = vst [vmem:[%s1284 + $0x50] sm:$0x1] %v1405
    %v1407 = vld [vmem:[%s1284 + $0x5c] sm:$0x1]
    %v1408 = vsel %vm1385, 0, %v1407
    %1409 = vst [vmem:[%s1284 + $0x5c] sm:$0x1] %v1408
    %v1410 = vld [vmem:[%s1284 + $0x68] sm:$0x1]
    %v1411 = vsel %vm1385, 0, %v1410
    %1412 = vst [vmem:[%s1284 + $0x68] sm:$0x1] %v1411
    %v1413 = vld [vmem:[%s1284 + $0x74] sm:$0x1]
    %v1414 = vsel %vm1385, 0, %v1413
    %1415 = vst [vmem:[%s1284 + $0x74] sm:$0x1] %v1414
    %v1416 = vld [vmem:[%s1284 + $0x80] sm:$0x1]
    %v1417 = vsel %vm1385, 0, %v1416
    %1418 = vst [vmem:[%s1284 + $0x80] sm:$0x1] %v1417
    %v1419 = vld [vmem:[%s1284 + $0x8c] sm:$0x1]
    %v1420 = vsel %vm1385, 0, %v1419
    %1421 = vst [vmem:[%s1284 + $0x8c] sm:$0x1] %v1420
    %v1422 = vld [vmem:[%s1284 + $0x98] sm:$0x1]
    %v1423 = vsel %vm1385, 0, %v1422
    %1424 = vst [vmem:[%s1284 + $0x98] sm:$0x1] %v1423
    %v1425 = vld [vmem:[%s1284 + $0xa4] sm:$0x1]
    %v1426 = vsel %vm1385, 0, %v1425
    %1427 = vst [vmem:[%s1284 + $0xa4] sm:$0x1] %v1426
    %v1428 = vld [vmem:[%s1284 + $0xb0] sm:$0x1]
    %v1429 = vsel %vm1385, 0, %v1428
    %1430 = vst [vmem:[%s1284 + $0xb0] sm:$0x1] %v1429
    %v1431 = vld [vmem:[%s1284 + $0xbc] sm:$0x1]
    %v1432 = vsel %vm1385, 0, %v1431
    %1433 = vst [vmem:[%s1284 + $0xbc] sm:$0x1] %v1432
    %v1434 = vld [vmem:[%s1284 + $0xe0] sm:$0x1]
    %v1435 = vsel %vm1385, 0, %v1434
    %1436 = vst [vmem:[%s1284 + $0xe0] sm:$0x1] %v1435
    %v1437 = vld [vmem:[%s1284 + $0xec] sm:$0x1]
    %v1438 = vsel %vm1385, 0, %v1437
    %1439 = vst [vmem:[%s1284 + $0xec] sm:$0x1] %v1438
    %v1440 = vld [vmem:[%s1284 + $0xf8] sm:$0x1]
    %v1441 = vsel %vm1385, 0, %v1440
    %1442 = vst [vmem:[%s1284 + $0xf8] sm:$0x1] %v1441
    %v1443 = vld [vmem:[%s1284 + $0x104] sm:$0x1]
    %v1444 = vsel %vm1385, 0, %v1443
    %1445 = vst [vmem:[%s1284 + $0x104] sm:$0x1] %v1444
    %v1446 = vld [vmem:[%s1284 + $0x110] sm:$0x1]
    %v1447 = vsel %vm1385, 0, %v1446
    %1448 = vst [vmem:[%s1284 + $0x110] sm:$0x1] %v1447
    %v1449 = vld [vmem:[%s1284 + $0x11c] sm:$0x1]
    %v1450 = vsel %vm1385, 0, %v1449
    %1451 = vst [vmem:[%s1284 + $0x11c] sm:$0x1] %v1450
    %v1452 = vld [vmem:[%s1284 + $0x128] sm:$0x1]
    %v1453 = vsel %vm1385, 0, %v1452
    %1454 = vst [vmem:[%s1284 + $0x128] sm:$0x1] %v1453
    %v1455 = vld [vmem:[%s1284 + $0x134] sm:$0x1]
    %v1456 = vsel %vm1385, 0, %v1455
    %1457 = vst [vmem:[%s1284 + $0x134] sm:$0x1] %v1456
    %v1458 = vld [vmem:[%s1284 + $0x140] sm:$0x1]
    %v1459 = vsel %vm1385, 0, %v1458
    %1460 = vst [vmem:[%s1284 + $0x140] sm:$0x1] %v1459
    %v1461 = vld [vmem:[%s1284 + $0x14c] sm:$0x1]
    %v1462 = vsel %vm1385, 0, %v1461
    %1463 = vst [vmem:[%s1284 + $0x14c] sm:$0x1] %v1462
    %v1464 = vld [vmem:[%s1284 + $0x158] sm:$0x1]
    %v1465 = vsel %vm1385, 0, %v1464
    %1466 = vst [vmem:[%s1284 + $0x158] sm:$0x1] %v1465
    %v1467 = vld [vmem:[%s1284 + $0x164] sm:$0x1]
    %v1468 = vsel %vm1385, 0, %v1467
    %1469 = vst [vmem:[%s1284 + $0x164] sm:$0x1] %v1468
    %v1470 = vld [vmem:[%s1284 + $0x170] sm:$0x1]
    %v1471 = vsel %vm1385, 0, %v1470
    %1472 = vst [vmem:[%s1284 + $0x170] sm:$0x1] %v1471
    %v1473 = vld [vmem:[%s1284 + $0x17c] sm:$0x1]
    %v1474 = vsel %vm1385, 0, %v1473
    %1475 = vst [vmem:[%s1284 + $0x17c] sm:$0x1] %v1474
    %v1476 = vld [vmem:[%s1284 + $0x188] sm:$0x1]
    %v1477 = vsel %vm1385, 0, %v1476
    %1478 = vst [vmem:[%s1284 + $0x188] sm:$0x1] %v1477
    %v1479 = vld [vmem:[%s1284 + $0x194] sm:$0x1]
    %v1480 = vsel %vm1385, 0, %v1479
    %1481 = vst [vmem:[%s1284 + $0x194] sm:$0x1] %v1480
    %v1482 = vpack.c.bf16 %v1206, %v1205
    %v1483 = vpack.c.bf16 %v1208, %v1207
    %v1484 = vpack.c.bf16 %v1210, %v1209
    %v1485 = vpack.c.bf16 %v1212, %v1211
    %v1486 = vpack.c.bf16 %v1214, %v1213
    %v1487 = vpack.c.bf16 %v1216, %v1215
    %v1488 = vpack.c.bf16 %v1218, %v1217
    %v1489 = vpack.c.bf16 %v1220, %v1219
    %v1490 = vpack.c.bf16 %v1222, %v1221
    %v1491 = vpack.c.bf16 %v1224, %v1223
    %v1492 = vpack.c.bf16 %v1226, %v1225
    %v1493 = vpack.c.bf16 %v1228, %v1227
    %v1494 = vpack.c.bf16 %v1230, %v1229
    %v1495 = vpack.c.bf16 %v1232, %v1231
    %v1496 = vpack.c.bf16 %v1234, %v1233
    %v1497 = vpack.c.bf16 %v1236, %v1235
    %v1498 = vpack.c.bf16 %v1238, %v1237
    %v1499 = vpack.c.bf16 %v1240, %v1239
    %v1500 = vpack.c.bf16 %v1242, %v1241
    %v1501 = vpack.c.bf16 %v1244, %v1243
    %v1502 = vpack.c.bf16 %v1246, %v1245
    %v1503 = vpack.c.bf16 %v1248, %v1247
    %v1504 = vpack.c.bf16 %v1250, %v1249
    %v1505 = vpack.c.bf16 %v1252, %v1251
    %v1506 = vpack.c.bf16 %v1254, %v1253
    %v1507 = vpack.c.bf16 %v1256, %v1255
    %v1508 = vpack.c.bf16 %v1258, %v1257
    %v1509 = vpack.c.bf16 %v1260, %v1259
    %v1510 = vpack.c.bf16 %v1262, %v1261
    %v1511 = vpack.c.bf16 %v1264, %v1263
    %v1512 = vpack.c.bf16 %v1266, %v1265
    %v1513 = vpack.c.bf16 %v1268, %v1267
    %v1546 = vunpack.c.l.b16 %v1482
    %v1547 = vunpack.c.h.b16 %v1482
    %v1548 = vunpack.c.l.b16 %v1483
    %v1549 = vunpack.c.h.b16 %v1483
    %v1550 = vunpack.c.l.b16 %v1484
    %v1551 = vunpack.c.h.b16 %v1484
    %v1552 = vunpack.c.l.b16 %v1485
    %v1553 = vunpack.c.h.b16 %v1485
    %v1554 = vunpack.c.l.b16 %v1486
    %v1555 = vunpack.c.h.b16 %v1486
    %v1556 = vunpack.c.l.b16 %v1487
    %v1557 = vunpack.c.h.b16 %v1487
    %v1558 = vunpack.c.l.b16 %v1488
    %v1559 = vunpack.c.h.b16 %v1488
    %v1560 = vunpack.c.l.b16 %v1489
    %v1561 = vunpack.c.h.b16 %v1489
    %v1562 = vunpack.c.l.b16 %v1490
    %v1563 = vunpack.c.h.b16 %v1490
    %v1564 = vunpack.c.l.b16 %v1491
    %v1565 = vunpack.c.h.b16 %v1491
    %v1566 = vunpack.c.l.b16 %v1492
    %v1567 = vunpack.c.h.b16 %v1492
    %v1568 = vunpack.c.l.b16 %v1493
    %v1569 = vunpack.c.h.b16 %v1493
    %v1570 = vunpack.c.l.b16 %v1494
    %v1571 = vunpack.c.h.b16 %v1494
    %v1572 = vunpack.c.l.b16 %v1495
    %v1573 = vunpack.c.h.b16 %v1495
    %v1574 = vunpack.c.l.b16 %v1496
    %v1575 = vunpack.c.h.b16 %v1496
    %v1576 = vunpack.c.l.b16 %v1497
    %v1577 = vunpack.c.h.b16 %v1497
    %v1578 = vunpack.c.l.b16 %v1498
    %v1579 = vunpack.c.h.b16 %v1498
    %v1580 = vunpack.c.l.b16 %v1499
    %v1581 = vunpack.c.h.b16 %v1499
    %v1582 = vunpack.c.l.b16 %v1500
    %v1583 = vunpack.c.h.b16 %v1500
    %v1584 = vunpack.c.l.b16 %v1501
    %v1585 = vunpack.c.h.b16 %v1501
    %v1586 = vunpack.c.l.b16 %v1502
    %v1587 = vunpack.c.h.b16 %v1502
    %v1588 = vunpack.c.l.b16 %v1503
    %v1589 = vunpack.c.h.b16 %v1503
    %v1590 = vunpack.c.l.b16 %v1504
    %v1591 = vunpack.c.h.b16 %v1504
    %v1592 = vunpack.c.l.b16 %v1505
    %v1593 = vunpack.c.h.b16 %v1505
    %v1594 = vunpack.c.l.b16 %v1506
    %v1595 = vunpack.c.h.b16 %v1506
    %v1596 = vunpack.c.l.b16 %v1507
    %v1597 = vunpack.c.h.b16 %v1507
    %v1598 = vunpack.c.l.b16 %v1508
    %v1599 = vunpack.c.h.b16 %v1508
    %v1600 = vunpack.c.l.b16 %v1509
    %v1601 = vunpack.c.h.b16 %v1509
    %v1602 = vunpack.c.l.b16 %v1510
    %v1603 = vunpack.c.h.b16 %v1510
    %v1604 = vunpack.c.l.b16 %v1511
    %v1605 = vunpack.c.h.b16 %v1511
    %v1606 = vunpack.c.l.b16 %v1512
    %v1607 = vunpack.c.h.b16 %v1512
    %v1608 = vunpack.c.l.b16 %v1513
    %v1609 = vunpack.c.h.b16 %v1513
    %v1610 = vpack.c.b16 %v1546, %v1546
    %v1611 = vpack.c.b16 %v1547, %v1547
    %v1612 = vpack.c.b16 %v1548, %v1548
    %v1613 = vpack.c.b16 %v1549, %v1549
    %v1614 = vpack.c.b16 %v1550, %v1550
    %v1615 = vpack.c.b16 %v1551, %v1551
    %v1616 = vpack.c.b16 %v1552, %v1552
    %v1617 = vpack.c.b16 %v1553, %v1553
    %v1618 = vpack.c.b16 %v1554, %v1554
    %v1619 = vpack.c.b16 %v1555, %v1555
    %v1620 = vpack.c.b16 %v1556, %v1556
    %v1621 = vpack.c.b16 %v1557, %v1557
    %v1622 = vpack.c.b16 %v1558, %v1558
    %v1623 = vpack.c.b16 %v1559, %v1559
    %v1624 = vpack.c.b16 %v1560, %v1560
    %v1625 = vpack.c.b16 %v1561, %v1561
    %v1626 = vpack.c.b16 %v1562, %v1562
    %v1627 = vpack.c.b16 %v1563, %v1563
    %v1628 = vpack.c.b16 %v1564, %v1564
    %v1629 = vpack.c.b16 %v1565, %v1565
    %v1630 = vpack.c.b16 %v1566, %v1566
    %v1631 = vpack.c.b16 %v1567, %v1567
    %v1632 = vpack.c.b16 %v1568, %v1568
    %v1633 = vpack.c.b16 %v1569, %v1569
    %v1634 = vpack.c.b16 %v1570, %v1570
    %v1635 = vpack.c.b16 %v1571, %v1571
    %v1636 = vpack.c.b16 %v1572, %v1572
    %v1637 = vpack.c.b16 %v1573, %v1573
    %v1638 = vpack.c.b16 %v1574, %v1574
    %v1639 = vpack.c.b16 %v1575, %v1575
    %v1640 = vpack.c.b16 %v1576, %v1576
    %v1641 = vpack.c.b16 %v1577, %v1577
    %v1642 = vpack.c.b16 %v1578, %v1578
    %v1643 = vpack.c.b16 %v1579, %v1579
    %v1644 = vpack.c.b16 %v1580, %v1580
    %v1645 = vpack.c.b16 %v1581, %v1581
    %v1646 = vpack.c.b16 %v1582, %v1582
    %v1647 = vpack.c.b16 %v1583, %v1583
    %v1648 = vpack.c.b16 %v1584, %v1584
    %v1649 = vpack.c.b16 %v1585, %v1585
    %v1650 = vpack.c.b16 %v1586, %v1586
    %v1651 = vpack.c.b16 %v1587, %v1587
    %v1652 = vpack.c.b16 %v1588, %v1588
    %v1653 = vpack.c.b16 %v1589, %v1589
    %v1654 = vpack.c.b16 %v1590, %v1590
    %v1655 = vpack.c.b16 %v1591, %v1591
    %v1656 = vpack.c.b16 %v1592, %v1592
    %v1657 = vpack.c.b16 %v1593, %v1593
    %v1658 = vpack.c.b16 %v1594, %v1594
    %v1659 = vpack.c.b16 %v1595, %v1595
    %v1660 = vpack.c.b16 %v1596, %v1596
    %v1661 = vpack.c.b16 %v1597, %v1597
    %v1662 = vpack.c.b16 %v1598, %v1598
    %v1663 = vpack.c.b16 %v1599, %v1599
    %v1664 = vpack.c.b16 %v1600, %v1600
    %v1665 = vpack.c.b16 %v1601, %v1601
    %v1666 = vpack.c.b16 %v1602, %v1602
    %v1667 = vpack.c.b16 %v1603, %v1603
    %v1668 = vpack.c.b16 %v1604, %v1604
    %v1669 = vpack.c.b16 %v1605, %v1605
    %v1670 = vpack.c.b16 %v1606, %v1606
    %v1671 = vpack.c.b16 %v1607, %v1607
    %v1672 = vpack.c.b16 %v1608, %v1608
    %v1673 = vpack.c.b16 %v1609, %v1609
    %vm1674 = vsmask.f32 4368
    %vm1675 = vmor %vm1286, %vm1674
    %v1677 = vshrl.u32 %v1610, 16
    %v1679 = vrot.slane %v1677, 7
    %v1680 = vshll.u32 %v1610, 16
    %v1682 = vor.u32 %v1679, %v1680
    %v1683 = vrot.slane %v1679, 4
    %v1685 = vshrl.u32 %v1611, 16
    %v1687 = vrot.slane %v1685, 7
    %v1688 = vshll.u32 %v1611, 16
    %v1690 = vor.u32 %v1687, %v1688
    %v1691 = vsel %vm1675, %v1683, %v1690
    %v1692 = vrot.slane %v1687, 4
    %v1694 = vshrl.u32 %v1612, 16
    %v1696 = vrot.slane %v1694, 7
    %v1697 = vshll.u32 %v1612, 16
    %v1699 = vor.u32 %v1696, %v1697
    %v1700 = vrot.slane %v1696, 4
    %v1702 = vshrl.u32 %v1613, 16
    %v1704 = vrot.slane %v1702, 7
    %v1705 = vshll.u32 %v1613, 16
    %v1707 = vor.u32 %v1704, %v1705
    %v1708 = vsel %vm1675, %v1700, %v1707
    %v1709 = vrot.slane %v1704, 4
    %v1711 = vshrl.u32 %v1614, 16
    %v1713 = vrot.slane %v1711, 7
    %v1714 = vshll.u32 %v1614, 16
    %v1716 = vor.u32 %v1713, %v1714
    %v1717 = vrot.slane %v1713, 4
    %v1719 = vshrl.u32 %v1615, 16
    %v1721 = vrot.slane %v1719, 7
    %v1722 = vshll.u32 %v1615, 16
    %v1724 = vor.u32 %v1721, %v1722
    %v1725 = vsel %vm1675, %v1717, %v1724
    %v1726 = vrot.slane %v1721, 4
    %v1728 = vshrl.u32 %v1616, 16
    %v1730 = vrot.slane %v1728, 7
    %v1731 = vshll.u32 %v1616, 16
    %v1733 = vor.u32 %v1730, %v1731
    %v1734 = vrot.slane %v1730, 4
    %v1736 = vshrl.u32 %v1617, 16
    %v1738 = vrot.slane %v1736, 7
    %v1739 = vshll.u32 %v1617, 16
    %v1741 = vor.u32 %v1738, %v1739
    %v1742 = vsel %vm1675, %v1734, %v1741
    %v1743 = vrot.slane %v1738, 4
    %v1745 = vshrl.u32 %v1618, 16
    %v1747 = vrot.slane %v1745, 7
    %v1748 = vshll.u32 %v1618, 16
    %v1750 = vor.u32 %v1747, %v1748
    %v1751 = vrot.slane %v1747, 4
    %v1753 = vshrl.u32 %v1619, 16
    %v1755 = vrot.slane %v1753, 7
    %v1756 = vshll.u32 %v1619, 16
    %v1758 = vor.u32 %v1755, %v1756
    %v1759 = vsel %vm1675, %v1751, %v1758
    %v1760 = vrot.slane %v1755, 4
    %v1762 = vshrl.u32 %v1620, 16
    %v1764 = vrot.slane %v1762, 7
    %v1765 = vshll.u32 %v1620, 16
    %v1767 = vor.u32 %v1764, %v1765
    %v1768 = vrot.slane %v1764, 4
    %v1770 = vshrl.u32 %v1621, 16
    %v1772 = vrot.slane %v1770, 7
    %v1773 = vshll.u32 %v1621, 16
    %v1775 = vor.u32 %v1772, %v1773
    %v1776 = vsel %vm1675, %v1768, %v1775
    %v1777 = vrot.slane %v1772, 4
    %v1779 = vshrl.u32 %v1622, 16
    %v1781 = vrot.slane %v1779, 7
    %v1782 = vshll.u32 %v1622, 16
    %v1784 = vor.u32 %v1781, %v1782
    %v1785 = vrot.slane %v1781, 4
    %v1787 = vshrl.u32 %v1623, 16
    %v1789 = vrot.slane %v1787, 7
    %v1790 = vshll.u32 %v1623, 16
    %v1792 = vor.u32 %v1789, %v1790
    %v1793 = vsel %vm1675, %v1785, %v1792
    %v1794 = vrot.slane %v1789, 4
    %v1796 = vshrl.u32 %v1624, 16
    %v1798 = vrot.slane %v1796, 7
    %v1799 = vshll.u32 %v1624, 16
    %v1801 = vor.u32 %v1798, %v1799
    %v1802 = vrot.slane %v1798, 4
    %v1804 = vshrl.u32 %v1625, 16
    %v1806 = vrot.slane %v1804, 7
    %v1807 = vshll.u32 %v1625, 16
    %v1809 = vor.u32 %v1806, %v1807
    %v1810 = vsel %vm1675, %v1802, %v1809
    %v1811 = vrot.slane %v1806, 4
    %v1813 = vshrl.u32 %v1626, 16
    %v1815 = vrot.slane %v1813, 7
    %v1816 = vshll.u32 %v1626, 16
    %v1818 = vor.u32 %v1815, %v1816
    %v1819 = vrot.slane %v1815, 4
    %v1821 = vshrl.u32 %v1627, 16
    %v1823 = vrot.slane %v1821, 7
    %v1824 = vshll.u32 %v1627, 16
    %v1826 = vor.u32 %v1823, %v1824
    %v1827 = vsel %vm1675, %v1819, %v1826
    %v1828 = vrot.slane %v1823, 4
    %v1830 = vshrl.u32 %v1628, 16
    %v1832 = vrot.slane %v1830, 7
    %v1833 = vshll.u32 %v1628, 16
    %v1835 = vor.u32 %v1832, %v1833
    %v1836 = vrot.slane %v1832, 4
    %v1838 = vshrl.u32 %v1629, 16
    %v1840 = vrot.slane %v1838, 7
    %v1841 = vshll.u32 %v1629, 16
    %v1843 = vor.u32 %v1840, %v1841
    %v1844 = vsel %vm1675, %v1836, %v1843
    %v1845 = vrot.slane %v1840, 4
    %v1847 = vshrl.u32 %v1630, 16
    %v1849 = vrot.slane %v1847, 7
    %v1850 = vshll.u32 %v1630, 16
    %v1852 = vor.u32 %v1849, %v1850
    %v1853 = vrot.slane %v1849, 4
    %v1855 = vshrl.u32 %v1631, 16
    %v1857 = vrot.slane %v1855, 7
    %v1858 = vshll.u32 %v1631, 16
    %v1860 = vor.u32 %v1857, %v1858
    %v1861 = vsel %vm1675, %v1853, %v1860
    %v1862 = vrot.slane %v1857, 4
    %v1864 = vshrl.u32 %v1632, 16
    %v1866 = vrot.slane %v1864, 7
    %v1867 = vshll.u32 %v1632, 16
    %v1869 = vor.u32 %v1866, %v1867
    %v1870 = vrot.slane %v1866, 4
    %v1872 = vshrl.u32 %v1633, 16
    %v1874 = vrot.slane %v1872, 7
    %v1875 = vshll.u32 %v1633, 16
    %v1877 = vor.u32 %v1874, %v1875
    %v1878 = vsel %vm1675, %v1870, %v1877
    %v1879 = vrot.slane %v1874, 4
    %v1881 = vshrl.u32 %v1634, 16
    %v1883 = vrot.slane %v1881, 7
    %v1884 = vshll.u32 %v1634, 16
    %v1886 = vor.u32 %v1883, %v1884
    %v1887 = vrot.slane %v1883, 4
    %v1889 = vshrl.u32 %v1635, 16
    %v1891 = vrot.slane %v1889, 7
    %v1892 = vshll.u32 %v1635, 16
    %v1894 = vor.u32 %v1891, %v1892
    %v1895 = vsel %vm1675, %v1887, %v1894
    %v1896 = vrot.slane %v1891, 4
    %v1898 = vshrl.u32 %v1636, 16
    %v1900 = vrot.slane %v1898, 7
    %v1901 = vshll.u32 %v1636, 16
    %v1903 = vor.u32 %v1900, %v1901
    %v1904 = vrot.slane %v1900, 4
    %v1906 = vshrl.u32 %v1637, 16
    %v1908 = vrot.slane %v1906, 7
    %v1909 = vshll.u32 %v1637, 16
    %v1911 = vor.u32 %v1908, %v1909
    %v1912 = vsel %vm1675, %v1904, %v1911
    %v1913 = vrot.slane %v1908, 4
    %v1915 = vshrl.u32 %v1638, 16
    %v1917 = vrot.slane %v1915, 7
    %v1918 = vshll.u32 %v1638, 16
    %v1920 = vor.u32 %v1917, %v1918
    %v1921 = vrot.slane %v1917, 4
    %v1923 = vshrl.u32 %v1639, 16
    %v1925 = vrot.slane %v1923, 7
    %v1926 = vshll.u32 %v1639, 16
    %v1928 = vor.u32 %v1925, %v1926
    %v1929 = vsel %vm1675, %v1921, %v1928
    %v1930 = vrot.slane %v1925, 4
    %v1932 = vshrl.u32 %v1640, 16
    %v1934 = vrot.slane %v1932, 7
    %v1935 = vshll.u32 %v1640, 16
    %v1937 = vor.u32 %v1934, %v1935
    %v1938 = vrot.slane %v1934, 4
    %v1940 = vshrl.u32 %v1641, 16
    %v1942 = vrot.slane %v1940, 7
    %v1943 = vshll.u32 %v1641, 16
    %v1945 = vor.u32 %v1942, %v1943
    %v1946 = vsel %vm1675, %v1938, %v1945
    %v1947 = vrot.slane %v1942, 4
    %v1949 = vshrl.u32 %v1642, 16
    %v1951 = vrot.slane %v1949, 7
    %v1952 = vshll.u32 %v1642, 16
    %v1954 = vor.u32 %v1951, %v1952
    %v1955 = vrot.slane %v1951, 4
    %v1957 = vshrl.u32 %v1643, 16
    %v1959 = vrot.slane %v1957, 7
    %v1960 = vshll.u32 %v1643, 16
    %v1962 = vor.u32 %v1959, %v1960
    %v1963 = vsel %vm1675, %v1955, %v1962
    %v1964 = vrot.slane %v1959, 4
    %v1966 = vshrl.u32 %v1644, 16
    %v1968 = vrot.slane %v1966, 7
    %v1969 = vshll.u32 %v1644, 16
    %v1971 = vor.u32 %v1968, %v1969
    %v1972 = vrot.slane %v1968, 4
    %v1974 = vshrl.u32 %v1645, 16
    %v1976 = vrot.slane %v1974, 7
    %v1977 = vshll.u32 %v1645, 16
    %v1979 = vor.u32 %v1976, %v1977
    %v1980 = vsel %vm1675, %v1972, %v1979
    %v1981 = vrot.slane %v1976, 4
    %v1983 = vshrl.u32 %v1646, 16
    %v1985 = vrot.slane %v1983, 7
    %v1986 = vshll.u32 %v1646, 16
    %v1988 = vor.u32 %v1985, %v1986
    %v1989 = vrot.slane %v1985, 4
    %v1991 = vshrl.u32 %v1647, 16
    %v1993 = vrot.slane %v1991, 7
    %v1994 = vshll.u32 %v1647, 16
    %v1996 = vor.u32 %v1993, %v1994
    %v1997 = vsel %vm1675, %v1989, %v1996
    %v1998 = vrot.slane %v1993, 4
    %v2000 = vshrl.u32 %v1648, 16
    %v2002 = vrot.slane %v2000, 7
    %v2003 = vshll.u32 %v1648, 16
    %v2005 = vor.u32 %v2002, %v2003
    %v2006 = vrot.slane %v2002, 4
    %v2008 = vshrl.u32 %v1649, 16
    %v2010 = vrot.slane %v2008, 7
    %v2011 = vshll.u32 %v1649, 16
    %v2013 = vor.u32 %v2010, %v2011
    %v2014 = vsel %vm1675, %v2006, %v2013
    %v2015 = vrot.slane %v2010, 4
    %v2017 = vshrl.u32 %v1650, 16
    %v2019 = vrot.slane %v2017, 7
    %v2020 = vshll.u32 %v1650, 16
    %v2022 = vor.u32 %v2019, %v2020
    %v2023 = vrot.slane %v2019, 4
    %v2025 = vshrl.u32 %v1651, 16
    %v2027 = vrot.slane %v2025, 7
    %v2028 = vshll.u32 %v1651, 16
    %v2030 = vor.u32 %v2027, %v2028
    %v2031 = vsel %vm1675, %v2023, %v2030
    %v2032 = vrot.slane %v2027, 4
    %v2034 = vshrl.u32 %v1652, 16
    %v2036 = vrot.slane %v2034, 7
    %v2037 = vshll.u32 %v1652, 16
    %v2039 = vor.u32 %v2036, %v2037
    %v2040 = vrot.slane %v2036, 4
    %v2042 = vshrl.u32 %v1653, 16
    %v2044 = vrot.slane %v2042, 7
    %v2045 = vshll.u32 %v1653, 16
    %v2047 = vor.u32 %v2044, %v2045
    %v2048 = vsel %vm1675, %v2040, %v2047
    %v2049 = vrot.slane %v2044, 4
    %v2051 = vshrl.u32 %v1654, 16
    %v2053 = vrot.slane %v2051, 7
    %v2054 = vshll.u32 %v1654, 16
    %v2056 = vor.u32 %v2053, %v2054
    %v2057 = vrot.slane %v2053, 4
    %v2059 = vshrl.u32 %v1655, 16
    %v2061 = vrot.slane %v2059, 7
    %v2062 = vshll.u32 %v1655, 16
    %v2064 = vor.u32 %v2061, %v2062
    %v2065 = vsel %vm1675, %v2057, %v2064
    %v2066 = vrot.slane %v2061, 4
    %v2068 = vshrl.u32 %v1656, 16
    %v2070 = vrot.slane %v2068, 7
    %v2071 = vshll.u32 %v1656, 16
    %v2073 = vor.u32 %v2070, %v2071
    %v2074 = vrot.slane %v2070, 4
    %v2076 = vshrl.u32 %v1657, 16
    %v2078 = vrot.slane %v2076, 7
    %v2079 = vshll.u32 %v1657, 16
    %v2081 = vor.u32 %v2078, %v2079
    %v2082 = vsel %vm1675, %v2074, %v2081
    %v2083 = vrot.slane %v2078, 4
    %v2085 = vshrl.u32 %v1658, 16
    %v2087 = vrot.slane %v2085, 7
    %v2088 = vshll.u32 %v1658, 16
    %v2090 = vor.u32 %v2087, %v2088
    %v2091 = vrot.slane %v2087, 4
    %v2093 = vshrl.u32 %v1659, 16
    %v2095 = vrot.slane %v2093, 7
    %v2096 = vshll.u32 %v1659, 16
    %v2098 = vor.u32 %v2095, %v2096
    %v2099 = vsel %vm1675, %v2091, %v2098
    %v2100 = vrot.slane %v2095, 4
    %v2102 = vshrl.u32 %v1660, 16
    %v2104 = vrot.slane %v2102, 7
    %v2105 = vshll.u32 %v1660, 16
    %v2107 = vor.u32 %v2104, %v2105
    %v2108 = vrot.slane %v2104, 4
    %v2110 = vshrl.u32 %v1661, 16
    %v2112 = vrot.slane %v2110, 7
    %v2113 = vshll.u32 %v1661, 16
    %v2115 = vor.u32 %v2112, %v2113
    %v2116 = vsel %vm1675, %v2108, %v2115
    %v2117 = vrot.slane %v2112, 4
    %v2119 = vshrl.u32 %v1662, 16
    %v2121 = vrot.slane %v2119, 7
    %v2122 = vshll.u32 %v1662, 16
    %v2124 = vor.u32 %v2121, %v2122
    %v2125 = vrot.slane %v2121, 4
    %v2127 = vshrl.u32 %v1663, 16
    %v2129 = vrot.slane %v2127, 7
    %v2130 = vshll.u32 %v1663, 16
    %v2132 = vor.u32 %v2129, %v2130
    %v2133 = vsel %vm1675, %v2125, %v2132
    %v2134 = vrot.slane %v2129, 4
    %v2136 = vshrl.u32 %v1664, 16
    %v2138 = vrot.slane %v2136, 7
    %v2139 = vshll.u32 %v1664, 16
    %v2141 = vor.u32 %v2138, %v2139
    %v2142 = vrot.slane %v2138, 4
    %v2144 = vshrl.u32 %v1665, 16
    %v2146 = vrot.slane %v2144, 7
    %v2147 = vshll.u32 %v1665, 16
    %v2149 = vor.u32 %v2146, %v2147
    %v2150 = vsel %vm1675, %v2142, %v2149
    %v2151 = vrot.slane %v2146, 4
    %v2153 = vshrl.u32 %v1666, 16
    %v2155 = vrot.slane %v2153, 7
    %v2156 = vshll.u32 %v1666, 16
    %v2158 = vor.u32 %v2155, %v2156
    %v2159 = vrot.slane %v2155, 4
    %v2161 = vshrl.u32 %v1667, 16
    %v2163 = vrot.slane %v2161, 7
    %v2164 = vshll.u32 %v1667, 16
    %v2166 = vor.u32 %v2163, %v2164
    %v2167 = vsel %vm1675, %v2159, %v2166
    %v2168 = vrot.slane %v2163, 4
    %v2170 = vshrl.u32 %v1668, 16
    %v2172 = vrot.slane %v2170, 7
    %v2173 = vshll.u32 %v1668, 16
    %v2175 = vor.u32 %v2172, %v2173
    %v2176 = vrot.slane %v2172, 4
    %v2178 = vshrl.u32 %v1669, 16
    %v2180 = vrot.slane %v2178, 7
    %v2181 = vshll.u32 %v1669, 16
    %v2183 = vor.u32 %v2180, %v2181
    %v2184 = vsel %vm1675, %v2176, %v2183
    %v2185 = vrot.slane %v2180, 4
    %v2187 = vshrl.u32 %v1670, 16
    %v2189 = vrot.slane %v2187, 7
    %v2190 = vshll.u32 %v1670, 16
    %v2192 = vor.u32 %v2189, %v2190
    %v2193 = vrot.slane %v2189, 4
    %v2195 = vshrl.u32 %v1671, 16
    %v2197 = vrot.slane %v2195, 7
    %v2198 = vshll.u32 %v1671, 16
    %v2200 = vor.u32 %v2197, %v2198
    %v2201 = vsel %vm1675, %v2193, %v2200
    %v2202 = vrot.slane %v2197, 4
    %v2204 = vshrl.u32 %v1672, 16
    %v2206 = vrot.slane %v2204, 7
    %v2207 = vshll.u32 %v1672, 16
    %v2209 = vor.u32 %v2206, %v2207
    %v2210 = vrot.slane %v2206, 4
    %v2212 = vshrl.u32 %v1673, 16
    %v2214 = vrot.slane %v2212, 7
    %v2215 = vshll.u32 %v1673, 16
    %v2217 = vor.u32 %v2214, %v2215
    %v2218 = vsel %vm1675, %v2210, %v2217
    %v2219 = vrot.slane %v2214, 4
    %vm2316 = vcmask 60416
    %vm2317 = vmand %vm2316, %vm1384
    %v2318 = vld [vmem:[%s1284] sm:$0xf]
    %v2319 = vsel %vm2317, %v1682, %v2318
    %2320 = vst [vmem:[%s1284] sm:$0xf] %v2319
    %2321 = vst.msk [vmem:[%s1284 + $0x4] sm:$0xf] %vm1269, %v1691
    %v2322 = vld [vmem:[%s1284 + $0x8] sm:$0x1]
    %v2323 = vsel %vm1287, %v1692, %v2322
    %2324 = vst [vmem:[%s1284 + $0x8] sm:$0x1] %v2323
    %v2325 = vld [vmem:[%s1284 + $0xc] sm:$0xf]
    %v2326 = vsel %vm2317, %v1699, %v2325
    %2327 = vst [vmem:[%s1284 + $0xc] sm:$0xf] %v2326
    %2328 = vst.msk [vmem:[%s1284 + $0x10] sm:$0xf] %vm1269, %v1708
    %v2329 = vld [vmem:[%s1284 + $0x14] sm:$0x1]
    %v2330 = vsel %vm1287, %v1709, %v2329
    %2331 = vst [vmem:[%s1284 + $0x14] sm:$0x1] %v2330
    %v2332 = vld [vmem:[%s1284 + $0x18] sm:$0xf]
    %v2333 = vsel %vm2317, %v1716, %v2332
    %2334 = vst [vmem:[%s1284 + $0x18] sm:$0xf] %v2333
    %2335 = vst.msk [vmem:[%s1284 + $0x1c] sm:$0xf] %vm1269, %v1725
    %v2336 = vld [vmem:[%s1284 + $0x20] sm:$0x1]
    %v2337 = vsel %vm1287, %v1726, %v2336
    %2338 = vst [vmem:[%s1284 + $0x20] sm:$0x1] %v2337
    %v2339 = vld [vmem:[%s1284 + $0x24] sm:$0xf]
    %v2340 = vsel %vm2317, %v1733, %v2339
    %2341 = vst [vmem:[%s1284 + $0x24] sm:$0xf] %v2340
    %2342 = vst.msk [vmem:[%s1284 + $0x28] sm:$0xf] %vm1269, %v1742
    %v2343 = vld [vmem:[%s1284 + $0x2c] sm:$0x1]
    %v2344 = vsel %vm1287, %v1743, %v2343
    %2345 = vst [vmem:[%s1284 + $0x2c] sm:$0x1] %v2344
    %v2346 = vld [vmem:[%s1284 + $0x30] sm:$0xf]
    %v2347 = vsel %vm2317, %v1750, %v2346
    %2348 = vst [vmem:[%s1284 + $0x30] sm:$0xf] %v2347
    %2349 = vst.msk [vmem:[%s1284 + $0x34] sm:$0xf] %vm1269, %v1759
    %v2350 = vld [vmem:[%s1284 + $0x38] sm:$0x1]
    %v2351 = vsel %vm1287, %v1760, %v2350
    %2352 = vst [vmem:[%s1284 + $0x38] sm:$0x1] %v2351
    %v2353 = vld [vmem:[%s1284 + $0x3c] sm:$0xf]
    %v2354 = vsel %vm2317, %v1767, %v2353
    %2355 = vst [vmem:[%s1284 + $0x3c] sm:$0xf] %v2354
    %2356 = vst.msk [vmem:[%s1284 + $0x40] sm:$0xf] %vm1269, %v1776
    %v2357 = vld [vmem:[%s1284 + $0x44] sm:$0x1]
    %v2358 = vsel %vm1287, %v1777, %v2357
    %2359 = vst [vmem:[%s1284 + $0x44] sm:$0x1] %v2358
    %v2360 = vld [vmem:[%s1284 + $0x48] sm:$0xf]
    %v2361 = vsel %vm2317, %v1784, %v2360
    %2362 = vst [vmem:[%s1284 + $0x48] sm:$0xf] %v2361
    %2363 = vst.msk [vmem:[%s1284 + $0x4c] sm:$0xf] %vm1269, %v1793
    %v2364 = vld [vmem:[%s1284 + $0x50] sm:$0x1]
    %v2365 = vsel %vm1287, %v1794, %v2364
    %2366 = vst [vmem:[%s1284 + $0x50] sm:$0x1] %v2365
    %v2367 = vld [vmem:[%s1284 + $0x54] sm:$0xf]
    %v2368 = vsel %vm2317, %v1801, %v2367
    %2369 = vst [vmem:[%s1284 + $0x54] sm:$0xf] %v2368
    %2370 = vst.msk [vmem:[%s1284 + $0x58] sm:$0xf] %vm1269, %v1810
    %v2371 = vld [vmem:[%s1284 + $0x5c] sm:$0x1]
    %v2372 = vsel %vm1287, %v1811, %v2371
    %2373 = vst [vmem:[%s1284 + $0x5c] sm:$0x1] %v2372
    %v2374 = vld [vmem:[%s1284 + $0x60] sm:$0xf]
    %v2375 = vsel %vm2317, %v1818, %v2374
    %2376 = vst [vmem:[%s1284 + $0x60] sm:$0xf] %v2375
    %2377 = vst.msk [vmem:[%s1284 + $0x64] sm:$0xf] %vm1269, %v1827
    %v2378 = vld [vmem:[%s1284 + $0x68] sm:$0x1]
    %v2379 = vsel %vm1287, %v1828, %v2378
    %2380 = vst [vmem:[%s1284 + $0x68] sm:$0x1] %v2379
    %v2381 = vld [vmem:[%s1284 + $0x6c] sm:$0xf]
    %v2382 = vsel %vm2317, %v1835, %v2381
    %2383 = vst [vmem:[%s1284 + $0x6c] sm:$0xf] %v2382
    %2384 = vst.msk [vmem:[%s1284 + $0x70] sm:$0xf] %vm1269, %v1844
    %v2385 = vld [vmem:[%s1284 + $0x74] sm:$0x1]
    %v2386 = vsel %vm1287, %v1845, %v2385
    %2387 = vst [vmem:[%s1284 + $0x74] sm:$0x1] %v2386
    %v2388 = vld [vmem:[%s1284 + $0x78] sm:$0xf]
    %v2389 = vsel %vm2317, %v1852, %v2388
    %2390 = vst [vmem:[%s1284 + $0x78] sm:$0xf] %v2389
    %2391 = vst.msk [vmem:[%s1284 + $0x7c] sm:$0xf] %vm1269, %v1861
    %v2392 = vld [vmem:[%s1284 + $0x80] sm:$0x1]
    %v2393 = vsel %vm1287, %v1862, %v2392
    %2394 = vst [vmem:[%s1284 + $0x80] sm:$0x1] %v2393
    %v2395 = vld [vmem:[%s1284 + $0x84] sm:$0xf]
    %v2396 = vsel %vm2317, %v1869, %v2395
    %2397 = vst [vmem:[%s1284 + $0x84] sm:$0xf] %v2396
    %2398 = vst.msk [vmem:[%s1284 + $0x88] sm:$0xf] %vm1269, %v1878
    %v2399 = vld [vmem:[%s1284 + $0x8c] sm:$0x1]
    %v2400 = vsel %vm1287, %v1879, %v2399
    %2401 = vst [vmem:[%s1284 + $0x8c] sm:$0x1] %v2400
    %v2402 = vld [vmem:[%s1284 + $0x90] sm:$0xf]
    %v2403 = vsel %vm2317, %v1886, %v2402
    %2404 = vst [vmem:[%s1284 + $0x90] sm:$0xf] %v2403
    %2405 = vst.msk [vmem:[%s1284 + $0x94] sm:$0xf] %vm1269, %v1895
    %v2406 = vld [vmem:[%s1284 + $0x98] sm:$0x1]
    %v2407 = vsel %vm1287, %v1896, %v2406
    %2408 = vst [vmem:[%s1284 + $0x98] sm:$0x1] %v2407
    %v2409 = vld [vmem:[%s1284 + $0x9c] sm:$0xf]
    %v2410 = vsel %vm2317, %v1903, %v2409
    %2411 = vst [vmem:[%s1284 + $0x9c] sm:$0xf] %v2410
    %2412 = vst.msk [vmem:[%s1284 + $0xa0] sm:$0xf] %vm1269, %v1912
    %v2413 = vld [vmem:[%s1284 + $0xa4] sm:$0x1]
    %v2414 = vsel %vm1287, %v1913, %v2413
    %2415 = vst [vmem:[%s1284 + $0xa4] sm:$0x1] %v2414
    %v2416 = vld [vmem:[%s1284 + $0xa8] sm:$0xf]
    %v2417 = vsel %vm2317, %v1920, %v2416
    %2418 = vst [vmem:[%s1284 + $0xa8] sm:$0xf] %v2417
    %2419 = vst.msk [vmem:[%s1284 + $0xac] sm:$0xf] %vm1269, %v1929
    %v2420 = vld [vmem:[%s1284 + $0xb0] sm:$0x1]
    %v2421 = vsel %vm1287, %v1930, %v2420
    %2422 = vst [vmem:[%s1284 + $0xb0] sm:$0x1] %v2421
    %v2423 = vld [vmem:[%s1284 + $0xb4] sm:$0xf]
    %v2424 = vsel %vm2317, %v1937, %v2423
    %2425 = vst [vmem:[%s1284 + $0xb4] sm:$0xf] %v2424
    %2426 = vst.msk [vmem:[%s1284 + $0xb8] sm:$0xf] %vm1269, %v1946
    %v2427 = vld [vmem:[%s1284 + $0xbc] sm:$0x1]
    %v2428 = vsel %vm1287, %v1947, %v2427
    %2429 = vst [vmem:[%s1284 + $0xbc] sm:$0x1] %v2428
    %v2430 = vld [vmem:[%s1284 + $0xd8] sm:$0xf]
    %v2431 = vsel %vm2317, %v1954, %v2430
    %2432 = vst [vmem:[%s1284 + $0xd8] sm:$0xf] %v2431
    %2433 = vst.msk [vmem:[%s1284 + $0xdc] sm:$0xf] %vm1269, %v1963
    %v2434 = vld [vmem:[%s1284 + $0xe0] sm:$0x1]
    %v2435 = vsel %vm1287, %v1964, %v2434
    %2436 = vst [vmem:[%s1284 + $0xe0] sm:$0x1] %v2435
    %v2437 = vld [vmem:[%s1284 + $0xe4] sm:$0xf]
    %v2438 = vsel %vm2317, %v1971, %v2437
    %2439 = vst [vmem:[%s1284 + $0xe4] sm:$0xf] %v2438
    %2440 = vst.msk [vmem:[%s1284 + $0xe8] sm:$0xf] %vm1269, %v1980
    %v2441 = vld [vmem:[%s1284 + $0xec] sm:$0x1]
    %v2442 = vsel %vm1287, %v1981, %v2441
    %2443 = vst [vmem:[%s1284 + $0xec] sm:$0x1] %v2442
    %v2444 = vld [vmem:[%s1284 + $0xf0] sm:$0xf]
    %v2445 = vsel %vm2317, %v1988, %v2444
    %2446 = vst [vmem:[%s1284 + $0xf0] sm:$0xf] %v2445
    %2447 = vst.msk [vmem:[%s1284 + $0xf4] sm:$0xf] %vm1269, %v1997
    %v2448 = vld [vmem:[%s1284 + $0xf8] sm:$0x1]
    %v2449 = vsel %vm1287, %v1998, %v2448
    %2450 = vst [vmem:[%s1284 + $0xf8] sm:$0x1] %v2449
    %v2451 = vld [vmem:[%s1284 + $0xfc] sm:$0xf]
    %v2452 = vsel %vm2317, %v2005, %v2451
    %2453 = vst [vmem:[%s1284 + $0xfc] sm:$0xf] %v2452
    %2454 = vst.msk [vmem:[%s1284 + $0x100] sm:$0xf] %vm1269, %v2014
    %v2455 = vld [vmem:[%s1284 + $0x104] sm:$0x1]
    %v2456 = vsel %vm1287, %v2015, %v2455
    %2457 = vst [vmem:[%s1284 + $0x104] sm:$0x1] %v2456
    %v2458 = vld [vmem:[%s1284 + $0x108] sm:$0xf]
    %v2459 = vsel %vm2317, %v2022, %v2458
    %2460 = vst [vmem:[%s1284 + $0x108] sm:$0xf] %v2459
    %2461 = vst.msk [vmem:[%s1284 + $0x10c] sm:$0xf] %vm1269, %v2031
    %v2462 = vld [vmem:[%s1284 + $0x110] sm:$0x1]
    %v2463 = vsel %vm1287, %v2032, %v2462
    %2464 = vst [vmem:[%s1284 + $0x110] sm:$0x1] %v2463
    %v2465 = vld [vmem:[%s1284 + $0x114] sm:$0xf]
    %v2466 = vsel %vm2317, %v2039, %v2465
    %2467 = vst [vmem:[%s1284 + $0x114] sm:$0xf] %v2466
    %2468 = vst.msk [vmem:[%s1284 + $0x118] sm:$0xf] %vm1269, %v2048
    %v2469 = vld [vmem:[%s1284 + $0x11c] sm:$0x1]
    %v2470 = vsel %vm1287, %v2049, %v2469
    %2471 = vst [vmem:[%s1284 + $0x11c] sm:$0x1] %v2470
    %v2472 = vld [vmem:[%s1284 + $0x120] sm:$0xf]
    %v2473 = vsel %vm2317, %v2056, %v2472
    %2474 = vst [vmem:[%s1284 + $0x120] sm:$0xf] %v2473
    %2475 = vst.msk [vmem:[%s1284 + $0x124] sm:$0xf] %vm1269, %v2065
    %v2476 = vld [vmem:[%s1284 + $0x128] sm:$0x1]
    %v2477 = vsel %vm1287, %v2066, %v2476
    %2478 = vst [vmem:[%s1284 + $0x128] sm:$0x1] %v2477
    %v2479 = vld [vmem:[%s1284 + $0x12c] sm:$0xf]
    %v2480 = vsel %vm2317, %v2073, %v2479
    %2481 = vst [vmem:[%s1284 + $0x12c] sm:$0xf] %v2480
    %2482 = vst.msk [vmem:[%s1284 + $0x130] sm:$0xf] %vm1269, %v2082
    %v2483 = vld [vmem:[%s1284 + $0x134] sm:$0x1]
    %v2484 = vsel %vm1287, %v2083, %v2483
    %2485 = vst [vmem:[%s1284 + $0x134] sm:$0x1] %v2484
    %v2486 = vld [vmem:[%s1284 + $0x138] sm:$0xf]
    %v2487 = vsel %vm2317, %v2090, %v2486
    %2488 = vst [vmem:[%s1284 + $0x138] sm:$0xf] %v2487
    %2489 = vst.msk [vmem:[%s1284 + $0x13c] sm:$0xf] %vm1269, %v2099
    %v2490 = vld [vmem:[%s1284 + $0x140] sm:$0x1]
    %v2491 = vsel %vm1287, %v2100, %v2490
    %2492 = vst [vmem:[%s1284 + $0x140] sm:$0x1] %v2491
    %v2493 = vld [vmem:[%s1284 + $0x144] sm:$0xf]
    %v2494 = vsel %vm2317, %v2107, %v2493
    %2495 = vst [vmem:[%s1284 + $0x144] sm:$0xf] %v2494
    %2496 = vst.msk [vmem:[%s1284 + $0x148] sm:$0xf] %vm1269, %v2116
    %v2497 = vld [vmem:[%s1284 + $0x14c] sm:$0x1]
    %v2498 = vsel %vm1287, %v2117, %v2497
    %2499 = vst [vmem:[%s1284 + $0x14c] sm:$0x1] %v2498
    %v2500 = vld [vmem:[%s1284 + $0x150] sm:$0xf]
    %v2501 = vsel %vm2317, %v2124, %v2500
    %2502 = vst [vmem:[%s1284 + $0x150] sm:$0xf] %v2501
    %2503 = vst.msk [vmem:[%s1284 + $0x154] sm:$0xf] %vm1269, %v2133
    %v2504 = vld [vmem:[%s1284 + $0x158] sm:$0x1]
    %v2505 = vsel %vm1287, %v2134, %v2504
    %2506 = vst [vmem:[%s1284 + $0x158] sm:$0x1] %v2505
    %v2507 = vld [vmem:[%s1284 + $0x15c] sm:$0xf]
    %v2508 = vsel %vm2317, %v2141, %v2507
    %2509 = vst [vmem:[%s1284 + $0x15c] sm:$0xf] %v2508
    %2510 = vst.msk [vmem:[%s1284 + $0x160] sm:$0xf] %vm1269, %v2150
    %v2511 = vld [vmem:[%s1284 + $0x164] sm:$0x1]
    %v2512 = vsel %vm1287, %v2151, %v2511
    %2513 = vst [vmem:[%s1284 + $0x164] sm:$0x1] %v2512
    %v2514 = vld [vmem:[%s1284 + $0x168] sm:$0xf]
    %v2515 = vsel %vm2317, %v2158, %v2514
    %2516 = vst [vmem:[%s1284 + $0x168] sm:$0xf] %v2515
    %2517 = vst.msk [vmem:[%s1284 + $0x16c] sm:$0xf] %vm1269, %v2167
    %v2518 = vld [vmem:[%s1284 + $0x170] sm:$0x1]
    %v2519 = vsel %vm1287, %v2168, %v2518
    %2520 = vst [vmem:[%s1284 + $0x170] sm:$0x1] %v2519
    %v2521 = vld [vmem:[%s1284 + $0x174] sm:$0xf]
    %v2522 = vsel %vm2317, %v2175, %v2521
    %2523 = vst [vmem:[%s1284 + $0x174] sm:$0xf] %v2522
    %2524 = vst.msk [vmem:[%s1284 + $0x178] sm:$0xf] %vm1269, %v2184
    %v2525 = vld [vmem:[%s1284 + $0x17c] sm:$0x1]
    %v2526 = vsel %vm1287, %v2185, %v2525
    %2527 = vst [vmem:[%s1284 + $0x17c] sm:$0x1] %v2526
    %v2528 = vld [vmem:[%s1284 + $0x180] sm:$0xf]
    %v2529 = vsel %vm2317, %v2192, %v2528
    %2530 = vst [vmem:[%s1284 + $0x180] sm:$0xf] %v2529
    %2531 = vst.msk [vmem:[%s1284 + $0x184] sm:$0xf] %vm1269, %v2201
    %v2532 = vld [vmem:[%s1284 + $0x188] sm:$0x1]
    %v2533 = vsel %vm1287, %v2202, %v2532
    %2534 = vst [vmem:[%s1284 + $0x188] sm:$0x1] %v2533
    %v2535 = vld [vmem:[%s1284 + $0x18c] sm:$0xf]
    %v2536 = vsel %vm2317, %v2209, %v2535
    %2537 = vst [vmem:[%s1284 + $0x18c] sm:$0xf] %v2536
    %2538 = vst.msk [vmem:[%s1284 + $0x190] sm:$0xf] %vm1269, %v2218
    %v2539 = vld [vmem:[%s1284 + $0x194] sm:$0x1]
    %v2540 = vsel %vm1287, %v2219, %v2539
    %2541 = vst [vmem:[%s1284 + $0x194] sm:$0x1] %v2540
    %v2542 = vld [vmem:[#allocation2] sm:$0xf]
    %v2543 = vld [vmem:[#allocation2 + $0x4] sm:$0xf]
    %v2544 = vld [vmem:[#allocation2 + $0xc] sm:$0xf]
    %v2545 = vld [vmem:[#allocation2 + $0x10] sm:$0xf]
    %v2546 = vld [vmem:[#allocation2 + $0x18] sm:$0xf]
    %v2547 = vld [vmem:[#allocation2 + $0x1c] sm:$0xf]
    %v2548 = vld [vmem:[#allocation2 + $0x24] sm:$0xf]
    %v2549 = vld [vmem:[#allocation2 + $0x28] sm:$0xf]
    %v2550 = vld [vmem:[#allocation2 + $0x30] sm:$0xf]
    %v2551 = vld [vmem:[#allocation2 + $0x34] sm:$0xf]
    %v2552 = vld [vmem:[#allocation2 + $0x3c] sm:$0xf]
    %v2553 = vld [vmem:[#allocation2 + $0x40] sm:$0xf]
    %v2554 = vld [vmem:[#allocation2 + $0x48] sm:$0xf]
    %v2555 = vld [vmem:[#allocation2 + $0x4c] sm:$0xf]
    %v2556 = vld [vmem:[#allocation2 + $0x54] sm:$0xf]
    %v2557 = vld [vmem:[#allocation2 + $0x58] sm:$0xf]
    %v2558 = vld [vmem:[#allocation2 + $0x60] sm:$0xf]
    %v2559 = vld [vmem:[#allocation2 + $0x64] sm:$0xf]
    %v2560 = vld [vmem:[#allocation2 + $0x6c] sm:$0xf]
    %v2561 = vld [vmem:[#allocation2 + $0x70] sm:$0xf]
    %v2562 = vld [vmem:[#allocation2 + $0x78] sm:$0xf]
    %v2563 = vld [vmem:[#allocation2 + $0x7c] sm:$0xf]
    %v2564 = vld [vmem:[#allocation2 + $0x84] sm:$0xf]
    %v2565 = vld [vmem:[#allocation2 + $0x88] sm:$0xf]
    %v2566 = vld [vmem:[#allocation2 + $0x90] sm:$0xf]
    %v2567 = vld [vmem:[#allocation2 + $0x94] sm:$0xf]
    %v2568 = vld [vmem:[#allocation2 + $0x9c] sm:$0xf]
    %v2569 = vld [vmem:[#allocation2 + $0xa0] sm:$0xf]
    %v2570 = vld [vmem:[#allocation2 + $0xa8] sm:$0xf]
    %v2571 = vld [vmem:[#allocation2 + $0xac] sm:$0xf]
    %v2572 = vld [vmem:[#allocation2 + $0xb4] sm:$0xf]
    %v2573 = vld [vmem:[#allocation2 + $0xb8] sm:$0xf]
    %v2574 = vld [vmem:[#allocation2 + $0xd8] sm:$0xf]
    %v2575 = vld [vmem:[#allocation2 + $0xdc] sm:$0xf]
    %v2576 = vld [vmem:[#allocation2 + $0xe4] sm:$0xf]
    %v2577 = vld [vmem:[#allocation2 + $0xe8] sm:$0xf]
    %v2578 = vld [vmem:[#allocation2 + $0xf0] sm:$0xf]
    %v2579 = vld [vmem:[#allocation2 + $0xf4] sm:$0xf]
    %v2580 = vld [vmem:[#allocation2 + $0xfc] sm:$0xf]
    %v2581 = vld [vmem:[#allocation2 + $0x100] sm:$0xf]
    %v2582 = vld [vmem:[#allocation2 + $0x108] sm:$0xf]
    %v2583 = vld [vmem:[#allocation2 + $0x10c] sm:$0xf]
    %v2584 = vld [vmem:[#allocation2 + $0x114] sm:$0xf]
    %v2585 = vld [vmem:[#allocation2 + $0x118] sm:$0xf]
    %v2586 = vld [vmem:[#allocation2 + $0x120] sm:$0xf]
    %v2587 = vld [vmem:[#allocation2 + $0x124] sm:$0xf]
    %v2588 = vld [vmem:[#allocation2 + $0x12c] sm:$0xf]
    %v2589 = vld [vmem:[#allocation2 + $0x130] sm:$0xf]
    %v2590 = vld [vmem:[#allocation2 + $0x138] sm:$0xf]
    %v2591 = vld [vmem:[#allocation2 + $0x13c] sm:$0xf]
    %v2592 = vld [vmem:[#allocation2 + $0x144] sm:$0xf]
    %v2593 = vld [vmem:[#allocation2 + $0x148] sm:$0xf]
    %v2594 = vld [vmem:[#allocation2 + $0x150] sm:$0xf]
    %v2595 = vld [vmem:[#allocation2 + $0x154] sm:$0xf]
    %v2596 = vld [vmem:[#allocation2 + $0x15c] sm:$0xf]
    %v2597 = vld [vmem:[#allocation2 + $0x160] sm:$0xf]
    %v2598 = vld [vmem:[#allocation2 + $0x168] sm:$0xf]
    %v2599 = vld [vmem:[#allocation2 + $0x16c] sm:$0xf]
    %v2600 = vld [vmem:[#allocation2 + $0x174] sm:$0xf]
    %v2601 = vld [vmem:[#allocation2 + $0x178] sm:$0xf]
    %v2602 = vld [vmem:[#allocation2 + $0x180] sm:$0xf]
    %v2603 = vld [vmem:[#allocation2 + $0x184] sm:$0xf]
    %v2604 = vld [vmem:[#allocation2 + $0x18c] sm:$0xf]
    %v2605 = vld [vmem:[#allocation2 + $0x190] sm:$0xf]
    %v2606 = vld [vmem:[#allocation2 + $0x8] sm:$0x1]
    %v2607 = vld [vmem:[#allocation2 + $0x14] sm:$0x1]
    %v2608 = vld [vmem:[#allocation2 + $0x20] sm:$0x1]
    %v2609 = vld [vmem:[#allocation2 + $0x2c] sm:$0x1]
    %v2610 = vld [vmem:[#allocation2 + $0x38] sm:$0x1]
    %v2611 = vld [vmem:[#allocation2 + $0x44] sm:$0x1]
    %v2612 = vld [vmem:[#allocation2 + $0x50] sm:$0x1]
    %v2613 = vld [vmem:[#allocation2 + $0x5c] sm:$0x1]
    %v2614 = vld [vmem:[#allocation2 + $0x68] sm:$0x1]
    %v2615 = vld [vmem:[#allocation2 + $0x74] sm:$0x1]
    %v2616 = vld [vmem:[#allocation2 + $0x80] sm:$0x1]
    %v2617 = vld [vmem:[#allocation2 + $0x8c] sm:$0x1]
    %v2618 = vld [vmem:[#allocation2 + $0x98] sm:$0x1]
    %v2619 = vld [vmem:[#allocation2 + $0xa4] sm:$0x1]
    %v2620 = vld [vmem:[#allocation2 + $0xb0] sm:$0x1]
    %v2621 = vld [vmem:[#allocation2 + $0xbc] sm:$0x1]
    %v2622 = vld [vmem:[#allocation2 + $0xe0] sm:$0x1]
    %v2623 = vld [vmem:[#allocation2 + $0xec] sm:$0x1]
    %v2624 = vld [vmem:[#allocation2 + $0xf8] sm:$0x1]
    %v2625 = vld [vmem:[#allocation2 + $0x104] sm:$0x1]
    %v2626 = vld [vmem:[#allocation2 + $0x110] sm:$0x1]
    %v2627 = vld [vmem:[#allocation2 + $0x11c] sm:$0x1]
    %v2628 = vld [vmem:[#allocation2 + $0x128] sm:$0x1]
    %v2629 = vld [vmem:[#allocation2 + $0x134] sm:$0x1]
    %v2630 = vld [vmem:[#allocation2 + $0x140] sm:$0x1]
    %v2631 = vld [vmem:[#allocation2 + $0x14c] sm:$0x1]
    %v2632 = vld [vmem:[#allocation2 + $0x158] sm:$0x1]
    %v2633 = vld [vmem:[#allocation2 + $0x164] sm:$0x1]
    %v2634 = vld [vmem:[#allocation2 + $0x170] sm:$0x1]
    %v2635 = vld [vmem:[#allocation2 + $0x17c] sm:$0x1]
    %v2636 = vld [vmem:[#allocation2 + $0x188] sm:$0x1]
    %v2637 = vld [vmem:[#allocation2 + $0x194] sm:$0x1]
    %vm2638 = vsmask.f32 3328
    %vm2639 = vsmask.f32 7440
    %vm2640 = vmor %vm2638, %vm2639
    %v2642 = vshrl.u32 %v2542, 16
    %v2644 = vrot.slane %v2642, 4
    %v2645 = vshll.u32 %v2542, 16
    %v2647 = vrot.slane %v2645, 5
    %v2648 = vor.u32 %v2644, %v2647
    %v2649 = vrot.slane %v2648, 4
    %v2651 = vshll.u32 %v2543, 16
    %v2653 = vrot.slane %v2651, 5
    %v2654 = vsel %vm2640, %v2649, %v2653
    %v2655 = vshrl.u32 %v2543, 16
    %v2657 = vrot.slane %v2655, 4
    %v2658 = vor.u32 %v2657, %v2653
    %v2659 = vrot.slane %v2658, 4
    %v2661 = vshll.u32 %v2606, 16
    %v2663 = vrot.slane %v2661, 5
    %v2664 = vsel %vm2640, %v2659, %v2663
    %v2666 = vshrl.u32 %v2544, 16
    %v2668 = vrot.slane %v2666, 4
    %v2669 = vshll.u32 %v2544, 16
    %v2671 = vrot.slane %v2669, 5
    %v2672 = vor.u32 %v2668, %v2671
    %v2673 = vrot.slane %v2672, 4
    %v2675 = vshll.u32 %v2545, 16
    %v2677 = vrot.slane %v2675, 5
    %v2678 = vsel %vm2640, %v2673, %v2677
    %v2679 = vshrl.u32 %v2545, 16
    %v2681 = vrot.slane %v2679, 4
    %v2682 = vor.u32 %v2681, %v2677
    %v2683 = vrot.slane %v2682, 4
    %v2685 = vshll.u32 %v2607, 16
    %v2687 = vrot.slane %v2685, 5
    %v2688 = vsel %vm2640, %v2683, %v2687
    %v2690 = vshrl.u32 %v2546, 16
    %v2692 = vrot.slane %v2690, 4
    %v2693 = vshll.u32 %v2546, 16
    %v2695 = vrot.slane %v2693, 5
    %v2696 = vor.u32 %v2692, %v2695
    %v2697 = vrot.slane %v2696, 4
    %v2699 = vshll.u32 %v2547, 16
    %v2701 = vrot.slane %v2699, 5
    %v2702 = vsel %vm2640, %v2697, %v2701
    %v2703 = vshrl.u32 %v2547, 16
    %v2705 = vrot.slane %v2703, 4
    %v2706 = vor.u32 %v2705, %v2701
    %v2707 = vrot.slane %v2706, 4
    %v2709 = vshll.u32 %v2608, 16
    %v2711 = vrot.slane %v2709, 5
    %v2712 = vsel %vm2640, %v2707, %v2711
    %v2714 = vshrl.u32 %v2548, 16
    %v2716 = vrot.slane %v2714, 4
    %v2717 = vshll.u32 %v2548, 16
    %v2719 = vrot.slane %v2717, 5
    %v2720 = vor.u32 %v2716, %v2719
    %v2721 = vrot.slane %v2720, 4
    %v2723 = vshll.u32 %v2549, 16
    %v2725 = vrot.slane %v2723, 5
    %v2726 = vsel %vm2640, %v2721, %v2725
    %v2727 = vshrl.u32 %v2549, 16
    %v2729 = vrot.slane %v2727, 4
    %v2730 = vor.u32 %v2729, %v2725
    %v2731 = vrot.slane %v2730, 4
    %v2733 = vshll.u32 %v2609, 16
    %v2735 = vrot.slane %v2733, 5
    %v2736 = vsel %vm2640, %v2731, %v2735
    %v2738 = vshrl.u32 %v2550, 16
    %v2740 = vrot.slane %v2738, 4
    %v2741 = vshll.u32 %v2550, 16
    %v2743 = vrot.slane %v2741, 5
    %v2744 = vor.u32 %v2740, %v2743
    %v2745 = vrot.slane %v2744, 4
    %v2747 = vshll.u32 %v2551, 16
    %v2749 = vrot.slane %v2747, 5
    %v2750 = vsel %vm2640, %v2745, %v2749
    %v2751 = vshrl.u32 %v2551, 16
    %v2753 = vrot.slane %v2751, 4
    %v2754 = vor.u32 %v2753, %v2749
    %v2755 = vrot.slane %v2754, 4
    %v2757 = vshll.u32 %v2610, 16
    %v2759 = vrot.slane %v2757, 5
    %v2760 = vsel %vm2640, %v2755, %v2759
    %v2762 = vshrl.u32 %v2552, 16
    %v2764 = vrot.slane %v2762, 4
    %v2765 = vshll.u32 %v2552, 16
    %v2767 = vrot.slane %v2765, 5
    %v2768 = vor.u32 %v2764, %v2767
    %v2769 = vrot.slane %v2768, 4
    %v2771 = vshll.u32 %v2553, 16
    %v2773 = vrot.slane %v2771, 5
    %v2774 = vsel %vm2640, %v2769, %v2773
    %v2775 = vshrl.u32 %v2553, 16
    %v2777 = vrot.slane %v2775, 4
    %v2778 = vor.u32 %v2777, %v2773
    %v2779 = vrot.slane %v2778, 4
    %v2781 = vshll.u32 %v2611, 16
    %v2783 = vrot.slane %v2781, 5
    %v2784 = vsel %vm2640, %v2779, %v2783
    %v2786 = vshrl.u32 %v2554, 16
    %v2788 = vrot.slane %v2786, 4
    %v2789 = vshll.u32 %v2554, 16
    %v2791 = vrot.slane %v2789, 5
    %v2792 = vor.u32 %v2788, %v2791
    %v2793 = vrot.slane %v2792, 4
    %v2795 = vshll.u32 %v2555, 16
    %v2797 = vrot.slane %v2795, 5
    %v2798 = vsel %vm2640, %v2793, %v2797
    %v2799 = vshrl.u32 %v2555, 16
    %v2801 = vrot.slane %v2799, 4
    %v2802 = vor.u32 %v2801, %v2797
    %v2803 = vrot.slane %v2802, 4
    %v2805 = vshll.u32 %v2612, 16
    %v2807 = vrot.slane %v2805, 5
    %v2808 = vsel %vm2640, %v2803, %v2807
    %v2810 = vshrl.u32 %v2556, 16
    %v2812 = vrot.slane %v2810, 4
    %v2813 = vshll.u32 %v2556, 16
    %v2815 = vrot.slane %v2813, 5
    %v2816 = vor.u32 %v2812, %v2815
    %v2817 = vrot.slane %v2816, 4
    %v2819 = vshll.u32 %v2557, 16
    %v2821 = vrot.slane %v2819, 5
    %v2822 = vsel %vm2640, %v2817, %v2821
    %v2823 = vshrl.u32 %v2557, 16
    %v2825 = vrot.slane %v2823, 4
    %v2826 = vor.u32 %v2825, %v2821
    %v2827 = vrot.slane %v2826, 4
    %v2829 = vshll.u32 %v2613, 16
    %v2831 = vrot.slane %v2829, 5
    %v2832 = vsel %vm2640, %v2827, %v2831
    %v2834 = vshrl.u32 %v2558, 16
    %v2836 = vrot.slane %v2834, 4
    %v2837 = vshll.u32 %v2558, 16
    %v2839 = vrot.slane %v2837, 5
    %v2840 = vor.u32 %v2836, %v2839
    %v2841 = vrot.slane %v2840, 4
    %v2843 = vshll.u32 %v2559, 16
    %v2845 = vrot.slane %v2843, 5
    %v2846 = vsel %vm2640, %v2841, %v2845
    %v2847 = vshrl.u32 %v2559, 16
    %v2849 = vrot.slane %v2847, 4
    %v2850 = vor.u32 %v2849, %v2845
    %v2851 = vrot.slane %v2850, 4
    %v2853 = vshll.u32 %v2614, 16
    %v2855 = vrot.slane %v2853, 5
    %v2856 = vsel %vm2640, %v2851, %v2855
    %v2858 = vshrl.u32 %v2560, 16
    %v2860 = vrot.slane %v2858, 4
    %v2861 = vshll.u32 %v2560, 16
    %v2863 = vrot.slane %v2861, 5
    %v2864 = vor.u32 %v2860, %v2863
    %v2865 = vrot.slane %v2864, 4
    %v2867 = vshll.u32 %v2561, 16
    %v2869 = vrot.slane %v2867, 5
    %v2870 = vsel %vm2640, %v2865, %v2869
    %v2871 = vshrl.u32 %v2561, 16
    %v2873 = vrot.slane %v2871, 4
    %v2874 = vor.u32 %v2873, %v2869
    %v2875 = vrot.slane %v2874, 4
    %v2877 = vshll.u32 %v2615, 16
    %v2879 = vrot.slane %v2877, 5
    %v2880 = vsel %vm2640, %v2875, %v2879
    %v2882 = vshrl.u32 %v2562, 16
    %v2884 = vrot.slane %v2882, 4
    %v2885 = vshll.u32 %v2562, 16
    %v2887 = vrot.slane %v2885, 5
    %v2888 = vor.u32 %v2884, %v2887
    %v2889 = vrot.slane %v2888, 4
    %v2891 = vshll.u32 %v2563, 16
    %v2893 = vrot.slane %v2891, 5
    %v2894 = vsel %vm2640, %v2889, %v2893
    %v2895 = vshrl.u32 %v2563, 16
    %v2897 = vrot.slane %v2895, 4
    %v2898 = vor.u32 %v2897, %v2893
    %v2899 = vrot.slane %v2898, 4
    %v2901 = vshll.u32 %v2616, 16
    %v2903 = vrot.slane %v2901, 5
    %v2904 = vsel %vm2640, %v2899, %v2903
    %v2906 = vshrl.u32 %v2564, 16
    %v2908 = vrot.slane %v2906, 4
    %v2909 = vshll.u32 %v2564, 16
    %v2911 = vrot.slane %v2909, 5
    %v2912 = vor.u32 %v2908, %v2911
    %v2913 = vrot.slane %v2912, 4
    %v2915 = vshll.u32 %v2565, 16
    %v2917 = vrot.slane %v2915, 5
    %v2918 = vsel %vm2640, %v2913, %v2917
    %v2919 = vshrl.u32 %v2565, 16
    %v2921 = vrot.slane %v2919, 4
    %v2922 = vor.u32 %v2921, %v2917
    %v2923 = vrot.slane %v2922, 4
    %v2925 = vshll.u32 %v2617, 16
    %v2927 = vrot.slane %v2925, 5
    %v2928 = vsel %vm2640, %v2923, %v2927
    %v2930 = vshrl.u32 %v2566, 16
    %v2932 = vrot.slane %v2930, 4
    %v2933 = vshll.u32 %v2566, 16
    %v2935 = vrot.slane %v2933, 5
    %v2936 = vor.u32 %v2932, %v2935
    %v2937 = vrot.slane %v2936, 4
    %v2939 = vshll.u32 %v2567, 16
    %v2941 = vrot.slane %v2939, 5
    %v2942 = vsel %vm2640, %v2937, %v2941
    %v2943 = vshrl.u32 %v2567, 16
    %v2945 = vrot.slane %v2943, 4
    %v2946 = vor.u32 %v2945, %v2941
    %v2947 = vrot.slane %v2946, 4
    %v2949 = vshll.u32 %v2618, 16
    %v2951 = vrot.slane %v2949, 5
    %v2952 = vsel %vm2640, %v2947, %v2951
    %v2954 = vshrl.u32 %v2568, 16
    %v2956 = vrot.slane %v2954, 4
    %v2957 = vshll.u32 %v2568, 16
    %v2959 = vrot.slane %v2957, 5
    %v2960 = vor.u32 %v2956, %v2959
    %v2961 = vrot.slane %v2960, 4
    %v2963 = vshll.u32 %v2569, 16
    %v2965 = vrot.slane %v2963, 5
    %v2966 = vsel %vm2640, %v2961, %v2965
    %v2967 = vshrl.u32 %v2569, 16
    %v2969 = vrot.slane %v2967, 4
    %v2970 = vor.u32 %v2969, %v2965
    %v2971 = vrot.slane %v2970, 4
    %v2973 = vshll.u32 %v2619, 16
    %v2975 = vrot.slane %v2973, 5
    %v2976 = vsel %vm2640, %v2971, %v2975
    %v2978 = vshrl.u32 %v2570, 16
    %v2980 = vrot.slane %v2978, 4
    %v2981 = vshll.u32 %v2570, 16
    %v2983 = vrot.slane %v2981, 5
    %v2984 = vor.u32 %v2980, %v2983
    %v2985 = vrot.slane %v2984, 4
    %v2987 = vshll.u32 %v2571, 16
    %v2989 = vrot.slane %v2987, 5
    %v2990 = vsel %vm2640, %v2985, %v2989
    %v2991 = vshrl.u32 %v2571, 16
    %v2993 = vrot.slane %v2991, 4
    %v2994 = vor.u32 %v2993, %v2989
    %v2995 = vrot.slane %v2994, 4
    %v2997 = vshll.u32 %v2620, 16
    %v2999 = vrot.slane %v2997, 5
    %v3000 = vsel %vm2640, %v2995, %v2999
    %v3002 = vshrl.u32 %v2572, 16
    %v3004 = vrot.slane %v3002, 4
    %v3005 = vshll.u32 %v2572, 16
    %v3007 = vrot.slane %v3005, 5
    %v3008 = vor.u32 %v3004, %v3007
    %v3009 = vrot.slane %v3008, 4
    %v3011 = vshll.u32 %v2573, 16
    %v3013 = vrot.slane %v3011, 5
    %v3014 = vsel %vm2640, %v3009, %v3013
    %v3015 = vshrl.u32 %v2573, 16
    %v3017 = vrot.slane %v3015, 4
    %v3018 = vor.u32 %v3017, %v3013
    %v3019 = vrot.slane %v3018, 4
    %v3021 = vshll.u32 %v2621, 16
    %v3023 = vrot.slane %v3021, 5
    %v3024 = vsel %vm2640, %v3019, %v3023
    %v3026 = vshrl.u32 %v2574, 16
    %v3028 = vrot.slane %v3026, 4
    %v3029 = vshll.u32 %v2574, 16
    %v3031 = vrot.slane %v3029, 5
    %v3032 = vor.u32 %v3028, %v3031
    %v3033 = vrot.slane %v3032, 4
    %v3035 = vshll.u32 %v2575, 16
    %v3037 = vrot.slane %v3035, 5
    %v3038 = vsel %vm2640, %v3033, %v3037
    %v3039 = vshrl.u32 %v2575, 16
    %v3041 = vrot.slane %v3039, 4
    %v3042 = vor.u32 %v3041, %v3037
    %v3043 = vrot.slane %v3042, 4
    %v3045 = vshll.u32 %v2622, 16
    %v3047 = vrot.slane %v3045, 5
    %v3048 = vsel %vm2640, %v3043, %v3047
    %v3050 = vshrl.u32 %v2576, 16
    %v3052 = vrot.slane %v3050, 4
    %v3053 = vshll.u32 %v2576, 16
    %v3055 = vrot.slane %v3053, 5
    %v3056 = vor.u32 %v3052, %v3055
    %v3057 = vrot.slane %v3056, 4
    %v3059 = vshll.u32 %v2577, 16
    %v3061 = vrot.slane %v3059, 5
    %v3062 = vsel %vm2640, %v3057, %v3061
    %v3063 = vshrl.u32 %v2577, 16
    %v3065 = vrot.slane %v3063, 4
    %v3066 = vor.u32 %v3065, %v3061
    %v3067 = vrot.slane %v3066, 4
    %v3069 = vshll.u32 %v2623, 16
    %v3071 = vrot.slane %v3069, 5
    %v3072 = vsel %vm2640, %v3067, %v3071
    %v3074 = vshrl.u32 %v2578, 16
    %v3076 = vrot.slane %v3074, 4
    %v3077 = vshll.u32 %v2578, 16
    %v3079 = vrot.slane %v3077, 5
    %v3080 = vor.u32 %v3076, %v3079
    %v3081 = vrot.slane %v3080, 4
    %v3083 = vshll.u32 %v2579, 16
    %v3085 = vrot.slane %v3083, 5
    %v3086 = vsel %vm2640, %v3081, %v3085
    %v3087 = vshrl.u32 %v2579, 16
    %v3089 = vrot.slane %v3087, 4
    %v3090 = vor.u32 %v3089, %v3085
    %v3091 = vrot.slane %v3090, 4
    %v3093 = vshll.u32 %v2624, 16
    %v3095 = vrot.slane %v3093, 5
    %v3096 = vsel %vm2640, %v3091, %v3095
    %v3098 = vshrl.u32 %v2580, 16
    %v3100 = vrot.slane %v3098, 4
    %v3101 = vshll.u32 %v2580, 16
    %v3103 = vrot.slane %v3101, 5
    %v3104 = vor.u32 %v3100, %v3103
    %v3105 = vrot.slane %v3104, 4
    %v3107 = vshll.u32 %v2581, 16
    %v3109 = vrot.slane %v3107, 5
    %v3110 = vsel %vm2640, %v3105, %v3109
    %v3111 = vshrl.u32 %v2581, 16
    %v3113 = vrot.slane %v3111, 4
    %v3114 = vor.u32 %v3113, %v3109
    %v3115 = vrot.slane %v3114, 4
    %v3117 = vshll.u32 %v2625, 16
    %v3119 = vrot.slane %v3117, 5
    %v3120 = vsel %vm2640, %v3115, %v3119
    %v3122 = vshrl.u32 %v2582, 16
    %v3124 = vrot.slane %v3122, 4
    %v3125 = vshll.u32 %v2582, 16
    %v3127 = vrot.slane %v3125, 5
    %v3128 = vor.u32 %v3124, %v3127
    %v3129 = vrot.slane %v3128, 4
    %v3131 = vshll.u32 %v2583, 16
    %v3133 = vrot.slane %v3131, 5
    %v3134 = vsel %vm2640, %v3129, %v3133
    %v3135 = vshrl.u32 %v2583, 16
    %v3137 = vrot.slane %v3135, 4
    %v3138 = vor.u32 %v3137, %v3133
    %v3139 = vrot.slane %v3138, 4
    %v3141 = vshll.u32 %v2626, 16
    %v3143 = vrot.slane %v3141, 5
    %v3144 = vsel %vm2640, %v3139, %v3143
    %v3146 = vshrl.u32 %v2584, 16
    %v3148 = vrot.slane %v3146, 4
    %v3149 = vshll.u32 %v2584, 16
    %v3151 = vrot.slane %v3149, 5
    %v3152 = vor.u32 %v3148, %v3151
    %v3153 = vrot.slane %v3152, 4
    %v3155 = vshll.u32 %v2585, 16
    %v3157 = vrot.slane %v3155, 5
    %v3158 = vsel %vm2640, %v3153, %v3157
    %v3159 = vshrl.u32 %v2585, 16
    %v3161 = vrot.slane %v3159, 4
    %v3162 = vor.u32 %v3161, %v3157
    %v3163 = vrot.slane %v3162, 4
    %v3165 = vshll.u32 %v2627, 16
    %v3167 = vrot.slane %v3165, 5
    %v3168 = vsel %vm2640, %v3163, %v3167
    %v3170 = vshrl.u32 %v2586, 16
    %v3172 = vrot.slane %v3170, 4
    %v3173 = vshll.u32 %v2586, 16
    %v3175 = vrot.slane %v3173, 5
    %v3176 = vor.u32 %v3172, %v3175
    %v3177 = vrot.slane %v3176, 4
    %v3179 = vshll.u32 %v2587, 16
    %v3181 = vrot.slane %v3179, 5
    %v3182 = vsel %vm2640, %v3177, %v3181
    %v3183 = vshrl.u32 %v2587, 16
    %v3185 = vrot.slane %v3183, 4
    %v3186 = vor.u32 %v3185, %v3181
    %v3187 = vrot.slane %v3186, 4
    %v3189 = vshll.u32 %v2628, 16
    %v3191 = vrot.slane %v3189, 5
    %v3192 = vsel %vm2640, %v3187, %v3191
    %v3194 = vshrl.u32 %v2588, 16
    %v3196 = vrot.slane %v3194, 4
    %v3197 = vshll.u32 %v2588, 16
    %v3199 = vrot.slane %v3197, 5
    %v3200 = vor.u32 %v3196, %v3199
    %v3201 = vrot.slane %v3200, 4
    %v3203 = vshll.u32 %v2589, 16
    %v3205 = vrot.slane %v3203, 5
    %v3206 = vsel %vm2640, %v3201, %v3205
    %v3207 = vshrl.u32 %v2589, 16
    %v3209 = vrot.slane %v3207, 4
    %v3210 = vor.u32 %v3209, %v3205
    %v3211 = vrot.slane %v3210, 4
    %v3213 = vshll.u32 %v2629, 16
    %v3215 = vrot.slane %v3213, 5
    %v3216 = vsel %vm2640, %v3211, %v3215
    %v3218 = vshrl.u32 %v2590, 16
    %v3220 = vrot.slane %v3218, 4
    %v3221 = vshll.u32 %v2590, 16
    %v3223 = vrot.slane %v3221, 5
    %v3224 = vor.u32 %v3220, %v3223
    %v3225 = vrot.slane %v3224, 4
    %v3227 = vshll.u32 %v2591, 16
    %v3229 = vrot.slane %v3227, 5
    %v3230 = vsel %vm2640, %v3225, %v3229
    %v3231 = vshrl.u32 %v2591, 16
    %v3233 = vrot.slane %v3231, 4
    %v3234 = vor.u32 %v3233, %v3229
    %v3235 = vrot.slane %v3234, 4
    %v3237 = vshll.u32 %v2630, 16
    %v3239 = vrot.slane %v3237, 5
    %v3240 = vsel %vm2640, %v3235, %v3239
    %v3242 = vshrl.u32 %v2592, 16
    %v3244 = vrot.slane %v3242, 4
    %v3245 = vshll.u32 %v2592, 16
    %v3247 = vrot.slane %v3245, 5
    %v3248 = vor.u32 %v3244, %v3247
    %v3249 = vrot.slane %v3248, 4
    %v3251 = vshll.u32 %v2593, 16
    %v3253 = vrot.slane %v3251, 5
    %v3254 = vsel %vm2640, %v3249, %v3253
    %v3255 = vshrl.u32 %v2593, 16
    %v3257 = vrot.slane %v3255, 4
    %v3258 = vor.u32 %v3257, %v3253
    %v3259 = vrot.slane %v3258, 4
    %v3261 = vshll.u32 %v2631, 16
    %v3263 = vrot.slane %v3261, 5
    %v3264 = vsel %vm2640, %v3259, %v3263
    %v3266 = vshrl.u32 %v2594, 16
    %v3268 = vrot.slane %v3266, 4
    %v3269 = vshll.u32 %v2594, 16
    %v3271 = vrot.slane %v3269, 5
    %v3272 = vor.u32 %v3268, %v3271
    %v3273 = vrot.slane %v3272, 4
    %v3275 = vshll.u32 %v2595, 16
    %v3277 = vrot.slane %v3275, 5
    %v3278 = vsel %vm2640, %v3273, %v3277
    %v3279 = vshrl.u32 %v2595, 16
    %v3281 = vrot.slane %v3279, 4
    %v3282 = vor.u32 %v3281, %v3277
    %v3283 = vrot.slane %v3282, 4
    %v3285 = vshll.u32 %v2632, 16
    %v3287 = vrot.slane %v3285, 5
    %v3288 = vsel %vm2640, %v3283, %v3287
    %v3290 = vshrl.u32 %v2596, 16
    %v3292 = vrot.slane %v3290, 4
    %v3293 = vshll.u32 %v2596, 16
    %v3295 = vrot.slane %v3293, 5
    %v3296 = vor.u32 %v3292, %v3295
    %v3297 = vrot.slane %v3296, 4
    %v3299 = vshll.u32 %v2597, 16
    %v3301 = vrot.slane %v3299, 5
    %v3302 = vsel %vm2640, %v3297, %v3301
    %v3303 = vshrl.u32 %v2597, 16
    %v3305 = vrot.slane %v3303, 4
    %v3306 = vor.u32 %v3305, %v3301
    %v3307 = vrot.slane %v3306, 4
    %v3309 = vshll.u32 %v2633, 16
    %v3311 = vrot.slane %v3309, 5
    %v3312 = vsel %vm2640, %v3307, %v3311
    %v3314 = vshrl.u32 %v2598, 16
    %v3316 = vrot.slane %v3314, 4
    %v3317 = vshll.u32 %v2598, 16
    %v3319 = vrot.slane %v3317, 5
    %v3320 = vor.u32 %v3316, %v3319
    %v3321 = vrot.slane %v3320, 4
    %v3323 = vshll.u32 %v2599, 16
    %v3325 = vrot.slane %v3323, 5
    %v3326 = vsel %vm2640, %v3321, %v3325
    %v3327 = vshrl.u32 %v2599, 16
    %v3329 = vrot.slane %v3327, 4
    %v3330 = vor.u32 %v3329, %v3325
    %v3331 = vrot.slane %v3330, 4
    %v3333 = vshll.u32 %v2634, 16
    %v3335 = vrot.slane %v3333, 5
    %v3336 = vsel %vm2640, %v3331, %v3335
    %v3338 = vshrl.u32 %v2600, 16
    %v3340 = vrot.slane %v3338, 4
    %v3341 = vshll.u32 %v2600, 16
    %v3343 = vrot.slane %v3341, 5
    %v3344 = vor.u32 %v3340, %v3343
    %v3345 = vrot.slane %v3344, 4
    %v3347 = vshll.u32 %v2601, 16
    %v3349 = vrot.slane %v3347, 5
    %v3350 = vsel %vm2640, %v3345, %v3349
    %v3351 = vshrl.u32 %v2601, 16
    %v3353 = vrot.slane %v3351, 4
    %v3354 = vor.u32 %v3353, %v3349
    %v3355 = vrot.slane %v3354, 4
    %v3357 = vshll.u32 %v2635, 16
    %v3359 = vrot.slane %v3357, 5
    %v3360 = vsel %vm2640, %v3355, %v3359
    %v3362 = vshrl.u32 %v2602, 16
    %v3364 = vrot.slane %v3362, 4
    %v3365 = vshll.u32 %v2602, 16
    %v3367 = vrot.slane %v3365, 5
    %v3368 = vor.u32 %v3364, %v3367
    %v3369 = vrot.slane %v3368, 4
    %v3371 = vshll.u32 %v2603, 16
    %v3373 = vrot.slane %v3371, 5
    %v3374 = vsel %vm2640, %v3369, %v3373
    %v3375 = vshrl.u32 %v2603, 16
    %v3377 = vrot.slane %v3375, 4
    %v3378 = vor.u32 %v3377, %v3373
    %v3379 = vrot.slane %v3378, 4
    %v3381 = vshll.u32 %v2636, 16
    %v3383 = vrot.slane %v3381, 5
    %v3384 = vsel %vm2640, %v3379, %v3383
    %v3386 = vshrl.u32 %v2604, 16
    %v3388 = vrot.slane %v3386, 4
    %v3389 = vshll.u32 %v2604, 16
    %v3391 = vrot.slane %v3389, 5
    %v3392 = vor.u32 %v3388, %v3391
    %v3393 = vrot.slane %v3392, 4
    %v3395 = vshll.u32 %v2605, 16
    %v3397 = vrot.slane %v3395, 5
    %v3398 = vsel %vm2640, %v3393, %v3397
    %v3399 = vshrl.u32 %v2605, 16
    %v3401 = vrot.slane %v3399, 4
    %v3402 = vor.u32 %v3401, %v3397
    %v3403 = vrot.slane %v3402, 4
    %v3405 = vshll.u32 %v2637, 16
    %v3407 = vrot.slane %v3405, 5
    %v3408 = vsel %vm2640, %v3403, %v3407
    %v3409 = vld [vmem:[#allocation2] sm:$0xe]
    %v3410 = vld [vmem:[#allocation2 + $0xc] sm:$0xe]
    %v3411 = vld [vmem:[#allocation2 + $0x18] sm:$0xe]
    %v3412 = vld [vmem:[#allocation2 + $0x24] sm:$0xe]
    %v3413 = vld [vmem:[#allocation2 + $0x30] sm:$0xe]
    %v3414 = vld [vmem:[#allocation2 + $0x3c] sm:$0xe]
    %v3415 = vld [vmem:[#allocation2 + $0x48] sm:$0xe]
    %v3416 = vld [vmem:[#allocation2 + $0x54] sm:$0xe]
    %v3417 = vld [vmem:[#allocation2 + $0x60] sm:$0xe]
    %v3418 = vld [vmem:[#allocation2 + $0x6c] sm:$0xe]
    %v3419 = vld [vmem:[#allocation2 + $0x78] sm:$0xe]
    %v3420 = vld [vmem:[#allocation2 + $0x84] sm:$0xe]
    %v3421 = vld [vmem:[#allocation2 + $0x90] sm:$0xe]
    %v3422 = vld [vmem:[#allocation2 + $0x9c] sm:$0xe]
    %v3423 = vld [vmem:[#allocation2 + $0xa8] sm:$0xe]
    %v3424 = vld [vmem:[#allocation2 + $0xb4] sm:$0xe]
    %v3425 = vld [vmem:[#allocation2 + $0xd8] sm:$0xe]
    %v3426 = vld [vmem:[#allocation2 + $0xe4] sm:$0xe]
    %v3427 = vld [vmem:[#allocation2 + $0xf0] sm:$0xe]
    %v3428 = vld [vmem:[#allocation2 + $0xfc] sm:$0xe]
    %v3429 = vld [vmem:[#allocation2 + $0x108] sm:$0xe]
    %v3430 = vld [vmem:[#allocation2 + $0x114] sm:$0xe]
    %v3431 = vld [vmem:[#allocation2 + $0x120] sm:$0xe]
    %v3432 = vld [vmem:[#allocation2 + $0x12c] sm:$0xe]
    %v3433 = vld [vmem:[#allocation2 + $0x138] sm:$0xe]
    %v3434 = vld [vmem:[#allocation2 + $0x144] sm:$0xe]
    %v3435 = vld [vmem:[#allocation2 + $0x150] sm:$0xe]
    %v3436 = vld [vmem:[#allocation2 + $0x15c] sm:$0xe]
    %v3437 = vld [vmem:[#allocation2 + $0x168] sm:$0xe]
    %v3438 = vld [vmem:[#allocation2 + $0x174] sm:$0xe]
    %v3439 = vld [vmem:[#allocation2 + $0x180] sm:$0xe]
    %v3440 = vld [vmem:[#allocation2 + $0x18c] sm:$0xe]
    %vm3537 = vcmask 1042432
    %vm3538 = vcmask 1046532
    %vm3539 = vmor %vm3537, %vm3538
    %v3540 = vrot.slane %v3409, 5
    %v3541 = vrot.slane %v3540, 4
    %v3542 = vrot.slane %v2543, 5
    %v3543 = vsel %vm3539, %v3541, %v3542
    %v3544 = vrot.slane %v3542, 4
    %v3545 = vrot.slane %v2606, 5
    %v3546 = vsel %vm3539, %v3544, %v3545
    %v3547 = vrot.slane %v3410, 5
    %v3548 = vrot.slane %v3547, 4
    %v3549 = vrot.slane %v2545, 5
    %v3550 = vsel %vm3539, %v3548, %v3549
    %v3551 = vrot.slane %v3549, 4
    %v3552 = vrot.slane %v2607, 5
    %v3553 = vsel %vm3539, %v3551, %v3552
    %v3554 = vrot.slane %v3411, 5
    %v3555 = vrot.slane %v3554, 4
    %v3556 = vrot.slane %v2547, 5
    %v3557 = vsel %vm3539, %v3555, %v3556
    %v3558 = vrot.slane %v3556, 4
    %v3559 = vrot.slane %v2608, 5
    %v3560 = vsel %vm3539, %v3558, %v3559
    %v3561 = vrot.slane %v3412, 5
    %v3562 = vrot.slane %v3561, 4
    %v3563 = vrot.slane %v2549, 5
    %v3564 = vsel %vm3539, %v3562, %v3563
    %v3565 = vrot.slane %v3563, 4
    %v3566 = vrot.slane %v2609, 5
    %v3567 = vsel %vm3539, %v3565, %v3566
    %v3568 = vrot.slane %v3413, 5
    %v3569 = vrot.slane %v3568, 4
    %v3570 = vrot.slane %v2551, 5
    %v3571 = vsel %vm3539, %v3569, %v3570
    %v3572 = vrot.slane %v3570, 4
    %v3573 = vrot.slane %v2610, 5
    %v3574 = vsel %vm3539, %v3572, %v3573
    %v3575 = vrot.slane %v3414, 5
    %v3576 = vrot.slane %v3575, 4
    %v3577 = vrot.slane %v2553, 5
    %v3578 = vsel %vm3539, %v3576, %v3577
    %v3579 = vrot.slane %v3577, 4
    %v3580 = vrot.slane %v2611, 5
    %v3581 = vsel %vm3539, %v3579, %v3580
    %v3582 = vrot.slane %v3415, 5
    %v3583 = vrot.slane %v3582, 4
    %v3584 = vrot.slane %v2555, 5
    %v3585 = vsel %vm3539, %v3583, %v3584
    %v3586 = vrot.slane %v3584, 4
    %v3587 = vrot.slane %v2612, 5
    %v3588 = vsel %vm3539, %v3586, %v3587
    %v3589 = vrot.slane %v3416, 5
    %v3590 = vrot.slane %v3589, 4
    %v3591 = vrot.slane %v2557, 5
    %v3592 = vsel %vm3539, %v3590, %v3591
    %v3593 = vrot.slane %v3591, 4
    %v3594 = vrot.slane %v2613, 5
    %v3595 = vsel %vm3539, %v3593, %v3594
    %v3596 = vrot.slane %v3417, 5
    %v3597 = vrot.slane %v3596, 4
    %v3598 = vrot.slane %v2559, 5
    %v3599 = vsel %vm3539, %v3597, %v3598
    %v3600 = vrot.slane %v3598, 4
    %v3601 = vrot.slane %v2614, 5
    %v3602 = vsel %vm3539, %v3600, %v3601
    %v3603 = vrot.slane %v3418, 5
    %v3604 = vrot.slane %v3603, 4
    %v3605 = vrot.slane %v2561, 5
    %v3606 = vsel %vm3539, %v3604, %v3605
    %v3607 = vrot.slane %v3605, 4
    %v3608 = vrot.slane %v2615, 5
    %v3609 = vsel %vm3539, %v3607, %v3608
    %v3610 = vrot.slane %v3419, 5
    %v3611 = vrot.slane %v3610, 4
    %v3612 = vrot.slane %v2563, 5
    %v3613 = vsel %vm3539, %v3611, %v3612
    %v3614 = vrot.slane %v3612, 4
    %v3615 = vrot.slane %v2616, 5
    %v3616 = vsel %vm3539, %v3614, %v3615
    %v3617 = vrot.slane %v3420, 5
    %v3618 = vrot.slane %v3617, 4
    %v3619 = vrot.slane %v2565, 5
    %v3620 = vsel %vm3539, %v3618, %v3619
    %v3621 = vrot.slane %v3619, 4
    %v3622 = vrot.slane %v2617, 5
    %v3623 = vsel %vm3539, %v3621, %v3622
    %v3624 = vrot.slane %v3421, 5
    %v3625 = vrot.slane %v3624, 4
    %v3626 = vrot.slane %v2567, 5
    %v3627 = vsel %vm3539, %v3625, %v3626
    %v3628 = vrot.slane %v3626, 4
    %v3629 = vrot.slane %v2618, 5
    %v3630 = vsel %vm3539, %v3628, %v3629
    %v3631 = vrot.slane %v3422, 5
    %v3632 = vrot.slane %v3631, 4
    %v3633 = vrot.slane %v2569, 5
    %v3634 = vsel %vm3539, %v3632, %v3633
    %v3635 = vrot.slane %v3633, 4
    %v3636 = vrot.slane %v2619, 5
    %v3637 = vsel %vm3539, %v3635, %v3636
    %v3638 = vrot.slane %v3423, 5
    %v3639 = vrot.slane %v3638, 4
    %v3640 = vrot.slane %v2571, 5
    %v3641 = vsel %vm3539, %v3639, %v3640
    %v3642 = vrot.slane %v3640, 4
    %v3643 = vrot.slane %v2620, 5
    %v3644 = vsel %vm3539, %v3642, %v3643
    %v3645 = vrot.slane %v3424, 5
    %v3646 = vrot.slane %v3645, 4
    %v3647 = vrot.slane %v2573, 5
    %v3648 = vsel %vm3539, %v3646, %v3647
    %v3649 = vrot.slane %v3647, 4
    %v3650 = vrot.slane %v2621, 5
    %v3651 = vsel %vm3539, %v3649, %v3650
    %v3652 = vrot.slane %v3425, 5
    %v3653 = vrot.slane %v3652, 4
    %v3654 = vrot.slane %v2575, 5
    %v3655 = vsel %vm3539, %v3653, %v3654
    %v3656 = vrot.slane %v3654, 4
    %v3657 = vrot.slane %v2622, 5
    %v3658 = vsel %vm3539, %v3656, %v3657
    %v3659 = vrot.slane %v3426, 5
    %v3660 = vrot.slane %v3659, 4
    %v3661 = vrot.slane %v2577, 5
    %v3662 = vsel %vm3539, %v3660, %v3661
    %v3663 = vrot.slane %v3661, 4
    %v3664 = vrot.slane %v2623, 5
    %v3665 = vsel %vm3539, %v3663, %v3664
    %v3666 = vrot.slane %v3427, 5
    %v3667 = vrot.slane %v3666, 4
    %v3668 = vrot.slane %v2579, 5
    %v3669 = vsel %vm3539, %v3667, %v3668
    %v3670 = vrot.slane %v3668, 4
    %v3671 = vrot.slane %v2624, 5
    %v3672 = vsel %vm3539, %v3670, %v3671
    %v3673 = vrot.slane %v3428, 5
    %v3674 = vrot.slane %v3673, 4
    %v3675 = vrot.slane %v2581, 5
    %v3676 = vsel %vm3539, %v3674, %v3675
    %v3677 = vrot.slane %v3675, 4
    %v3678 = vrot.slane %v2625, 5
    %v3679 = vsel %vm3539, %v3677, %v3678
    %v3680 = vrot.slane %v3429, 5
    %v3681 = vrot.slane %v3680, 4
    %v3682 = vrot.slane %v2583, 5
    %v3683 = vsel %vm3539, %v3681, %v3682
    %v3684 = vrot.slane %v3682, 4
    %v3685 = vrot.slane %v2626, 5
    %v3686 = vsel %vm3539, %v3684, %v3685
    %v3687 = vrot.slane %v3430, 5
    %v3688 = vrot.slane %v3687, 4
    %v3689 = vrot.slane %v2585, 5
    %v3690 = vsel %vm3539, %v3688, %v3689
    %v3691 = vrot.slane %v3689, 4
    %v3692 = vrot.slane %v2627, 5
    %v3693 = vsel %vm3539, %v3691, %v3692
    %v3694 = vrot.slane %v3431, 5
    %v3695 = vrot.slane %v3694, 4
    %v3696 = vrot.slane %v2587, 5
    %v3697 = vsel %vm3539, %v3695, %v3696
    %v3698 = vrot.slane %v3696, 4
    %v3699 = vrot.slane %v2628, 5
    %v3700 = vsel %vm3539, %v3698, %v3699
    %v3701 = vrot.slane %v3432, 5
    %v3702 = vrot.slane %v3701, 4
    %v3703 = vrot.slane %v2589, 5
    %v3704 = vsel %vm3539, %v3702, %v3703
    %v3705 = vrot.slane %v3703, 4
    %v3706 = vrot.slane %v2629, 5
    %v3707 = vsel %vm3539, %v3705, %v3706
    %v3708 = vrot.slane %v3433, 5
    %v3709 = vrot.slane %v3708, 4
    %v3710 = vrot.slane %v2591, 5
    %v3711 = vsel %vm3539, %v3709, %v3710
    %v3712 = vrot.slane %v3710, 4
    %v3713 = vrot.slane %v2630, 5
    %v3714 = vsel %vm3539, %v3712, %v3713
    %v3715 = vrot.slane %v3434, 5
    %v3716 = vrot.slane %v3715, 4
    %v3717 = vrot.slane %v2593, 5
    %v3718 = vsel %vm3539, %v3716, %v3717
    %v3719 = vrot.slane %v3717, 4
    %v3720 = vrot.slane %v2631, 5
    %v3721 = vsel %vm3539, %v3719, %v3720
    %v3722 = vrot.slane %v3435, 5
    %v3723 = vrot.slane %v3722, 4
    %v3724 = vrot.slane %v2595, 5
    %v3725 = vsel %vm3539, %v3723, %v3724
    %v3726 = vrot.slane %v3724, 4
    %v3727 = vrot.slane %v2632, 5
    %v3728 = vsel %vm3539, %v3726, %v3727
    %v3729 = vrot.slane %v3436, 5
    %v3730 = vrot.slane %v3729, 4
    %v3731 = vrot.slane %v2597, 5
    %v3732 = vsel %vm3539, %v3730, %v3731
    %v3733 = vrot.slane %v3731, 4
    %v3734 = vrot.slane %v2633, 5
    %v3735 = vsel %vm3539, %v3733, %v3734
    %v3736 = vrot.slane %v3437, 5
    %v3737 = vrot.slane %v3736, 4
    %v3738 = vrot.slane %v2599, 5
    %v3739 = vsel %vm3539, %v3737, %v3738
    %v3740 = vrot.slane %v3738, 4
    %v3741 = vrot.slane %v2634, 5
    %v3742 = vsel %vm3539, %v3740, %v3741
    %v3743 = vrot.slane %v3438, 5
    %v3744 = vrot.slane %v3743, 4
    %v3745 = vrot.slane %v2601, 5
    %v3746 = vsel %vm3539, %v3744, %v3745
    %v3747 = vrot.slane %v3745, 4
    %v3748 = vrot.slane %v2635, 5
    %v3749 = vsel %vm3539, %v3747, %v3748
    %v3750 = vrot.slane %v3439, 5
    %v3751 = vrot.slane %v3750, 4
    %v3752 = vrot.slane %v2603, 5
    %v3753 = vsel %vm3539, %v3751, %v3752
    %v3754 = vrot.slane %v3752, 4
    %v3755 = vrot.slane %v2636, 5
    %v3756 = vsel %vm3539, %v3754, %v3755
    %v3757 = vrot.slane %v3440, 5
    %v3758 = vrot.slane %v3757, 4
    %v3759 = vrot.slane %v2605, 5
    %v3760 = vsel %vm3539, %v3758, %v3759
    %v3761 = vrot.slane %v3759, 4
    %v3762 = vrot.slane %v2637, 5
    %v3763 = vsel %vm3539, %v3761, %v3762
    %v3764 = vld [vmem:[%s1284] sm:$0xf]
    %v3765 = vld [vmem:[%s1284 + $0x4] sm:$0xf]
    %v3766 = vld [vmem:[%s1284 + $0xc] sm:$0xf]
    %v3767 = vld [vmem:[%s1284 + $0x10] sm:$0xf]
    %v3768 = vld [vmem:[%s1284 + $0x18] sm:$0xf]
    %v3769 = vld [vmem:[%s1284 + $0x1c] sm:$0xf]
    %v3770 = vld [vmem:[%s1284 + $0x24] sm:$0xf]
    %v3771 = vld [vmem:[%s1284 + $0x28] sm:$0xf]
    %v3772 = vld [vmem:[%s1284 + $0x30] sm:$0xf]
    %v3773 = vld [vmem:[%s1284 + $0x34] sm:$0xf]
    %v3774 = vld [vmem:[%s1284 + $0x3c] sm:$0xf]
    %v3775 = vld [vmem:[%s1284 + $0x40] sm:$0xf]
    %v3776 = vld [vmem:[%s1284 + $0x48] sm:$0xf]
    %v3777 = vld [vmem:[%s1284 + $0x4c] sm:$0xf]
    %v3778 = vld [vmem:[%s1284 + $0x54] sm:$0xf]
    %v3779 = vld [vmem:[%s1284 + $0x58] sm:$0xf]
    %v3780 = vld [vmem:[%s1284 + $0x60] sm:$0xf]
    %v3781 = vld [vmem:[%s1284 + $0x64] sm:$0xf]
    %v3782 = vld [vmem:[%s1284 + $0x6c] sm:$0xf]
    %v3783 = vld [vmem:[%s1284 + $0x70] sm:$0xf]
    %v3784 = vld [vmem:[%s1284 + $0x78] sm:$0xf]
    %v3785 = vld [vmem:[%s1284 + $0x7c] sm:$0xf]
    %v3786 = vld [vmem:[%s1284 + $0x84] sm:$0xf]
    %v3787 = vld [vmem:[%s1284 + $0x88] sm:$0xf]
    %v3788 = vld [vmem:[%s1284 + $0x90] sm:$0xf]
    %v3789 = vld [vmem:[%s1284 + $0x94] sm:$0xf]
    %v3790 = vld [vmem:[%s1284 + $0x9c] sm:$0xf]
    %v3791 = vld [vmem:[%s1284 + $0xa0] sm:$0xf]
    %v3792 = vld [vmem:[%s1284 + $0xa8] sm:$0xf]
    %v3793 = vld [vmem:[%s1284 + $0xac] sm:$0xf]
    %v3794 = vld [vmem:[%s1284 + $0xb4] sm:$0xf]
    %v3795 = vld [vmem:[%s1284 + $0xb8] sm:$0xf]
    %v3796 = vld [vmem:[%s1284 + $0xd8] sm:$0xf]
    %v3797 = vld [vmem:[%s1284 + $0xdc] sm:$0xf]
    %v3798 = vld [vmem:[%s1284 + $0xe4] sm:$0xf]
    %v3799 = vld [vmem:[%s1284 + $0xe8] sm:$0xf]
    %v3800 = vld [vmem:[%s1284 + $0xf0] sm:$0xf]
    %v3801 = vld [vmem:[%s1284 + $0xf4] sm:$0xf]
    %v3802 = vld [vmem:[%s1284 + $0xfc] sm:$0xf]
    %v3803 = vld [vmem:[%s1284 + $0x100] sm:$0xf]
    %v3804 = vld [vmem:[%s1284 + $0x108] sm:$0xf]
    %v3805 = vld [vmem:[%s1284 + $0x10c] sm:$0xf]
    %v3806 = vld [vmem:[%s1284 + $0x114] sm:$0xf]
    %v3807 = vld [vmem:[%s1284 + $0x118] sm:$0xf]
    %v3808 = vld [vmem:[%s1284 + $0x120] sm:$0xf]
    %v3809 = vld [vmem:[%s1284 + $0x124] sm:$0xf]
    %v3810 = vld [vmem:[%s1284 + $0x12c] sm:$0xf]
    %v3811 = vld [vmem:[%s1284 + $0x130] sm:$0xf]
    %v3812 = vld [vmem:[%s1284 + $0x138] sm:$0xf]
    %v3813 = vld [vmem:[%s1284 + $0x13c] sm:$0xf]
    %v3814 = vld [vmem:[%s1284 + $0x144] sm:$0xf]
    %v3815 = vld [vmem:[%s1284 + $0x148] sm:$0xf]
    %v3816 = vld [vmem:[%s1284 + $0x150] sm:$0xf]
    %v3817 = vld [vmem:[%s1284 + $0x154] sm:$0xf]
    %v3818 = vld [vmem:[%s1284 + $0x15c] sm:$0xf]
    %v3819 = vld [vmem:[%s1284 + $0x160] sm:$0xf]
    %v3820 = vld [vmem:[%s1284 + $0x168] sm:$0xf]
    %v3821 = vld [vmem:[%s1284 + $0x16c] sm:$0xf]
    %v3822 = vld [vmem:[%s1284 + $0x174] sm:$0xf]
    %v3823 = vld [vmem:[%s1284 + $0x178] sm:$0xf]
    %v3824 = vld [vmem:[%s1284 + $0x180] sm:$0xf]
    %v3825 = vld [vmem:[%s1284 + $0x184] sm:$0xf]
    %v3826 = vld [vmem:[%s1284 + $0x18c] sm:$0xf]
    %v3827 = vld [vmem:[%s1284 + $0x190] sm:$0xf]
    %v3828 = vld [vmem:[%s1284 + $0x8] sm:$0x1]
    %v3829 = vld [vmem:[%s1284 + $0x14] sm:$0x1]
    %v3830 = vld [vmem:[%s1284 + $0x20] sm:$0x1]
    %v3831 = vld [vmem:[%s1284 + $0x2c] sm:$0x1]
    %v3832 = vld [vmem:[%s1284 + $0x38] sm:$0x1]
    %v3833 = vld [vmem:[%s1284 + $0x44] sm:$0x1]
    %v3834 = vld [vmem:[%s1284 + $0x50] sm:$0x1]
    %v3835 = vld [vmem:[%s1284 + $0x5c] sm:$0x1]
    %v3836 = vld [vmem:[%s1284 + $0x68] sm:$0x1]
    %v3837 = vld [vmem:[%s1284 + $0x74] sm:$0x1]
    %v3838 = vld [vmem:[%s1284 + $0x80] sm:$0x1]
    %v3839 = vld [vmem:[%s1284 + $0x8c] sm:$0x1]
    %v3840 = vld [vmem:[%s1284 + $0x98] sm:$0x1]
    %v3841 = vld [vmem:[%s1284 + $0xa4] sm:$0x1]
    %v3842 = vld [vmem:[%s1284 + $0xb0] sm:$0x1]
    %v3843 = vld [vmem:[%s1284 + $0xbc] sm:$0x1]
    %v3844 = vld [vmem:[%s1284 + $0xe0] sm:$0x1]
    %v3845 = vld [vmem:[%s1284 + $0xec] sm:$0x1]
    %v3846 = vld [vmem:[%s1284 + $0xf8] sm:$0x1]
    %v3847 = vld [vmem:[%s1284 + $0x104] sm:$0x1]
    %v3848 = vld [vmem:[%s1284 + $0x110] sm:$0x1]
    %v3849 = vld [vmem:[%s1284 + $0x11c] sm:$0x1]
    %v3850 = vld [vmem:[%s1284 + $0x128] sm:$0x1]
    %v3851 = vld [vmem:[%s1284 + $0x134] sm:$0x1]
    %v3852 = vld [vmem:[%s1284 + $0x140] sm:$0x1]
    %v3853 = vld [vmem:[%s1284 + $0x14c] sm:$0x1]
    %v3854 = vld [vmem:[%s1284 + $0x158] sm:$0x1]
    %v3855 = vld [vmem:[%s1284 + $0x164] sm:$0x1]
    %v3856 = vld [vmem:[%s1284 + $0x170] sm:$0x1]
    %v3857 = vld [vmem:[%s1284 + $0x17c] sm:$0x1]
    %v3858 = vld [vmem:[%s1284 + $0x188] sm:$0x1]
    %v3859 = vld [vmem:[%s1284 + $0x194] sm:$0x1]
    %v3861 = vshrl.u32 %v3764, 16
    %v3863 = vrot.slane %v3861, 4
    %v3864 = vshll.u32 %v3764, 16
    %v3866 = vrot.slane %v3864, 5
    %v3867 = vor.u32 %v3863, %v3866
    %v3868 = vrot.slane %v3867, 4
    %v3870 = vshll.u32 %v3765, 16
    %v3872 = vrot.slane %v3870, 5
    %v3873 = vsel %vm2640, %v3868, %v3872
    %v3874 = vshrl.u32 %v3765, 16
    %v3876 = vrot.slane %v3874, 4
    %v3877 = vor.u32 %v3876, %v3872
    %v3878 = vrot.slane %v3877, 4
    %v3880 = vshll.u32 %v3828, 16
    %v3882 = vrot.slane %v3880, 5
    %v3883 = vsel %vm2640, %v3878, %v3882
    %v3885 = vshrl.u32 %v3766, 16
    %v3887 = vrot.slane %v3885, 4
    %v3888 = vshll.u32 %v3766, 16
    %v3890 = vrot.slane %v3888, 5
    %v3891 = vor.u32 %v3887, %v3890
    %v3892 = vrot.slane %v3891, 4
    %v3894 = vshll.u32 %v3767, 16
    %v3896 = vrot.slane %v3894, 5
    %v3897 = vsel %vm2640, %v3892, %v3896
    %v3898 = vshrl.u32 %v3767, 16
    %v3900 = vrot.slane %v3898, 4
    %v3901 = vor.u32 %v3900, %v3896
    %v3902 = vrot.slane %v3901, 4
    %v3904 = vshll.u32 %v3829, 16
    %v3906 = vrot.slane %v3904, 5
    %v3907 = vsel %vm2640, %v3902, %v3906
    %v3909 = vshrl.u32 %v3768, 16
    %v3911 = vrot.slane %v3909, 4
    %v3912 = vshll.u32 %v3768, 16
    %v3914 = vrot.slane %v3912, 5
    %v3915 = vor.u32 %v3911, %v3914
    %v3916 = vrot.slane %v3915, 4
    %v3918 = vshll.u32 %v3769, 16
    %v3920 = vrot.slane %v3918, 5
    %v3921 = vsel %vm2640, %v3916, %v3920
    %v3922 = vshrl.u32 %v3769, 16
    %v3924 = vrot.slane %v3922, 4
    %v3925 = vor.u32 %v3924, %v3920
    %v3926 = vrot.slane %v3925, 4
    %v3928 = vshll.u32 %v3830, 16
    %v3930 = vrot.slane %v3928, 5
    %v3931 = vsel %vm2640, %v3926, %v3930
    %v3933 = vshrl.u32 %v3770, 16
    %v3935 = vrot.slane %v3933, 4
    %v3936 = vshll.u32 %v3770, 16
    %v3938 = vrot.slane %v3936, 5
    %v3939 = vor.u32 %v3935, %v3938
    %v3940 = vrot.slane %v3939, 4
    %v3942 = vshll.u32 %v3771, 16
    %v3944 = vrot.slane %v3942, 5
    %v3945 = vsel %vm2640, %v3940, %v3944
    %v3946 = vshrl.u32 %v3771, 16
    %v3948 = vrot.slane %v3946, 4
    %v3949 = vor.u32 %v3948, %v3944
    %v3950 = vrot.slane %v3949, 4
    %v3952 = vshll.u32 %v3831, 16
    %v3954 = vrot.slane %v3952, 5
    %v3955 = vsel %vm2640, %v3950, %v3954
    %v3957 = vshrl.u32 %v3772, 16
    %v3959 = vrot.slane %v3957, 4
    %v3960 = vshll.u32 %v3772, 16
    %v3962 = vrot.slane %v3960, 5
    %v3963 = vor.u32 %v3959, %v3962
    %v3964 = vrot.slane %v3963, 4
    %v3966 = vshll.u32 %v3773, 16
    %v3968 = vrot.slane %v3966, 5
    %v3969 = vsel %vm2640, %v3964, %v3968
    %v3970 = vshrl.u32 %v3773, 16
    %v3972 = vrot.slane %v3970, 4
    %v3973 = vor.u32 %v3972, %v3968
    %v3974 = vrot.slane %v3973, 4
    %v3976 = vshll.u32 %v3832, 16
    %v3978 = vrot.slane %v3976, 5
    %v3979 = vsel %vm2640, %v3974, %v3978
    %v3981 = vshrl.u32 %v3774, 16
    %v3983 = vrot.slane %v3981, 4
    %v3984 = vshll.u32 %v3774, 16
    %v3986 = vrot.slane %v3984, 5
    %v3987 = vor.u32 %v3983, %v3986
    %v3988 = vrot.slane %v3987, 4
    %v3990 = vshll.u32 %v3775, 16
    %v3992 = vrot.slane %v3990, 5
    %v3993 = vsel %vm2640, %v3988, %v3992
    %v3994 = vshrl.u32 %v3775, 16
    %v3996 = vrot.slane %v3994, 4
    %v3997 = vor.u32 %v3996, %v3992
    %v3998 = vrot.slane %v3997, 4
    %v4000 = vshll.u32 %v3833, 16
    %v4002 = vrot.slane %v4000, 5
    %v4003 = vsel %vm2640, %v3998, %v4002
    %v4005 = vshrl.u32 %v3776, 16
    %v4007 = vrot.slane %v4005, 4
    %v4008 = vshll.u32 %v3776, 16
    %v4010 = vrot.slane %v4008, 5
    %v4011 = vor.u32 %v4007, %v4010
    %v4012 = vrot.slane %v4011, 4
    %v4014 = vshll.u32 %v3777, 16
    %v4016 = vrot.slane %v4014, 5
    %v4017 = vsel %vm2640, %v4012, %v4016
    %v4018 = vshrl.u32 %v3777, 16
    %v4020 = vrot.slane %v4018, 4
    %v4021 = vor.u32 %v4020, %v4016
    %v4022 = vrot.slane %v4021, 4
    %v4024 = vshll.u32 %v3834, 16
    %v4026 = vrot.slane %v4024, 5
    %v4027 = vsel %vm2640, %v4022, %v4026
    %v4029 = vshrl.u32 %v3778, 16
    %v4031 = vrot.slane %v4029, 4
    %v4032 = vshll.u32 %v3778, 16
    %v4034 = vrot.slane %v4032, 5
    %v4035 = vor.u32 %v4031, %v4034
    %v4036 = vrot.slane %v4035, 4
    %v4038 = vshll.u32 %v3779, 16
    %v4040 = vrot.slane %v4038, 5
    %v4041 = vsel %vm2640, %v4036, %v4040
    %v4042 = vshrl.u32 %v3779, 16
    %v4044 = vrot.slane %v4042, 4
    %v4045 = vor.u32 %v4044, %v4040
    %v4046 = vrot.slane %v4045, 4
    %v4048 = vshll.u32 %v3835, 16
    %v4050 = vrot.slane %v4048, 5
    %v4051 = vsel %vm2640, %v4046, %v4050
    %v4053 = vshrl.u32 %v3780, 16
    %v4055 = vrot.slane %v4053, 4
    %v4056 = vshll.u32 %v3780, 16
    %v4058 = vrot.slane %v4056, 5
    %v4059 = vor.u32 %v4055, %v4058
    %v4060 = vrot.slane %v4059, 4
    %v4062 = vshll.u32 %v3781, 16
    %v4064 = vrot.slane %v4062, 5
    %v4065 = vsel %vm2640, %v4060, %v4064
    %v4066 = vshrl.u32 %v3781, 16
    %v4068 = vrot.slane %v4066, 4
    %v4069 = vor.u32 %v4068, %v4064
    %v4070 = vrot.slane %v4069, 4
    %v4072 = vshll.u32 %v3836, 16
    %v4074 = vrot.slane %v4072, 5
    %v4075 = vsel %vm2640, %v4070, %v4074
    %v4077 = vshrl.u32 %v3782, 16
    %v4079 = vrot.slane %v4077, 4
    %v4080 = vshll.u32 %v3782, 16
    %v4082 = vrot.slane %v4080, 5
    %v4083 = vor.u32 %v4079, %v4082
    %v4084 = vrot.slane %v4083, 4
    %v4086 = vshll.u32 %v3783, 16
    %v4088 = vrot.slane %v4086, 5
    %v4089 = vsel %vm2640, %v4084, %v4088
    %v4090 = vshrl.u32 %v3783, 16
    %v4092 = vrot.slane %v4090, 4
    %v4093 = vor.u32 %v4092, %v4088
    %v4094 = vrot.slane %v4093, 4
    %v4096 = vshll.u32 %v3837, 16
    %v4098 = vrot.slane %v4096, 5
    %v4099 = vsel %vm2640, %v4094, %v4098
    %v4101 = vshrl.u32 %v3784, 16
    %v4103 = vrot.slane %v4101, 4
    %v4104 = vshll.u32 %v3784, 16
    %v4106 = vrot.slane %v4104, 5
    %v4107 = vor.u32 %v4103, %v4106
    %v4108 = vrot.slane %v4107, 4
    %v4110 = vshll.u32 %v3785, 16
    %v4112 = vrot.slane %v4110, 5
    %v4113 = vsel %vm2640, %v4108, %v4112
    %v4114 = vshrl.u32 %v3785, 16
    %v4116 = vrot.slane %v4114, 4
    %v4117 = vor.u32 %v4116, %v4112
    %v4118 = vrot.slane %v4117, 4
    %v4120 = vshll.u32 %v3838, 16
    %v4122 = vrot.slane %v4120, 5
    %v4123 = vsel %vm2640, %v4118, %v4122
    %v4125 = vshrl.u32 %v3786, 16
    %v4127 = vrot.slane %v4125, 4
    %v4128 = vshll.u32 %v3786, 16
    %v4130 = vrot.slane %v4128, 5
    %v4131 = vor.u32 %v4127, %v4130
    %v4132 = vrot.slane %v4131, 4
    %v4134 = vshll.u32 %v3787, 16
    %v4136 = vrot.slane %v4134, 5
    %v4137 = vsel %vm2640, %v4132, %v4136
    %v4138 = vshrl.u32 %v3787, 16
    %v4140 = vrot.slane %v4138, 4
    %v4141 = vor.u32 %v4140, %v4136
    %v4142 = vrot.slane %v4141, 4
    %v4144 = vshll.u32 %v3839, 16
    %v4146 = vrot.slane %v4144, 5
    %v4147 = vsel %vm2640, %v4142, %v4146
    %v4149 = vshrl.u32 %v3788, 16
    %v4151 = vrot.slane %v4149, 4
    %v4152 = vshll.u32 %v3788, 16
    %v4154 = vrot.slane %v4152, 5
    %v4155 = vor.u32 %v4151, %v4154
    %v4156 = vrot.slane %v4155, 4
    %v4158 = vshll.u32 %v3789, 16
    %v4160 = vrot.slane %v4158, 5
    %v4161 = vsel %vm2640, %v4156, %v4160
    %v4162 = vshrl.u32 %v3789, 16
    %v4164 = vrot.slane %v4162, 4
    %v4165 = vor.u32 %v4164, %v4160
    %v4166 = vrot.slane %v4165, 4
    %v4168 = vshll.u32 %v3840, 16
    %v4170 = vrot.slane %v4168, 5
    %v4171 = vsel %vm2640, %v4166, %v4170
    %v4173 = vshrl.u32 %v3790, 16
    %v4175 = vrot.slane %v4173, 4
    %v4176 = vshll.u32 %v3790, 16
    %v4178 = vrot.slane %v4176, 5
    %v4179 = vor.u32 %v4175, %v4178
    %v4180 = vrot.slane %v4179, 4
    %v4182 = vshll.u32 %v3791, 16
    %v4184 = vrot.slane %v4182, 5
    %v4185 = vsel %vm2640, %v4180, %v4184
    %v4186 = vshrl.u32 %v3791, 16
    %v4188 = vrot.slane %v4186, 4
    %v4189 = vor.u32 %v4188, %v4184
    %v4190 = vrot.slane %v4189, 4
    %v4192 = vshll.u32 %v3841, 16
    %v4194 = vrot.slane %v4192, 5
    %v4195 = vsel %vm2640, %v4190, %v4194
    %v4197 = vshrl.u32 %v3792, 16
    %v4199 = vrot.slane %v4197, 4
    %v4200 = vshll.u32 %v3792, 16
    %v4202 = vrot.slane %v4200, 5
    %v4203 = vor.u32 %v4199, %v4202
    %v4204 = vrot.slane %v4203, 4
    %v4206 = vshll.u32 %v3793, 16
    %v4208 = vrot.slane %v4206, 5
    %v4209 = vsel %vm2640, %v4204, %v4208
    %v4210 = vshrl.u32 %v3793, 16
    %v4212 = vrot.slane %v4210, 4
    %v4213 = vor.u32 %v4212, %v4208
    %v4214 = vrot.slane %v4213, 4
    %v4216 = vshll.u32 %v3842, 16
    %v4218 = vrot.slane %v4216, 5
    %v4219 = vsel %vm2640, %v4214, %v4218
    %v4221 = vshrl.u32 %v3794, 16
    %v4223 = vrot.slane %v4221, 4
    %v4224 = vshll.u32 %v3794, 16
    %v4226 = vrot.slane %v4224, 5
    %v4227 = vor.u32 %v4223, %v4226
    %v4228 = vrot.slane %v4227, 4
    %v4230 = vshll.u32 %v3795, 16
    %v4232 = vrot.slane %v4230, 5
    %v4233 = vsel %vm2640, %v4228, %v4232
    %v4234 = vshrl.u32 %v3795, 16
    %v4236 = vrot.slane %v4234, 4
    %v4237 = vor.u32 %v4236, %v4232
    %v4238 = vrot.slane %v4237, 4
    %v4240 = vshll.u32 %v3843, 16
    %v4242 = vrot.slane %v4240, 5
    %v4243 = vsel %vm2640, %v4238, %v4242
    %v4245 = vshrl.u32 %v3796, 16
    %v4247 = vrot.slane %v4245, 4
    %v4248 = vshll.u32 %v3796, 16
    %v4250 = vrot.slane %v4248, 5
    %v4251 = vor.u32 %v4247, %v4250
    %v4252 = vrot.slane %v4251, 4
    %v4254 = vshll.u32 %v3797, 16
    %v4256 = vrot.slane %v4254, 5
    %v4257 = vsel %vm2640, %v4252, %v4256
    %v4258 = vshrl.u32 %v3797, 16
    %v4260 = vrot.slane %v4258, 4
    %v4261 = vor.u32 %v4260, %v4256
    %v4262 = vrot.slane %v4261, 4
    %v4264 = vshll.u32 %v3844, 16
    %v4266 = vrot.slane %v4264, 5
    %v4267 = vsel %vm2640, %v4262, %v4266
    %v4269 = vshrl.u32 %v3798, 16
    %v4271 = vrot.slane %v4269, 4
    %v4272 = vshll.u32 %v3798, 16
    %v4274 = vrot.slane %v4272, 5
    %v4275 = vor.u32 %v4271, %v4274
    %v4276 = vrot.slane %v4275, 4
    %v4278 = vshll.u32 %v3799, 16
    %v4280 = vrot.slane %v4278, 5
    %v4281 = vsel %vm2640, %v4276, %v4280
    %v4282 = vshrl.u32 %v3799, 16
    %v4284 = vrot.slane %v4282, 4
    %v4285 = vor.u32 %v4284, %v4280
    %v4286 = vrot.slane %v4285, 4
    %v4288 = vshll.u32 %v3845, 16
    %v4290 = vrot.slane %v4288, 5
    %v4291 = vsel %vm2640, %v4286, %v4290
    %v4293 = vshrl.u32 %v3800, 16
    %v4295 = vrot.slane %v4293, 4
    %v4296 = vshll.u32 %v3800, 16
    %v4298 = vrot.slane %v4296, 5
    %v4299 = vor.u32 %v4295, %v4298
    %v4300 = vrot.slane %v4299, 4
    %v4302 = vshll.u32 %v3801, 16
    %v4304 = vrot.slane %v4302, 5
    %v4305 = vsel %vm2640, %v4300, %v4304
    %v4306 = vshrl.u32 %v3801, 16
    %v4308 = vrot.slane %v4306, 4
    %v4309 = vor.u32 %v4308, %v4304
    %v4310 = vrot.slane %v4309, 4
    %v4312 = vshll.u32 %v3846, 16
    %v4314 = vrot.slane %v4312, 5
    %v4315 = vsel %vm2640, %v4310, %v4314
    %v4317 = vshrl.u32 %v3802, 16
    %v4319 = vrot.slane %v4317, 4
    %v4320 = vshll.u32 %v3802, 16
    %v4322 = vrot.slane %v4320, 5
    %v4323 = vor.u32 %v4319, %v4322
    %v4324 = vrot.slane %v4323, 4
    %v4326 = vshll.u32 %v3803, 16
    %v4328 = vrot.slane %v4326, 5
    %v4329 = vsel %vm2640, %v4324, %v4328
    %v4330 = vshrl.u32 %v3803, 16
    %v4332 = vrot.slane %v4330, 4
    %v4333 = vor.u32 %v4332, %v4328
    %v4334 = vrot.slane %v4333, 4
    %v4336 = vshll.u32 %v3847, 16
    %v4338 = vrot.slane %v4336, 5
    %v4339 = vsel %vm2640, %v4334, %v4338
    %v4341 = vshrl.u32 %v3804, 16
    %v4343 = vrot.slane %v4341, 4
    %v4344 = vshll.u32 %v3804, 16
    %v4346 = vrot.slane %v4344, 5
    %v4347 = vor.u32 %v4343, %v4346
    %v4348 = vrot.slane %v4347, 4
    %v4350 = vshll.u32 %v3805, 16
    %v4352 = vrot.slane %v4350, 5
    %v4353 = vsel %vm2640, %v4348, %v4352
    %v4354 = vshrl.u32 %v3805, 16
    %v4356 = vrot.slane %v4354, 4
    %v4357 = vor.u32 %v4356, %v4352
    %v4358 = vrot.slane %v4357, 4
    %v4360 = vshll.u32 %v3848, 16
    %v4362 = vrot.slane %v4360, 5
    %v4363 = vsel %vm2640, %v4358, %v4362
    %v4365 = vshrl.u32 %v3806, 16
    %v4367 = vrot.slane %v4365, 4
    %v4368 = vshll.u32 %v3806, 16
    %v4370 = vrot.slane %v4368, 5
    %v4371 = vor.u32 %v4367, %v4370
    %v4372 = vrot.slane %v4371, 4
    %v4374 = vshll.u32 %v3807, 16
    %v4376 = vrot.slane %v4374, 5
    %v4377 = vsel %vm2640, %v4372, %v4376
    %v4378 = vshrl.u32 %v3807, 16
    %v4380 = vrot.slane %v4378, 4
    %v4381 = vor.u32 %v4380, %v4376
    %v4382 = vrot.slane %v4381, 4
    %v4384 = vshll.u32 %v3849, 16
    %v4386 = vrot.slane %v4384, 5
    %v4387 = vsel %vm2640, %v4382, %v4386
    %v4389 = vshrl.u32 %v3808, 16
    %v4391 = vrot.slane %v4389, 4
    %v4392 = vshll.u32 %v3808, 16
    %v4394 = vrot.slane %v4392, 5
    %v4395 = vor.u32 %v4391, %v4394
    %v4396 = vrot.slane %v4395, 4
    %v4398 = vshll.u32 %v3809, 16
    %v4400 = vrot.slane %v4398, 5
    %v4401 = vsel %vm2640, %v4396, %v4400
    %v4402 = vshrl.u32 %v3809, 16
    %v4404 = vrot.slane %v4402, 4
    %v4405 = vor.u32 %v4404, %v4400
    %v4406 = vrot.slane %v4405, 4
    %v4408 = vshll.u32 %v3850, 16
    %v4410 = vrot.slane %v4408, 5
    %v4411 = vsel %vm2640, %v4406, %v4410
    %v4413 = vshrl.u32 %v3810, 16
    %v4415 = vrot.slane %v4413, 4
    %v4416 = vshll.u32 %v3810, 16
    %v4418 = vrot.slane %v4416, 5
    %v4419 = vor.u32 %v4415, %v4418
    %v4420 = vrot.slane %v4419, 4
    %v4422 = vshll.u32 %v3811, 16
    %v4424 = vrot.slane %v4422, 5
    %v4425 = vsel %vm2640, %v4420, %v4424
    %v4426 = vshrl.u32 %v3811, 16
    %v4428 = vrot.slane %v4426, 4
    %v4429 = vor.u32 %v4428, %v4424
    %v4430 = vrot.slane %v4429, 4
    %v4432 = vshll.u32 %v3851, 16
    %v4434 = vrot.slane %v4432, 5
    %v4435 = vsel %vm2640, %v4430, %v4434
    %v4437 = vshrl.u32 %v3812, 16
    %v4439 = vrot.slane %v4437, 4
    %v4440 = vshll.u32 %v3812, 16
    %v4442 = vrot.slane %v4440, 5
    %v4443 = vor.u32 %v4439, %v4442
    %v4444 = vrot.slane %v4443, 4
    %v4446 = vshll.u32 %v3813, 16
    %v4448 = vrot.slane %v4446, 5
    %v4449 = vsel %vm2640, %v4444, %v4448
    %v4450 = vshrl.u32 %v3813, 16
    %v4452 = vrot.slane %v4450, 4
    %v4453 = vor.u32 %v4452, %v4448
    %v4454 = vrot.slane %v4453, 4
    %v4456 = vshll.u32 %v3852, 16
    %v4458 = vrot.slane %v4456, 5
    %v4459 = vsel %vm2640, %v4454, %v4458
    %v4461 = vshrl.u32 %v3814, 16
    %v4463 = vrot.slane %v4461, 4
    %v4464 = vshll.u32 %v3814, 16
    %v4466 = vrot.slane %v4464, 5
    %v4467 = vor.u32 %v4463, %v4466
    %v4468 = vrot.slane %v4467, 4
    %v4470 = vshll.u32 %v3815, 16
    %v4472 = vrot.slane %v4470, 5
    %v4473 = vsel %vm2640, %v4468, %v4472
    %v4474 = vshrl.u32 %v3815, 16
    %v4476 = vrot.slane %v4474, 4
    %v4477 = vor.u32 %v4476, %v4472
    %v4478 = vrot.slane %v4477, 4
    %v4480 = vshll.u32 %v3853, 16
    %v4482 = vrot.slane %v4480, 5
    %v4483 = vsel %vm2640, %v4478, %v4482
    %v4485 = vshrl.u32 %v3816, 16
    %v4487 = vrot.slane %v4485, 4
    %v4488 = vshll.u32 %v3816, 16
    %v4490 = vrot.slane %v4488, 5
    %v4491 = vor.u32 %v4487, %v4490
    %v4492 = vrot.slane %v4491, 4
    %v4494 = vshll.u32 %v3817, 16
    %v4496 = vrot.slane %v4494, 5
    %v4497 = vsel %vm2640, %v4492, %v4496
    %v4498 = vshrl.u32 %v3817, 16
    %v4500 = vrot.slane %v4498, 4
    %v4501 = vor.u32 %v4500, %v4496
    %v4502 = vrot.slane %v4501, 4
    %v4504 = vshll.u32 %v3854, 16
    %v4506 = vrot.slane %v4504, 5
    %v4507 = vsel %vm2640, %v4502, %v4506
    %v4509 = vshrl.u32 %v3818, 16
    %v4511 = vrot.slane %v4509, 4
    %v4512 = vshll.u32 %v3818, 16
    %v4514 = vrot.slane %v4512, 5
    %v4515 = vor.u32 %v4511, %v4514
    %v4516 = vrot.slane %v4515, 4
    %v4518 = vshll.u32 %v3819, 16
    %v4520 = vrot.slane %v4518, 5
    %v4521 = vsel %vm2640, %v4516, %v4520
    %v4522 = vshrl.u32 %v3819, 16
    %v4524 = vrot.slane %v4522, 4
    %v4525 = vor.u32 %v4524, %v4520
    %v4526 = vrot.slane %v4525, 4
    %v4528 = vshll.u32 %v3855, 16
    %v4530 = vrot.slane %v4528, 5
    %v4531 = vsel %vm2640, %v4526, %v4530
    %v4533 = vshrl.u32 %v3820, 16
    %v4535 = vrot.slane %v4533, 4
    %v4536 = vshll.u32 %v3820, 16
    %v4538 = vrot.slane %v4536, 5
    %v4539 = vor.u32 %v4535, %v4538
    %v4540 = vrot.slane %v4539, 4
    %v4542 = vshll.u32 %v3821, 16
    %v4544 = vrot.slane %v4542, 5
    %v4545 = vsel %vm2640, %v4540, %v4544
    %v4546 = vshrl.u32 %v3821, 16
    %v4548 = vrot.slane %v4546, 4
    %v4549 = vor.u32 %v4548, %v4544
    %v4550 = vrot.slane %v4549, 4
    %v4552 = vshll.u32 %v3856, 16
    %v4554 = vrot.slane %v4552, 5
    %v4555 = vsel %vm2640, %v4550, %v4554
    %v4557 = vshrl.u32 %v3822, 16
    %v4559 = vrot.slane %v4557, 4
    %v4560 = vshll.u32 %v3822, 16
    %v4562 = vrot.slane %v4560, 5
    %v4563 = vor.u32 %v4559, %v4562
    %v4564 = vrot.slane %v4563, 4
    %v4566 = vshll.u32 %v3823, 16
    %v4568 = vrot.slane %v4566, 5
    %v4569 = vsel %vm2640, %v4564, %v4568
    %v4570 = vshrl.u32 %v3823, 16
    %v4572 = vrot.slane %v4570, 4
    %v4573 = vor.u32 %v4572, %v4568
    %v4574 = vrot.slane %v4573, 4
    %v4576 = vshll.u32 %v3857, 16
    %v4578 = vrot.slane %v4576, 5
    %v4579 = vsel %vm2640, %v4574, %v4578
    %v4581 = vshrl.u32 %v3824, 16
    %v4583 = vrot.slane %v4581, 4
    %v4584 = vshll.u32 %v3824, 16
    %v4586 = vrot.slane %v4584, 5
    %v4587 = vor.u32 %v4583, %v4586
    %v4588 = vrot.slane %v4587, 4
    %v4590 = vshll.u32 %v3825, 16
    %v4592 = vrot.slane %v4590, 5
    %v4593 = vsel %vm2640, %v4588, %v4592
    %v4594 = vshrl.u32 %v3825, 16
    %v4596 = vrot.slane %v4594, 4
    %v4597 = vor.u32 %v4596, %v4592
    %v4598 = vrot.slane %v4597, 4
    %v4600 = vshll.u32 %v3858, 16
    %v4602 = vrot.slane %v4600, 5
    %v4603 = vsel %vm2640, %v4598, %v4602
    %v4605 = vshrl.u32 %v3826, 16
    %v4607 = vrot.slane %v4605, 4
    %v4608 = vshll.u32 %v3826, 16
    %v4610 = vrot.slane %v4608, 5
    %v4611 = vor.u32 %v4607, %v4610
    %v4612 = vrot.slane %v4611, 4
    %v4614 = vshll.u32 %v3827, 16
    %v4616 = vrot.slane %v4614, 5
    %v4617 = vsel %vm2640, %v4612, %v4616
    %v4618 = vshrl.u32 %v3827, 16
    %v4620 = vrot.slane %v4618, 4
    %v4621 = vor.u32 %v4620, %v4616
    %v4622 = vrot.slane %v4621, 4
    %v4624 = vshll.u32 %v3859, 16
    %v4626 = vrot.slane %v4624, 5
    %v4627 = vsel %vm2640, %v4622, %v4626
    %v4628 = vld [vmem:[%s1284] sm:$0xe]
    %v4629 = vld [vmem:[%s1284 + $0xc] sm:$0xe]
    %v4630 = vld [vmem:[%s1284 + $0x18] sm:$0xe]
    %v4631 = vld [vmem:[%s1284 + $0x24] sm:$0xe]
    %v4632 = vld [vmem:[%s1284 + $0x30] sm:$0xe]
    %v4633 = vld [vmem:[%s1284 + $0x3c] sm:$0xe]
    %v4634 = vld [vmem:[%s1284 + $0x48] sm:$0xe]
    %v4635 = vld [vmem:[%s1284 + $0x54] sm:$0xe]
    %v4636 = vld [vmem:[%s1284 + $0x60] sm:$0xe]
    %v4637 = vld [vmem:[%s1284 + $0x6c] sm:$0xe]
    %v4638 = vld [vmem:[%s1284 + $0x78] sm:$0xe]
    %v4639 = vld [vmem:[%s1284 + $0x84] sm:$0xe]
    %v4640 = vld [vmem:[%s1284 + $0x90] sm:$0xe]
    %v4641 = vld [vmem:[%s1284 + $0x9c] sm:$0xe]
    %v4642 = vld [vmem:[%s1284 + $0xa8] sm:$0xe]
    %v4643 = vld [vmem:[%s1284 + $0xb4] sm:$0xe]
    %v4644 = vld [vmem:[%s1284 + $0xd8] sm:$0xe]
    %v4645 = vld [vmem:[%s1284 + $0xe4] sm:$0xe]
    %v4646 = vld [vmem:[%s1284 + $0xf0] sm:$0xe]
    %v4647 = vld [vmem:[%s1284 + $0xfc] sm:$0xe]
    %v4648 = vld [vmem:[%s1284 + $0x108] sm:$0xe]
    %v4649 = vld [vmem:[%s1284 + $0x114] sm:$0xe]
    %v4650 = vld [vmem:[%s1284 + $0x120] sm:$0xe]
    %v4651 = vld [vmem:[%s1284 + $0x12c] sm:$0xe]
    %v4652 = vld [vmem:[%s1284 + $0x138] sm:$0xe]
    %v4653 = vld [vmem:[%s1284 + $0x144] sm:$0xe]
    %v4654 = vld [vmem:[%s1284 + $0x150] sm:$0xe]
    %v4655 = vld [vmem:[%s1284 + $0x15c] sm:$0xe]
    %v4656 = vld [vmem:[%s1284 + $0x168] sm:$0xe]
    %v4657 = vld [vmem:[%s1284 + $0x174] sm:$0xe]
    %v4658 = vld [vmem:[%s1284 + $0x180] sm:$0xe]
    %v4659 = vld [vmem:[%s1284 + $0x18c] sm:$0xe]
    %v4756 = vrot.slane %v4628, 5
    %v4757 = vrot.slane %v4756, 4
    %v4758 = vrot.slane %v3765, 5
    %v4759 = vsel %vm3539, %v4757, %v4758
    %v4760 = vrot.slane %v4758, 4
    %v4761 = vrot.slane %v3828, 5
    %v4762 = vsel %vm3539, %v4760, %v4761
    %v4763 = vrot.slane %v4629, 5
    %v4764 = vrot.slane %v4763, 4
    %v4765 = vrot.slane %v3767, 5
    %v4766 = vsel %vm3539, %v4764, %v4765
    %v4767 = vrot.slane %v4765, 4
    %v4768 = vrot.slane %v3829, 5
    %v4769 = vsel %vm3539, %v4767, %v4768
    %v4770 = vrot.slane %v4630, 5
    %v4771 = vrot.slane %v4770, 4
    %v4772 = vrot.slane %v3769, 5
    %v4773 = vsel %vm3539, %v4771, %v4772
    %v4774 = vrot.slane %v4772, 4
    %v4775 = vrot.slane %v3830, 5
    %v4776 = vsel %vm3539, %v4774, %v4775
    %v4777 = vrot.slane %v4631, 5
    %v4778 = vrot.slane %v4777, 4
    %v4779 = vrot.slane %v3771, 5
    %v4780 = vsel %vm3539, %v4778, %v4779
    %v4781 = vrot.slane %v4779, 4
    %v4782 = vrot.slane %v3831, 5
    %v4783 = vsel %vm3539, %v4781, %v4782
    %v4784 = vrot.slane %v4632, 5
    %v4785 = vrot.slane %v4784, 4
    %v4786 = vrot.slane %v3773, 5
    %v4787 = vsel %vm3539, %v4785, %v4786
    %v4788 = vrot.slane %v4786, 4
    %v4789 = vrot.slane %v3832, 5
    %v4790 = vsel %vm3539, %v4788, %v4789
    %v4791 = vrot.slane %v4633, 5
    %v4792 = vrot.slane %v4791, 4
    %v4793 = vrot.slane %v3775, 5
    %v4794 = vsel %vm3539, %v4792, %v4793
    %v4795 = vrot.slane %v4793, 4
    %v4796 = vrot.slane %v3833, 5
    %v4797 = vsel %vm3539, %v4795, %v4796
    %v4798 = vrot.slane %v4634, 5
    %v4799 = vrot.slane %v4798, 4
    %v4800 = vrot.slane %v3777, 5
    %v4801 = vsel %vm3539, %v4799, %v4800
    %v4802 = vrot.slane %v4800, 4
    %v4803 = vrot.slane %v3834, 5
    %v4804 = vsel %vm3539, %v4802, %v4803
    %v4805 = vrot.slane %v4635, 5
    %v4806 = vrot.slane %v4805, 4
    %v4807 = vrot.slane %v3779, 5
    %v4808 = vsel %vm3539, %v4806, %v4807
    %v4809 = vrot.slane %v4807, 4
    %v4810 = vrot.slane %v3835, 5
    %v4811 = vsel %vm3539, %v4809, %v4810
    %v4812 = vrot.slane %v4636, 5
    %v4813 = vrot.slane %v4812, 4
    %v4814 = vrot.slane %v3781, 5
    %v4815 = vsel %vm3539, %v4813, %v4814
    %v4816 = vrot.slane %v4814, 4
    %v4817 = vrot.slane %v3836, 5
    %v4818 = vsel %vm3539, %v4816, %v4817
    %v4819 = vrot.slane %v4637, 5
    %v4820 = vrot.slane %v4819, 4
    %v4821 = vrot.slane %v3783, 5
    %v4822 = vsel %vm3539, %v4820, %v4821
    %v4823 = vrot.slane %v4821, 4
    %v4824 = vrot.slane %v3837, 5
    %v4825 = vsel %vm3539, %v4823, %v4824
    %v4826 = vrot.slane %v4638, 5
    %v4827 = vrot.slane %v4826, 4
    %v4828 = vrot.slane %v3785, 5
    %v4829 = vsel %vm3539, %v4827, %v4828
    %v4830 = vrot.slane %v4828, 4
    %v4831 = vrot.slane %v3838, 5
    %v4832 = vsel %vm3539, %v4830, %v4831
    %v4833 = vrot.slane %v4639, 5
    %v4834 = vrot.slane %v4833, 4
    %v4835 = vrot.slane %v3787, 5
    %v4836 = vsel %vm3539, %v4834, %v4835
    %v4837 = vrot.slane %v4835, 4
    %v4838 = vrot.slane %v3839, 5
    %v4839 = vsel %vm3539, %v4837, %v4838
    %v4840 = vrot.slane %v4640, 5
    %v4841 = vrot.slane %v4840, 4
    %v4842 = vrot.slane %v3789, 5
    %v4843 = vsel %vm3539, %v4841, %v4842
    %v4844 = vrot.slane %v4842, 4
    %v4845 = vrot.slane %v3840, 5
    %v4846 = vsel %vm3539, %v4844, %v4845
    %v4847 = vrot.slane %v4641, 5
    %v4848 = vrot.slane %v4847, 4
    %v4849 = vrot.slane %v3791, 5
    %v4850 = vsel %vm3539, %v4848, %v4849
    %v4851 = vrot.slane %v4849, 4
    %v4852 = vrot.slane %v3841, 5
    %v4853 = vsel %vm3539, %v4851, %v4852
    %v4854 = vrot.slane %v4642, 5
    %v4855 = vrot.slane %v4854, 4
    %v4856 = vrot.slane %v3793, 5
    %v4857 = vsel %vm3539, %v4855, %v4856
    %v4858 = vrot.slane %v4856, 4
    %v4859 = vrot.slane %v3842, 5
    %v4860 = vsel %vm3539, %v4858, %v4859
    %v4861 = vrot.slane %v4643, 5
    %v4862 = vrot.slane %v4861, 4
    %v4863 = vrot.slane %v3795, 5
    %v4864 = vsel %vm3539, %v4862, %v4863
    %v4865 = vrot.slane %v4863, 4
    %v4866 = vrot.slane %v3843, 5
    %v4867 = vsel %vm3539, %v4865, %v4866
    %v4868 = vrot.slane %v4644, 5
    %v4869 = vrot.slane %v4868, 4
    %v4870 = vrot.slane %v3797, 5
    %v4871 = vsel %vm3539, %v4869, %v4870
    %v4872 = vrot.slane %v4870, 4
    %v4873 = vrot.slane %v3844, 5
    %v4874 = vsel %vm3539, %v4872, %v4873
    %v4875 = vrot.slane %v4645, 5
    %v4876 = vrot.slane %v4875, 4
    %v4877 = vrot.slane %v3799, 5
    %v4878 = vsel %vm3539, %v4876, %v4877
    %v4879 = vrot.slane %v4877, 4
    %v4880 = vrot.slane %v3845, 5
    %v4881 = vsel %vm3539, %v4879, %v4880
    %v4882 = vrot.slane %v4646, 5
    %v4883 = vrot.slane %v4882, 4
    %v4884 = vrot.slane %v3801, 5
    %v4885 = vsel %vm3539, %v4883, %v4884
    %v4886 = vrot.slane %v4884, 4
    %v4887 = vrot.slane %v3846, 5
    %v4888 = vsel %vm3539, %v4886, %v4887
    %v4889 = vrot.slane %v4647, 5
    %v4890 = vrot.slane %v4889, 4
    %v4891 = vrot.slane %v3803, 5
    %v4892 = vsel %vm3539, %v4890, %v4891
    %v4893 = vrot.slane %v4891, 4
    %v4894 = vrot.slane %v3847, 5
    %v4895 = vsel %vm3539, %v4893, %v4894
    %v4896 = vrot.slane %v4648, 5
    %v4897 = vrot.slane %v4896, 4
    %v4898 = vrot.slane %v3805, 5
    %v4899 = vsel %vm3539, %v4897, %v4898
    %v4900 = vrot.slane %v4898, 4
    %v4901 = vrot.slane %v3848, 5
    %v4902 = vsel %vm3539, %v4900, %v4901
    %v4903 = vrot.slane %v4649, 5
    %v4904 = vrot.slane %v4903, 4
    %v4905 = vrot.slane %v3807, 5
    %v4906 = vsel %vm3539, %v4904, %v4905
    %v4907 = vrot.slane %v4905, 4
    %v4908 = vrot.slane %v3849, 5
    %v4909 = vsel %vm3539, %v4907, %v4908
    %v4910 = vrot.slane %v4650, 5
    %v4911 = vrot.slane %v4910, 4
    %v4912 = vrot.slane %v3809, 5
    %v4913 = vsel %vm3539, %v4911, %v4912
    %v4914 = vrot.slane %v4912, 4
    %v4915 = vrot.slane %v3850, 5
    %v4916 = vsel %vm3539, %v4914, %v4915
    %v4917 = vrot.slane %v4651, 5
    %v4918 = vrot.slane %v4917, 4
    %v4919 = vrot.slane %v3811, 5
    %v4920 = vsel %vm3539, %v4918, %v4919
    %v4921 = vrot.slane %v4919, 4
    %v4922 = vrot.slane %v3851, 5
    %v4923 = vsel %vm3539, %v4921, %v4922
    %v4924 = vrot.slane %v4652, 5
    %v4925 = vrot.slane %v4924, 4
    %v4926 = vrot.slane %v3813, 5
    %v4927 = vsel %vm3539, %v4925, %v4926
    %v4928 = vrot.slane %v4926, 4
    %v4929 = vrot.slane %v3852, 5
    %v4930 = vsel %vm3539, %v4928, %v4929
    %v4931 = vrot.slane %v4653, 5
    %v4932 = vrot.slane %v4931, 4
    %v4933 = vrot.slane %v3815, 5
    %v4934 = vsel %vm3539, %v4932, %v4933
    %v4935 = vrot.slane %v4933, 4
    %v4936 = vrot.slane %v3853, 5
    %v4937 = vsel %vm3539, %v4935, %v4936
    %v4938 = vrot.slane %v4654, 5
    %v4939 = vrot.slane %v4938, 4
    %v4940 = vrot.slane %v3817, 5
    %v4941 = vsel %vm3539, %v4939, %v4940
    %v4942 = vrot.slane %v4940, 4
    %v4943 = vrot.slane %v3854, 5
    %v4944 = vsel %vm3539, %v4942, %v4943
    %v4945 = vrot.slane %v4655, 5
    %v4946 = vrot.slane %v4945, 4
    %v4947 = vrot.slane %v3819, 5
    %v4948 = vsel %vm3539, %v4946, %v4947
    %v4949 = vrot.slane %v4947, 4
    %v4950 = vrot.slane %v3855, 5
    %v4951 = vsel %vm3539, %v4949, %v4950
    %v4952 = vrot.slane %v4656, 5
    %v4953 = vrot.slane %v4952, 4
    %v4954 = vrot.slane %v3821, 5
    %v4955 = vsel %vm3539, %v4953, %v4954
    %v4956 = vrot.slane %v4954, 4
    %v4957 = vrot.slane %v3856, 5
    %v4958 = vsel %vm3539, %v4956, %v4957
    %v4959 = vrot.slane %v4657, 5
    %v4960 = vrot.slane %v4959, 4
    %v4961 = vrot.slane %v3823, 5
    %v4962 = vsel %vm3539, %v4960, %v4961
    %v4963 = vrot.slane %v4961, 4
    %v4964 = vrot.slane %v3857, 5
    %v4965 = vsel %vm3539, %v4963, %v4964
    %v4966 = vrot.slane %v4658, 5
    %v4967 = vrot.slane %v4966, 4
    %v4968 = vrot.slane %v3825, 5
    %v4969 = vsel %vm3539, %v4967, %v4968
    %v4970 = vrot.slane %v4968, 4
    %v4971 = vrot.slane %v3858, 5
    %v4972 = vsel %vm3539, %v4970, %v4971
    %v4973 = vrot.slane %v4659, 5
    %v4974 = vrot.slane %v4973, 4
    %v4975 = vrot.slane %v3827, 5
    %v4976 = vsel %vm3539, %v4974, %v4975
    %v4977 = vrot.slane %v4975, 4
    %v4978 = vrot.slane %v3859, 5
    %v4979 = vsel %vm3539, %v4977, %v4978
    %s4980 = scalar_lea.vmem [#allocation2], 24
    %v4981 = vld [vmem:[%s4980] sm:$0xf]
    %v4982 = vld [vmem:[%s4980 + $0x4] sm:$0xf]
    %v4983 = vld [vmem:[%s4980 + $0xc] sm:$0xf]
    %v4984 = vld [vmem:[%s4980 + $0x10] sm:$0xf]
    %v4985 = vld [vmem:[%s4980 + $0x18] sm:$0xf]
    %v4986 = vld [vmem:[%s4980 + $0x1c] sm:$0xf]
    %v4987 = vld [vmem:[%s4980 + $0x24] sm:$0xf]
    %v4988 = vld [vmem:[%s4980 + $0x28] sm:$0xf]
    %v4989 = vld [vmem:[%s4980 + $0x30] sm:$0xf]
    %v4990 = vld [vmem:[%s4980 + $0x34] sm:$0xf]
    %v4991 = vld [vmem:[%s4980 + $0x3c] sm:$0xf]
    %v4992 = vld [vmem:[%s4980 + $0x40] sm:$0xf]
    %v4993 = vld [vmem:[%s4980 + $0x48] sm:$0xf]
    %v4994 = vld [vmem:[%s4980 + $0x4c] sm:$0xf]
    %v4995 = vld [vmem:[%s4980 + $0x54] sm:$0xf]
    %v4996 = vld [vmem:[%s4980 + $0x58] sm:$0xf]
    %v4997 = vld [vmem:[%s4980 + $0x60] sm:$0xf]
    %v4998 = vld [vmem:[%s4980 + $0x64] sm:$0xf]
    %v4999 = vld [vmem:[%s4980 + $0x6c] sm:$0xf]
    %v5000 = vld [vmem:[%s4980 + $0x70] sm:$0xf]
    %v5001 = vld [vmem:[%s4980 + $0x78] sm:$0xf]
    %v5002 = vld [vmem:[%s4980 + $0x7c] sm:$0xf]
    %v5003 = vld [vmem:[%s4980 + $0x84] sm:$0xf]
    %v5004 = vld [vmem:[%s4980 + $0x88] sm:$0xf]
    %v5005 = vld [vmem:[%s4980 + $0x90] sm:$0xf]
    %v5006 = vld [vmem:[%s4980 + $0x94] sm:$0xf]
    %v5007 = vld [vmem:[%s4980 + $0x9c] sm:$0xf]
    %v5008 = vld [vmem:[%s4980 + $0xa0] sm:$0xf]
    %v5009 = vld [vmem:[%s4980 + $0xa8] sm:$0xf]
    %v5010 = vld [vmem:[%s4980 + $0xac] sm:$0xf]
    %v5011 = vld [vmem:[%s4980 + $0xb4] sm:$0xf]
    %v5012 = vld [vmem:[%s4980 + $0xb8] sm:$0xf]
    %v5013 = vld [vmem:[%s4980 + $0xd8] sm:$0xf]
    %v5014 = vld [vmem:[%s4980 + $0xdc] sm:$0xf]
    %v5015 = vld [vmem:[%s4980 + $0xe4] sm:$0xf]
    %v5016 = vld [vmem:[%s4980 + $0xe8] sm:$0xf]
    %v5017 = vld [vmem:[%s4980 + $0xf0] sm:$0xf]
    %v5018 = vld [vmem:[%s4980 + $0xf4] sm:$0xf]
    %v5019 = vld [vmem:[%s4980 + $0xfc] sm:$0xf]
    %v5020 = vld [vmem:[%s4980 + $0x100] sm:$0xf]
    %v5021 = vld [vmem:[%s4980 + $0x108] sm:$0xf]
    %v5022 = vld [vmem:[%s4980 + $0x10c] sm:$0xf]
    %v5023 = vld [vmem:[%s4980 + $0x114] sm:$0xf]
    %v5024 = vld [vmem:[%s4980 + $0x118] sm:$0xf]
    %v5025 = vld [vmem:[%s4980 + $0x120] sm:$0xf]
    %v5026 = vld [vmem:[%s4980 + $0x124] sm:$0xf]
    %v5027 = vld [vmem:[%s4980 + $0x12c] sm:$0xf]
    %v5028 = vld [vmem:[%s4980 + $0x130] sm:$0xf]
    %v5029 = vld [vmem:[%s4980 + $0x138] sm:$0xf]
    %v5030 = vld [vmem:[%s4980 + $0x13c] sm:$0xf]
    %v5031 = vld [vmem:[%s4980 + $0x144] sm:$0xf]
    %v5032 = vld [vmem:[%s4980 + $0x148] sm:$0xf]
    %v5033 = vld [vmem:[%s4980 + $0x150] sm:$0xf]
    %v5034 = vld [vmem:[%s4980 + $0x154] sm:$0xf]
    %v5035 = vld [vmem:[%s4980 + $0x15c] sm:$0xf]
    %v5036 = vld [vmem:[%s4980 + $0x160] sm:$0xf]
    %v5037 = vld [vmem:[%s4980 + $0x168] sm:$0xf]
    %v5038 = vld [vmem:[%s4980 + $0x16c] sm:$0xf]
    %v5039 = vld [vmem:[%s4980 + $0x174] sm:$0xf]
    %v5040 = vld [vmem:[%s4980 + $0x178] sm:$0xf]
    %v5041 = vld [vmem:[%s4980 + $0x180] sm:$0xf]
    %v5042 = vld [vmem:[%s4980 + $0x184] sm:$0xf]
    %v5043 = vld [vmem:[%s4980 + $0x18c] sm:$0xf]
    %v5044 = vld [vmem:[%s4980 + $0x190] sm:$0xf]
    %v5045 = vld [vmem:[%s4980 + $0x8] sm:$0x1]
    %v5046 = vld [vmem:[%s4980 + $0x14] sm:$0x1]
    %v5047 = vld [vmem:[%s4980 + $0x20] sm:$0x1]
    %v5048 = vld [vmem:[%s4980 + $0x2c] sm:$0x1]
    %v5049 = vld [vmem:[%s4980 + $0x38] sm:$0x1]
    %v5050 = vld [vmem:[%s4980 + $0x44] sm:$0x1]
    %v5051 = vld [vmem:[%s4980 + $0x50] sm:$0x1]
    %v5052 = vld [vmem:[%s4980 + $0x5c] sm:$0x1]
    %v5053 = vld [vmem:[%s4980 + $0x68] sm:$0x1]
    %v5054 = vld [vmem:[%s4980 + $0x74] sm:$0x1]
    %v5055 = vld [vmem:[%s4980 + $0x80] sm:$0x1]
    %v5056 = vld [vmem:[%s4980 + $0x8c] sm:$0x1]
    %v5057 = vld [vmem:[%s4980 + $0x98] sm:$0x1]
    %v5058 = vld [vmem:[%s4980 + $0xa4] sm:$0x1]
    %v5059 = vld [vmem:[%s4980 + $0xb0] sm:$0x1]
    %v5060 = vld [vmem:[%s4980 + $0xbc] sm:$0x1]
    %v5061 = vld [vmem:[%s4980 + $0xe0] sm:$0x1]
    %v5062 = vld [vmem:[%s4980 + $0xec] sm:$0x1]
    %v5063 = vld [vmem:[%s4980 + $0xf8] sm:$0x1]
    %v5064 = vld [vmem:[%s4980 + $0x104] sm:$0x1]
    %v5065 = vld [vmem:[%s4980 + $0x110] sm:$0x1]
    %v5066 = vld [vmem:[%s4980 + $0x11c] sm:$0x1]
    %v5067 = vld [vmem:[%s4980 + $0x128] sm:$0x1]
    %v5068 = vld [vmem:[%s4980 + $0x134] sm:$0x1]
    %v5069 = vld [vmem:[%s4980 + $0x140] sm:$0x1]
    %v5070 = vld [vmem:[%s4980 + $0x14c] sm:$0x1]
    %v5071 = vld [vmem:[%s4980 + $0x158] sm:$0x1]
    %v5072 = vld [vmem:[%s4980 + $0x164] sm:$0x1]
    %v5073 = vld [vmem:[%s4980 + $0x170] sm:$0x1]
    %v5074 = vld [vmem:[%s4980 + $0x17c] sm:$0x1]
    %v5075 = vld [vmem:[%s4980 + $0x188] sm:$0x1]
    %v5076 = vld [vmem:[%s4980 + $0x194] sm:$0x1]
    %v5078 = vshrl.u32 %v4981, 16
    %v5080 = vrot.slane %v5078, 4
    %v5081 = vshll.u32 %v4981, 16
    %v5083 = vrot.slane %v5081, 5
    %v5084 = vor.u32 %v5080, %v5083
    %v5085 = vrot.slane %v5084, 4
    %v5087 = vshll.u32 %v4982, 16
    %v5089 = vrot.slane %v5087, 5
    %v5090 = vsel %vm2640, %v5085, %v5089
    %v5091 = vshrl.u32 %v4982, 16
    %v5093 = vrot.slane %v5091, 4
    %v5094 = vor.u32 %v5093, %v5089
    %v5095 = vrot.slane %v5094, 4
    %v5097 = vshll.u32 %v5045, 16
    %v5099 = vrot.slane %v5097, 5
    %v5100 = vsel %vm2640, %v5095, %v5099
    %v5102 = vshrl.u32 %v4983, 16
    %v5104 = vrot.slane %v5102, 4
    %v5105 = vshll.u32 %v4983, 16
    %v5107 = vrot.slane %v5105, 5
    %v5108 = vor.u32 %v5104, %v5107
    %v5109 = vrot.slane %v5108, 4
    %v5111 = vshll.u32 %v4984, 16
    %v5113 = vrot.slane %v5111, 5
    %v5114 = vsel %vm2640, %v5109, %v5113
    %v5115 = vshrl.u32 %v4984, 16
    %v5117 = vrot.slane %v5115, 4
    %v5118 = vor.u32 %v5117, %v5113
    %v5119 = vrot.slane %v5118, 4
    %v5121 = vshll.u32 %v5046, 16
    %v5123 = vrot.slane %v5121, 5
    %v5124 = vsel %vm2640, %v5119, %v5123
    %v5126 = vshrl.u32 %v4985, 16
    %v5128 = vrot.slane %v5126, 4
    %v5129 = vshll.u32 %v4985, 16
    %v5131 = vrot.slane %v5129, 5
    %v5132 = vor.u32 %v5128, %v5131
    %v5133 = vrot.slane %v5132, 4
    %v5135 = vshll.u32 %v4986, 16
    %v5137 = vrot.slane %v5135, 5
    %v5138 = vsel %vm2640, %v5133, %v5137
    %v5139 = vshrl.u32 %v4986, 16
    %v5141 = vrot.slane %v5139, 4
    %v5142 = vor.u32 %v5141, %v5137
    %v5143 = vrot.slane %v5142, 4
    %v5145 = vshll.u32 %v5047, 16
    %v5147 = vrot.slane %v5145, 5
    %v5148 = vsel %vm2640, %v5143, %v5147
    %v5150 = vshrl.u32 %v4987, 16
    %v5152 = vrot.slane %v5150, 4
    %v5153 = vshll.u32 %v4987, 16
    %v5155 = vrot.slane %v5153, 5
    %v5156 = vor.u32 %v5152, %v5155
    %v5157 = vrot.slane %v5156, 4
    %v5159 = vshll.u32 %v4988, 16
    %v5161 = vrot.slane %v5159, 5
    %v5162 = vsel %vm2640, %v5157, %v5161
    %v5163 = vshrl.u32 %v4988, 16
    %v5165 = vrot.slane %v5163, 4
    %v5166 = vor.u32 %v5165, %v5161
    %v5167 = vrot.slane %v5166, 4
    %v5169 = vshll.u32 %v5048, 16
    %v5171 = vrot.slane %v5169, 5
    %v5172 = vsel %vm2640, %v5167, %v5171
    %v5174 = vshrl.u32 %v4989, 16
    %v5176 = vrot.slane %v5174, 4
    %v5177 = vshll.u32 %v4989, 16
    %v5179 = vrot.slane %v5177, 5
    %v5180 = vor.u32 %v5176, %v5179
    %v5181 = vrot.slane %v5180, 4
    %v5183 = vshll.u32 %v4990, 16
    %v5185 = vrot.slane %v5183, 5
    %v5186 = vsel %vm2640, %v5181, %v5185
    %v5187 = vshrl.u32 %v4990, 16
    %v5189 = vrot.slane %v5187, 4
    %v5190 = vor.u32 %v5189, %v5185
    %v5191 = vrot.slane %v5190, 4
    %v5193 = vshll.u32 %v5049, 16
    %v5195 = vrot.slane %v5193, 5
    %v5196 = vsel %vm2640, %v5191, %v5195
    %v5198 = vshrl.u32 %v4991, 16
    %v5200 = vrot.slane %v5198, 4
    %v5201 = vshll.u32 %v4991, 16
    %v5203 = vrot.slane %v5201, 5
    %v5204 = vor.u32 %v5200, %v5203
    %v5205 = vrot.slane %v5204, 4
    %v5207 = vshll.u32 %v4992, 16
    %v5209 = vrot.slane %v5207, 5
    %v5210 = vsel %vm2640, %v5205, %v5209
    %v5211 = vshrl.u32 %v4992, 16
    %v5213 = vrot.slane %v5211, 4
    %v5214 = vor.u32 %v5213, %v5209
    %v5215 = vrot.slane %v5214, 4
    %v5217 = vshll.u32 %v5050, 16
    %v5219 = vrot.slane %v5217, 5
    %v5220 = vsel %vm2640, %v5215, %v5219
    %v5222 = vshrl.u32 %v4993, 16
    %v5224 = vrot.slane %v5222, 4
    %v5225 = vshll.u32 %v4993, 16
    %v5227 = vrot.slane %v5225, 5
    %v5228 = vor.u32 %v5224, %v5227
    %v5229 = vrot.slane %v5228, 4
    %v5231 = vshll.u32 %v4994, 16
    %v5233 = vrot.slane %v5231, 5
    %v5234 = vsel %vm2640, %v5229, %v5233
    %v5235 = vshrl.u32 %v4994, 16
    %v5237 = vrot.slane %v5235, 4
    %v5238 = vor.u32 %v5237, %v5233
    %v5239 = vrot.slane %v5238, 4
    %v5241 = vshll.u32 %v5051, 16
    %v5243 = vrot.slane %v5241, 5
    %v5244 = vsel %vm2640, %v5239, %v5243
    %v5246 = vshrl.u32 %v4995, 16
    %v5248 = vrot.slane %v5246, 4
    %v5249 = vshll.u32 %v4995, 16
    %v5251 = vrot.slane %v5249, 5
    %v5252 = vor.u32 %v5248, %v5251
    %v5253 = vrot.slane %v5252, 4
    %v5255 = vshll.u32 %v4996, 16
    %v5257 = vrot.slane %v5255, 5
    %v5258 = vsel %vm2640, %v5253, %v5257
    %v5259 = vshrl.u32 %v4996, 16
    %v5261 = vrot.slane %v5259, 4
    %v5262 = vor.u32 %v5261, %v5257
    %v5263 = vrot.slane %v5262, 4
    %v5265 = vshll.u32 %v5052, 16
    %v5267 = vrot.slane %v5265, 5
    %v5268 = vsel %vm2640, %v5263, %v5267
    %v5270 = vshrl.u32 %v4997, 16
    %v5272 = vrot.slane %v5270, 4
    %v5273 = vshll.u32 %v4997, 16
    %v5275 = vrot.slane %v5273, 5
    %v5276 = vor.u32 %v5272, %v5275
    %v5277 = vrot.slane %v5276, 4
    %v5279 = vshll.u32 %v4998, 16
    %v5281 = vrot.slane %v5279, 5
    %v5282 = vsel %vm2640, %v5277, %v5281
    %v5283 = vshrl.u32 %v4998, 16
    %v5285 = vrot.slane %v5283, 4
    %v5286 = vor.u32 %v5285, %v5281
    %v5287 = vrot.slane %v5286, 4
    %v5289 = vshll.u32 %v5053, 16
    %v5291 = vrot.slane %v5289, 5
    %v5292 = vsel %vm2640, %v5287, %v5291
    %v5294 = vshrl.u32 %v4999, 16
    %v5296 = vrot.slane %v5294, 4
    %v5297 = vshll.u32 %v4999, 16
    %v5299 = vrot.slane %v5297, 5
    %v5300 = vor.u32 %v5296, %v5299
    %v5301 = vrot.slane %v5300, 4
    %v5303 = vshll.u32 %v5000, 16
    %v5305 = vrot.slane %v5303, 5
    %v5306 = vsel %vm2640, %v5301, %v5305
    %v5307 = vshrl.u32 %v5000, 16
    %v5309 = vrot.slane %v5307, 4
    %v5310 = vor.u32 %v5309, %v5305
    %v5311 = vrot.slane %v5310, 4
    %v5313 = vshll.u32 %v5054, 16
    %v5315 = vrot.slane %v5313, 5
    %v5316 = vsel %vm2640, %v5311, %v5315
    %v5318 = vshrl.u32 %v5001, 16
    %v5320 = vrot.slane %v5318, 4
    %v5321 = vshll.u32 %v5001, 16
    %v5323 = vrot.slane %v5321, 5
    %v5324 = vor.u32 %v5320, %v5323
    %v5325 = vrot.slane %v5324, 4
    %v5327 = vshll.u32 %v5002, 16
    %v5329 = vrot.slane %v5327, 5
    %v5330 = vsel %vm2640, %v5325, %v5329
    %v5331 = vshrl.u32 %v5002, 16
    %v5333 = vrot.slane %v5331, 4
    %v5334 = vor.u32 %v5333, %v5329
    %v5335 = vrot.slane %v5334, 4
    %v5337 = vshll.u32 %v5055, 16
    %v5339 = vrot.slane %v5337, 5
    %v5340 = vsel %vm2640, %v5335, %v5339
    %v5342 = vshrl.u32 %v5003, 16
    %v5344 = vrot.slane %v5342, 4
    %v5345 = vshll.u32 %v5003, 16
    %v5347 = vrot.slane %v5345, 5
    %v5348 = vor.u32 %v5344, %v5347
    %v5349 = vrot.slane %v5348, 4
    %v5351 = vshll.u32 %v5004, 16
    %v5353 = vrot.slane %v5351, 5
    %v5354 = vsel %vm2640, %v5349, %v5353
    %v5355 = vshrl.u32 %v5004, 16
    %v5357 = vrot.slane %v5355, 4
    %v5358 = vor.u32 %v5357, %v5353
    %v5359 = vrot.slane %v5358, 4
    %v5361 = vshll.u32 %v5056, 16
    %v5363 = vrot.slane %v5361, 5
    %v5364 = vsel %vm2640, %v5359, %v5363
    %v5366 = vshrl.u32 %v5005, 16
    %v5368 = vrot.slane %v5366, 4
    %v5369 = vshll.u32 %v5005, 16
    %v5371 = vrot.slane %v5369, 5
    %v5372 = vor.u32 %v5368, %v5371
    %v5373 = vrot.slane %v5372, 4
    %v5375 = vshll.u32 %v5006, 16
    %v5377 = vrot.slane %v5375, 5
    %v5378 = vsel %vm2640, %v5373, %v5377
    %v5379 = vshrl.u32 %v5006, 16
    %v5381 = vrot.slane %v5379, 4
    %v5382 = vor.u32 %v5381, %v5377
    %v5383 = vrot.slane %v5382, 4
    %v5385 = vshll.u32 %v5057, 16
    %v5387 = vrot.slane %v5385, 5
    %v5388 = vsel %vm2640, %v5383, %v5387
    %v5390 = vshrl.u32 %v5007, 16
    %v5392 = vrot.slane %v5390, 4
    %v5393 = vshll.u32 %v5007, 16
    %v5395 = vrot.slane %v5393, 5
    %v5396 = vor.u32 %v5392, %v5395
    %v5397 = vrot.slane %v5396, 4
    %v5399 = vshll.u32 %v5008, 16
    %v5401 = vrot.slane %v5399, 5
    %v5402 = vsel %vm2640, %v5397, %v5401
    %v5403 = vshrl.u32 %v5008, 16
    %v5405 = vrot.slane %v5403, 4
    %v5406 = vor.u32 %v5405, %v5401
    %v5407 = vrot.slane %v5406, 4
    %v5409 = vshll.u32 %v5058, 16
    %v5411 = vrot.slane %v5409, 5
    %v5412 = vsel %vm2640, %v5407, %v5411
    %v5414 = vshrl.u32 %v5009, 16
    %v5416 = vrot.slane %v5414, 4
    %v5417 = vshll.u32 %v5009, 16
    %v5419 = vrot.slane %v5417, 5
    %v5420 = vor.u32 %v5416, %v5419
    %v5421 = vrot.slane %v5420, 4
    %v5423 = vshll.u32 %v5010, 16
    %v5425 = vrot.slane %v5423, 5
    %v5426 = vsel %vm2640, %v5421, %v5425
    %v5427 = vshrl.u32 %v5010, 16
    %v5429 = vrot.slane %v5427, 4
    %v5430 = vor.u32 %v5429, %v5425
    %v5431 = vrot.slane %v5430, 4
    %v5433 = vshll.u32 %v5059, 16
    %v5435 = vrot.slane %v5433, 5
    %v5436 = vsel %vm2640, %v5431, %v5435
    %v5438 = vshrl.u32 %v5011, 16
    %v5440 = vrot.slane %v5438, 4
    %v5441 = vshll.u32 %v5011, 16
    %v5443 = vrot.slane %v5441, 5
    %v5444 = vor.u32 %v5440, %v5443
    %v5445 = vrot.slane %v5444, 4
    %v5447 = vshll.u32 %v5012, 16
    %v5449 = vrot.slane %v5447, 5
    %v5450 = vsel %vm2640, %v5445, %v5449
    %v5451 = vshrl.u32 %v5012, 16
    %v5453 = vrot.slane %v5451, 4
    %v5454 = vor.u32 %v5453, %v5449
    %v5455 = vrot.slane %v5454, 4
    %v5457 = vshll.u32 %v5060, 16
    %v5459 = vrot.slane %v5457, 5
    %v5460 = vsel %vm2640, %v5455, %v5459
    %v5462 = vshrl.u32 %v5013, 16
    %v5464 = vrot.slane %v5462, 4
    %v5465 = vshll.u32 %v5013, 16
    %v5467 = vrot.slane %v5465, 5
    %v5468 = vor.u32 %v5464, %v5467
    %v5469 = vrot.slane %v5468, 4
    %v5471 = vshll.u32 %v5014, 16
    %v5473 = vrot.slane %v5471, 5
    %v5474 = vsel %vm2640, %v5469, %v5473
    %v5475 = vshrl.u32 %v5014, 16
    %v5477 = vrot.slane %v5475, 4
    %v5478 = vor.u32 %v5477, %v5473
    %v5479 = vrot.slane %v5478, 4
    %v5481 = vshll.u32 %v5061, 16
    %v5483 = vrot.slane %v5481, 5
    %v5484 = vsel %vm2640, %v5479, %v5483
    %v5486 = vshrl.u32 %v5015, 16
    %v5488 = vrot.slane %v5486, 4
    %v5489 = vshll.u32 %v5015, 16
    %v5491 = vrot.slane %v5489, 5
    %v5492 = vor.u32 %v5488, %v5491
    %v5493 = vrot.slane %v5492, 4
    %v5495 = vshll.u32 %v5016, 16
    %v5497 = vrot.slane %v5495, 5
    %v5498 = vsel %vm2640, %v5493, %v5497
    %v5499 = vshrl.u32 %v5016, 16
    %v5501 = vrot.slane %v5499, 4
    %v5502 = vor.u32 %v5501, %v5497
    %v5503 = vrot.slane %v5502, 4
    %v5505 = vshll.u32 %v5062, 16
    %v5507 = vrot.slane %v5505, 5
    %v5508 = vsel %vm2640, %v5503, %v5507
    %v5510 = vshrl.u32 %v5017, 16
    %v5512 = vrot.slane %v5510, 4
    %v5513 = vshll.u32 %v5017, 16
    %v5515 = vrot.slane %v5513, 5
    %v5516 = vor.u32 %v5512, %v5515
    %v5517 = vrot.slane %v5516, 4
    %v5519 = vshll.u32 %v5018, 16
    %v5521 = vrot.slane %v5519, 5
    %v5522 = vsel %vm2640, %v5517, %v5521
    %v5523 = vshrl.u32 %v5018, 16
    %v5525 = vrot.slane %v5523, 4
    %v5526 = vor.u32 %v5525, %v5521
    %v5527 = vrot.slane %v5526, 4
    %v5529 = vshll.u32 %v5063, 16
    %v5531 = vrot.slane %v5529, 5
    %v5532 = vsel %vm2640, %v5527, %v5531
    %v5534 = vshrl.u32 %v5019, 16
    %v5536 = vrot.slane %v5534, 4
    %v5537 = vshll.u32 %v5019, 16
    %v5539 = vrot.slane %v5537, 5
    %v5540 = vor.u32 %v5536, %v5539
    %v5541 = vrot.slane %v5540, 4
    %v5543 = vshll.u32 %v5020, 16
    %v5545 = vrot.slane %v5543, 5
    %v5546 = vsel %vm2640, %v5541, %v5545
    %v5547 = vshrl.u32 %v5020, 16
    %v5549 = vrot.slane %v5547, 4
    %v5550 = vor.u32 %v5549, %v5545
    %v5551 = vrot.slane %v5550, 4
    %v5553 = vshll.u32 %v5064, 16
    %v5555 = vrot.slane %v5553, 5
    %v5556 = vsel %vm2640, %v5551, %v5555
    %v5558 = vshrl.u32 %v5021, 16
    %v5560 = vrot.slane %v5558, 4
    %v5561 = vshll.u32 %v5021, 16
    %v5563 = vrot.slane %v5561, 5
    %v5564 = vor.u32 %v5560, %v5563
    %v5565 = vrot.slane %v5564, 4
    %v5567 = vshll.u32 %v5022, 16
    %v5569 = vrot.slane %v5567, 5
    %v5570 = vsel %vm2640, %v5565, %v5569
    %v5571 = vshrl.u32 %v5022, 16
    %v5573 = vrot.slane %v5571, 4
    %v5574 = vor.u32 %v5573, %v5569
    %v5575 = vrot.slane %v5574, 4
    %v5577 = vshll.u32 %v5065, 16
    %v5579 = vrot.slane %v5577, 5
    %v5580 = vsel %vm2640, %v5575, %v5579
    %v5582 = vshrl.u32 %v5023, 16
    %v5584 = vrot.slane %v5582, 4
    %v5585 = vshll.u32 %v5023, 16
    %v5587 = vrot.slane %v5585, 5
    %v5588 = vor.u32 %v5584, %v5587
    %v5589 = vrot.slane %v5588, 4
    %v5591 = vshll.u32 %v5024, 16
    %v5593 = vrot.slane %v5591, 5
    %v5594 = vsel %vm2640, %v5589, %v5593
    %v5595 = vshrl.u32 %v5024, 16
    %v5597 = vrot.slane %v5595, 4
    %v5598 = vor.u32 %v5597, %v5593
    %v5599 = vrot.slane %v5598, 4
    %v5601 = vshll.u32 %v5066, 16
    %v5603 = vrot.slane %v5601, 5
    %v5604 = vsel %vm2640, %v5599, %v5603
    %v5606 = vshrl.u32 %v5025, 16
    %v5608 = vrot.slane %v5606, 4
    %v5609 = vshll.u32 %v5025, 16
    %v5611 = vrot.slane %v5609, 5
    %v5612 = vor.u32 %v5608, %v5611
    %v5613 = vrot.slane %v5612, 4
    %v5615 = vshll.u32 %v5026, 16
    %v5617 = vrot.slane %v5615, 5
    %v5618 = vsel %vm2640, %v5613, %v5617
    %v5619 = vshrl.u32 %v5026, 16
    %v5621 = vrot.slane %v5619, 4
    %v5622 = vor.u32 %v5621, %v5617
    %v5623 = vrot.slane %v5622, 4
    %v5625 = vshll.u32 %v5067, 16
    %v5627 = vrot.slane %v5625, 5
    %v5628 = vsel %vm2640, %v5623, %v5627
    %v5630 = vshrl.u32 %v5027, 16
    %v5632 = vrot.slane %v5630, 4
    %v5633 = vshll.u32 %v5027, 16
    %v5635 = vrot.slane %v5633, 5
    %v5636 = vor.u32 %v5632, %v5635
    %v5637 = vrot.slane %v5636, 4
    %v5639 = vshll.u32 %v5028, 16
    %v5641 = vrot.slane %v5639, 5
    %v5642 = vsel %vm2640, %v5637, %v5641
    %v5643 = vshrl.u32 %v5028, 16
    %v5645 = vrot.slane %v5643, 4
    %v5646 = vor.u32 %v5645, %v5641
    %v5647 = vrot.slane %v5646, 4
    %v5649 = vshll.u32 %v5068, 16
    %v5651 = vrot.slane %v5649, 5
    %v5652 = vsel %vm2640, %v5647, %v5651
    %v5654 = vshrl.u32 %v5029, 16
    %v5656 = vrot.slane %v5654, 4
    %v5657 = vshll.u32 %v5029, 16
    %v5659 = vrot.slane %v5657, 5
    %v5660 = vor.u32 %v5656, %v5659
    %v5661 = vrot.slane %v5660, 4
    %v5663 = vshll.u32 %v5030, 16
    %v5665 = vrot.slane %v5663, 5
    %v5666 = vsel %vm2640, %v5661, %v5665
    %v5667 = vshrl.u32 %v5030, 16
    %v5669 = vrot.slane %v5667, 4
    %v5670 = vor.u32 %v5669, %v5665
    %v5671 = vrot.slane %v5670, 4
    %v5673 = vshll.u32 %v5069, 16
    %v5675 = vrot.slane %v5673, 5
    %v5676 = vsel %vm2640, %v5671, %v5675
    %v5678 = vshrl.u32 %v5031, 16
    %v5680 = vrot.slane %v5678, 4
    %v5681 = vshll.u32 %v5031, 16
    %v5683 = vrot.slane %v5681, 5
    %v5684 = vor.u32 %v5680, %v5683
    %v5685 = vrot.slane %v5684, 4
    %v5687 = vshll.u32 %v5032, 16
    %v5689 = vrot.slane %v5687, 5
    %v5690 = vsel %vm2640, %v5685, %v5689
    %v5691 = vshrl.u32 %v5032, 16
    %v5693 = vrot.slane %v5691, 4
    %v5694 = vor.u32 %v5693, %v5689
    %v5695 = vrot.slane %v5694, 4
    %v5697 = vshll.u32 %v5070, 16
    %v5699 = vrot.slane %v5697, 5
    %v5700 = vsel %vm2640, %v5695, %v5699
    %v5702 = vshrl.u32 %v5033, 16
    %v5704 = vrot.slane %v5702, 4
    %v5705 = vshll.u32 %v5033, 16
    %v5707 = vrot.slane %v5705, 5
    %v5708 = vor.u32 %v5704, %v5707
    %v5709 = vrot.slane %v5708, 4
    %v5711 = vshll.u32 %v5034, 16
    %v5713 = vrot.slane %v5711, 5
    %v5714 = vsel %vm2640, %v5709, %v5713
    %v5715 = vshrl.u32 %v5034, 16
    %v5717 = vrot.slane %v5715, 4
    %v5718 = vor.u32 %v5717, %v5713
    %v5719 = vrot.slane %v5718, 4
    %v5721 = vshll.u32 %v5071, 16
    %v5723 = vrot.slane %v5721, 5
    %v5724 = vsel %vm2640, %v5719, %v5723
    %v5726 = vshrl.u32 %v5035, 16
    %v5728 = vrot.slane %v5726, 4
    %v5729 = vshll.u32 %v5035, 16
    %v5731 = vrot.slane %v5729, 5
    %v5732 = vor.u32 %v5728, %v5731
    %v5733 = vrot.slane %v5732, 4
    %v5735 = vshll.u32 %v5036, 16
    %v5737 = vrot.slane %v5735, 5
    %v5738 = vsel %vm2640, %v5733, %v5737
    %v5739 = vshrl.u32 %v5036, 16
    %v5741 = vrot.slane %v5739, 4
    %v5742 = vor.u32 %v5741, %v5737
    %v5743 = vrot.slane %v5742, 4
    %v5745 = vshll.u32 %v5072, 16
    %v5747 = vrot.slane %v5745, 5
    %v5748 = vsel %vm2640, %v5743, %v5747
    %v5750 = vshrl.u32 %v5037, 16
    %v5752 = vrot.slane %v5750, 4
    %v5753 = vshll.u32 %v5037, 16
    %v5755 = vrot.slane %v5753, 5
    %v5756 = vor.u32 %v5752, %v5755
    %v5757 = vrot.slane %v5756, 4
    %v5759 = vshll.u32 %v5038, 16
    %v5761 = vrot.slane %v5759, 5
    %v5762 = vsel %vm2640, %v5757, %v5761
    %v5763 = vshrl.u32 %v5038, 16
    %v5765 = vrot.slane %v5763, 4
    %v5766 = vor.u32 %v5765, %v5761
    %v5767 = vrot.slane %v5766, 4
    %v5769 = vshll.u32 %v5073, 16
    %v5771 = vrot.slane %v5769, 5
    %v5772 = vsel %vm2640, %v5767, %v5771
    %v5774 = vshrl.u32 %v5039, 16
    %v5776 = vrot.slane %v5774, 4
    %v5777 = vshll.u32 %v5039, 16
    %v5779 = vrot.slane %v5777, 5
    %v5780 = vor.u32 %v5776, %v5779
    %v5781 = vrot.slane %v5780, 4
    %v5783 = vshll.u32 %v5040, 16
    %v5785 = vrot.slane %v5783, 5
    %v5786 = vsel %vm2640, %v5781, %v5785
    %v5787 = vshrl.u32 %v5040, 16
    %v5789 = vrot.slane %v5787, 4
    %v5790 = vor.u32 %v5789, %v5785
    %v5791 = vrot.slane %v5790, 4
    %v5793 = vshll.u32 %v5074, 16
    %v5795 = vrot.slane %v5793, 5
    %v5796 = vsel %vm2640, %v5791, %v5795
    %v5798 = vshrl.u32 %v5041, 16
    %v5800 = vrot.slane %v5798, 4
    %v5801 = vshll.u32 %v5041, 16
    %v5803 = vrot.slane %v5801, 5
    %v5804 = vor.u32 %v5800, %v5803
    %v5805 = vrot.slane %v5804, 4
    %v5807 = vshll.u32 %v5042, 16
    %v5809 = vrot.slane %v5807, 5
    %v5810 = vsel %vm2640, %v5805, %v5809
    %v5811 = vshrl.u32 %v5042, 16
    %v5813 = vrot.slane %v5811, 4
    %v5814 = vor.u32 %v5813, %v5809
    %v5815 = vrot.slane %v5814, 4
    %v5817 = vshll.u32 %v5075, 16
    %v5819 = vrot.slane %v5817, 5
    %v5820 = vsel %vm2640, %v5815, %v5819
    %v5822 = vshrl.u32 %v5043, 16
    %v5824 = vrot.slane %v5822, 4
    %v5825 = vshll.u32 %v5043, 16
    %v5827 = vrot.slane %v5825, 5
    %v5828 = vor.u32 %v5824, %v5827
    %v5829 = vrot.slane %v5828, 4
    %v5831 = vshll.u32 %v5044, 16
    %v5833 = vrot.slane %v5831, 5
    %v5834 = vsel %vm2640, %v5829, %v5833
    %v5835 = vshrl.u32 %v5044, 16
    %v5837 = vrot.slane %v5835, 4
    %v5838 = vor.u32 %v5837, %v5833
    %v5839 = vrot.slane %v5838, 4
    %v5841 = vshll.u32 %v5076, 16
    %v5843 = vrot.slane %v5841, 5
    %v5844 = vsel %vm2640, %v5839, %v5843
    %v5845 = vld [vmem:[%s4980] sm:$0xe]
    %v5846 = vld [vmem:[%s4980 + $0xc] sm:$0xe]
    %v5847 = vld [vmem:[%s4980 + $0x18] sm:$0xe]
    %v5848 = vld [vmem:[%s4980 + $0x24] sm:$0xe]
    %v5849 = vld [vmem:[%s4980 + $0x30] sm:$0xe]
    %v5850 = vld [vmem:[%s4980 + $0x3c] sm:$0xe]
    %v5851 = vld [vmem:[%s4980 + $0x48] sm:$0xe]
    %v5852 = vld [vmem:[%s4980 + $0x54] sm:$0xe]
    %v5853 = vld [vmem:[%s4980 + $0x60] sm:$0xe]
    %v5854 = vld [vmem:[%s4980 + $0x6c] sm:$0xe]
    %v5855 = vld [vmem:[%s4980 + $0x78] sm:$0xe]
    %v5856 = vld [vmem:[%s4980 + $0x84] sm:$0xe]
    %v5857 = vld [vmem:[%s4980 + $0x90] sm:$0xe]
    %v5858 = vld [vmem:[%s4980 + $0x9c] sm:$0xe]
    %v5859 = vld [vmem:[%s4980 + $0xa8] sm:$0xe]
    %v5860 = vld [vmem:[%s4980 + $0xb4] sm:$0xe]
    %v5861 = vld [vmem:[%s4980 + $0xd8] sm:$0xe]
    %v5862 = vld [vmem:[%s4980 + $0xe4] sm:$0xe]
    %v5863 = vld [vmem:[%s4980 + $0xf0] sm:$0xe]
    %v5864 = vld [vmem:[%s4980 + $0xfc] sm:$0xe]
    %v5865 = vld [vmem:[%s4980 + $0x108] sm:$0xe]
    %v5866 = vld [vmem:[%s4980 + $0x114] sm:$0xe]
    %v5867 = vld [vmem:[%s4980 + $0x120] sm:$0xe]
    %v5868 = vld [vmem:[%s4980 + $0x12c] sm:$0xe]
    %v5869 = vld [vmem:[%s4980 + $0x138] sm:$0xe]
    %v5870 = vld [vmem:[%s4980 + $0x144] sm:$0xe]
    %v5871 = vld [vmem:[%s4980 + $0x150] sm:$0xe]
    %v5872 = vld [vmem:[%s4980 + $0x15c] sm:$0xe]
    %v5873 = vld [vmem:[%s4980 + $0x168] sm:$0xe]
    %v5874 = vld [vmem:[%s4980 + $0x174] sm:$0xe]
    %v5875 = vld [vmem:[%s4980 + $0x180] sm:$0xe]
    %v5876 = vld [vmem:[%s4980 + $0x18c] sm:$0xe]
    %v5973 = vrot.slane %v5845, 5
    %v5974 = vrot.slane %v5973, 4
    %v5975 = vrot.slane %v4982, 5
    %v5976 = vsel %vm3539, %v5974, %v5975
    %v5977 = vrot.slane %v5975, 4
    %v5978 = vrot.slane %v5045, 5
    %v5979 = vsel %vm3539, %v5977, %v5978
    %v5980 = vrot.slane %v5846, 5
    %v5981 = vrot.slane %v5980, 4
    %v5982 = vrot.slane %v4984, 5
    %v5983 = vsel %vm3539, %v5981, %v5982
    %v5984 = vrot.slane %v5982, 4
    %v5985 = vrot.slane %v5046, 5
    %v5986 = vsel %vm3539, %v5984, %v5985
    %v5987 = vrot.slane %v5847, 5
    %v5988 = vrot.slane %v5987, 4
    %v5989 = vrot.slane %v4986, 5
    %v5990 = vsel %vm3539, %v5988, %v5989
    %v5991 = vrot.slane %v5989, 4
    %v5992 = vrot.slane %v5047, 5
    %v5993 = vsel %vm3539, %v5991, %v5992
    %v5994 = vrot.slane %v5848, 5
    %v5995 = vrot.slane %v5994, 4
    %v5996 = vrot.slane %v4988, 5
    %v5997 = vsel %vm3539, %v5995, %v5996
    %v5998 = vrot.slane %v5996, 4
    %v5999 = vrot.slane %v5048, 5
    %v6000 = vsel %vm3539, %v5998, %v5999
    %v6001 = vrot.slane %v5849, 5
    %v6002 = vrot.slane %v6001, 4
    %v6003 = vrot.slane %v4990, 5
    %v6004 = vsel %vm3539, %v6002, %v6003
    %v6005 = vrot.slane %v6003, 4
    %v6006 = vrot.slane %v5049, 5
    %v6007 = vsel %vm3539, %v6005, %v6006
    %v6008 = vrot.slane %v5850, 5
    %v6009 = vrot.slane %v6008, 4
    %v6010 = vrot.slane %v4992, 5
    %v6011 = vsel %vm3539, %v6009, %v6010
    %v6012 = vrot.slane %v6010, 4
    %v6013 = vrot.slane %v5050, 5
    %v6014 = vsel %vm3539, %v6012, %v6013
    %v6015 = vrot.slane %v5851, 5
    %v6016 = vrot.slane %v6015, 4
    %v6017 = vrot.slane %v4994, 5
    %v6018 = vsel %vm3539, %v6016, %v6017
    %v6019 = vrot.slane %v6017, 4
    %v6020 = vrot.slane %v5051, 5
    %v6021 = vsel %vm3539, %v6019, %v6020
    %v6022 = vrot.slane %v5852, 5
    %v6023 = vrot.slane %v6022, 4
    %v6024 = vrot.slane %v4996, 5
    %v6025 = vsel %vm3539, %v6023, %v6024
    %v6026 = vrot.slane %v6024, 4
    %v6027 = vrot.slane %v5052, 5
    %v6028 = vsel %vm3539, %v6026, %v6027
    %v6029 = vrot.slane %v5853, 5
    %v6030 = vrot.slane %v6029, 4
    %v6031 = vrot.slane %v4998, 5
    %v6032 = vsel %vm3539, %v6030, %v6031
    %v6033 = vrot.slane %v6031, 4
    %v6034 = vrot.slane %v5053, 5
    %v6035 = vsel %vm3539, %v6033, %v6034
    %v6036 = vrot.slane %v5854, 5
    %v6037 = vrot.slane %v6036, 4
    %v6038 = vrot.slane %v5000, 5
    %v6039 = vsel %vm3539, %v6037, %v6038
    %v6040 = vrot.slane %v6038, 4
    %v6041 = vrot.slane %v5054, 5
    %v6042 = vsel %vm3539, %v6040, %v6041
    %v6043 = vrot.slane %v5855, 5
    %v6044 = vrot.slane %v6043, 4
    %v6045 = vrot.slane %v5002, 5
    %v6046 = vsel %vm3539, %v6044, %v6045
    %v6047 = vrot.slane %v6045, 4
    %v6048 = vrot.slane %v5055, 5
    %v6049 = vsel %vm3539, %v6047, %v6048
    %v6050 = vrot.slane %v5856, 5
    %v6051 = vrot.slane %v6050, 4
    %v6052 = vrot.slane %v5004, 5
    %v6053 = vsel %vm3539, %v6051, %v6052
    %v6054 = vrot.slane %v6052, 4
    %v6055 = vrot.slane %v5056, 5
    %v6056 = vsel %vm3539, %v6054, %v6055
    %v6057 = vrot.slane %v5857, 5
    %v6058 = vrot.slane %v6057, 4
    %v6059 = vrot.slane %v5006, 5
    %v6060 = vsel %vm3539, %v6058, %v6059
    %v6061 = vrot.slane %v6059, 4
    %v6062 = vrot.slane %v5057, 5
    %v6063 = vsel %vm3539, %v6061, %v6062
    %v6064 = vrot.slane %v5858, 5
    %v6065 = vrot.slane %v6064, 4
    %v6066 = vrot.slane %v5008, 5
    %v6067 = vsel %vm3539, %v6065, %v6066
    %v6068 = vrot.slane %v6066, 4
    %v6069 = vrot.slane %v5058, 5
    %v6070 = vsel %vm3539, %v6068, %v6069
    %v6071 = vrot.slane %v5859, 5
    %v6072 = vrot.slane %v6071, 4
    %v6073 = vrot.slane %v5010, 5
    %v6074 = vsel %vm3539, %v6072, %v6073
    %v6075 = vrot.slane %v6073, 4
    %v6076 = vrot.slane %v5059, 5
    %v6077 = vsel %vm3539, %v6075, %v6076
    %v6078 = vrot.slane %v5860, 5
    %v6079 = vrot.slane %v6078, 4
    %v6080 = vrot.slane %v5012, 5
    %v6081 = vsel %vm3539, %v6079, %v6080
    %v6082 = vrot.slane %v6080, 4
    %v6083 = vrot.slane %v5060, 5
    %v6084 = vsel %vm3539, %v6082, %v6083
    %v6085 = vrot.slane %v5861, 5
    %v6086 = vrot.slane %v6085, 4
    %v6087 = vrot.slane %v5014, 5
    %v6088 = vsel %vm3539, %v6086, %v6087
    %v6089 = vrot.slane %v6087, 4
    %v6090 = vrot.slane %v5061, 5
    %v6091 = vsel %vm3539, %v6089, %v6090
    %v6092 = vrot.slane %v5862, 5
    %v6093 = vrot.slane %v6092, 4
    %v6094 = vrot.slane %v5016, 5
    %v6095 = vsel %vm3539, %v6093, %v6094
    %v6096 = vrot.slane %v6094, 4
    %v6097 = vrot.slane %v5062, 5
    %v6098 = vsel %vm3539, %v6096, %v6097
    %v6099 = vrot.slane %v5863, 5
    %v6100 = vrot.slane %v6099, 4
    %v6101 = vrot.slane %v5018, 5
    %v6102 = vsel %vm3539, %v6100, %v6101
    %v6103 = vrot.slane %v6101, 4
    %v6104 = vrot.slane %v5063, 5
    %v6105 = vsel %vm3539, %v6103, %v6104
    %v6106 = vrot.slane %v5864, 5
    %v6107 = vrot.slane %v6106, 4
    %v6108 = vrot.slane %v5020, 5
    %v6109 = vsel %vm3539, %v6107, %v6108
    %v6110 = vrot.slane %v6108, 4
    %v6111 = vrot.slane %v5064, 5
    %v6112 = vsel %vm3539, %v6110, %v6111
    %v6113 = vrot.slane %v5865, 5
    %v6114 = vrot.slane %v6113, 4
    %v6115 = vrot.slane %v5022, 5
    %v6116 = vsel %vm3539, %v6114, %v6115
    %v6117 = vrot.slane %v6115, 4
    %v6118 = vrot.slane %v5065, 5
    %v6119 = vsel %vm3539, %v6117, %v6118
    %v6120 = vrot.slane %v5866, 5
    %v6121 = vrot.slane %v6120, 4
    %v6122 = vrot.slane %v5024, 5
    %v6123 = vsel %vm3539, %v6121, %v6122
    %v6124 = vrot.slane %v6122, 4
    %v6125 = vrot.slane %v5066, 5
    %v6126 = vsel %vm3539, %v6124, %v6125
    %v6127 = vrot.slane %v5867, 5
    %v6128 = vrot.slane %v6127, 4
    %v6129 = vrot.slane %v5026, 5
    %v6130 = vsel %vm3539, %v6128, %v6129
    %v6131 = vrot.slane %v6129, 4
    %v6132 = vrot.slane %v5067, 5
    %v6133 = vsel %vm3539, %v6131, %v6132
    %v6134 = vrot.slane %v5868, 5
    %v6135 = vrot.slane %v6134, 4
    %v6136 = vrot.slane %v5028, 5
    %v6137 = vsel %vm3539, %v6135, %v6136
    %v6138 = vrot.slane %v6136, 4
    %v6139 = vrot.slane %v5068, 5
    %v6140 = vsel %vm3539, %v6138, %v6139
    %v6141 = vrot.slane %v5869, 5
    %v6142 = vrot.slane %v6141, 4
    %v6143 = vrot.slane %v5030, 5
    %v6144 = vsel %vm3539, %v6142, %v6143
    %v6145 = vrot.slane %v6143, 4
    %v6146 = vrot.slane %v5069, 5
    %v6147 = vsel %vm3539, %v6145, %v6146
    %v6148 = vrot.slane %v5870, 5
    %v6149 = vrot.slane %v6148, 4
    %v6150 = vrot.slane %v5032, 5
    %v6151 = vsel %vm3539, %v6149, %v6150
    %v6152 = vrot.slane %v6150, 4
    %v6153 = vrot.slane %v5070, 5
    %v6154 = vsel %vm3539, %v6152, %v6153
    %v6155 = vrot.slane %v5871, 5
    %v6156 = vrot.slane %v6155, 4
    %v6157 = vrot.slane %v5034, 5
    %v6158 = vsel %vm3539, %v6156, %v6157
    %v6159 = vrot.slane %v6157, 4
    %v6160 = vrot.slane %v5071, 5
    %v6161 = vsel %vm3539, %v6159, %v6160
    %v6162 = vrot.slane %v5872, 5
    %v6163 = vrot.slane %v6162, 4
    %v6164 = vrot.slane %v5036, 5
    %v6165 = vsel %vm3539, %v6163, %v6164
    %v6166 = vrot.slane %v6164, 4
    %v6167 = vrot.slane %v5072, 5
    %v6168 = vsel %vm3539, %v6166, %v6167
    %v6169 = vrot.slane %v5873, 5
    %v6170 = vrot.slane %v6169, 4
    %v6171 = vrot.slane %v5038, 5
    %v6172 = vsel %vm3539, %v6170, %v6171
    %v6173 = vrot.slane %v6171, 4
    %v6174 = vrot.slane %v5073, 5
    %v6175 = vsel %vm3539, %v6173, %v6174
    %v6176 = vrot.slane %v5874, 5
    %v6177 = vrot.slane %v6176, 4
    %v6178 = vrot.slane %v5040, 5
    %v6179 = vsel %vm3539, %v6177, %v6178
    %v6180 = vrot.slane %v6178, 4
    %v6181 = vrot.slane %v5074, 5
    %v6182 = vsel %vm3539, %v6180, %v6181
    %v6183 = vrot.slane %v5875, 5
    %v6184 = vrot.slane %v6183, 4
    %v6185 = vrot.slane %v5042, 5
    %v6186 = vsel %vm3539, %v6184, %v6185
    %v6187 = vrot.slane %v6185, 4
    %v6188 = vrot.slane %v5075, 5
    %v6189 = vsel %vm3539, %v6187, %v6188
    %v6190 = vrot.slane %v5876, 5
    %v6191 = vrot.slane %v6190, 4
    %v6192 = vrot.slane %v5044, 5
    %v6193 = vsel %vm3539, %v6191, %v6192
    %v6194 = vrot.slane %v6192, 4
    %v6195 = vrot.slane %v5076, 5
    %v6196 = vsel %vm3539, %v6194, %v6195
    %v6229 = vunpack.c.l.b16 %v2542
    %v6230 = vunpack.c.l.b16 %v2543
    %v6231 = vunpack.c.l.b16 %v2544
    %v6232 = vunpack.c.l.b16 %v2545
    %v6233 = vunpack.c.l.b16 %v2546
    %v6234 = vunpack.c.l.b16 %v2547
    %v6235 = vunpack.c.l.b16 %v2548
    %v6236 = vunpack.c.l.b16 %v2549
    %v6237 = vunpack.c.l.b16 %v2550
    %v6238 = vunpack.c.l.b16 %v2551
    %v6239 = vunpack.c.l.b16 %v2552
    %v6240 = vunpack.c.l.b16 %v2553
    %v6241 = vunpack.c.l.b16 %v2554
    %v6242 = vunpack.c.l.b16 %v2555
    %v6243 = vunpack.c.l.b16 %v2556
    %v6244 = vunpack.c.l.b16 %v2557
    %v6245 = vunpack.c.l.b16 %v2558
    %v6246 = vunpack.c.l.b16 %v2559
    %v6247 = vunpack.c.l.b16 %v2560
    %v6248 = vunpack.c.l.b16 %v2561
    %v6249 = vunpack.c.l.b16 %v2562
    %v6250 = vunpack.c.l.b16 %v2563
    %v6251 = vunpack.c.l.b16 %v2564
    %v6252 = vunpack.c.l.b16 %v2565
    %v6253 = vunpack.c.l.b16 %v2566
    %v6254 = vunpack.c.l.b16 %v2567
    %v6255 = vunpack.c.l.b16 %v2568
    %v6256 = vunpack.c.l.b16 %v2569
    %v6257 = vunpack.c.l.b16 %v2570
    %v6258 = vunpack.c.l.b16 %v2571
    %v6259 = vunpack.c.l.b16 %v2572
    %v6260 = vunpack.c.l.b16 %v2573
    %v6261 = vunpack.c.l.b16 %v2574
    %v6262 = vunpack.c.l.b16 %v2575
    %v6263 = vunpack.c.l.b16 %v2576
    %v6264 = vunpack.c.l.b16 %v2577
    %v6265 = vunpack.c.l.b16 %v2578
    %v6266 = vunpack.c.l.b16 %v2579
    %v6267 = vunpack.c.l.b16 %v2580
    %v6268 = vunpack.c.l.b16 %v2581
    %v6269 = vunpack.c.l.b16 %v2582
    %v6270 = vunpack.c.l.b16 %v2583
    %v6271 = vunpack.c.l.b16 %v2584
    %v6272 = vunpack.c.l.b16 %v2585
    %v6273 = vunpack.c.l.b16 %v2586
    %v6274 = vunpack.c.l.b16 %v2587
    %v6275 = vunpack.c.l.b16 %v2588
    %v6276 = vunpack.c.l.b16 %v2589
    %v6277 = vunpack.c.l.b16 %v2590
    %v6278 = vunpack.c.l.b16 %v2591
    %v6279 = vunpack.c.l.b16 %v2592
    %v6280 = vunpack.c.l.b16 %v2593
    %v6281 = vunpack.c.l.b16 %v2594
    %v6282 = vunpack.c.l.b16 %v2595
    %v6283 = vunpack.c.l.b16 %v2596
    %v6284 = vunpack.c.l.b16 %v2597
    %v6285 = vunpack.c.l.b16 %v2598
    %v6286 = vunpack.c.l.b16 %v2599
    %v6287 = vunpack.c.l.b16 %v2600
    %v6288 = vunpack.c.l.b16 %v2601
    %v6289 = vunpack.c.l.b16 %v2602
    %v6290 = vunpack.c.l.b16 %v2603
    %v6291 = vunpack.c.l.b16 %v2604
    %v6292 = vunpack.c.l.b16 %v2605
    %v6293 = vpack.c.b16 %v6230, %v6229
    %v6294 = vpack.c.b16 %v6232, %v6231
    %v6295 = vpack.c.b16 %v6234, %v6233
    %v6296 = vpack.c.b16 %v6236, %v6235
    %v6297 = vpack.c.b16 %v6238, %v6237
    %v6298 = vpack.c.b16 %v6240, %v6239
    %v6299 = vpack.c.b16 %v6242, %v6241
    %v6300 = vpack.c.b16 %v6244, %v6243
    %v6301 = vpack.c.b16 %v6246, %v6245
    %v6302 = vpack.c.b16 %v6248, %v6247
    %v6303 = vpack.c.b16 %v6250, %v6249
    %v6304 = vpack.c.b16 %v6252, %v6251
    %v6305 = vpack.c.b16 %v6254, %v6253
    %v6306 = vpack.c.b16 %v6256, %v6255
    %v6307 = vpack.c.b16 %v6258, %v6257
    %v6308 = vpack.c.b16 %v6260, %v6259
    %v6309 = vpack.c.b16 %v6262, %v6261
    %v6310 = vpack.c.b16 %v6264, %v6263
    %v6311 = vpack.c.b16 %v6266, %v6265
    %v6312 = vpack.c.b16 %v6268, %v6267
    %v6313 = vpack.c.b16 %v6270, %v6269
    %v6314 = vpack.c.b16 %v6272, %v6271
    %v6315 = vpack.c.b16 %v6274, %v6273
    %v6316 = vpack.c.b16 %v6276, %v6275
    %v6317 = vpack.c.b16 %v6278, %v6277
    %v6318 = vpack.c.b16 %v6280, %v6279
    %v6319 = vpack.c.b16 %v6282, %v6281
    %v6320 = vpack.c.b16 %v6284, %v6283
    %v6321 = vpack.c.b16 %v6286, %v6285
    %v6322 = vpack.c.b16 %v6288, %v6287
    %v6323 = vpack.c.b16 %v6290, %v6289
    %v6324 = vpack.c.b16 %v6292, %v6291
    %v6325 = vunpack.c.l.b16 %v2654
    %v6326 = vunpack.c.l.b16 %v2664
    %v6327 = vunpack.c.l.b16 %v2678
    %v6328 = vunpack.c.l.b16 %v2688
    %v6329 = vunpack.c.l.b16 %v2702
    %v6330 = vunpack.c.l.b16 %v2712
    %v6331 = vunpack.c.l.b16 %v2726
    %v6332 = vunpack.c.l.b16 %v2736
    %v6333 = vunpack.c.l.b16 %v2750
    %v6334 = vunpack.c.l.b16 %v2760
    %v6335 = vunpack.c.l.b16 %v2774
    %v6336 = vunpack.c.l.b16 %v2784
    %v6337 = vunpack.c.l.b16 %v2798
    %v6338 = vunpack.c.l.b16 %v2808
    %v6339 = vunpack.c.l.b16 %v2822
    %v6340 = vunpack.c.l.b16 %v2832
    %v6341 = vunpack.c.l.b16 %v2846
    %v6342 = vunpack.c.l.b16 %v2856
    %v6343 = vunpack.c.l.b16 %v2870
    %v6344 = vunpack.c.l.b16 %v2880
    %v6345 = vunpack.c.l.b16 %v2894
    %v6346 = vunpack.c.l.b16 %v2904
    %v6347 = vunpack.c.l.b16 %v2918
    %v6348 = vunpack.c.l.b16 %v2928
    %v6349 = vunpack.c.l.b16 %v2942
    %v6350 = vunpack.c.l.b16 %v2952
    %v6351 = vunpack.c.l.b16 %v2966
    %v6352 = vunpack.c.l.b16 %v2976
    %v6353 = vunpack.c.l.b16 %v2990
    %v6354 = vunpack.c.l.b16 %v3000
    %v6355 = vunpack.c.l.b16 %v3014
    %v6356 = vunpack.c.l.b16 %v3024
    %v6357 = vunpack.c.l.b16 %v3038
    %v6358 = vunpack.c.l.b16 %v3048
    %v6359 = vunpack.c.l.b16 %v3062
    %v6360 = vunpack.c.l.b16 %v3072
    %v6361 = vunpack.c.l.b16 %v3086
    %v6362 = vunpack.c.l.b16 %v3096
    %v6363 = vunpack.c.l.b16 %v3110
    %v6364 = vunpack.c.l.b16 %v3120
    %v6365 = vunpack.c.l.b16 %v3134
    %v6366 = vunpack.c.l.b16 %v3144
    %v6367 = vunpack.c.l.b16 %v3158
    %v6368 = vunpack.c.l.b16 %v3168
    %v6369 = vunpack.c.l.b16 %v3182
    %v6370 = vunpack.c.l.b16 %v3192
    %v6371 = vunpack.c.l.b16 %v3206
    %v6372 = vunpack.c.l.b16 %v3216
    %v6373 = vunpack.c.l.b16 %v3230
    %v6374 = vunpack.c.l.b16 %v3240
    %v6375 = vunpack.c.l.b16 %v3254
    %v6376 = vunpack.c.l.b16 %v3264
    %v6377 = vunpack.c.l.b16 %v3278
    %v6378 = vunpack.c.l.b16 %v3288
    %v6379 = vunpack.c.l.b16 %v3302
    %v6380 = vunpack.c.l.b16 %v3312
    %v6381 = vunpack.c.l.b16 %v3326
    %v6382 = vunpack.c.l.b16 %v3336
    %v6383 = vunpack.c.l.b16 %v3350
    %v6384 = vunpack.c.l.b16 %v3360
    %v6385 = vunpack.c.l.b16 %v3374
    %v6386 = vunpack.c.l.b16 %v3384
    %v6387 = vunpack.c.l.b16 %v3398
    %v6388 = vunpack.c.l.b16 %v3408
    %v6389 = vpack.c.b16 %v6326, %v6325
    %v6390 = vpack.c.b16 %v6328, %v6327
    %v6391 = vpack.c.b16 %v6330, %v6329
    %v6392 = vpack.c.b16 %v6332, %v6331
    %v6393 = vpack.c.b16 %v6334, %v6333
    %v6394 = vpack.c.b16 %v6336, %v6335
    %v6395 = vpack.c.b16 %v6338, %v6337
    %v6396 = vpack.c.b16 %v6340, %v6339
    %v6397 = vpack.c.b16 %v6342, %v6341
    %v6398 = vpack.c.b16 %v6344, %v6343
    %v6399 = vpack.c.b16 %v6346, %v6345
    %v6400 = vpack.c.b16 %v6348, %v6347
    %v6401 = vpack.c.b16 %v6350, %v6349
    %v6402 = vpack.c.b16 %v6352, %v6351
    %v6403 = vpack.c.b16 %v6354, %v6353
    %v6404 = vpack.c.b16 %v6356, %v6355
    %v6405 = vpack.c.b16 %v6358, %v6357
    %v6406 = vpack.c.b16 %v6360, %v6359
    %v6407 = vpack.c.b16 %v6362, %v6361
    %v6408 = vpack.c.b16 %v6364, %v6363
    %v6409 = vpack.c.b16 %v6366, %v6365
    %v6410 = vpack.c.b16 %v6368, %v6367
    %v6411 = vpack.c.b16 %v6370, %v6369
    %v6412 = vpack.c.b16 %v6372, %v6371
    %v6413 = vpack.c.b16 %v6374, %v6373
    %v6414 = vpack.c.b16 %v6376, %v6375
    %v6415 = vpack.c.b16 %v6378, %v6377
    %v6416 = vpack.c.b16 %v6380, %v6379
    %v6417 = vpack.c.b16 %v6382, %v6381
    %v6418 = vpack.c.b16 %v6384, %v6383
    %v6419 = vpack.c.b16 %v6386, %v6385
    %v6420 = vpack.c.b16 %v6388, %v6387
    %6421 = vrot.lane.b32.xlu0 %v6389, 8
    %v6422 = vpop.permute.xlu0 %6421
    %6423 = vrot.lane.b32.xlu0 %v6390, 8
    %v6424 = vpop.permute.xlu0 %6423
    %6425 = vrot.lane.b32.xlu0 %v6391, 8
    %v6426 = vpop.permute.xlu0 %6425
    %6427 = vrot.lane.b32.xlu0 %v6392, 8
    %v6428 = vpop.permute.xlu0 %6427
    %6429 = vrot.lane.b32.xlu0 %v6393, 8
    %v6430 = vpop.permute.xlu0 %6429
    %6431 = vrot.lane.b32.xlu0 %v6394, 8
    %v6432 = vpop.permute.xlu0 %6431
    %6433 = vrot.lane.b32.xlu0 %v6395, 8
    %v6434 = vpop.permute.xlu0 %6433
    %6435 = vrot.lane.b32.xlu0 %v6396, 8
    %v6436 = vpop.permute.xlu0 %6435
    %6437 = vrot.lane.b32.xlu0 %v6397, 8
    %v6438 = vpop.permute.xlu0 %6437
    %6439 = vrot.lane.b32.xlu0 %v6398, 8
    %v6440 = vpop.permute.xlu0 %6439
    %6441 = vrot.lane.b32.xlu0 %v6399, 8
    %v6442 = vpop.permute.xlu0 %6441
    %6443 = vrot.lane.b32.xlu0 %v6400, 8
    %v6444 = vpop.permute.xlu0 %6443
    %6445 = vrot.lane.b32.xlu0 %v6401, 8
    %v6446 = vpop.permute.xlu0 %6445
    %6447 = vrot.lane.b32.xlu0 %v6402, 8
    %v6448 = vpop.permute.xlu0 %6447
    %6449 = vrot.lane.b32.xlu0 %v6403, 8
    %v6450 = vpop.permute.xlu0 %6449
    %6451 = vrot.lane.b32.xlu0 %v6404, 8
    %v6452 = vpop.permute.xlu0 %6451
    %6453 = vrot.lane.b32.xlu0 %v6405, 8
    %v6454 = vpop.permute.xlu0 %6453
    %6455 = vrot.lane.b32.xlu0 %v6406, 8
    %v6456 = vpop.permute.xlu0 %6455
    %6457 = vrot.lane.b32.xlu0 %v6407, 8
    %v6458 = vpop.permute.xlu0 %6457
    %6459 = vrot.lane.b32.xlu0 %v6408, 8
    %v6460 = vpop.permute.xlu0 %6459
    %6461 = vrot.lane.b32.xlu0 %v6409, 8
    %v6462 = vpop.permute.xlu0 %6461
    %6463 = vrot.lane.b32.xlu0 %v6410, 8
    %v6464 = vpop.permute.xlu0 %6463
    %6465 = vrot.lane.b32.xlu0 %v6411, 8
    %v6466 = vpop.permute.xlu0 %6465
    %6467 = vrot.lane.b32.xlu0 %v6412, 8
    %v6468 = vpop.permute.xlu0 %6467
    %6469 = vrot.lane.b32.xlu0 %v6413, 8
    %v6470 = vpop.permute.xlu0 %6469
    %6471 = vrot.lane.b32.xlu0 %v6414, 8
    %v6472 = vpop.permute.xlu0 %6471
    %6473 = vrot.lane.b32.xlu0 %v6415, 8
    %v6474 = vpop.permute.xlu0 %6473
    %6475 = vrot.lane.b32.xlu0 %v6416, 8
    %v6476 = vpop.permute.xlu0 %6475
    %6477 = vrot.lane.b32.xlu0 %v6417, 8
    %v6478 = vpop.permute.xlu0 %6477
    %6479 = vrot.lane.b32.xlu0 %v6418, 8
    %v6480 = vpop.permute.xlu0 %6479
    %6481 = vrot.lane.b32.xlu0 %v6419, 8
    %v6482 = vpop.permute.xlu0 %6481
    %6483 = vrot.lane.b32.xlu0 %v6420, 8
    %v6484 = vpop.permute.xlu0 %6483
    %v6485 = vunpack.c.l.b16 %v3543
    %v6486 = vunpack.c.l.b16 %v3546
    %v6487 = vunpack.c.l.b16 %v3550
    %v6488 = vunpack.c.l.b16 %v3553
    %v6489 = vunpack.c.l.b16 %v3557
    %v6490 = vunpack.c.l.b16 %v3560
    %v6491 = vunpack.c.l.b16 %v3564
    %v6492 = vunpack.c.l.b16 %v3567
    %v6493 = vunpack.c.l.b16 %v3571
    %v6494 = vunpack.c.l.b16 %v3574
    %v6495 = vunpack.c.l.b16 %v3578
    %v6496 = vunpack.c.l.b16 %v3581
    %v6497 = vunpack.c.l.b16 %v3585
    %v6498 = vunpack.c.l.b16 %v3588
    %v6499 = vunpack.c.l.b16 %v3592
    %v6500 = vunpack.c.l.b16 %v3595
    %v6501 = vunpack.c.l.b16 %v3599
    %v6502 = vunpack.c.l.b16 %v3602
    %v6503 = vunpack.c.l.b16 %v3606
    %v6504 = vunpack.c.l.b16 %v3609
    %v6505 = vunpack.c.l.b16 %v3613
    %v6506 = vunpack.c.l.b16 %v3616
    %v6507 = vunpack.c.l.b16 %v3620
    %v6508 = vunpack.c.l.b16 %v3623
    %v6509 = vunpack.c.l.b16 %v3627
    %v6510 = vunpack.c.l.b16 %v3630
    %v6511 = vunpack.c.l.b16 %v3634
    %v6512 = vunpack.c.l.b16 %v3637
    %v6513 = vunpack.c.l.b16 %v3641
    %v6514 = vunpack.c.l.b16 %v3644
    %v6515 = vunpack.c.l.b16 %v3648
    %v6516 = vunpack.c.l.b16 %v3651
    %v6517 = vunpack.c.l.b16 %v3655
    %v6518 = vunpack.c.l.b16 %v3658
    %v6519 = vunpack.c.l.b16 %v3662
    %v6520 = vunpack.c.l.b16 %v3665
    %v6521 = vunpack.c.l.b16 %v3669
    %v6522 = vunpack.c.l.b16 %v3672
    %v6523 = vunpack.c.l.b16 %v3676
    %v6524 = vunpack.c.l.b16 %v3679
    %v6525 = vunpack.c.l.b16 %v3683
    %v6526 = vunpack.c.l.b16 %v3686
    %v6527 = vunpack.c.l.b16 %v3690
    %v6528 = vunpack.c.l.b16 %v3693
    %v6529 = vunpack.c.l.b16 %v3697
    %v6530 = vunpack.c.l.b16 %v3700
    %v6531 = vunpack.c.l.b16 %v3704
    %v6532 = vunpack.c.l.b16 %v3707
    %v6533 = vunpack.c.l.b16 %v3711
    %v6534 = vunpack.c.l.b16 %v3714
    %v6535 = vunpack.c.l.b16 %v3718
    %v6536 = vunpack.c.l.b16 %v3721
    %v6537 = vunpack.c.l.b16 %v3725
    %v6538 = vunpack.c.l.b16 %v3728
    %v6539 = vunpack.c.l.b16 %v3732
    %v6540 = vunpack.c.l.b16 %v3735
    %v6541 = vunpack.c.l.b16 %v3739
    %v6542 = vunpack.c.l.b16 %v3742
    %v6543 = vunpack.c.l.b16 %v3746
    %v6544 = vunpack.c.l.b16 %v3749
    %v6545 = vunpack.c.l.b16 %v3753
    %v6546 = vunpack.c.l.b16 %v3756
    %v6547 = vunpack.c.l.b16 %v3760
    %v6548 = vunpack.c.l.b16 %v3763
    %v6549 = vpack.c.b16 %v6486, %v6485
    %v6550 = vpack.c.b16 %v6488, %v6487
    %v6551 = vpack.c.b16 %v6490, %v6489
    %v6552 = vpack.c.b16 %v6492, %v6491
    %v6553 = vpack.c.b16 %v6494, %v6493
    %v6554 = vpack.c.b16 %v6496, %v6495
    %v6555 = vpack.c.b16 %v6498, %v6497
    %v6556 = vpack.c.b16 %v6500, %v6499
    %v6557 = vpack.c.b16 %v6502, %v6501
    %v6558 = vpack.c.b16 %v6504, %v6503
    %v6559 = vpack.c.b16 %v6506, %v6505
    %v6560 = vpack.c.b16 %v6508, %v6507
    %v6561 = vpack.c.b16 %v6510, %v6509
    %v6562 = vpack.c.b16 %v6512, %v6511
    %v6563 = vpack.c.b16 %v6514, %v6513
    %v6564 = vpack.c.b16 %v6516, %v6515
    %v6565 = vpack.c.b16 %v6518, %v6517
    %v6566 = vpack.c.b16 %v6520, %v6519
    %v6567 = vpack.c.b16 %v6522, %v6521
    %v6568 = vpack.c.b16 %v6524, %v6523
    %v6569 = vpack.c.b16 %v6526, %v6525
    %v6570 = vpack.c.b16 %v6528, %v6527
    %v6571 = vpack.c.b16 %v6530, %v6529
    %v6572 = vpack.c.b16 %v6532, %v6531
    %v6573 = vpack.c.b16 %v6534, %v6533
    %v6574 = vpack.c.b16 %v6536, %v6535
    %v6575 = vpack.c.b16 %v6538, %v6537
    %v6576 = vpack.c.b16 %v6540, %v6539
    %v6577 = vpack.c.b16 %v6542, %v6541
    %v6578 = vpack.c.b16 %v6544, %v6543
    %v6579 = vpack.c.b16 %v6546, %v6545
    %v6580 = vpack.c.b16 %v6548, %v6547
    %6581 = vrot.lane.b32.xlu0 %v6549, 16
    %v6582 = vpop.permute.xlu0 %6581
    %6583 = vrot.lane.b32.xlu0 %v6550, 16
    %v6584 = vpop.permute.xlu0 %6583
    %6585 = vrot.lane.b32.xlu0 %v6551, 16
    %v6586 = vpop.permute.xlu0 %6585
    %6587 = vrot.lane.b32.xlu0 %v6552, 16
    %v6588 = vpop.permute.xlu0 %6587
    %6589 = vrot.lane.b32.xlu0 %v6553, 16
    %v6590 = vpop.permute.xlu0 %6589
    %6591 = vrot.lane.b32.xlu0 %v6554, 16
    %v6592 = vpop.permute.xlu0 %6591
    %6593 = vrot.lane.b32.xlu0 %v6555, 16
    %v6594 = vpop.permute.xlu0 %6593
    %6595 = vrot.lane.b32.xlu0 %v6556, 16
    %v6596 = vpop.permute.xlu0 %6595
    %6597 = vrot.lane.b32.xlu0 %v6557, 16
    %v6598 = vpop.permute.xlu0 %6597
    %6599 = vrot.lane.b32.xlu0 %v6558, 16
    %v6600 = vpop.permute.xlu0 %6599
    %6601 = vrot.lane.b32.xlu0 %v6559, 16
    %v6602 = vpop.permute.xlu0 %6601
    %6603 = vrot.lane.b32.xlu0 %v6560, 16
    %v6604 = vpop.permute.xlu0 %6603
    %6605 = vrot.lane.b32.xlu0 %v6561, 16
    %v6606 = vpop.permute.xlu0 %6605
    %6607 = vrot.lane.b32.xlu0 %v6562, 16
    %v6608 = vpop.permute.xlu0 %6607
    %6609 = vrot.lane.b32.xlu0 %v6563, 16
    %v6610 = vpop.permute.xlu0 %6609
    %6611 = vrot.lane.b32.xlu0 %v6564, 16
    %v6612 = vpop.permute.xlu0 %6611
    %6613 = vrot.lane.b32.xlu0 %v6565, 16
    %v6614 = vpop.permute.xlu0 %6613
    %6615 = vrot.lane.b32.xlu0 %v6566, 16
    %v6616 = vpop.permute.xlu0 %6615
    %6617 = vrot.lane.b32.xlu0 %v6567, 16
    %v6618 = vpop.permute.xlu0 %6617
    %6619 = vrot.lane.b32.xlu0 %v6568, 16
    %v6620 = vpop.permute.xlu0 %6619
    %6621 = vrot.lane.b32.xlu0 %v6569, 16
    %v6622 = vpop.permute.xlu0 %6621
    %6623 = vrot.lane.b32.xlu0 %v6570, 16
    %v6624 = vpop.permute.xlu0 %6623
    %6625 = vrot.lane.b32.xlu0 %v6571, 16
    %v6626 = vpop.permute.xlu0 %6625
    %6627 = vrot.lane.b32.xlu0 %v6572, 16
    %v6628 = vpop.permute.xlu0 %6627
    %6629 = vrot.lane.b32.xlu0 %v6573, 16
    %v6630 = vpop.permute.xlu0 %6629
    %6631 = vrot.lane.b32.xlu0 %v6574, 16
    %v6632 = vpop.permute.xlu0 %6631
    %6633 = vrot.lane.b32.xlu0 %v6575, 16
    %v6634 = vpop.permute.xlu0 %6633
    %6635 = vrot.lane.b32.xlu0 %v6576, 16
    %v6636 = vpop.permute.xlu0 %6635
    %6637 = vrot.lane.b32.xlu0 %v6577, 16
    %v6638 = vpop.permute.xlu0 %6637
    %6639 = vrot.lane.b32.xlu0 %v6578, 16
    %v6640 = vpop.permute.xlu0 %6639
    %6641 = vrot.lane.b32.xlu0 %v6579, 16
    %v6642 = vpop.permute.xlu0 %6641
    %6643 = vrot.lane.b32.xlu0 %v6580, 16
    %v6644 = vpop.permute.xlu0 %6643
    %v6677 = vunpack.c.l.b16 %v3764
    %v6678 = vunpack.c.l.b16 %v3765
    %v6679 = vunpack.c.l.b16 %v3766
    %v6680 = vunpack.c.l.b16 %v3767
    %v6681 = vunpack.c.l.b16 %v3768
    %v6682 = vunpack.c.l.b16 %v3769
    %v6683 = vunpack.c.l.b16 %v3770
    %v6684 = vunpack.c.l.b16 %v3771
    %v6685 = vunpack.c.l.b16 %v3772
    %v6686 = vunpack.c.l.b16 %v3773
    %v6687 = vunpack.c.l.b16 %v3774
    %v6688 = vunpack.c.l.b16 %v3775
    %v6689 = vunpack.c.l.b16 %v3776
    %v6690 = vunpack.c.l.b16 %v3777
    %v6691 = vunpack.c.l.b16 %v3778
    %v6692 = vunpack.c.l.b16 %v3779
    %v6693 = vunpack.c.l.b16 %v3780
    %v6694 = vunpack.c.l.b16 %v3781
    %v6695 = vunpack.c.l.b16 %v3782
    %v6696 = vunpack.c.l.b16 %v3783
    %v6697 = vunpack.c.l.b16 %v3784
    %v6698 = vunpack.c.l.b16 %v3785
    %v6699 = vunpack.c.l.b16 %v3786
    %v6700 = vunpack.c.l.b16 %v3787
    %v6701 = vunpack.c.l.b16 %v3788
    %v6702 = vunpack.c.l.b16 %v3789
    %v6703 = vunpack.c.l.b16 %v3790
    %v6704 = vunpack.c.l.b16 %v3791
    %v6705 = vunpack.c.l.b16 %v3792
    %v6706 = vunpack.c.l.b16 %v3793
    %v6707 = vunpack.c.l.b16 %v3794
    %v6708 = vunpack.c.l.b16 %v3795
    %v6709 = vunpack.c.l.b16 %v3796
    %v6710 = vunpack.c.l.b16 %v3797
    %v6711 = vunpack.c.l.b16 %v3798
    %v6712 = vunpack.c.l.b16 %v3799
    %v6713 = vunpack.c.l.b16 %v3800
    %v6714 = vunpack.c.l.b16 %v3801
    %v6715 = vunpack.c.l.b16 %v3802
    %v6716 = vunpack.c.l.b16 %v3803
    %v6717 = vunpack.c.l.b16 %v3804
    %v6718 = vunpack.c.l.b16 %v3805
    %v6719 = vunpack.c.l.b16 %v3806
    %v6720 = vunpack.c.l.b16 %v3807
    %v6721 = vunpack.c.l.b16 %v3808
    %v6722 = vunpack.c.l.b16 %v3809
    %v6723 = vunpack.c.l.b16 %v3810
    %v6724 = vunpack.c.l.b16 %v3811
    %v6725 = vunpack.c.l.b16 %v3812
    %v6726 = vunpack.c.l.b16 %v3813
    %v6727 = vunpack.c.l.b16 %v3814
    %v6728 = vunpack.c.l.b16 %v3815
    %v6729 = vunpack.c.l.b16 %v3816
    %v6730 = vunpack.c.l.b16 %v3817
    %v6731 = vunpack.c.l.b16 %v3818
    %v6732 = vunpack.c.l.b16 %v3819
    %v6733 = vunpack.c.l.b16 %v3820
    %v6734 = vunpack.c.l.b16 %v3821
    %v6735 = vunpack.c.l.b16 %v3822
    %v6736 = vunpack.c.l.b16 %v3823
    %v6737 = vunpack.c.l.b16 %v3824
    %v6738 = vunpack.c.l.b16 %v3825
    %v6739 = vunpack.c.l.b16 %v3826
    %v6740 = vunpack.c.l.b16 %v3827
    %v6741 = vpack.c.b16 %v6678, %v6677
    %v6742 = vpack.c.b16 %v6680, %v6679
    %v6743 = vpack.c.b16 %v6682, %v6681
    %v6744 = vpack.c.b16 %v6684, %v6683
    %v6745 = vpack.c.b16 %v6686, %v6685
    %v6746 = vpack.c.b16 %v6688, %v6687
    %v6747 = vpack.c.b16 %v6690, %v6689
    %v6748 = vpack.c.b16 %v6692, %v6691
    %v6749 = vpack.c.b16 %v6694, %v6693
    %v6750 = vpack.c.b16 %v6696, %v6695
    %v6751 = vpack.c.b16 %v6698, %v6697
    %v6752 = vpack.c.b16 %v6700, %v6699
    %v6753 = vpack.c.b16 %v6702, %v6701
    %v6754 = vpack.c.b16 %v6704, %v6703
    %v6755 = vpack.c.b16 %v6706, %v6705
    %v6756 = vpack.c.b16 %v6708, %v6707
    %v6757 = vpack.c.b16 %v6710, %v6709
    %v6758 = vpack.c.b16 %v6712, %v6711
    %v6759 = vpack.c.b16 %v6714, %v6713
    %v6760 = vpack.c.b16 %v6716, %v6715
    %v6761 = vpack.c.b16 %v6718, %v6717
    %v6762 = vpack.c.b16 %v6720, %v6719
    %v6763 = vpack.c.b16 %v6722, %v6721
    %v6764 = vpack.c.b16 %v6724, %v6723
    %v6765 = vpack.c.b16 %v6726, %v6725
    %v6766 = vpack.c.b16 %v6728, %v6727
    %v6767 = vpack.c.b16 %v6730, %v6729
    %v6768 = vpack.c.b16 %v6732, %v6731
    %v6769 = vpack.c.b16 %v6734, %v6733
    %v6770 = vpack.c.b16 %v6736, %v6735
    %v6771 = vpack.c.b16 %v6738, %v6737
    %v6772 = vpack.c.b16 %v6740, %v6739
    %6773 = vrot.lane.b32.xlu0 %v6741, 24
    %v6774 = vpop.permute.xlu0 %6773
    %6775 = vrot.lane.b32.xlu0 %v6742, 24
    %v6776 = vpop.permute.xlu0 %6775
    %6777 = vrot.lane.b32.xlu0 %v6743, 24
    %v6778 = vpop.permute.xlu0 %6777
    %6779 = vrot.lane.b32.xlu0 %v6744, 24
    %v6780 = vpop.permute.xlu0 %6779
    %6781 = vrot.lane.b32.xlu0 %v6745, 24
    %v6782 = vpop.permute.xlu0 %6781
    %6783 = vrot.lane.b32.xlu0 %v6746, 24
    %v6784 = vpop.permute.xlu0 %6783
    %6785 = vrot.lane.b32.xlu0 %v6747, 24
    %v6786 = vpop.permute.xlu0 %6785
    %6787 = vrot.lane.b32.xlu0 %v6748, 24
    %v6788 = vpop.permute.xlu0 %6787
    %6789 = vrot.lane.b32.xlu0 %v6749, 24
    %v6790 = vpop.permute.xlu0 %6789
    %6791 = vrot.lane.b32.xlu0 %v6750, 24
    %v6792 = vpop.permute.xlu0 %6791
    %6793 = vrot.lane.b32.xlu0 %v6751, 24
    %v6794 = vpop.permute.xlu0 %6793
    %6795 = vrot.lane.b32.xlu0 %v6752, 24
    %v6796 = vpop.permute.xlu0 %6795
    %6797 = vrot.lane.b32.xlu0 %v6753, 24
    %v6798 = vpop.permute.xlu0 %6797
    %6799 = vrot.lane.b32.xlu0 %v6754, 24
    %v6800 = vpop.permute.xlu0 %6799
    %6801 = vrot.lane.b32.xlu0 %v6755, 24
    %v6802 = vpop.permute.xlu0 %6801
    %6803 = vrot.lane.b32.xlu0 %v6756, 24
    %v6804 = vpop.permute.xlu0 %6803
    %6805 = vrot.lane.b32.xlu0 %v6757, 24
    %v6806 = vpop.permute.xlu0 %6805
    %6807 = vrot.lane.b32.xlu0 %v6758, 24
    %v6808 = vpop.permute.xlu0 %6807
    %6809 = vrot.lane.b32.xlu0 %v6759, 24
    %v6810 = vpop.permute.xlu0 %6809
    %6811 = vrot.lane.b32.xlu0 %v6760, 24
    %v6812 = vpop.permute.xlu0 %6811
    %6813 = vrot.lane.b32.xlu0 %v6761, 24
    %v6814 = vpop.permute.xlu0 %6813
    %6815 = vrot.lane.b32.xlu0 %v6762, 24
    %v6816 = vpop.permute.xlu0 %6815
    %6817 = vrot.lane.b32.xlu0 %v6763, 24
    %v6818 = vpop.permute.xlu0 %6817
    %6819 = vrot.lane.b32.xlu0 %v6764, 24
    %v6820 = vpop.permute.xlu0 %6819
    %6821 = vrot.lane.b32.xlu0 %v6765, 24
    %v6822 = vpop.permute.xlu0 %6821
    %6823 = vrot.lane.b32.xlu0 %v6766, 24
    %v6824 = vpop.permute.xlu0 %6823
    %6825 = vrot.lane.b32.xlu0 %v6767, 24
    %v6826 = vpop.permute.xlu0 %6825
    %6827 = vrot.lane.b32.xlu0 %v6768, 24
    %v6828 = vpop.permute.xlu0 %6827
    %6829 = vrot.lane.b32.xlu0 %v6769, 24
    %v6830 = vpop.permute.xlu0 %6829
    %6831 = vrot.lane.b32.xlu0 %v6770, 24
    %v6832 = vpop.permute.xlu0 %6831
    %6833 = vrot.lane.b32.xlu0 %v6771, 24
    %v6834 = vpop.permute.xlu0 %6833
    %6835 = vrot.lane.b32.xlu0 %v6772, 24
    %v6836 = vpop.permute.xlu0 %6835
    %v6837 = vunpack.c.l.b16 %v3873
    %v6838 = vunpack.c.l.b16 %v3883
    %v6839 = vunpack.c.l.b16 %v3897
    %v6840 = vunpack.c.l.b16 %v3907
    %v6841 = vunpack.c.l.b16 %v3921
    %v6842 = vunpack.c.l.b16 %v3931
    %v6843 = vunpack.c.l.b16 %v3945
    %v6844 = vunpack.c.l.b16 %v3955
    %v6845 = vunpack.c.l.b16 %v3969
    %v6846 = vunpack.c.l.b16 %v3979
    %v6847 = vunpack.c.l.b16 %v3993
    %v6848 = vunpack.c.l.b16 %v4003
    %v6849 = vunpack.c.l.b16 %v4017
    %v6850 = vunpack.c.l.b16 %v4027
    %v6851 = vunpack.c.l.b16 %v4041
    %v6852 = vunpack.c.l.b16 %v4051
    %v6853 = vunpack.c.l.b16 %v4065
    %v6854 = vunpack.c.l.b16 %v4075
    %v6855 = vunpack.c.l.b16 %v4089
    %v6856 = vunpack.c.l.b16 %v4099
    %v6857 = vunpack.c.l.b16 %v4113
    %v6858 = vunpack.c.l.b16 %v4123
    %v6859 = vunpack.c.l.b16 %v4137
    %v6860 = vunpack.c.l.b16 %v4147
    %v6861 = vunpack.c.l.b16 %v4161
    %v6862 = vunpack.c.l.b16 %v4171
    %v6863 = vunpack.c.l.b16 %v4185
    %v6864 = vunpack.c.l.b16 %v4195
    %v6865 = vunpack.c.l.b16 %v4209
    %v6866 = vunpack.c.l.b16 %v4219
    %v6867 = vunpack.c.l.b16 %v4233
    %v6868 = vunpack.c.l.b16 %v4243
    %v6869 = vunpack.c.l.b16 %v4257
    %v6870 = vunpack.c.l.b16 %v4267
    %v6871 = vunpack.c.l.b16 %v4281
    %v6872 = vunpack.c.l.b16 %v4291
    %v6873 = vunpack.c.l.b16 %v4305
    %v6874 = vunpack.c.l.b16 %v4315
    %v6875 = vunpack.c.l.b16 %v4329
    %v6876 = vunpack.c.l.b16 %v4339
    %v6877 = vunpack.c.l.b16 %v4353
    %v6878 = vunpack.c.l.b16 %v4363
    %v6879 = vunpack.c.l.b16 %v4377
    %v6880 = vunpack.c.l.b16 %v4387
    %v6881 = vunpack.c.l.b16 %v4401
    %v6882 = vunpack.c.l.b16 %v4411
    %v6883 = vunpack.c.l.b16 %v4425
    %v6884 = vunpack.c.l.b16 %v4435
    %v6885 = vunpack.c.l.b16 %v4449
    %v6886 = vunpack.c.l.b16 %v4459
    %v6887 = vunpack.c.l.b16 %v4473
    %v6888 = vunpack.c.l.b16 %v4483
    %v6889 = vunpack.c.l.b16 %v4497
    %v6890 = vunpack.c.l.b16 %v4507
    %v6891 = vunpack.c.l.b16 %v4521
    %v6892 = vunpack.c.l.b16 %v4531
    %v6893 = vunpack.c.l.b16 %v4545
    %v6894 = vunpack.c.l.b16 %v4555
    %v6895 = vunpack.c.l.b16 %v4569
    %v6896 = vunpack.c.l.b16 %v4579
    %v6897 = vunpack.c.l.b16 %v4593
    %v6898 = vunpack.c.l.b16 %v4603
    %v6899 = vunpack.c.l.b16 %v4617
    %v6900 = vunpack.c.l.b16 %v4627
    %v6901 = vpack.c.b16 %v6838, %v6837
    %v6902 = vpack.c.b16 %v6840, %v6839
    %v6903 = vpack.c.b16 %v6842, %v6841
    %v6904 = vpack.c.b16 %v6844, %v6843
    %v6905 = vpack.c.b16 %v6846, %v6845
    %v6906 = vpack.c.b16 %v6848, %v6847
    %v6907 = vpack.c.b16 %v6850, %v6849
    %v6908 = vpack.c.b16 %v6852, %v6851
    %v6909 = vpack.c.b16 %v6854, %v6853
    %v6910 = vpack.c.b16 %v6856, %v6855
    %v6911 = vpack.c.b16 %v6858, %v6857
    %v6912 = vpack.c.b16 %v6860, %v6859
    %v6913 = vpack.c.b16 %v6862, %v6861
    %v6914 = vpack.c.b16 %v6864, %v6863
    %v6915 = vpack.c.b16 %v6866, %v6865
    %v6916 = vpack.c.b16 %v6868, %v6867
    %v6917 = vpack.c.b16 %v6870, %v6869
    %v6918 = vpack.c.b16 %v6872, %v6871
    %v6919 = vpack.c.b16 %v6874, %v6873
    %v6920 = vpack.c.b16 %v6876, %v6875
    %v6921 = vpack.c.b16 %v6878, %v6877
    %v6922 = vpack.c.b16 %v6880, %v6879
    %v6923 = vpack.c.b16 %v6882, %v6881
    %v6924 = vpack.c.b16 %v6884, %v6883
    %v6925 = vpack.c.b16 %v6886, %v6885
    %v6926 = vpack.c.b16 %v6888, %v6887
    %v6927 = vpack.c.b16 %v6890, %v6889
    %v6928 = vpack.c.b16 %v6892, %v6891
    %v6929 = vpack.c.b16 %v6894, %v6893
    %v6930 = vpack.c.b16 %v6896, %v6895
    %v6931 = vpack.c.b16 %v6898, %v6897
    %v6932 = vpack.c.b16 %v6900, %v6899
    %6933 = vrot.lane.b32.xlu0 %v6901, 32
    %v6934 = vpop.permute.xlu0 %6933
    %6935 = vrot.lane.b32.xlu0 %v6902, 32
    %v6936 = vpop.permute.xlu0 %6935
    %6937 = vrot.lane.b32.xlu0 %v6903, 32
    %v6938 = vpop.permute.xlu0 %6937
    %6939 = vrot.lane.b32.xlu0 %v6904, 32
    %v6940 = vpop.permute.xlu0 %6939
    %6941 = vrot.lane.b32.xlu0 %v6905, 32
    %v6942 = vpop.permute.xlu0 %6941
    %6943 = vrot.lane.b32.xlu0 %v6906, 32
    %v6944 = vpop.permute.xlu0 %6943
    %6945 = vrot.lane.b32.xlu0 %v6907, 32
    %v6946 = vpop.permute.xlu0 %6945
    %6947 = vrot.lane.b32.xlu0 %v6908, 32
    %v6948 = vpop.permute.xlu0 %6947
    %6949 = vrot.lane.b32.xlu0 %v6909, 32
    %v6950 = vpop.permute.xlu0 %6949
    %6951 = vrot.lane.b32.xlu0 %v6910, 32
    %v6952 = vpop.permute.xlu0 %6951
    %6953 = vrot.lane.b32.xlu0 %v6911, 32
    %v6954 = vpop.permute.xlu0 %6953
    %6955 = vrot.lane.b32.xlu0 %v6912, 32
    %v6956 = vpop.permute.xlu0 %6955
    %6957 = vrot.lane.b32.xlu0 %v6913, 32
    %v6958 = vpop.permute.xlu0 %6957
    %6959 = vrot.lane.b32.xlu0 %v6914, 32
    %v6960 = vpop.permute.xlu0 %6959
    %6961 = vrot.lane.b32.xlu0 %v6915, 32
    %v6962 = vpop.permute.xlu0 %6961
    %6963 = vrot.lane.b32.xlu0 %v6916, 32
    %v6964 = vpop.permute.xlu0 %6963
    %6965 = vrot.lane.b32.xlu0 %v6917, 32
    %v6966 = vpop.permute.xlu0 %6965
    %6967 = vrot.lane.b32.xlu0 %v6918, 32
    %v6968 = vpop.permute.xlu0 %6967
    %6969 = vrot.lane.b32.xlu0 %v6919, 32
    %v6970 = vpop.permute.xlu0 %6969
    %6971 = vrot.lane.b32.xlu0 %v6920, 32
    %v6972 = vpop.permute.xlu0 %6971
    %6973 = vrot.lane.b32.xlu0 %v6921, 32
    %v6974 = vpop.permute.xlu0 %6973
    %6975 = vrot.lane.b32.xlu0 %v6922, 32
    %v6976 = vpop.permute.xlu0 %6975
    %6977 = vrot.lane.b32.xlu0 %v6923, 32
    %v6978 = vpop.permute.xlu0 %6977
    %6979 = vrot.lane.b32.xlu0 %v6924, 32
    %v6980 = vpop.permute.xlu0 %6979
    %6981 = vrot.lane.b32.xlu0 %v6925, 32
    %v6982 = vpop.permute.xlu0 %6981
    %6983 = vrot.lane.b32.xlu0 %v6926, 32
    %v6984 = vpop.permute.xlu0 %6983
    %6985 = vrot.lane.b32.xlu0 %v6927, 32
    %v6986 = vpop.permute.xlu0 %6985
    %6987 = vrot.lane.b32.xlu0 %v6928, 32
    %v6988 = vpop.permute.xlu0 %6987
    %6989 = vrot.lane.b32.xlu0 %v6929, 32
    %v6990 = vpop.permute.xlu0 %6989
    %6991 = vrot.lane.b32.xlu0 %v6930, 32
    %v6992 = vpop.permute.xlu0 %6991
    %6993 = vrot.lane.b32.xlu0 %v6931, 32
    %v6994 = vpop.permute.xlu0 %6993
    %6995 = vrot.lane.b32.xlu0 %v6932, 32
    %v6996 = vpop.permute.xlu0 %6995
    %v6997 = vunpack.c.l.b16 %v4759
    %v6998 = vunpack.c.l.b16 %v4762
    %v6999 = vunpack.c.l.b16 %v4766
    %v7000 = vunpack.c.l.b16 %v4769
    %v7001 = vunpack.c.l.b16 %v4773
    %v7002 = vunpack.c.l.b16 %v4776
    %v7003 = vunpack.c.l.b16 %v4780
    %v7004 = vunpack.c.l.b16 %v4783
    %v7005 = vunpack.c.l.b16 %v4787
    %v7006 = vunpack.c.l.b16 %v4790
    %v7007 = vunpack.c.l.b16 %v4794
    %v7008 = vunpack.c.l.b16 %v4797
    %v7009 = vunpack.c.l.b16 %v4801
    %v7010 = vunpack.c.l.b16 %v4804
    %v7011 = vunpack.c.l.b16 %v4808
    %v7012 = vunpack.c.l.b16 %v4811
    %v7013 = vunpack.c.l.b16 %v4815
    %v7014 = vunpack.c.l.b16 %v4818
    %v7015 = vunpack.c.l.b16 %v4822
    %v7016 = vunpack.c.l.b16 %v4825
    %v7017 = vunpack.c.l.b16 %v4829
    %v7018 = vunpack.c.l.b16 %v4832
    %v7019 = vunpack.c.l.b16 %v4836
    %v7020 = vunpack.c.l.b16 %v4839
    %v7021 = vunpack.c.l.b16 %v4843
    %v7022 = vunpack.c.l.b16 %v4846
    %v7023 = vunpack.c.l.b16 %v4850
    %v7024 = vunpack.c.l.b16 %v4853
    %v7025 = vunpack.c.l.b16 %v4857
    %v7026 = vunpack.c.l.b16 %v4860
    %v7027 = vunpack.c.l.b16 %v4864
    %v7028 = vunpack.c.l.b16 %v4867
    %v7029 = vunpack.c.l.b16 %v4871
    %v7030 = vunpack.c.l.b16 %v4874
    %v7031 = vunpack.c.l.b16 %v4878
    %v7032 = vunpack.c.l.b16 %v4881
    %v7033 = vunpack.c.l.b16 %v4885
    %v7034 = vunpack.c.l.b16 %v4888
    %v7035 = vunpack.c.l.b16 %v4892
    %v7036 = vunpack.c.l.b16 %v4895
    %v7037 = vunpack.c.l.b16 %v4899
    %v7038 = vunpack.c.l.b16 %v4902
    %v7039 = vunpack.c.l.b16 %v4906
    %v7040 = vunpack.c.l.b16 %v4909
    %v7041 = vunpack.c.l.b16 %v4913
    %v7042 = vunpack.c.l.b16 %v4916
    %v7043 = vunpack.c.l.b16 %v4920
    %v7044 = vunpack.c.l.b16 %v4923
    %v7045 = vunpack.c.l.b16 %v4927
    %v7046 = vunpack.c.l.b16 %v4930
    %v7047 = vunpack.c.l.b16 %v4934
    %v7048 = vunpack.c.l.b16 %v4937
    %v7049 = vunpack.c.l.b16 %v4941
    %v7050 = vunpack.c.l.b16 %v4944
    %v7051 = vunpack.c.l.b16 %v4948
    %v7052 = vunpack.c.l.b16 %v4951
    %v7053 = vunpack.c.l.b16 %v4955
    %v7054 = vunpack.c.l.b16 %v4958
    %v7055 = vunpack.c.l.b16 %v4962
    %v7056 = vunpack.c.l.b16 %v4965
    %v7057 = vunpack.c.l.b16 %v4969
    %v7058 = vunpack.c.l.b16 %v4972
    %v7059 = vunpack.c.l.b16 %v4976
    %v7060 = vunpack.c.l.b16 %v4979
    %v7061 = vpack.c.b16 %v6998, %v6997
    %v7062 = vpack.c.b16 %v7000, %v6999
    %v7063 = vpack.c.b16 %v7002, %v7001
    %v7064 = vpack.c.b16 %v7004, %v7003
    %v7065 = vpack.c.b16 %v7006, %v7005
    %v7066 = vpack.c.b16 %v7008, %v7007
    %v7067 = vpack.c.b16 %v7010, %v7009
    %v7068 = vpack.c.b16 %v7012, %v7011
    %v7069 = vpack.c.b16 %v7014, %v7013
    %v7070 = vpack.c.b16 %v7016, %v7015
    %v7071 = vpack.c.b16 %v7018, %v7017
    %v7072 = vpack.c.b16 %v7020, %v7019
    %v7073 = vpack.c.b16 %v7022, %v7021
    %v7074 = vpack.c.b16 %v7024, %v7023
    %v7075 = vpack.c.b16 %v7026, %v7025
    %v7076 = vpack.c.b16 %v7028, %v7027
    %v7077 = vpack.c.b16 %v7030, %v7029
    %v7078 = vpack.c.b16 %v7032, %v7031
    %v7079 = vpack.c.b16 %v7034, %v7033
    %v7080 = vpack.c.b16 %v7036, %v7035
    %v7081 = vpack.c.b16 %v7038, %v7037
    %v7082 = vpack.c.b16 %v7040, %v7039
    %v7083 = vpack.c.b16 %v7042, %v7041
    %v7084 = vpack.c.b16 %v7044, %v7043
    %v7085 = vpack.c.b16 %v7046, %v7045
    %v7086 = vpack.c.b16 %v7048, %v7047
    %v7087 = vpack.c.b16 %v7050, %v7049
    %v7088 = vpack.c.b16 %v7052, %v7051
    %v7089 = vpack.c.b16 %v7054, %v7053
    %v7090 = vpack.c.b16 %v7056, %v7055
    %v7091 = vpack.c.b16 %v7058, %v7057
    %v7092 = vpack.c.b16 %v7060, %v7059
    %7093 = vrot.lane.b32.xlu0 %v7061, 40
    %v7094 = vpop.permute.xlu0 %7093
    %7095 = vrot.lane.b32.xlu0 %v7062, 40
    %v7096 = vpop.permute.xlu0 %7095
    %7097 = vrot.lane.b32.xlu0 %v7063, 40
    %v7098 = vpop.permute.xlu0 %7097
    %7099 = vrot.lane.b32.xlu0 %v7064, 40
    %v7100 = vpop.permute.xlu0 %7099
    %7101 = vrot.lane.b32.xlu0 %v7065, 40
    %v7102 = vpop.permute.xlu0 %7101
    %7103 = vrot.lane.b32.xlu0 %v7066, 40
    %v7104 = vpop.permute.xlu0 %7103
    %7105 = vrot.lane.b32.xlu0 %v7067, 40
    %v7106 = vpop.permute.xlu0 %7105
    %7107 = vrot.lane.b32.xlu0 %v7068, 40
    %v7108 = vpop.permute.xlu0 %7107
    %7109 = vrot.lane.b32.xlu0 %v7069, 40
    %v7110 = vpop.permute.xlu0 %7109
    %7111 = vrot.lane.b32.xlu0 %v7070, 40
    %v7112 = vpop.permute.xlu0 %7111
    %7113 = vrot.lane.b32.xlu0 %v7071, 40
    %v7114 = vpop.permute.xlu0 %7113
    %7115 = vrot.lane.b32.xlu0 %v7072, 40
    %v7116 = vpop.permute.xlu0 %7115
    %7117 = vrot.lane.b32.xlu0 %v7073, 40
    %v7118 = vpop.permute.xlu0 %7117
    %7119 = vrot.lane.b32.xlu0 %v7074, 40
    %v7120 = vpop.permute.xlu0 %7119
    %7121 = vrot.lane.b32.xlu0 %v7075, 40
    %v7122 = vpop.permute.xlu0 %7121
    %7123 = vrot.lane.b32.xlu0 %v7076, 40
    %v7124 = vpop.permute.xlu0 %7123
    %7125 = vrot.lane.b32.xlu0 %v7077, 40
    %v7126 = vpop.permute.xlu0 %7125
    %7127 = vrot.lane.b32.xlu0 %v7078, 40
    %v7128 = vpop.permute.xlu0 %7127
    %7129 = vrot.lane.b32.xlu0 %v7079, 40
    %v7130 = vpop.permute.xlu0 %7129
    %7131 = vrot.lane.b32.xlu0 %v7080, 40
    %v7132 = vpop.permute.xlu0 %7131
    %7133 = vrot.lane.b32.xlu0 %v7081, 40
    %v7134 = vpop.permute.xlu0 %7133
    %7135 = vrot.lane.b32.xlu0 %v7082, 40
    %v7136 = vpop.permute.xlu0 %7135
    %7137 = vrot.lane.b32.xlu0 %v7083, 40
    %v7138 = vpop.permute.xlu0 %7137
    %7139 = vrot.lane.b32.xlu0 %v7084, 40
    %v7140 = vpop.permute.xlu0 %7139
    %7141 = vrot.lane.b32.xlu0 %v7085, 40
    %v7142 = vpop.permute.xlu0 %7141
    %7143 = vrot.lane.b32.xlu0 %v7086, 40
    %v7144 = vpop.permute.xlu0 %7143
    %7145 = vrot.lane.b32.xlu0 %v7087, 40
    %v7146 = vpop.permute.xlu0 %7145
    %7147 = vrot.lane.b32.xlu0 %v7088, 40
    %v7148 = vpop.permute.xlu0 %7147
    %7149 = vrot.lane.b32.xlu0 %v7089, 40
    %v7150 = vpop.permute.xlu0 %7149
    %7151 = vrot.lane.b32.xlu0 %v7090, 40
    %v7152 = vpop.permute.xlu0 %7151
    %7153 = vrot.lane.b32.xlu0 %v7091, 40
    %v7154 = vpop.permute.xlu0 %7153
    %7155 = vrot.lane.b32.xlu0 %v7092, 40
    %v7156 = vpop.permute.xlu0 %7155
    %v7189 = vunpack.c.l.b16 %v4981
    %v7190 = vunpack.c.l.b16 %v4982
    %v7191 = vunpack.c.l.b16 %v4983
    %v7192 = vunpack.c.l.b16 %v4984
    %v7193 = vunpack.c.l.b16 %v4985
    %v7194 = vunpack.c.l.b16 %v4986
    %v7195 = vunpack.c.l.b16 %v4987
    %v7196 = vunpack.c.l.b16 %v4988
    %v7197 = vunpack.c.l.b16 %v4989
    %v7198 = vunpack.c.l.b16 %v4990
    %v7199 = vunpack.c.l.b16 %v4991
    %v7200 = vunpack.c.l.b16 %v4992
    %v7201 = vunpack.c.l.b16 %v4993
    %v7202 = vunpack.c.l.b16 %v4994
    %v7203 = vunpack.c.l.b16 %v4995
    %v7204 = vunpack.c.l.b16 %v4996
    %v7205 = vunpack.c.l.b16 %v4997
    %v7206 = vunpack.c.l.b16 %v4998
    %v7207 = vunpack.c.l.b16 %v4999
    %v7208 = vunpack.c.l.b16 %v5000
    %v7209 = vunpack.c.l.b16 %v5001
    %v7210 = vunpack.c.l.b16 %v5002
    %v7211 = vunpack.c.l.b16 %v5003
    %v7212 = vunpack.c.l.b16 %v5004
    %v7213 = vunpack.c.l.b16 %v5005
    %v7214 = vunpack.c.l.b16 %v5006
    %v7215 = vunpack.c.l.b16 %v5007
    %v7216 = vunpack.c.l.b16 %v5008
    %v7217 = vunpack.c.l.b16 %v5009
    %v7218 = vunpack.c.l.b16 %v5010
    %v7219 = vunpack.c.l.b16 %v5011
    %v7220 = vunpack.c.l.b16 %v5012
    %v7221 = vunpack.c.l.b16 %v5013
    %v7222 = vunpack.c.l.b16 %v5014
    %v7223 = vunpack.c.l.b16 %v5015
    %v7224 = vunpack.c.l.b16 %v5016
    %v7225 = vunpack.c.l.b16 %v5017
    %v7226 = vunpack.c.l.b16 %v5018
    %v7227 = vunpack.c.l.b16 %v5019
    %v7228 = vunpack.c.l.b16 %v5020
    %v7229 = vunpack.c.l.b16 %v5021
    %v7230 = vunpack.c.l.b16 %v5022
    %v7231 = vunpack.c.l.b16 %v5023
    %v7232 = vunpack.c.l.b16 %v5024
    %v7233 = vunpack.c.l.b16 %v5025
    %v7234 = vunpack.c.l.b16 %v5026
    %v7235 = vunpack.c.l.b16 %v5027
    %v7236 = vunpack.c.l.b16 %v5028
    %v7237 = vunpack.c.l.b16 %v5029
    %v7238 = vunpack.c.l.b16 %v5030
    %v7239 = vunpack.c.l.b16 %v5031
    %v7240 = vunpack.c.l.b16 %v5032
    %v7241 = vunpack.c.l.b16 %v5033
    %v7242 = vunpack.c.l.b16 %v5034
    %v7243 = vunpack.c.l.b16 %v5035
    %v7244 = vunpack.c.l.b16 %v5036
    %v7245 = vunpack.c.l.b16 %v5037
    %v7246 = vunpack.c.l.b16 %v5038
    %v7247 = vunpack.c.l.b16 %v5039
    %v7248 = vunpack.c.l.b16 %v5040
    %v7249 = vunpack.c.l.b16 %v5041
    %v7250 = vunpack.c.l.b16 %v5042
    %v7251 = vunpack.c.l.b16 %v5043
    %v7252 = vunpack.c.l.b16 %v5044
    %v7253 = vpack.c.b16 %v7190, %v7189
    %v7254 = vpack.c.b16 %v7192, %v7191
    %v7255 = vpack.c.b16 %v7194, %v7193
    %v7256 = vpack.c.b16 %v7196, %v7195
    %v7257 = vpack.c.b16 %v7198, %v7197
    %v7258 = vpack.c.b16 %v7200, %v7199
    %v7259 = vpack.c.b16 %v7202, %v7201
    %v7260 = vpack.c.b16 %v7204, %v7203
    %v7261 = vpack.c.b16 %v7206, %v7205
    %v7262 = vpack.c.b16 %v7208, %v7207
    %v7263 = vpack.c.b16 %v7210, %v7209
    %v7264 = vpack.c.b16 %v7212, %v7211
    %v7265 = vpack.c.b16 %v7214, %v7213
    %v7266 = vpack.c.b16 %v7216, %v7215
    %v7267 = vpack.c.b16 %v7218, %v7217
    %v7268 = vpack.c.b16 %v7220, %v7219
    %v7269 = vpack.c.b16 %v7222, %v7221
    %v7270 = vpack.c.b16 %v7224, %v7223
    %v7271 = vpack.c.b16 %v7226, %v7225
    %v7272 = vpack.c.b16 %v7228, %v7227
    %v7273 = vpack.c.b16 %v7230, %v7229
    %v7274 = vpack.c.b16 %v7232, %v7231
    %v7275 = vpack.c.b16 %v7234, %v7233
    %v7276 = vpack.c.b16 %v7236, %v7235
    %v7277 = vpack.c.b16 %v7238, %v7237
    %v7278 = vpack.c.b16 %v7240, %v7239
    %v7279 = vpack.c.b16 %v7242, %v7241
    %v7280 = vpack.c.b16 %v7244, %v7243
    %v7281 = vpack.c.b16 %v7246, %v7245
    %v7282 = vpack.c.b16 %v7248, %v7247
    %v7283 = vpack.c.b16 %v7250, %v7249
    %v7284 = vpack.c.b16 %v7252, %v7251
    %7285 = vrot.lane.b32.xlu0 %v7253, 48
    %v7286 = vpop.permute.xlu0 %7285
    %7287 = vrot.lane.b32.xlu0 %v7254, 48
    %v7288 = vpop.permute.xlu0 %7287
    %7289 = vrot.lane.b32.xlu0 %v7255, 48
    %v7290 = vpop.permute.xlu0 %7289
    %7291 = vrot.lane.b32.xlu0 %v7256, 48
    %v7292 = vpop.permute.xlu0 %7291
    %7293 = vrot.lane.b32.xlu0 %v7257, 48
    %v7294 = vpop.permute.xlu0 %7293
    %7295 = vrot.lane.b32.xlu0 %v7258, 48
    %v7296 = vpop.permute.xlu0 %7295
    %7297 = vrot.lane.b32.xlu0 %v7259, 48
    %v7298 = vpop.permute.xlu0 %7297
    %7299 = vrot.lane.b32.xlu0 %v7260, 48
    %v7300 = vpop.permute.xlu0 %7299
    %7301 = vrot.lane.b32.xlu0 %v7261, 48
    %v7302 = vpop.permute.xlu0 %7301
    %7303 = vrot.lane.b32.xlu0 %v7262, 48
    %v7304 = vpop.permute.xlu0 %7303
    %7305 = vrot.lane.b32.xlu0 %v7263, 48
    %v7306 = vpop.permute.xlu0 %7305
    %7307 = vrot.lane.b32.xlu0 %v7264, 48
    %v7308 = vpop.permute.xlu0 %7307
    %7309 = vrot.lane.b32.xlu0 %v7265, 48
    %v7310 = vpop.permute.xlu0 %7309
    %7311 = vrot.lane.b32.xlu0 %v7266, 48
    %v7312 = vpop.permute.xlu0 %7311
    %7313 = vrot.lane.b32.xlu0 %v7267, 48
    %v7314 = vpop.permute.xlu0 %7313
    %7315 = vrot.lane.b32.xlu0 %v7268, 48
    %v7316 = vpop.permute.xlu0 %7315
    %7317 = vrot.lane.b32.xlu0 %v7269, 48
    %v7318 = vpop.permute.xlu0 %7317
    %7319 = vrot.lane.b32.xlu0 %v7270, 48
    %v7320 = vpop.permute.xlu0 %7319
    %7321 = vrot.lane.b32.xlu0 %v7271, 48
    %v7322 = vpop.permute.xlu0 %7321
    %7323 = vrot.lane.b32.xlu0 %v7272, 48
    %v7324 = vpop.permute.xlu0 %7323
    %7325 = vrot.lane.b32.xlu0 %v7273, 48
    %v7326 = vpop.permute.xlu0 %7325
    %7327 = vrot.lane.b32.xlu0 %v7274, 48
    %v7328 = vpop.permute.xlu0 %7327
    %7329 = vrot.lane.b32.xlu0 %v7275, 48
    %v7330 = vpop.permute.xlu0 %7329
    %7331 = vrot.lane.b32.xlu0 %v7276, 48
    %v7332 = vpop.permute.xlu0 %7331
    %7333 = vrot.lane.b32.xlu0 %v7277, 48
    %v7334 = vpop.permute.xlu0 %7333
    %7335 = vrot.lane.b32.xlu0 %v7278, 48
    %v7336 = vpop.permute.xlu0 %7335
    %7337 = vrot.lane.b32.xlu0 %v7279, 48
    %v7338 = vpop.permute.xlu0 %7337
    %7339 = vrot.lane.b32.xlu0 %v7280, 48
    %v7340 = vpop.permute.xlu0 %7339
    %7341 = vrot.lane.b32.xlu0 %v7281, 48
    %v7342 = vpop.permute.xlu0 %7341
    %7343 = vrot.lane.b32.xlu0 %v7282, 48
    %v7344 = vpop.permute.xlu0 %7343
    %7345 = vrot.lane.b32.xlu0 %v7283, 48
    %v7346 = vpop.permute.xlu0 %7345
    %7347 = vrot.lane.b32.xlu0 %v7284, 48
    %v7348 = vpop.permute.xlu0 %7347
    %v7349 = vunpack.c.l.b16 %v5090
    %v7350 = vunpack.c.l.b16 %v5100
    %v7351 = vunpack.c.l.b16 %v5114
    %v7352 = vunpack.c.l.b16 %v5124
    %v7353 = vunpack.c.l.b16 %v5138
    %v7354 = vunpack.c.l.b16 %v5148
    %v7355 = vunpack.c.l.b16 %v5162
    %v7356 = vunpack.c.l.b16 %v5172
    %v7357 = vunpack.c.l.b16 %v5186
    %v7358 = vunpack.c.l.b16 %v5196
    %v7359 = vunpack.c.l.b16 %v5210
    %v7360 = vunpack.c.l.b16 %v5220
    %v7361 = vunpack.c.l.b16 %v5234
    %v7362 = vunpack.c.l.b16 %v5244
    %v7363 = vunpack.c.l.b16 %v5258
    %v7364 = vunpack.c.l.b16 %v5268
    %v7365 = vunpack.c.l.b16 %v5282
    %v7366 = vunpack.c.l.b16 %v5292
    %v7367 = vunpack.c.l.b16 %v5306
    %v7368 = vunpack.c.l.b16 %v5316
    %v7369 = vunpack.c.l.b16 %v5330
    %v7370 = vunpack.c.l.b16 %v5340
    %v7371 = vunpack.c.l.b16 %v5354
    %v7372 = vunpack.c.l.b16 %v5364
    %v7373 = vunpack.c.l.b16 %v5378
    %v7374 = vunpack.c.l.b16 %v5388
    %v7375 = vunpack.c.l.b16 %v5402
    %v7376 = vunpack.c.l.b16 %v5412
    %v7377 = vunpack.c.l.b16 %v5426
    %v7378 = vunpack.c.l.b16 %v5436
    %v7379 = vunpack.c.l.b16 %v5450
    %v7380 = vunpack.c.l.b16 %v5460
    %v7381 = vunpack.c.l.b16 %v5474
    %v7382 = vunpack.c.l.b16 %v5484
    %v7383 = vunpack.c.l.b16 %v5498
    %v7384 = vunpack.c.l.b16 %v5508
    %v7385 = vunpack.c.l.b16 %v5522
    %v7386 = vunpack.c.l.b16 %v5532
    %v7387 = vunpack.c.l.b16 %v5546
    %v7388 = vunpack.c.l.b16 %v5556
    %v7389 = vunpack.c.l.b16 %v5570
    %v7390 = vunpack.c.l.b16 %v5580
    %v7391 = vunpack.c.l.b16 %v5594
    %v7392 = vunpack.c.l.b16 %v5604
    %v7393 = vunpack.c.l.b16 %v5618
    %v7394 = vunpack.c.l.b16 %v5628
    %v7395 = vunpack.c.l.b16 %v5642
    %v7396 = vunpack.c.l.b16 %v5652
    %v7397 = vunpack.c.l.b16 %v5666
    %v7398 = vunpack.c.l.b16 %v5676
    %v7399 = vunpack.c.l.b16 %v5690
    %v7400 = vunpack.c.l.b16 %v5700
    %v7401 = vunpack.c.l.b16 %v5714
    %v7402 = vunpack.c.l.b16 %v5724
    %v7403 = vunpack.c.l.b16 %v5738
    %v7404 = vunpack.c.l.b16 %v5748
    %v7405 = vunpack.c.l.b16 %v5762
    %v7406 = vunpack.c.l.b16 %v5772
    %v7407 = vunpack.c.l.b16 %v5786
    %v7408 = vunpack.c.l.b16 %v5796
    %v7409 = vunpack.c.l.b16 %v5810
    %v7410 = vunpack.c.l.b16 %v5820
    %v7411 = vunpack.c.l.b16 %v5834
    %v7412 = vunpack.c.l.b16 %v5844
    %v7413 = vpack.c.b16 %v7350, %v7349
    %v7414 = vpack.c.b16 %v7352, %v7351
    %v7415 = vpack.c.b16 %v7354, %v7353
    %v7416 = vpack.c.b16 %v7356, %v7355
    %v7417 = vpack.c.b16 %v7358, %v7357
    %v7418 = vpack.c.b16 %v7360, %v7359
    %v7419 = vpack.c.b16 %v7362, %v7361
    %v7420 = vpack.c.b16 %v7364, %v7363
    %v7421 = vpack.c.b16 %v7366, %v7365
    %v7422 = vpack.c.b16 %v7368, %v7367
    %v7423 = vpack.c.b16 %v7370, %v7369
    %v7424 = vpack.c.b16 %v7372, %v7371
    %v7425 = vpack.c.b16 %v7374, %v7373
    %v7426 = vpack.c.b16 %v7376, %v7375
    %v7427 = vpack.c.b16 %v7378, %v7377
    %v7428 = vpack.c.b16 %v7380, %v7379
    %v7429 = vpack.c.b16 %v7382, %v7381
    %v7430 = vpack.c.b16 %v7384, %v7383
    %v7431 = vpack.c.b16 %v7386, %v7385
    %v7432 = vpack.c.b16 %v7388, %v7387
    %v7433 = vpack.c.b16 %v7390, %v7389
    %v7434 = vpack.c.b16 %v7392, %v7391
    %v7435 = vpack.c.b16 %v7394, %v7393
    %v7436 = vpack.c.b16 %v7396, %v7395
    %v7437 = vpack.c.b16 %v7398, %v7397
    %v7438 = vpack.c.b16 %v7400, %v7399
    %v7439 = vpack.c.b16 %v7402, %v7401
    %v7440 = vpack.c.b16 %v7404, %v7403
    %v7441 = vpack.c.b16 %v7406, %v7405
    %v7442 = vpack.c.b16 %v7408, %v7407
    %v7443 = vpack.c.b16 %v7410, %v7409
    %v7444 = vpack.c.b16 %v7412, %v7411
    %7445 = vrot.lane.b32.xlu0 %v7413, 56
    %v7446 = vpop.permute.xlu0 %7445
    %7447 = vrot.lane.b32.xlu0 %v7414, 56
    %v7448 = vpop.permute.xlu0 %7447
    %7449 = vrot.lane.b32.xlu0 %v7415, 56
    %v7450 = vpop.permute.xlu0 %7449
    %7451 = vrot.lane.b32.xlu0 %v7416, 56
    %v7452 = vpop.permute.xlu0 %7451
    %7453 = vrot.lane.b32.xlu0 %v7417, 56
    %v7454 = vpop.permute.xlu0 %7453
    %7455 = vrot.lane.b32.xlu0 %v7418, 56
    %v7456 = vpop.permute.xlu0 %7455
    %7457 = vrot.lane.b32.xlu0 %v7419, 56
    %v7458 = vpop.permute.xlu0 %7457
    %7459 = vrot.lane.b32.xlu0 %v7420, 56
    %v7460 = vpop.permute.xlu0 %7459
    %7461 = vrot.lane.b32.xlu0 %v7421, 56
    %v7462 = vpop.permute.xlu0 %7461
    %7463 = vrot.lane.b32.xlu0 %v7422, 56
    %v7464 = vpop.permute.xlu0 %7463
    %7465 = vrot.lane.b32.xlu0 %v7423, 56
    %v7466 = vpop.permute.xlu0 %7465
    %7467 = vrot.lane.b32.xlu0 %v7424, 56
    %v7468 = vpop.permute.xlu0 %7467
    %7469 = vrot.lane.b32.xlu0 %v7425, 56
    %v7470 = vpop.permute.xlu0 %7469
    %7471 = vrot.lane.b32.xlu0 %v7426, 56
    %v7472 = vpop.permute.xlu0 %7471
    %7473 = vrot.lane.b32.xlu0 %v7427, 56
    %v7474 = vpop.permute.xlu0 %7473
    %7475 = vrot.lane.b32.xlu0 %v7428, 56
    %v7476 = vpop.permute.xlu0 %7475
    %7477 = vrot.lane.b32.xlu0 %v7429, 56
    %v7478 = vpop.permute.xlu0 %7477
    %7479 = vrot.lane.b32.xlu0 %v7430, 56
    %v7480 = vpop.permute.xlu0 %7479
    %7481 = vrot.lane.b32.xlu0 %v7431, 56
    %v7482 = vpop.permute.xlu0 %7481
    %7483 = vrot.lane.b32.xlu0 %v7432, 56
    %v7484 = vpop.permute.xlu0 %7483
    %7485 = vrot.lane.b32.xlu0 %v7433, 56
    %v7486 = vpop.permute.xlu0 %7485
    %7487 = vrot.lane.b32.xlu0 %v7434, 56
    %v7488 = vpop.permute.xlu0 %7487
    %7489 = vrot.lane.b32.xlu0 %v7435, 56
    %v7490 = vpop.permute.xlu0 %7489
    %7491 = vrot.lane.b32.xlu0 %v7436, 56
    %v7492 = vpop.permute.xlu0 %7491
    %7493 = vrot.lane.b32.xlu0 %v7437, 56
    %v7494 = vpop.permute.xlu0 %7493
    %7495 = vrot.lane.b32.xlu0 %v7438, 56
    %v7496 = vpop.permute.xlu0 %7495
    %7497 = vrot.lane.b32.xlu0 %v7439, 56
    %v7498 = vpop.permute.xlu0 %7497
    %7499 = vrot.lane.b32.xlu0 %v7440, 56
    %v7500 = vpop.permute.xlu0 %7499
    %7501 = vrot.lane.b32.xlu0 %v7441, 56
    %v7502 = vpop.permute.xlu0 %7501
    %7503 = vrot.lane.b32.xlu0 %v7442, 56
    %v7504 = vpop.permute.xlu0 %7503
    %7505 = vrot.lane.b32.xlu0 %v7443, 56
    %v7506 = vpop.permute.xlu0 %7505
    %7507 = vrot.lane.b32.xlu0 %v7444, 56
    %v7508 = vpop.permute.xlu0 %7507
    %v7509 = vunpack.c.l.b16 %v5976
    %v7510 = vunpack.c.l.b16 %v5979
    %v7511 = vunpack.c.l.b16 %v5983
    %v7512 = vunpack.c.l.b16 %v5986
    %v7513 = vunpack.c.l.b16 %v5990
    %v7514 = vunpack.c.l.b16 %v5993
    %v7515 = vunpack.c.l.b16 %v5997
    %v7516 = vunpack.c.l.b16 %v6000
    %v7517 = vunpack.c.l.b16 %v6004
    %v7518 = vunpack.c.l.b16 %v6007
    %v7519 = vunpack.c.l.b16 %v6011
    %v7520 = vunpack.c.l.b16 %v6014
    %v7521 = vunpack.c.l.b16 %v6018
    %v7522 = vunpack.c.l.b16 %v6021
    %v7523 = vunpack.c.l.b16 %v6025
    %v7524 = vunpack.c.l.b16 %v6028
    %v7525 = vunpack.c.l.b16 %v6032
    %v7526 = vunpack.c.l.b16 %v6035
    %v7527 = vunpack.c.l.b16 %v6039
    %v7528 = vunpack.c.l.b16 %v6042
    %v7529 = vunpack.c.l.b16 %v6046
    %v7530 = vunpack.c.l.b16 %v6049
    %v7531 = vunpack.c.l.b16 %v6053
    %v7532 = vunpack.c.l.b16 %v6056
    %v7533 = vunpack.c.l.b16 %v6060
    %v7534 = vunpack.c.l.b16 %v6063
    %v7535 = vunpack.c.l.b16 %v6067
    %v7536 = vunpack.c.l.b16 %v6070
    %v7537 = vunpack.c.l.b16 %v6074
    %v7538 = vunpack.c.l.b16 %v6077
    %v7539 = vunpack.c.l.b16 %v6081
    %v7540 = vunpack.c.l.b16 %v6084
    %v7541 = vunpack.c.l.b16 %v6088
    %v7542 = vunpack.c.l.b16 %v6091
    %v7543 = vunpack.c.l.b16 %v6095
    %v7544 = vunpack.c.l.b16 %v6098
    %v7545 = vunpack.c.l.b16 %v6102
    %v7546 = vunpack.c.l.b16 %v6105
    %v7547 = vunpack.c.l.b16 %v6109
    %v7548 = vunpack.c.l.b16 %v6112
    %v7549 = vunpack.c.l.b16 %v6116
    %v7550 = vunpack.c.l.b16 %v6119
    %v7551 = vunpack.c.l.b16 %v6123
    %v7552 = vunpack.c.l.b16 %v6126
    %v7553 = vunpack.c.l.b16 %v6130
    %v7554 = vunpack.c.l.b16 %v6133
    %v7555 = vunpack.c.l.b16 %v6137
    %v7556 = vunpack.c.l.b16 %v6140
    %v7557 = vunpack.c.l.b16 %v6144
    %v7558 = vunpack.c.l.b16 %v6147
    %v7559 = vunpack.c.l.b16 %v6151
    %v7560 = vunpack.c.l.b16 %v6154
    %v7561 = vunpack.c.l.b16 %v6158
    %v7562 = vunpack.c.l.b16 %v6161
    %v7563 = vunpack.c.l.b16 %v6165
    %v7564 = vunpack.c.l.b16 %v6168
    %v7565 = vunpack.c.l.b16 %v6172
    %v7566 = vunpack.c.l.b16 %v6175
    %v7567 = vunpack.c.l.b16 %v6179
    %v7568 = vunpack.c.l.b16 %v6182
    %v7569 = vunpack.c.l.b16 %v6186
    %v7570 = vunpack.c.l.b16 %v6189
    %v7571 = vunpack.c.l.b16 %v6193
    %v7572 = vunpack.c.l.b16 %v6196
    %v7573 = vpack.c.b16 %v7510, %v7509
    %v7574 = vpack.c.b16 %v7512, %v7511
    %v7575 = vpack.c.b16 %v7514, %v7513
    %v7576 = vpack.c.b16 %v7516, %v7515
    %v7577 = vpack.c.b16 %v7518, %v7517
    %v7578 = vpack.c.b16 %v7520, %v7519
    %v7579 = vpack.c.b16 %v7522, %v7521
    %v7580 = vpack.c.b16 %v7524, %v7523
    %v7581 = vpack.c.b16 %v7526, %v7525
    %v7582 = vpack.c.b16 %v7528, %v7527
    %v7583 = vpack.c.b16 %v7530, %v7529
    %v7584 = vpack.c.b16 %v7532, %v7531
    %v7585 = vpack.c.b16 %v7534, %v7533
    %v7586 = vpack.c.b16 %v7536, %v7535
    %v7587 = vpack.c.b16 %v7538, %v7537
    %v7588 = vpack.c.b16 %v7540, %v7539
    %v7589 = vpack.c.b16 %v7542, %v7541
    %v7590 = vpack.c.b16 %v7544, %v7543
    %v7591 = vpack.c.b16 %v7546, %v7545
    %v7592 = vpack.c.b16 %v7548, %v7547
    %v7593 = vpack.c.b16 %v7550, %v7549
    %v7594 = vpack.c.b16 %v7552, %v7551
    %v7595 = vpack.c.b16 %v7554, %v7553
    %v7596 = vpack.c.b16 %v7556, %v7555
    %v7597 = vpack.c.b16 %v7558, %v7557
    %v7598 = vpack.c.b16 %v7560, %v7559
    %v7599 = vpack.c.b16 %v7562, %v7561
    %v7600 = vpack.c.b16 %v7564, %v7563
    %v7601 = vpack.c.b16 %v7566, %v7565
    %v7602 = vpack.c.b16 %v7568, %v7567
    %v7603 = vpack.c.b16 %v7570, %v7569
    %v7604 = vpack.c.b16 %v7572, %v7571
    %7605 = vrot.lane.b32.xlu0 %v7573, 64
    %v7606 = vpop.permute.xlu0 %7605
    %7607 = vrot.lane.b32.xlu0 %v7574, 64
    %v7608 = vpop.permute.xlu0 %7607
    %7609 = vrot.lane.b32.xlu0 %v7575, 64
    %v7610 = vpop.permute.xlu0 %7609
    %7611 = vrot.lane.b32.xlu0 %v7576, 64
    %v7612 = vpop.permute.xlu0 %7611
    %7613 = vrot.lane.b32.xlu0 %v7577, 64
    %v7614 = vpop.permute.xlu0 %7613
    %7615 = vrot.lane.b32.xlu0 %v7578, 64
    %v7616 = vpop.permute.xlu0 %7615
    %7617 = vrot.lane.b32.xlu0 %v7579, 64
    %v7618 = vpop.permute.xlu0 %7617
    %7619 = vrot.lane.b32.xlu0 %v7580, 64
    %v7620 = vpop.permute.xlu0 %7619
    %7621 = vrot.lane.b32.xlu0 %v7581, 64
    %v7622 = vpop.permute.xlu0 %7621
    %7623 = vrot.lane.b32.xlu0 %v7582, 64
    %v7624 = vpop.permute.xlu0 %7623
    %7625 = vrot.lane.b32.xlu0 %v7583, 64
    %v7626 = vpop.permute.xlu0 %7625
    %7627 = vrot.lane.b32.xlu0 %v7584, 64
    %v7628 = vpop.permute.xlu0 %7627
    %7629 = vrot.lane.b32.xlu0 %v7585, 64
    %v7630 = vpop.permute.xlu0 %7629
    %7631 = vrot.lane.b32.xlu0 %v7586, 64
    %v7632 = vpop.permute.xlu0 %7631
    %7633 = vrot.lane.b32.xlu0 %v7587, 64
    %v7634 = vpop.permute.xlu0 %7633
    %7635 = vrot.lane.b32.xlu0 %v7588, 64
    %v7636 = vpop.permute.xlu0 %7635
    %7637 = vrot.lane.b32.xlu0 %v7589, 64
    %v7638 = vpop.permute.xlu0 %7637
    %7639 = vrot.lane.b32.xlu0 %v7590, 64
    %v7640 = vpop.permute.xlu0 %7639
    %7641 = vrot.lane.b32.xlu0 %v7591, 64
    %v7642 = vpop.permute.xlu0 %7641
    %7643 = vrot.lane.b32.xlu0 %v7592, 64
    %v7644 = vpop.permute.xlu0 %7643
    %7645 = vrot.lane.b32.xlu0 %v7593, 64
    %v7646 = vpop.permute.xlu0 %7645
    %7647 = vrot.lane.b32.xlu0 %v7594, 64
    %v7648 = vpop.permute.xlu0 %7647
    %7649 = vrot.lane.b32.xlu0 %v7595, 64
    %v7650 = vpop.permute.xlu0 %7649
    %7651 = vrot.lane.b32.xlu0 %v7596, 64
    %v7652 = vpop.permute.xlu0 %7651
    %7653 = vrot.lane.b32.xlu0 %v7597, 64
    %v7654 = vpop.permute.xlu0 %7653
    %7655 = vrot.lane.b32.xlu0 %v7598, 64
    %v7656 = vpop.permute.xlu0 %7655
    %7657 = vrot.lane.b32.xlu0 %v7599, 64
    %v7658 = vpop.permute.xlu0 %7657
    %7659 = vrot.lane.b32.xlu0 %v7600, 64
    %v7660 = vpop.permute.xlu0 %7659
    %7661 = vrot.lane.b32.xlu0 %v7601, 64
    %v7662 = vpop.permute.xlu0 %7661
    %7663 = vrot.lane.b32.xlu0 %v7602, 64
    %v7664 = vpop.permute.xlu0 %7663
    %7665 = vrot.lane.b32.xlu0 %v7603, 64
    %v7666 = vpop.permute.xlu0 %7665
    %7667 = vrot.lane.b32.xlu0 %v7604, 64
    %v7668 = vpop.permute.xlu0 %7667
    %v7671 = vsel %vm726, %v6293, %v6422
    %v7674 = vsel %vm726, %v6294, %v6424
    %v7677 = vsel %vm726, %v6295, %v6426
    %v7680 = vsel %vm726, %v6296, %v6428
    %v7683 = vsel %vm726, %v6297, %v6430
    %v7686 = vsel %vm726, %v6298, %v6432
    %v7689 = vsel %vm726, %v6299, %v6434
    %v7692 = vsel %vm726, %v6300, %v6436
    %v7695 = vsel %vm726, %v6301, %v6438
    %v7698 = vsel %vm726, %v6302, %v6440
    %v7701 = vsel %vm726, %v6303, %v6442
    %v7704 = vsel %vm726, %v6304, %v6444
    %v7707 = vsel %vm726, %v6305, %v6446
    %v7710 = vsel %vm726, %v6306, %v6448
    %v7713 = vsel %vm726, %v6307, %v6450
    %v7716 = vsel %vm726, %v6308, %v6452
    %v7719 = vsel %vm726, %v6309, %v6454
    %v7722 = vsel %vm726, %v6310, %v6456
    %v7725 = vsel %vm726, %v6311, %v6458
    %v7728 = vsel %vm726, %v6312, %v6460
    %v7731 = vsel %vm726, %v6313, %v6462
    %v7734 = vsel %vm726, %v6314, %v6464
    %v7737 = vsel %vm726, %v6315, %v6466
    %v7740 = vsel %vm726, %v6316, %v6468
    %v7743 = vsel %vm726, %v6317, %v6470
    %v7746 = vsel %vm726, %v6318, %v6472
    %v7749 = vsel %vm726, %v6319, %v6474
    %v7752 = vsel %vm726, %v6320, %v6476
    %v7755 = vsel %vm726, %v6321, %v6478
    %v7758 = vsel %vm726, %v6322, %v6480
    %v7761 = vsel %vm726, %v6323, %v6482
    %v7764 = vsel %vm726, %v6324, %v6484
    %vm7765 = vcmask 130048
    %v7767 = vsel %vm7765, %v7671, %v6582
    %v7769 = vsel %vm7765, %v7674, %v6584
    %v7771 = vsel %vm7765, %v7677, %v6586
    %v7773 = vsel %vm7765, %v7680, %v6588
    %v7775 = vsel %vm7765, %v7683, %v6590
    %v7777 = vsel %vm7765, %v7686, %v6592
    %v7779 = vsel %vm7765, %v7689, %v6594
    %v7781 = vsel %vm7765, %v7692, %v6596
    %v7783 = vsel %vm7765, %v7695, %v6598
    %v7785 = vsel %vm7765, %v7698, %v6600
    %v7787 = vsel %vm7765, %v7701, %v6602
    %v7789 = vsel %vm7765, %v7704, %v6604
    %v7791 = vsel %vm7765, %v7707, %v6606
    %v7793 = vsel %vm7765, %v7710, %v6608
    %v7795 = vsel %vm7765, %v7713, %v6610
    %v7797 = vsel %vm7765, %v7716, %v6612
    %v7799 = vsel %vm7765, %v7719, %v6614
    %v7801 = vsel %vm7765, %v7722, %v6616
    %v7803 = vsel %vm7765, %v7725, %v6618
    %v7805 = vsel %vm7765, %v7728, %v6620
    %v7807 = vsel %vm7765, %v7731, %v6622
    %v7809 = vsel %vm7765, %v7734, %v6624
    %v7811 = vsel %vm7765, %v7737, %v6626
    %v7813 = vsel %vm7765, %v7740, %v6628
    %v7815 = vsel %vm7765, %v7743, %v6630
    %v7817 = vsel %vm7765, %v7746, %v6632
    %v7819 = vsel %vm7765, %v7749, %v6634
    %v7821 = vsel %vm7765, %v7752, %v6636
    %v7823 = vsel %vm7765, %v7755, %v6638
    %v7825 = vsel %vm7765, %v7758, %v6640
    %v7827 = vsel %vm7765, %v7761, %v6642
    %v7829 = vsel %vm7765, %v7764, %v6644
    %vm7830 = vcmask 195584
    %v7832 = vsel %vm7830, %v7767, %v6774
    %v7834 = vsel %vm7830, %v7769, %v6776
    %v7836 = vsel %vm7830, %v7771, %v6778
    %v7838 = vsel %vm7830, %v7773, %v6780
    %v7840 = vsel %vm7830, %v7775, %v6782
    %v7842 = vsel %vm7830, %v7777, %v6784
    %v7844 = vsel %vm7830, %v7779, %v6786
    %v7846 = vsel %vm7830, %v7781, %v6788
    %v7848 = vsel %vm7830, %v7783, %v6790
    %v7850 = vsel %vm7830, %v7785, %v6792
    %v7852 = vsel %vm7830, %v7787, %v6794
    %v7854 = vsel %vm7830, %v7789, %v6796
    %v7856 = vsel %vm7830, %v7791, %v6798
    %v7858 = vsel %vm7830, %v7793, %v6800
    %v7860 = vsel %vm7830, %v7795, %v6802
    %v7862 = vsel %vm7830, %v7797, %v6804
    %v7864 = vsel %vm7830, %v7799, %v6806
    %v7866 = vsel %vm7830, %v7801, %v6808
    %v7868 = vsel %vm7830, %v7803, %v6810
    %v7870 = vsel %vm7830, %v7805, %v6812
    %v7872 = vsel %vm7830, %v7807, %v6814
    %v7874 = vsel %vm7830, %v7809, %v6816
    %v7876 = vsel %vm7830, %v7811, %v6818
    %v7878 = vsel %vm7830, %v7813, %v6820
    %v7880 = vsel %vm7830, %v7815, %v6822
    %v7882 = vsel %vm7830, %v7817, %v6824
    %v7884 = vsel %vm7830, %v7819, %v6826
    %v7886 = vsel %vm7830, %v7821, %v6828
    %v7888 = vsel %vm7830, %v7823, %v6830
    %v7890 = vsel %vm7830, %v7825, %v6832
    %v7892 = vsel %vm7830, %v7827, %v6834
    %v7894 = vsel %vm7830, %v7829, %v6836
    %vm7895 = vcmask 261120
    %v7897 = vsel %vm7895, %v7832, %v6934
    %v7899 = vsel %vm7895, %v7834, %v6936
    %v7901 = vsel %vm7895, %v7836, %v6938
    %v7903 = vsel %vm7895, %v7838, %v6940
    %v7905 = vsel %vm7895, %v7840, %v6942
    %v7907 = vsel %vm7895, %v7842, %v6944
    %v7909 = vsel %vm7895, %v7844, %v6946
    %v7911 = vsel %vm7895, %v7846, %v6948
    %v7913 = vsel %vm7895, %v7848, %v6950
    %v7915 = vsel %vm7895, %v7850, %v6952
    %v7917 = vsel %vm7895, %v7852, %v6954
    %v7919 = vsel %vm7895, %v7854, %v6956
    %v7921 = vsel %vm7895, %v7856, %v6958
    %v7923 = vsel %vm7895, %v7858, %v6960
    %v7925 = vsel %vm7895, %v7860, %v6962
    %v7927 = vsel %vm7895, %v7862, %v6964
    %v7929 = vsel %vm7895, %v7864, %v6966
    %v7931 = vsel %vm7895, %v7866, %v6968
    %v7933 = vsel %vm7895, %v7868, %v6970
    %v7935 = vsel %vm7895, %v7870, %v6972
    %v7937 = vsel %vm7895, %v7872, %v6974
    %v7939 = vsel %vm7895, %v7874, %v6976
    %v7941 = vsel %vm7895, %v7876, %v6978
    %v7943 = vsel %vm7895, %v7878, %v6980
    %v7945 = vsel %vm7895, %v7880, %v6982
    %v7947 = vsel %vm7895, %v7882, %v6984
    %v7949 = vsel %vm7895, %v7884, %v6986
    %v7951 = vsel %vm7895, %v7886, %v6988
    %v7953 = vsel %vm7895, %v7888, %v6990
    %v7955 = vsel %vm7895, %v7890, %v6992
    %v7957 = vsel %vm7895, %v7892, %v6994
    %v7959 = vsel %vm7895, %v7894, %v6996
    %vm7960 = vcmask 326656
    %v7962 = vsel %vm7960, %v7897, %v7094
    %v7964 = vsel %vm7960, %v7899, %v7096
    %v7966 = vsel %vm7960, %v7901, %v7098
    %v7968 = vsel %vm7960, %v7903, %v7100
    %v7970 = vsel %vm7960, %v7905, %v7102
    %v7972 = vsel %vm7960, %v7907, %v7104
    %v7974 = vsel %vm7960, %v7909, %v7106
    %v7976 = vsel %vm7960, %v7911, %v7108
    %v7978 = vsel %vm7960, %v7913, %v7110
    %v7980 = vsel %vm7960, %v7915, %v7112
    %v7982 = vsel %vm7960, %v7917, %v7114
    %v7984 = vsel %vm7960, %v7919, %v7116
    %v7986 = vsel %vm7960, %v7921, %v7118
    %v7988 = vsel %vm7960, %v7923, %v7120
    %v7990 = vsel %vm7960, %v7925, %v7122
    %v7992 = vsel %vm7960, %v7927, %v7124
    %v7994 = vsel %vm7960, %v7929, %v7126
    %v7996 = vsel %vm7960, %v7931, %v7128
    %v7998 = vsel %vm7960, %v7933, %v7130
    %v8000 = vsel %vm7960, %v7935, %v7132
    %v8002 = vsel %vm7960, %v7937, %v7134
    %v8004 = vsel %vm7960, %v7939, %v7136
    %v8006 = vsel %vm7960, %v7941, %v7138
    %v8008 = vsel %vm7960, %v7943, %v7140
    %v8010 = vsel %vm7960, %v7945, %v7142
    %v8012 = vsel %vm7960, %v7947, %v7144
    %v8014 = vsel %vm7960, %v7949, %v7146
    %v8016 = vsel %vm7960, %v7951, %v7148
    %v8018 = vsel %vm7960, %v7953, %v7150
    %v8020 = vsel %vm7960, %v7955, %v7152
    %v8022 = vsel %vm7960, %v7957, %v7154
    %v8024 = vsel %vm7960, %v7959, %v7156
    %vm8025 = vcmask 392192
    %v8027 = vsel %vm8025, %v7962, %v7286
    %v8029 = vsel %vm8025, %v7964, %v7288
    %v8031 = vsel %vm8025, %v7966, %v7290
    %v8033 = vsel %vm8025, %v7968, %v7292
    %v8035 = vsel %vm8025, %v7970, %v7294
    %v8037 = vsel %vm8025, %v7972, %v7296
    %v8039 = vsel %vm8025, %v7974, %v7298
    %v8041 = vsel %vm8025, %v7976, %v7300
    %v8043 = vsel %vm8025, %v7978, %v7302
    %v8045 = vsel %vm8025, %v7980, %v7304
    %v8047 = vsel %vm8025, %v7982, %v7306
    %v8049 = vsel %vm8025, %v7984, %v7308
    %v8051 = vsel %vm8025, %v7986, %v7310
    %v8053 = vsel %vm8025, %v7988, %v7312
    %v8055 = vsel %vm8025, %v7990, %v7314
    %v8057 = vsel %vm8025, %v7992, %v7316
    %v8059 = vsel %vm8025, %v7994, %v7318
    %v8061 = vsel %vm8025, %v7996, %v7320
    %v8063 = vsel %vm8025, %v7998, %v7322
    %v8065 = vsel %vm8025, %v8000, %v7324
    %v8067 = vsel %vm8025, %v8002, %v7326
    %v8069 = vsel %vm8025, %v8004, %v7328
    %v8071 = vsel %vm8025, %v8006, %v7330
    %v8073 = vsel %vm8025, %v8008, %v7332
    %v8075 = vsel %vm8025, %v8010, %v7334
    %v8077 = vsel %vm8025, %v8012, %v7336
    %v8079 = vsel %vm8025, %v8014, %v7338
    %v8081 = vsel %vm8025, %v8016, %v7340
    %v8083 = vsel %vm8025, %v8018, %v7342
    %v8085 = vsel %vm8025, %v8020, %v7344
    %v8087 = vsel %vm8025, %v8022, %v7346
    %v8089 = vsel %vm8025, %v8024, %v7348
    %vm8090 = vcmask 457728
    %v8092 = vsel %vm8090, %v8027, %v7446
    %v8094 = vsel %vm8090, %v8029, %v7448
    %v8096 = vsel %vm8090, %v8031, %v7450
    %v8098 = vsel %vm8090, %v8033, %v7452
    %v8100 = vsel %vm8090, %v8035, %v7454
    %v8102 = vsel %vm8090, %v8037, %v7456
    %v8104 = vsel %vm8090, %v8039, %v7458
    %v8106 = vsel %vm8090, %v8041, %v7460
    %v8108 = vsel %vm8090, %v8043, %v7462
    %v8110 = vsel %vm8090, %v8045, %v7464
    %v8112 = vsel %vm8090, %v8047, %v7466
    %v8114 = vsel %vm8090, %v8049, %v7468
    %v8116 = vsel %vm8090, %v8051, %v7470
    %v8118 = vsel %vm8090, %v8053, %v7472
    %v8120 = vsel %vm8090, %v8055, %v7474
    %v8122 = vsel %vm8090, %v8057, %v7476
    %v8124 = vsel %vm8090, %v8059, %v7478
    %v8126 = vsel %vm8090, %v8061, %v7480
    %v8128 = vsel %vm8090, %v8063, %v7482
    %v8130 = vsel %vm8090, %v8065, %v7484
    %v8132 = vsel %vm8090, %v8067, %v7486
    %v8134 = vsel %vm8090, %v8069, %v7488
    %v8136 = vsel %vm8090, %v8071, %v7490
    %v8138 = vsel %vm8090, %v8073, %v7492
    %v8140 = vsel %vm8090, %v8075, %v7494
    %v8142 = vsel %vm8090, %v8077, %v7496
    %v8144 = vsel %vm8090, %v8079, %v7498
    %v8146 = vsel %vm8090, %v8081, %v7500
    %v8148 = vsel %vm8090, %v8083, %v7502
    %v8150 = vsel %vm8090, %v8085, %v7504
    %v8152 = vsel %vm8090, %v8087, %v7506
    %v8154 = vsel %vm8090, %v8089, %v7508
    %vm8155 = vcmask 523264
    %v8157 = vsel %vm8155, %v8092, %v7606
    %v8159 = vsel %vm8155, %v8094, %v7608
    %v8161 = vsel %vm8155, %v8096, %v7610
    %v8163 = vsel %vm8155, %v8098, %v7612
    %v8165 = vsel %vm8155, %v8100, %v7614
    %v8167 = vsel %vm8155, %v8102, %v7616
    %v8169 = vsel %vm8155, %v8104, %v7618
    %v8171 = vsel %vm8155, %v8106, %v7620
    %v8173 = vsel %vm8155, %v8108, %v7622
    %v8175 = vsel %vm8155, %v8110, %v7624
    %v8177 = vsel %vm8155, %v8112, %v7626
    %v8179 = vsel %vm8155, %v8114, %v7628
    %v8181 = vsel %vm8155, %v8116, %v7630
    %v8183 = vsel %vm8155, %v8118, %v7632
    %v8185 = vsel %vm8155, %v8120, %v7634
    %v8187 = vsel %vm8155, %v8122, %v7636
    %v8189 = vsel %vm8155, %v8124, %v7638
    %v8191 = vsel %vm8155, %v8126, %v7640
    %v8193 = vsel %vm8155, %v8128, %v7642
    %v8195 = vsel %vm8155, %v8130, %v7644
    %v8197 = vsel %vm8155, %v8132, %v7646
    %v8199 = vsel %vm8155, %v8134, %v7648
    %v8201 = vsel %vm8155, %v8136, %v7650
    %v8203 = vsel %vm8155, %v8138, %v7652
    %v8205 = vsel %vm8155, %v8140, %v7654
    %v8207 = vsel %vm8155, %v8142, %v7656
    %v8209 = vsel %vm8155, %v8144, %v7658
    %v8211 = vsel %vm8155, %v8146, %v7660
    %v8213 = vsel %vm8155, %v8148, %v7662
    %v8215 = vsel %vm8155, %v8150, %v7664
    %v8217 = vsel %vm8155, %v8152, %v7666
    %v8219 = vsel %vm8155, %v8154, %v7668
    %vm8220 = vcmask 588800
    %v8222 = vsel %vm8220, %v8157, 0
    %v8224 = vsel %vm8220, %v8159, 0
    %v8226 = vsel %vm8220, %v8161, 0
    %v8228 = vsel %vm8220, %v8163, 0
    %v8230 = vsel %vm8220, %v8165, 0
    %v8232 = vsel %vm8220, %v8167, 0
    %v8234 = vsel %vm8220, %v8169, 0
    %v8236 = vsel %vm8220, %v8171, 0
    %v8238 = vsel %vm8220, %v8173, 0
    %v8240 = vsel %vm8220, %v8175, 0
    %v8242 = vsel %vm8220, %v8177, 0
    %v8244 = vsel %vm8220, %v8179, 0
    %v8246 = vsel %vm8220, %v8181, 0
    %v8248 = vsel %vm8220, %v8183, 0
    %v8250 = vsel %vm8220, %v8185, 0
    %v8252 = vsel %vm8220, %v8187, 0
    %v8254 = vsel %vm8220, %v8189, 0
    %v8256 = vsel %vm8220, %v8191, 0
    %v8258 = vsel %vm8220, %v8193, 0
    %v8260 = vsel %vm8220, %v8195, 0
    %v8262 = vsel %vm8220, %v8197, 0
    %v8264 = vsel %vm8220, %v8199, 0
    %v8266 = vsel %vm8220, %v8201, 0
    %v8268 = vsel %vm8220, %v8203, 0
    %v8270 = vsel %vm8220, %v8205, 0
    %v8272 = vsel %vm8220, %v8207, 0
    %v8274 = vsel %vm8220, %v8209, 0
    %v8276 = vsel %vm8220, %v8211, 0
    %v8278 = vsel %vm8220, %v8213, 0
    %v8280 = vsel %vm8220, %v8215, 0
    %v8282 = vsel %vm8220, %v8217, 0
    %v8284 = vsel %vm8220, %v8219, 0
    %v8286 = vld [vmem:[#allocation11] sm:$0xf]
    %v8287 = vld [vmem:[#allocation11 + $0x4] sm:$0xf]
    %v8288 = vld [vmem:[#allocation11 + $0x8] sm:$0xf]
    %v8289 = vld [vmem:[#allocation11 + $0xc] sm:$0xf]
    %v8290 = vld [vmem:[#allocation11 + $0x10] sm:$0xf]
    %v8291 = vld [vmem:[#allocation11 + $0x14] sm:$0xf]
    %v8292 = vld [vmem:[#allocation11 + $0x18] sm:$0xf]
    %v8293 = vld [vmem:[#allocation11 + $0x1c] sm:$0xf]
    %v8294 = vld [vmem:[#allocation11 + $0x20] sm:$0xf]
    %v8295 = vld [vmem:[#allocation11 + $0x24] sm:$0xf]
    %v8296 = vld [vmem:[#allocation11 + $0x28] sm:$0xf]
    %v8297 = vld [vmem:[#allocation11 + $0x2c] sm:$0xf]
    %v8298 = vld [vmem:[#allocation11 + $0x30] sm:$0xf]
    %v8299 = vld [vmem:[#allocation11 + $0x34] sm:$0xf]
    %v8300 = vld [vmem:[#allocation11 + $0x38] sm:$0xf]
    %v8301 = vld [vmem:[#allocation11 + $0x3c] sm:$0xf]
    %v8318 = vunpack.c.l.b16 %v8286
    %v8319 = vunpack.c.l.b16 %v8287
    %v8320 = vunpack.c.l.b16 %v8288
    %v8321 = vunpack.c.l.b16 %v8289
    %v8322 = vunpack.c.l.b16 %v8290
    %v8323 = vunpack.c.l.b16 %v8291
    %v8324 = vunpack.c.l.b16 %v8292
    %v8325 = vunpack.c.l.b16 %v8293
    %v8326 = vunpack.c.l.b16 %v8294
    %v8327 = vunpack.c.l.b16 %v8295
    %v8328 = vunpack.c.l.b16 %v8296
    %v8329 = vunpack.c.l.b16 %v8297
    %v8330 = vunpack.c.l.b16 %v8298
    %v8331 = vunpack.c.l.b16 %v8299
    %v8332 = vunpack.c.l.b16 %v8300
    %v8333 = vunpack.c.l.b16 %v8301
    %v8334 = vpack.c.b16 %v8319, %v8318
    %v8335 = vpack.c.b16 %v8321, %v8320
    %v8336 = vpack.c.b16 %v8323, %v8322
    %v8337 = vpack.c.b16 %v8325, %v8324
    %v8338 = vpack.c.b16 %v8327, %v8326
    %v8339 = vpack.c.b16 %v8329, %v8328
    %v8340 = vpack.c.b16 %v8331, %v8330
    %v8341 = vpack.c.b16 %v8333, %v8332
    %8350 = vmatprep.subr.bf16.mxu0 0
    %8351 = vmatpush1.bf16.msra.mxu0 %v8334
    %8352 = vmatprep.subr.bf16.mxu0 0
    %8353 = vmatpush1.bf16.msra.mxu0 %v8335
    %8354 = vmatprep.subr.bf16.mxu0 0
    %8355 = vmatpush1.bf16.msra.mxu0 %v8336
    %8356 = vmatprep.subr.bf16.mxu0 0
    %8357 = vmatpush1.bf16.msra.mxu0 %v8337
    %8358 = vmatprep.subr.bf16.mxu0 0
    %8359 = vmatpush1.bf16.msra.mxu0 %v8338
    %8360 = vmatprep.subr.bf16.mxu0 0
    %8361 = vmatpush1.bf16.msra.mxu0 %v8339
    %8362 = vmatprep.subr.bf16.mxu0 0
    %8363 = vmatpush1.bf16.msra.mxu0 %v8340
    %8364 = vmatprep.subr.bf16.mxu0 0
    %8365 = vmatpush1.bf16.msra.mxu0 %v8341
    %8366 = vmatprep.subr.bf16.mxu0 0
    %8367 = vmatpush1.bf16.msra.mxu0 0
    %8368 = vmatprep.subr.bf16.mxu0 0
    %8369 = vmatpush1.bf16.msra.mxu0 0
    %8370 = vmatprep.subr.bf16.mxu0 0
    %8371 = vmatpush1.bf16.msra.mxu0 0
    %8372 = vmatprep.subr.bf16.mxu0 0
    %8373 = vmatpush1.bf16.msra.mxu0 0
    %8374 = vmatprep.subr.bf16.mxu0 0
    %8375 = vmatpush1.bf16.msra.mxu0 0
    %8376 = vmatprep.subr.bf16.mxu0 0
    %8377 = vmatpush1.bf16.msra.mxu0 0
    %8378 = vmatprep.subr.bf16.mxu0 0
    %8379 = vmatpush1.bf16.msra.mxu0 0
    %8380 = vmatprep.subr.bf16.mxu0 0
    %8381 = vmatpush1.bf16.msra.mxu0 0
    %8382 = vmatprep.mubr.bf16.mxu0 0
    %8383 = vmatmul.mubr.bf16.gmra.mrb[0].mxu0 %v8222
    %v8384 = vpop.f32.mrb[0].mxu0
    %v8385 = vadd.f32 0.0, %v8384
    %v8386 = vpop.f32.mrb[0].mxu0
    %v8387 = vpop.f32.mrb[0].mxu0
    %v8388 = vadd.f32 0.0, %v8387
    %v8389 = vpop.f32.mrb[0].mxu0
    %8390 = vmatprep.mubr.bf16.mxu0 0
    %8391 = vmatmul.mubr.bf16.gmra.mrb[0].mxu0 %v8224
    %v8392 = vpop.f32.mrb[0].mxu0
    %v8393 = vadd.f32 0.0, %v8392
    %v8394 = vpop.f32.mrb[0].mxu0
    %v8395 = vpop.f32.mrb[0].mxu0
    %v8396 = vadd.f32 0.0, %v8395
    %v8397 = vpop.f32.mrb[0].mxu0
    %8398 = vmatprep.mubr.bf16.mxu0 0
    %8399 = vmatmul.mubr.bf16.gmra.mrb[0].mxu0 %v8226
    %v8400 = vpop.f32.mrb[0].mxu0
    %v8401 = vadd.f32 0.0, %v8400
    %v8402 = vpop.f32.mrb[0].mxu0
    %v8403 = vpop.f32.mrb[0].mxu0
    %v8404 = vadd.f32 0.0, %v8403
    %v8405 = vpop.f32.mrb[0].mxu0
    %8406 = vmatprep.mubr.bf16.mxu0 0
    %8407 = vmatmul.mubr.bf16.gmra.mrb[0].mxu0 %v8228
    %v8408 = vpop.f32.mrb[0].mxu0
    %v8409 = vadd.f32 0.0, %v8408
    %v8410 = vpop.f32.mrb[0].mxu0
    %v8411 = vpop.f32.mrb[0].mxu0
    %v8412 = vadd.f32 0.0, %v8411
    %v8413 = vpop.f32.mrb[0].mxu0
    %8414 = vmatprep.mubr.bf16.mxu0 0
    %8415 = vmatmul.mubr.bf16.gmra.mrb[0].mxu0 %v8230
    %v8416 = vpop.f32.mrb[0].mxu0
    %v8417 = vadd.f32 0.0, %v8416
    %v8418 = vpop.f32.mrb[0].mxu0
    %v8419 = vpop.f32.mrb[0].mxu0
    %v8420 = vadd.f32 0.0, %v8419
    %v8421 = vpop.f32.mrb[0].mxu0
    %8422 = vmatprep.mubr.bf16.mxu0 0
    %8423 = vmatmul.mubr.bf16.gmra.mrb[0].mxu0 %v8232
    %v8424 = vpop.f32.mrb[0].mxu0
    %v8425 = vadd.f32 0.0, %v8424
    %v8426 = vpop.f32.mrb[0].mxu0
    %v8427 = vpop.f32.mrb[0].mxu0
    %v8428 = vadd.f32 0.0, %v8427
    %v8429 = vpop.f32.mrb[0].mxu0
    %8430 = vmatprep.mubr.bf16.mxu0 0
    %8431 = vmatmul.mubr.bf16.gmra.mrb[0].mxu0 %v8234
    %v8432 = vpop.f32.mrb[0].mxu0
    %v8433 = vadd.f32 0.0, %v8432
    %v8434 = vpop.f32.mrb[0].mxu0
    %v8435 = vpop.f32.mrb[0].mxu0
    %v8436 = vadd.f32 0.0, %v8435
    %v8437 = vpop.f32.mrb[0].mxu0
    %8438 = vmatprep.mubr.bf16.mxu0 0
    %8439 = vmatmul.mubr.bf16.gmra.mrb[0].mxu0 %v8236
    %v8440 = vpop.f32.mrb[0].mxu0
    %v8441 = vadd.f32 0.0, %v8440
    %v8442 = vpop.f32.mrb[0].mxu0
    %v8443 = vpop.f32.mrb[0].mxu0
    %v8444 = vadd.f32 0.0, %v8443
    %v8445 = vpop.f32.mrb[0].mxu0
    %8446 = vmatprep.mubr.bf16.mxu0 0
    %8447 = vmatmul.mubr.bf16.gmra.mrb[0].mxu0 %v8238
    %v8448 = vpop.f32.mrb[0].mxu0
    %v8449 = vadd.f32 0.0, %v8448
    %v8450 = vpop.f32.mrb[0].mxu0
    %v8451 = vpop.f32.mrb[0].mxu0
    %v8452 = vadd.f32 0.0, %v8451
    %v8453 = vpop.f32.mrb[0].mxu0
    %8454 = vmatprep.mubr.bf16.mxu0 0
    %8455 = vmatmul.mubr.bf16.gmra.mrb[0].mxu0 %v8240
    %v8456 = vpop.f32.mrb[0].mxu0
    %v8457 = vadd.f32 0.0, %v8456
    %v8458 = vpop.f32.mrb[0].mxu0
    %v8459 = vpop.f32.mrb[0].mxu0
    %v8460 = vadd.f32 0.0, %v8459
    %v8461 = vpop.f32.mrb[0].mxu0
    %8462 = vmatprep.mubr.bf16.mxu0 0
    %8463 = vmatmul.mubr.bf16.gmra.mrb[0].mxu0 %v8242
    %v8464 = vpop.f32.mrb[0].mxu0
    %v8465 = vadd.f32 0.0, %v8464
    %v8466 = vpop.f32.mrb[0].mxu0
    %v8467 = vpop.f32.mrb[0].mxu0
    %v8468 = vadd.f32 0.0, %v8467
    %v8469 = vpop.f32.mrb[0].mxu0
    %8470 = vmatprep.mubr.bf16.mxu0 0
    %8471 = vmatmul.mubr.bf16.gmra.mrb[0].mxu0 %v8244
    %v8472 = vpop.f32.mrb[0].mxu0
    %v8473 = vadd.f32 0.0, %v8472
    %v8474 = vpop.f32.mrb[0].mxu0
    %v8475 = vpop.f32.mrb[0].mxu0
    %v8476 = vadd.f32 0.0, %v8475
    %v8477 = vpop.f32.mrb[0].mxu0
    %8478 = vmatprep.mubr.bf16.mxu0 0
    %8479 = vmatmul.mubr.bf16.gmra.mrb[0].mxu0 %v8246
    %v8480 = vpop.f32.mrb[0].mxu0
    %v8481 = vadd.f32 0.0, %v8480
    %v8482 = vpop.f32.mrb[0].mxu0
    %v8483 = vpop.f32.mrb[0].mxu0
    %v8484 = vadd.f32 0.0, %v8483
    %v8485 = vpop.f32.mrb[0].mxu0
    %8486 = vmatprep.mubr.bf16.mxu0 0
    %8487 = vmatmul.mubr.bf16.gmra.mrb[0].mxu0 %v8248
    %v8488 = vpop.f32.mrb[0].mxu0
    %v8489 = vadd.f32 0.0, %v8488
    %v8490 = vpop.f32.mrb[0].mxu0
    %v8491 = vpop.f32.mrb[0].mxu0
    %v8492 = vadd.f32 0.0, %v8491
    %v8493 = vpop.f32.mrb[0].mxu0
    %8494 = vmatprep.mubr.bf16.mxu0 0
    %8495 = vmatmul.mubr.bf16.gmra.mrb[0].mxu0 %v8250
    %v8496 = vpop.f32.mrb[0].mxu0
    %v8497 = vadd.f32 0.0, %v8496
    %v8498 = vpop.f32.mrb[0].mxu0
    %v8499 = vpop.f32.mrb[0].mxu0
    %v8500 = vadd.f32 0.0, %v8499
    %v8501 = vpop.f32.mrb[0].mxu0
    %8502 = vmatprep.mubr.bf16.mxu0 0
    %8503 = vmatmul.mubr.bf16.gmra.mrb[0].mxu0 %v8252
    %v8504 = vpop.f32.mrb[0].mxu0
    %v8505 = vadd.f32 0.0, %v8504
    %v8506 = vpop.f32.mrb[0].mxu0
    %v8507 = vpop.f32.mrb[0].mxu0
    %v8508 = vadd.f32 0.0, %v8507
    %v8509 = vpop.f32.mrb[0].mxu0
    %8510 = vmatprep.mubr.bf16.mxu0 0
    %8511 = vmatmul.mubr.bf16.gmra.mrb[0].mxu0 %v8254
    %v8512 = vpop.f32.mrb[0].mxu0
    %v8513 = vadd.f32 0.0, %v8512
    %v8514 = vpop.f32.mrb[0].mxu0
    %v8515 = vpop.f32.mrb[0].mxu0
    %v8516 = vadd.f32 0.0, %v8515
    %v8517 = vpop.f32.mrb[0].mxu0
    %8518 = vmatprep.mubr.bf16.mxu0 0
    %8519 = vmatmul.mubr.bf16.gmra.mrb[0].mxu0 %v8256
    %v8520 = vpop.f32.mrb[0].mxu0
    %v8521 = vadd.f32 0.0, %v8520
    %v8522 = vpop.f32.mrb[0].mxu0
    %v8523 = vpop.f32.mrb[0].mxu0
    %v8524 = vadd.f32 0.0, %v8523
    %v8525 = vpop.f32.mrb[0].mxu0
    %8526 = vmatprep.mubr.bf16.mxu0 0
    %8527 = vmatmul.mubr.bf16.gmra.mrb[0].mxu0 %v8258
    %v8528 = vpop.f32.mrb[0].mxu0
    %v8529 = vadd.f32 0.0, %v8528
    %v8530 = vpop.f32.mrb[0].mxu0
    %v8531 = vpop.f32.mrb[0].mxu0
    %v8532 = vadd.f32 0.0, %v8531
    %v8533 = vpop.f32.mrb[0].mxu0
    %8534 = vmatprep.mubr.bf16.mxu0 0
    %8535 = vmatmul.mubr.bf16.gmra.mrb[0].mxu0 %v8260
    %v8536 = vpop.f32.mrb[0].mxu0
    %v8537 = vadd.f32 0.0, %v8536
    %v8538 = vpop.f32.mrb[0].mxu0
    %v8539 = vpop.f32.mrb[0].mxu0
    %v8540 = vadd.f32 0.0, %v8539
    %v8541 = vpop.f32.mrb[0].mxu0
    %8542 = vmatprep.mubr.bf16.mxu0 0
    %8543 = vmatmul.mubr.bf16.gmra.mrb[0].mxu0 %v8262
    %v8544 = vpop.f32.mrb[0].mxu0
    %v8545 = vadd.f32 0.0, %v8544
    %v8546 = vpop.f32.mrb[0].mxu0
    %v8547 = vpop.f32.mrb[0].mxu0
    %v8548 = vadd.f32 0.0, %v8547
    %v8549 = vpop.f32.mrb[0].mxu0
    %8550 = vmatprep.mubr.bf16.mxu0 0
    %8551 = vmatmul.mubr.bf16.gmra.mrb[0].mxu0 %v8264
    %v8552 = vpop.f32.mrb[0].mxu0
    %v8553 = vadd.f32 0.0, %v8552
    %v8554 = vpop.f32.mrb[0].mxu0
    %v8555 = vpop.f32.mrb[0].mxu0
    %v8556 = vadd.f32 0.0, %v8555
    %v8557 = vpop.f32.mrb[0].mxu0
    %8558 = vmatprep.mubr.bf16.mxu0 0
    %8559 = vmatmul.mubr.bf16.gmra.mrb[0].mxu0 %v8266
    %v8560 = vpop.f32.mrb[0].mxu0
    %v8561 = vadd.f32 0.0, %v8560
    %v8562 = vpop.f32.mrb[0].mxu0
    %v8563 = vpop.f32.mrb[0].mxu0
    %v8564 = vadd.f32 0.0, %v8563
    %v8565 = vpop.f32.mrb[0].mxu0
    %8566 = vmatprep.mubr.bf16.mxu0 0
    %8567 = vmatmul.mubr.bf16.gmra.mrb[0].mxu0 %v8268
    %v8568 = vpop.f32.mrb[0].mxu0
    %v8569 = vadd.f32 0.0, %v8568
    %v8570 = vpop.f32.mrb[0].mxu0
    %v8571 = vpop.f32.mrb[0].mxu0
    %v8572 = vadd.f32 0.0, %v8571
    %v8573 = vpop.f32.mrb[0].mxu0
    %8574 = vmatprep.mubr.bf16.mxu0 0
    %8575 = vmatmul.mubr.bf16.gmra.mrb[0].mxu0 %v8270
    %v8576 = vpop.f32.mrb[0].mxu0
    %v8577 = vadd.f32 0.0, %v8576
    %v8578 = vpop.f32.mrb[0].mxu0
    %v8579 = vpop.f32.mrb[0].mxu0
    %v8580 = vadd.f32 0.0, %v8579
    %v8581 = vpop.f32.mrb[0].mxu0
    %8582 = vmatprep.mubr.bf16.mxu0 0
    %8583 = vmatmul.mubr.bf16.gmra.mrb[0].mxu0 %v8272
    %v8584 = vpop.f32.mrb[0].mxu0
    %v8585 = vadd.f32 0.0, %v8584
    %v8586 = vpop.f32.mrb[0].mxu0
    %v8587 = vpop.f32.mrb[0].mxu0
    %v8588 = vadd.f32 0.0, %v8587
    %v8589 = vpop.f32.mrb[0].mxu0
    %8590 = vmatprep.mubr.bf16.mxu0 0
    %8591 = vmatmul.mubr.bf16.gmra.mrb[0].mxu0 %v8274
    %v8592 = vpop.f32.mrb[0].mxu0
    %v8593 = vadd.f32 0.0, %v8592
    %v8594 = vpop.f32.mrb[0].mxu0
    %v8595 = vpop.f32.mrb[0].mxu0
    %v8596 = vadd.f32 0.0, %v8595
    %v8597 = vpop.f32.mrb[0].mxu0
    %8598 = vmatprep.mubr.bf16.mxu0 0
    %8599 = vmatmul.mubr.bf16.gmra.mrb[0].mxu0 %v8276
    %v8600 = vpop.f32.mrb[0].mxu0
    %v8601 = vadd.f32 0.0, %v8600
    %v8602 = vpop.f32.mrb[0].mxu0
    %v8603 = vpop.f32.mrb[0].mxu0
    %v8604 = vadd.f32 0.0, %v8603
    %v8605 = vpop.f32.mrb[0].mxu0
    %8606 = vmatprep.mubr.bf16.mxu0 0
    %8607 = vmatmul.mubr.bf16.gmra.mrb[0].mxu0 %v8278
    %v8608 = vpop.f32.mrb[0].mxu0
    %v8609 = vadd.f32 0.0, %v8608
    %v8610 = vpop.f32.mrb[0].mxu0
    %v8611 = vpop.f32.mrb[0].mxu0
    %v8612 = vadd.f32 0.0, %v8611
    %v8613 = vpop.f32.mrb[0].mxu0
    %8614 = vmatprep.mubr.bf16.mxu0 0
    %8615 = vmatmul.mubr.bf16.gmra.mrb[0].mxu0 %v8280
    %v8616 = vpop.f32.mrb[0].mxu0
    %v8617 = vadd.f32 0.0, %v8616
    %v8618 = vpop.f32.mrb[0].mxu0
    %v8619 = vpop.f32.mrb[0].mxu0
    %v8620 = vadd.f32 0.0, %v8619
    %v8621 = vpop.f32.mrb[0].mxu0
    %8622 = vmatprep.mubr.bf16.mxu0 0
    %8623 = vmatmul.mubr.bf16.gmra.mrb[0].mxu0 %v8282
    %v8624 = vpop.f32.mrb[0].mxu0
    %v8625 = vadd.f32 0.0, %v8624
    %v8626 = vpop.f32.mrb[0].mxu0
    %v8627 = vpop.f32.mrb[0].mxu0
    %v8628 = vadd.f32 0.0, %v8627
    %v8629 = vpop.f32.mrb[0].mxu0
    %8630 = vmatprep.mubr.bf16.mxu0 0
    %8631 = vmatmul.mubr.bf16.gmra.mrb[0].mxu0 %v8284
    %v8632 = vpop.f32.mrb[0].mxu0
    %v8633 = vadd.f32 0.0, %v8632
    %v8634 = vpop.f32.mrb[0].mxu0
    %v8635 = vpop.f32.mrb[0].mxu0
    %v8636 = vadd.f32 0.0, %v8635
    %v8637 = vpop.f32.mrb[0].mxu0
    %8638 = vdwg.mxu0
    %v8639 = vld [vmem:[#allocation12] sm:$0x1]
    %v8640 = vld [vmem:[#allocation14] sm:$0x1]
    %v8641 = vsel %vm726, %v8385, 0.0
    %v8642 = vsel %vm726, %v8388, 0.0
    %v8643 = vadd.f32 %v8641, %v8642
    %v8644 = vsel %vm726, %v8393, 0.0
    %v8645 = vadd.f32 %v8643, %v8644
    %v8646 = vsel %vm726, %v8396, 0.0
    %v8647 = vadd.f32 %v8645, %v8646
    %v8648 = vsel %vm726, %v8401, 0.0
    %v8649 = vadd.f32 %v8647, %v8648
    %v8650 = vsel %vm726, %v8404, 0.0
    %v8651 = vadd.f32 %v8649, %v8650
    %v8652 = vsel %vm726, %v8409, 0.0
    %v8653 = vadd.f32 %v8651, %v8652
    %v8654 = vsel %vm726, %v8412, 0.0
    %v8655 = vadd.f32 %v8653, %v8654
    %v8656 = vsel %vm726, %v8417, 0.0
    %v8657 = vadd.f32 %v8655, %v8656
    %v8658 = vsel %vm726, %v8420, 0.0
    %v8659 = vadd.f32 %v8657, %v8658
    %v8660 = vsel %vm726, %v8425, 0.0
    %v8661 = vadd.f32 %v8659, %v8660
    %v8662 = vsel %vm726, %v8428, 0.0
    %v8663 = vadd.f32 %v8661, %v8662
    %v8664 = vsel %vm726, %v8433, 0.0
    %v8665 = vadd.f32 %v8663, %v8664
    %v8666 = vsel %vm726, %v8436, 0.0
    %v8667 = vadd.f32 %v8665, %v8666
    %v8668 = vsel %vm726, %v8441, 0.0
    %v8669 = vadd.f32 %v8667, %v8668
    %v8670 = vsel %vm726, %v8444, 0.0
    %v8671 = vadd.f32 %v8669, %v8670
    %v8672 = vsel %vm726, %v8449, 0.0
    %v8673 = vadd.f32 %v8671, %v8672
    %v8674 = vsel %vm726, %v8452, 0.0
    %v8675 = vadd.f32 %v8673, %v8674
    %v8676 = vsel %vm726, %v8457, 0.0
    %v8677 = vadd.f32 %v8675, %v8676
    %v8678 = vsel %vm726, %v8460, 0.0
    %v8679 = vadd.f32 %v8677, %v8678
    %v8680 = vsel %vm726, %v8465, 0.0
    %v8681 = vadd.f32 %v8679, %v8680
    %v8682 = vsel %vm726, %v8468, 0.0
    %v8683 = vadd.f32 %v8681, %v8682
    %v8684 = vsel %vm726, %v8473, 0.0
    %v8685 = vadd.f32 %v8683, %v8684
    %v8686 = vsel %vm726, %v8476, 0.0
    %v8687 = vadd.f32 %v8685, %v8686
    %v8688 = vsel %vm726, %v8481, 0.0
    %v8689 = vadd.f32 %v8687, %v8688
    %v8690 = vsel %vm726, %v8484, 0.0
    %v8691 = vadd.f32 %v8689, %v8690
    %v8692 = vsel %vm726, %v8489, 0.0
    %v8693 = vadd.f32 %v8691, %v8692
    %v8694 = vsel %vm726, %v8492, 0.0
    %v8695 = vadd.f32 %v8693, %v8694
    %v8696 = vsel %vm726, %v8497, 0.0
    %v8697 = vadd.f32 %v8695, %v8696
    %v8698 = vsel %vm726, %v8500, 0.0
    %v8699 = vadd.f32 %v8697, %v8698
    %v8700 = vsel %vm726, %v8505, 0.0
    %v8701 = vadd.f32 %v8699, %v8700
    %v8702 = vsel %vm726, %v8508, 0.0
    %v8703 = vadd.f32 %v8701, %v8702
    %v8704 = vsel %vm726, %v8513, 0.0
    %v8705 = vadd.f32 %v8703, %v8704
    %v8706 = vsel %vm726, %v8516, 0.0
    %v8707 = vadd.f32 %v8705, %v8706
    %v8708 = vsel %vm726, %v8521, 0.0
    %v8709 = vadd.f32 %v8707, %v8708
    %v8710 = vsel %vm726, %v8524, 0.0
    %v8711 = vadd.f32 %v8709, %v8710
    %v8712 = vsel %vm726, %v8529, 0.0
    %v8713 = vadd.f32 %v8711, %v8712
    %v8714 = vsel %vm726, %v8532, 0.0
    %v8715 = vadd.f32 %v8713, %v8714
    %v8716 = vsel %vm726, %v8537, 0.0
    %v8717 = vadd.f32 %v8715, %v8716
    %v8718 = vsel %vm726, %v8540, 0.0
    %v8719 = vadd.f32 %v8717, %v8718
    %v8720 = vsel %vm726, %v8545, 0.0
    %v8721 = vadd.f32 %v8719, %v8720
    %v8722 = vsel %vm726, %v8548, 0.0
    %v8723 = vadd.f32 %v8721, %v8722
    %v8724 = vsel %vm726, %v8553, 0.0
    %v8725 = vadd.f32 %v8723, %v8724
    %v8726 = vsel %vm726, %v8556, 0.0
    %v8727 = vadd.f32 %v8725, %v8726
    %v8728 = vsel %vm726, %v8561, 0.0
    %v8729 = vadd.f32 %v8727, %v8728
    %v8730 = vsel %vm726, %v8564, 0.0
    %v8731 = vadd.f32 %v8729, %v8730
    %v8732 = vsel %vm726, %v8569, 0.0
    %v8733 = vadd.f32 %v8731, %v8732
    %v8734 = vsel %vm726, %v8572, 0.0
    %v8735 = vadd.f32 %v8733, %v8734
    %v8736 = vsel %vm726, %v8577, 0.0
    %v8737 = vadd.f32 %v8735, %v8736
    %v8738 = vsel %vm726, %v8580, 0.0
    %v8739 = vadd.f32 %v8737, %v8738
    %v8740 = vsel %vm726, %v8585, 0.0
    %v8741 = vadd.f32 %v8739, %v8740
    %v8742 = vsel %vm726, %v8588, 0.0
    %v8743 = vadd.f32 %v8741, %v8742
    %v8744 = vsel %vm726, %v8593, 0.0
    %v8745 = vadd.f32 %v8743, %v8744
    %v8746 = vsel %vm726, %v8596, 0.0
    %v8747 = vadd.f32 %v8745, %v8746
    %v8748 = vsel %vm726, %v8601, 0.0
    %v8749 = vadd.f32 %v8747, %v8748
    %v8750 = vsel %vm726, %v8604, 0.0
    %v8751 = vadd.f32 %v8749, %v8750
    %v8752 = vsel %vm726, %v8609, 0.0
    %v8753 = vadd.f32 %v8751, %v8752
    %v8754 = vsel %vm726, %v8612, 0.0
    %v8755 = vadd.f32 %v8753, %v8754
    %v8756 = vsel %vm726, %v8617, 0.0
    %v8757 = vadd.f32 %v8755, %v8756
    %v8758 = vsel %vm726, %v8620, 0.0
    %v8759 = vadd.f32 %v8757, %v8758
    %v8760 = vsel %vm726, %v8625, 0.0
    %v8761 = vadd.f32 %v8759, %v8760
    %v8762 = vsel %vm726, %v8628, 0.0
    %v8763 = vadd.f32 %v8761, %v8762
    %v8764 = vsel %vm726, %v8633, 0.0
    %v8765 = vadd.f32 %v8763, %v8764
    %v8766 = vsel %vm726, %v8636, 0.0
    %v8767 = vadd.f32 %v8765, %v8766
    %v8768 = vrot.slane %v8767, 4
    %v8769 = vadd.f32 %v8767, %v8768
    %v8770 = vrot.slane %v8769, 2
    %v8771 = vadd.f32 %v8769, %v8770
    %v8772 = vrot.slane %v8771, 1
    %v8773 = vadd.f32 %v8771, %v8772
    %v8774 = vmul.f32 %v8385, %v8385
    %v8775 = vmul.f32 %v8388, %v8388
    %v8776 = vmul.f32 %v8393, %v8393
    %v8777 = vmul.f32 %v8396, %v8396
    %v8778 = vmul.f32 %v8401, %v8401
    %v8779 = vmul.f32 %v8404, %v8404
    %v8780 = vmul.f32 %v8409, %v8409
    %v8781 = vmul.f32 %v8412, %v8412
    %v8782 = vmul.f32 %v8417, %v8417
    %v8783 = vmul.f32 %v8420, %v8420
    %v8784 = vmul.f32 %v8425, %v8425
    %v8785 = vmul.f32 %v8428, %v8428
    %v8786 = vmul.f32 %v8433, %v8433
    %v8787 = vmul.f32 %v8436, %v8436
    %v8788 = vmul.f32 %v8441, %v8441
    %v8789 = vmul.f32 %v8444, %v8444
    %v8790 = vmul.f32 %v8449, %v8449
    %v8791 = vmul.f32 %v8452, %v8452
    %v8792 = vmul.f32 %v8457, %v8457
    %v8793 = vmul.f32 %v8460, %v8460
    %v8794 = vmul.f32 %v8465, %v8465
    %v8795 = vmul.f32 %v8468, %v8468
    %v8796 = vmul.f32 %v8473, %v8473
    %v8797 = vmul.f32 %v8476, %v8476
    %v8798 = vmul.f32 %v8481, %v8481
    %v8799 = vmul.f32 %v8484, %v8484
    %v8800 = vmul.f32 %v8489, %v8489
    %v8801 = vmul.f32 %v8492, %v8492
    %v8802 = vmul.f32 %v8497, %v8497
    %v8803 = vmul.f32 %v8500, %v8500
    %v8804 = vmul.f32 %v8505, %v8505
    %v8805 = vmul.f32 %v8508, %v8508
    %v8806 = vmul.f32 %v8513, %v8513
    %v8807 = vmul.f32 %v8516, %v8516
    %v8808 = vmul.f32 %v8521, %v8521
    %v8809 = vmul.f32 %v8524, %v8524
    %v8810 = vmul.f32 %v8529, %v8529
    %v8811 = vmul.f32 %v8532, %v8532
    %v8812 = vmul.f32 %v8537, %v8537
    %v8813 = vmul.f32 %v8540, %v8540
    %v8814 = vmul.f32 %v8545, %v8545
    %v8815 = vmul.f32 %v8548, %v8548
    %v8816 = vmul.f32 %v8553, %v8553
    %v8817 = vmul.f32 %v8556, %v8556
    %v8818 = vmul.f32 %v8561, %v8561
    %v8819 = vmul.f32 %v8564, %v8564
    %v8820 = vmul.f32 %v8569, %v8569
    %v8821 = vmul.f32 %v8572, %v8572
    %v8822 = vmul.f32 %v8577, %v8577
    %v8823 = vmul.f32 %v8580, %v8580
    %v8824 = vmul.f32 %v8585, %v8585
    %v8825 = vmul.f32 %v8588, %v8588
    %v8826 = vmul.f32 %v8593, %v8593
    %v8827 = vmul.f32 %v8596, %v8596
    %v8828 = vmul.f32 %v8601, %v8601
    %v8829 = vmul.f32 %v8604, %v8604
    %v8830 = vmul.f32 %v8609, %v8609
    %v8831 = vmul.f32 %v8612, %v8612
    %v8832 = vmul.f32 %v8617, %v8617
    %v8833 = vmul.f32 %v8620, %v8620
    %v8834 = vmul.f32 %v8625, %v8625
    %v8835 = vmul.f32 %v8628, %v8628
    %v8836 = vmul.f32 %v8633, %v8633
    %v8837 = vmul.f32 %v8636, %v8636
    %v8838 = vsel %vm726, %v8774, 0.0
    %v8839 = vsel %vm726, %v8775, 0.0
    %v8840 = vadd.f32 %v8838, %v8839
    %v8841 = vsel %vm726, %v8776, 0.0
    %v8842 = vadd.f32 %v8840, %v8841
    %v8843 = vsel %vm726, %v8777, 0.0
    %v8844 = vadd.f32 %v8842, %v8843
    %v8845 = vsel %vm726, %v8778, 0.0
    %v8846 = vadd.f32 %v8844, %v8845
    %v8847 = vsel %vm726, %v8779, 0.0
    %v8848 = vadd.f32 %v8846, %v8847
    %v8849 = vsel %vm726, %v8780, 0.0
    %v8850 = vadd.f32 %v8848, %v8849
    %v8851 = vsel %vm726, %v8781, 0.0
    %v8852 = vadd.f32 %v8850, %v8851
    %v8853 = vsel %vm726, %v8782, 0.0
    %v8854 = vadd.f32 %v8852, %v8853
    %v8855 = vsel %vm726, %v8783, 0.0
    %v8856 = vadd.f32 %v8854, %v8855
    %v8857 = vsel %vm726, %v8784, 0.0
    %v8858 = vadd.f32 %v8856, %v8857
    %v8859 = vsel %vm726, %v8785, 0.0
    %v8860 = vadd.f32 %v8858, %v8859
    %v8861 = vsel %vm726, %v8786, 0.0
    %v8862 = vadd.f32 %v8860, %v8861
    %v8863 = vsel %vm726, %v8787, 0.0
    %v8864 = vadd.f32 %v8862, %v8863
    %v8865 = vsel %vm726, %v8788, 0.0
    %v8866 = vadd.f32 %v8864, %v8865
    %v8867 = vsel %vm726, %v8789, 0.0
    %v8868 = vadd.f32 %v8866, %v8867
    %v8869 = vsel %vm726, %v8790, 0.0
    %v8870 = vadd.f32 %v8868, %v8869
    %v8871 = vsel %vm726, %v8791, 0.0
    %v8872 = vadd.f32 %v8870, %v8871
    %v8873 = vsel %vm726, %v8792, 0.0
    %v8874 = vadd.f32 %v8872, %v8873
    %v8875 = vsel %vm726, %v8793, 0.0
    %v8876 = vadd.f32 %v8874, %v8875
    %v8877 = vsel %vm726, %v8794, 0.0
    %v8878 = vadd.f32 %v8876, %v8877
    %v8879 = vsel %vm726, %v8795, 0.0
    %v8880 = vadd.f32 %v8878, %v8879
    %v8881 = vsel %vm726, %v8796, 0.0
    %v8882 = vadd.f32 %v8880, %v8881
    %v8883 = vsel %vm726, %v8797, 0.0
    %v8884 = vadd.f32 %v8882, %v8883
    %v8885 = vsel %vm726, %v8798, 0.0
    %v8886 = vadd.f32 %v8884, %v8885
    %v8887 = vsel %vm726, %v8799, 0.0
    %v8888 = vadd.f32 %v8886, %v8887
    %v8889 = vsel %vm726, %v8800, 0.0
    %v8890 = vadd.f32 %v8888, %v8889
    %v8891 = vsel %vm726, %v8801, 0.0
    %v8892 = vadd.f32 %v8890, %v8891
    %v8893 = vsel %vm726, %v8802, 0.0
    %v8894 = vadd.f32 %v8892, %v8893
    %v8895 = vsel %vm726, %v8803, 0.0
    %v8896 = vadd.f32 %v8894, %v8895
    %v8897 = vsel %vm726, %v8804, 0.0
    %v8898 = vadd.f32 %v8896, %v8897
    %v8899 = vsel %vm726, %v8805, 0.0
    %v8900 = vadd.f32 %v8898, %v8899
    %v8901 = vsel %vm726, %v8806, 0.0
    %v8902 = vadd.f32 %v8900, %v8901
    %v8903 = vsel %vm726, %v8807, 0.0
    %v8904 = vadd.f32 %v8902, %v8903
    %v8905 = vsel %vm726, %v8808, 0.0
    %v8906 = vadd.f32 %v8904, %v8905
    %v8907 = vsel %vm726, %v8809, 0.0
    %v8908 = vadd.f32 %v8906, %v8907
    %v8909 = vsel %vm726, %v8810, 0.0
    %v8910 = vadd.f32 %v8908, %v8909
    %v8911 = vsel %vm726, %v8811, 0.0
    %v8912 = vadd.f32 %v8910, %v8911
    %v8913 = vsel %vm726, %v8812, 0.0
    %v8914 = vadd.f32 %v8912, %v8913
    %v8915 = vsel %vm726, %v8813, 0.0
    %v8916 = vadd.f32 %v8914, %v8915
    %v8917 = vsel %vm726, %v8814, 0.0
    %v8918 = vadd.f32 %v8916, %v8917
    %v8919 = vsel %vm726, %v8815, 0.0
    %v8920 = vadd.f32 %v8918, %v8919
    %v8921 = vsel %vm726, %v8816, 0.0
    %v8922 = vadd.f32 %v8920, %v8921
    %v8923 = vsel %vm726, %v8817, 0.0
    %v8924 = vadd.f32 %v8922, %v8923
    %v8925 = vsel %vm726, %v8818, 0.0
    %v8926 = vadd.f32 %v8924, %v8925
    %v8927 = vsel %vm726, %v8819, 0.0
    %v8928 = vadd.f32 %v8926, %v8927
    %v8929 = vsel %vm726, %v8820, 0.0
    %v8930 = vadd.f32 %v8928, %v8929
    %v8931 = vsel %vm726, %v8821, 0.0
    %v8932 = vadd.f32 %v8930, %v8931
    %v8933 = vsel %vm726, %v8822, 0.0
    %v8934 = vadd.f32 %v8932, %v8933
    %v8935 = vsel %vm726, %v8823, 0.0
    %v8936 = vadd.f32 %v8934, %v8935
    %v8937 = vsel %vm726, %v8824, 0.0
    %v8938 = vadd.f32 %v8936, %v8937
    %v8939 = vsel %vm726, %v8825, 0.0
    %v8940 = vadd.f32 %v8938, %v8939
    %v8941 = vsel %vm726, %v8826, 0.0
    %v8942 = vadd.f32 %v8940, %v8941
    %v8943 = vsel %vm726, %v8827, 0.0
    %v8944 = vadd.f32 %v8942, %v8943
    %v8945 = vsel %vm726, %v8828, 0.0
    %v8946 = vadd.f32 %v8944, %v8945
    %v8947 = vsel %vm726, %v8829, 0.0
    %v8948 = vadd.f32 %v8946, %v8947
    %v8949 = vsel %vm726, %v8830, 0.0
    %v8950 = vadd.f32 %v8948, %v8949
    %v8951 = vsel %vm726, %v8831, 0.0
    %v8952 = vadd.f32 %v8950, %v8951
    %v8953 = vsel %vm726, %v8832, 0.0
    %v8954 = vadd.f32 %v8952, %v8953
    %v8955 = vsel %vm726, %v8833, 0.0
    %v8956 = vadd.f32 %v8954, %v8955
    %v8957 = vsel %vm726, %v8834, 0.0
    %v8958 = vadd.f32 %v8956, %v8957
    %v8959 = vsel %vm726, %v8835, 0.0
    %v8960 = vadd.f32 %v8958, %v8959
    %v8961 = vsel %vm726, %v8836, 0.0
    %v8962 = vadd.f32 %v8960, %v8961
    %v8963 = vsel %vm726, %v8837, 0.0
    %v8964 = vadd.f32 %v8962, %v8963
    %v8965 = vrot.slane %v8964, 4
    %v8966 = vadd.f32 %v8964, %v8965
    %v8967 = vrot.slane %v8966, 2
    %v8968 = vadd.f32 %v8966, %v8967
    %v8969 = vrot.slane %v8968, 1
    %v8970 = vadd.f32 %v8968, %v8969
    %v8971 = vmul.f32 %v8773, 0.001953125
    %v8972 = vmul.f32 %v8970, 0.001953125
    %v8973 = vmul.f32 %v8971, %v8971
    %v8974 = vsub.f32 %v8972, %v8973
    %v8975 = vmax.f32 %v8974, 0.0
    %v8976 = vadd.f32 %v8975, 1e-05
    %v8977 = vrsqrt.pop %v8976
    %v8978 = vmul.f32 %v8977, %v8639
    %v8979 = vmul.f32 %v8971, %v8978
    %v8980 = vsub.f32 %v8640, %v8979
    %v8981 = vlaneseq
    %v8982 = vshrl.u32 %v8981, 7
    %v8983 = vsub.s32 0, %v8982
    %v8984 = vrot.slane %v8978, %v8983
    %v8985 = vmul.f32 %v8385, %v8984
    %v8986 = vmul.f32 %v8388, %v8984
    %v8987 = vmul.f32 %v8393, %v8984
    %v8988 = vmul.f32 %v8396, %v8984
    %v8989 = vmul.f32 %v8401, %v8984
    %v8990 = vmul.f32 %v8404, %v8984
    %v8991 = vmul.f32 %v8409, %v8984
    %v8992 = vmul.f32 %v8412, %v8984
    %v8993 = vmul.f32 %v8417, %v8984
    %v8994 = vmul.f32 %v8420, %v8984
    %v8995 = vmul.f32 %v8425, %v8984
    %v8996 = vmul.f32 %v8428, %v8984
    %v8997 = vmul.f32 %v8433, %v8984
    %v8998 = vmul.f32 %v8436, %v8984
    %v8999 = vmul.f32 %v8441, %v8984
    %v9000 = vmul.f32 %v8444, %v8984
    %v9001 = vmul.f32 %v8449, %v8984
    %v9002 = vmul.f32 %v8452, %v8984
    %v9003 = vmul.f32 %v8457, %v8984
    %v9004 = vmul.f32 %v8460, %v8984
    %v9005 = vmul.f32 %v8465, %v8984
    %v9006 = vmul.f32 %v8468, %v8984
    %v9007 = vmul.f32 %v8473, %v8984
    %v9008 = vmul.f32 %v8476, %v8984
    %v9009 = vmul.f32 %v8481, %v8984
    %v9010 = vmul.f32 %v8484, %v8984
    %v9011 = vmul.f32 %v8489, %v8984
    %v9012 = vmul.f32 %v8492, %v8984
    %v9013 = vmul.f32 %v8497, %v8984
    %v9014 = vmul.f32 %v8500, %v8984
    %v9015 = vmul.f32 %v8505, %v8984
    %v9016 = vmul.f32 %v8508, %v8984
    %v9017 = vmul.f32 %v8513, %v8984
    %v9018 = vmul.f32 %v8516, %v8984
    %v9019 = vmul.f32 %v8521, %v8984
    %v9020 = vmul.f32 %v8524, %v8984
    %v9021 = vmul.f32 %v8529, %v8984
    %v9022 = vmul.f32 %v8532, %v8984
    %v9023 = vmul.f32 %v8537, %v8984
    %v9024 = vmul.f32 %v8540, %v8984
    %v9025 = vmul.f32 %v8545, %v8984
    %v9026 = vmul.f32 %v8548, %v8984
    %v9027 = vmul.f32 %v8553, %v8984
    %v9028 = vmul.f32 %v8556, %v8984
    %v9029 = vmul.f32 %v8561, %v8984
    %v9030 = vmul.f32 %v8564, %v8984
    %v9031 = vmul.f32 %v8569, %v8984
    %v9032 = vmul.f32 %v8572, %v8984
    %v9033 = vmul.f32 %v8577, %v8984
    %v9034 = vmul.f32 %v8580, %v8984
    %v9035 = vmul.f32 %v8585, %v8984
    %v9036 = vmul.f32 %v8588, %v8984
    %v9037 = vmul.f32 %v8593, %v8984
    %v9038 = vmul.f32 %v8596, %v8984
    %v9039 = vmul.f32 %v8601, %v8984
    %v9040 = vmul.f32 %v8604, %v8984
    %v9041 = vmul.f32 %v8609, %v8984
    %v9042 = vmul.f32 %v8612, %v8984
    %v9043 = vmul.f32 %v8617, %v8984
    %v9044 = vmul.f32 %v8620, %v8984
    %v9045 = vmul.f32 %v8625, %v8984
    %v9046 = vmul.f32 %v8628, %v8984
    %v9047 = vmul.f32 %v8633, %v8984
    %v9048 = vmul.f32 %v8636, %v8984
    %v9050 = vlaneseq
    %v9051 = vshrl.u32 %v9050, 7
    %v9052 = vsub.s32 0, %v9051
    %v9053 = vrot.slane %v8980, %v9052
    %v9055 = vadd.f32 %v8985, %v9053
    %v9056 = vadd.f32 %v8986, %v9053
    %v9057 = vadd.f32 %v8987, %v9053
    %v9058 = vadd.f32 %v8988, %v9053
    %v9059 = vadd.f32 %v8989, %v9053
    %v9060 = vadd.f32 %v8990, %v9053
    %v9061 = vadd.f32 %v8991, %v9053
    %v9062 = vadd.f32 %v8992, %v9053
    %v9063 = vadd.f32 %v8993, %v9053
    %v9064 = vadd.f32 %v8994, %v9053
    %v9065 = vadd.f32 %v8995, %v9053
    %v9066 = vadd.f32 %v8996, %v9053
    %v9067 = vadd.f32 %v8997, %v9053
    %v9068 = vadd.f32 %v8998, %v9053
    %v9069 = vadd.f32 %v8999, %v9053
    %v9070 = vadd.f32 %v9000, %v9053
    %v9071 = vadd.f32 %v9001, %v9053
    %v9072 = vadd.f32 %v9002, %v9053
    %v9073 = vadd.f32 %v9003, %v9053
    %v9074 = vadd.f32 %v9004, %v9053
    %v9075 = vadd.f32 %v9005, %v9053
    %v9076 = vadd.f32 %v9006, %v9053
    %v9077 = vadd.f32 %v9007, %v9053
    %v9078 = vadd.f32 %v9008, %v9053
    %v9079 = vadd.f32 %v9009, %v9053
    %v9080 = vadd.f32 %v9010, %v9053
    %v9081 = vadd.f32 %v9011, %v9053
    %v9082 = vadd.f32 %v9012, %v9053
    %v9083 = vadd.f32 %v9013, %v9053
    %v9084 = vadd.f32 %v9014, %v9053
    %v9085 = vadd.f32 %v9015, %v9053
    %v9086 = vadd.f32 %v9016, %v9053
    %v9087 = vadd.f32 %v9017, %v9053
    %v9088 = vadd.f32 %v9018, %v9053
    %v9089 = vadd.f32 %v9019, %v9053
    %v9090 = vadd.f32 %v9020, %v9053
    %v9091 = vadd.f32 %v9021, %v9053
    %v9092 = vadd.f32 %v9022, %v9053
    %v9093 = vadd.f32 %v9023, %v9053
    %v9094 = vadd.f32 %v9024, %v9053
    %v9095 = vadd.f32 %v9025, %v9053
    %v9096 = vadd.f32 %v9026, %v9053
    %v9097 = vadd.f32 %v9027, %v9053
    %v9098 = vadd.f32 %v9028, %v9053
    %v9099 = vadd.f32 %v9029, %v9053
    %v9100 = vadd.f32 %v9030, %v9053
    %v9101 = vadd.f32 %v9031, %v9053
    %v9102 = vadd.f32 %v9032, %v9053
    %v9103 = vadd.f32 %v9033, %v9053
    %v9104 = vadd.f32 %v9034, %v9053
    %v9105 = vadd.f32 %v9035, %v9053
    %v9106 = vadd.f32 %v9036, %v9053
    %v9107 = vadd.f32 %v9037, %v9053
    %v9108 = vadd.f32 %v9038, %v9053
    %v9109 = vadd.f32 %v9039, %v9053
    %v9110 = vadd.f32 %v9040, %v9053
    %v9111 = vadd.f32 %v9041, %v9053
    %v9112 = vadd.f32 %v9042, %v9053
    %v9113 = vadd.f32 %v9043, %v9053
    %v9114 = vadd.f32 %v9044, %v9053
    %v9115 = vadd.f32 %v9045, %v9053
    %v9116 = vadd.f32 %v9046, %v9053
    %v9117 = vadd.f32 %v9047, %v9053
    %v9118 = vadd.f32 %v9048, %v9053
    %v9119 = vmax.f32 %v9055, 0.0
    %v9120 = vmax.f32 %v9056, 0.0
    %v9121 = vmax.f32 %v9057, 0.0
    %v9122 = vmax.f32 %v9058, 0.0
    %v9123 = vmax.f32 %v9059, 0.0
    %v9124 = vmax.f32 %v9060, 0.0
    %v9125 = vmax.f32 %v9061, 0.0
    %v9126 = vmax.f32 %v9062, 0.0
    %v9127 = vmax.f32 %v9063, 0.0
    %v9128 = vmax.f32 %v9064, 0.0
    %v9129 = vmax.f32 %v9065, 0.0
    %v9130 = vmax.f32 %v9066, 0.0
    %v9131 = vmax.f32 %v9067, 0.0
    %v9132 = vmax.f32 %v9068, 0.0
    %v9133 = vmax.f32 %v9069, 0.0
    %v9134 = vmax.f32 %v9070, 0.0
    %v9135 = vmax.f32 %v9071, 0.0
    %v9136 = vmax.f32 %v9072, 0.0
    %v9137 = vmax.f32 %v9073, 0.0
    %v9138 = vmax.f32 %v9074, 0.0
    %v9139 = vmax.f32 %v9075, 0.0
    %v9140 = vmax.f32 %v9076, 0.0
    %v9141 = vmax.f32 %v9077, 0.0
    %v9142 = vmax.f32 %v9078, 0.0
    %v9143 = vmax.f32 %v9079, 0.0
    %v9144 = vmax.f32 %v9080, 0.0
    %v9145 = vmax.f32 %v9081, 0.0
    %v9146 = vmax.f32 %v9082, 0.0
    %v9147 = vmax.f32 %v9083, 0.0
    %v9148 = vmax.f32 %v9084, 0.0
    %v9149 = vmax.f32 %v9085, 0.0
    %v9150 = vmax.f32 %v9086, 0.0
    %v9151 = vmax.f32 %v9087, 0.0
    %v9152 = vmax.f32 %v9088, 0.0
    %v9153 = vmax.f32 %v9089, 0.0
    %v9154 = vmax.f32 %v9090, 0.0
    %v9155 = vmax.f32 %v9091, 0.0
    %v9156 = vmax.f32 %v9092, 0.0
    %v9157 = vmax.f32 %v9093, 0.0
    %v9158 = vmax.f32 %v9094, 0.0
    %v9159 = vmax.f32 %v9095, 0.0
    %v9160 = vmax.f32 %v9096, 0.0
    %v9161 = vmax.f32 %v9097, 0.0
    %v9162 = vmax.f32 %v9098, 0.0
    %v9163 = vmax.f32 %v9099, 0.0
    %v9164 = vmax.f32 %v9100, 0.0
    %v9165 = vmax.f32 %v9101, 0.0
    %v9166 = vmax.f32 %v9102, 0.0
    %v9167 = vmax.f32 %v9103, 0.0
    %v9168 = vmax.f32 %v9104, 0.0
    %v9169 = vmax.f32 %v9105, 0.0
    %v9170 = vmax.f32 %v9106, 0.0
    %v9171 = vmax.f32 %v9107, 0.0
    %v9172 = vmax.f32 %v9108, 0.0
    %v9173 = vmax.f32 %v9109, 0.0
    %v9174 = vmax.f32 %v9110, 0.0
    %v9175 = vmax.f32 %v9111, 0.0
    %v9176 = vmax.f32 %v9112, 0.0
    %v9177 = vmax.f32 %v9113, 0.0
    %v9178 = vmax.f32 %v9114, 0.0
    %v9179 = vmax.f32 %v9115, 0.0
    %v9180 = vmax.f32 %v9116, 0.0
    %v9181 = vmax.f32 %v9117, 0.0
    %v9182 = vmax.f32 %v9118, 0.0
    %9183 = vst.msk [vmem:[#allocation15] sm:$0xff] %vm726, %v9119
    %9184 = vst.msk [vmem:[#allocation15 + $0x8] sm:$0xff] %vm726, %v9120
    %9185 = vst.msk [vmem:[#allocation15 + $0x10] sm:$0xff] %vm726, %v9121
    %9186 = vst.msk [vmem:[#allocation15 + $0x18] sm:$0xff] %vm726, %v9122
    %9187 = vst.msk [vmem:[#allocation15 + $0x20] sm:$0xff] %vm726, %v9123
    %9188 = vst.msk [vmem:[#allocation15 + $0x28] sm:$0xff] %vm726, %v9124
    %9189 = vst.msk [vmem:[#allocation15 + $0x30] sm:$0xff] %vm726, %v9125
    %9190 = vst.msk [vmem:[#allocation15 + $0x38] sm:$0xff] %vm726, %v9126
    %9191 = vst.msk [vmem:[#allocation15 + $0x40] sm:$0xff] %vm726, %v9127
    %9192 = vst.msk [vmem:[#allocation15 + $0x48] sm:$0xff] %vm726, %v9128
    %9193 = vst.msk [vmem:[#allocation15 + $0x50] sm:$0xff] %vm726, %v9129
    %9194 = vst.msk [vmem:[#allocation15 + $0x58] sm:$0xff] %vm726, %v9130
    %9195 = vst.msk [vmem:[#allocation15 + $0x60] sm:$0xff] %vm726, %v9131
    %9196 = vst.msk [vmem:[#allocation15 + $0x68] sm:$0xff] %vm726, %v9132
    %9197 = vst.msk [vmem:[#allocation15 + $0x70] sm:$0xff] %vm726, %v9133
    %9198 = vst.msk [vmem:[#allocation15 + $0x78] sm:$0xff] %vm726, %v9134
    %9199 = vst.msk [vmem:[#allocation15 + $0x80] sm:$0xff] %vm726, %v9135
    %9200 = vst.msk [vmem:[#allocation15 + $0x88] sm:$0xff] %vm726, %v9136
    %9201 = vst.msk [vmem:[#allocation15 + $0x90] sm:$0xff] %vm726, %v9137
    %9202 = vst.msk [vmem:[#allocation15 + $0x98] sm:$0xff] %vm726, %v9138
    %9203 = vst.msk [vmem:[#allocation15 + $0xa0] sm:$0xff] %vm726, %v9139
    %9204 = vst.msk [vmem:[#allocation15 + $0xa8] sm:$0xff] %vm726, %v9140
    %9205 = vst.msk [vmem:[#allocation15 + $0xb0] sm:$0xff] %vm726, %v9141
    %9206 = vst.msk [vmem:[#allocation15 + $0xb8] sm:$0xff] %vm726, %v9142
    %9207 = vst.msk [vmem:[#allocation15 + $0xc0] sm:$0xff] %vm726, %v9143
    %9208 = vst.msk [vmem:[#allocation15 + $0xc8] sm:$0xff] %vm726, %v9144
    %9209 = vst.msk [vmem:[#allocation15 + $0xd0] sm:$0xff] %vm726, %v9145
    %9210 = vst.msk [vmem:[#allocation15 + $0xd8] sm:$0xff] %vm726, %v9146
    %9211 = vst.msk [vmem:[#allocation15 + $0xe0] sm:$0xff] %vm726, %v9147
    %9212 = vst.msk [vmem:[#allocation15 + $0xe8] sm:$0xff] %vm726, %v9148
    %9213 = vst.msk [vmem:[#allocation15 + $0xf0] sm:$0xff] %vm726, %v9149
    %9214 = vst.msk [vmem:[#allocation15 + $0xf8] sm:$0xff] %vm726, %v9150
    %9215 = vst.msk [vmem:[#allocation15 + $0x100] sm:$0xff] %vm726, %v9151
    %9216 = vst.msk [vmem:[#allocation15 + $0x108] sm:$0xff] %vm726, %v9152
    %9217 = vst.msk [vmem:[#allocation15 + $0x110] sm:$0xff] %vm726, %v9153
    %9218 = vst.msk [vmem:[#allocation15 + $0x118] sm:$0xff] %vm726, %v9154
    %9219 = vst.msk [vmem:[#allocation15 + $0x120] sm:$0xff] %vm726, %v9155
    %9220 = vst.msk [vmem:[#allocation15 + $0x128] sm:$0xff] %vm726, %v9156
    %9221 = vst.msk [vmem:[#allocation15 + $0x130] sm:$0xff] %vm726, %v9157
    %9222 = vst.msk [vmem:[#allocation15 + $0x138] sm:$0xff] %vm726, %v9158
    %9223 = vst.msk [vmem:[#allocation15 + $0x140] sm:$0xff] %vm726, %v9159
    %9224 = vst.msk [vmem:[#allocation15 + $0x148] sm:$0xff] %vm726, %v9160
    %9225 = vst.msk [vmem:[#allocation15 + $0x150] sm:$0xff] %vm726, %v9161
    %9226 = vst.msk [vmem:[#allocation15 + $0x158] sm:$0xff] %vm726, %v9162
    %9227 = vst.msk [vmem:[#allocation15 + $0x160] sm:$0xff] %vm726, %v9163
    %9228 = vst.msk [vmem:[#allocation15 + $0x168] sm:$0xff] %vm726, %v9164
    %9229 = vst.msk [vmem:[#allocation15 + $0x170] sm:$0xff] %vm726, %v9165
    %9230 = vst.msk [vmem:[#allocation15 + $0x178] sm:$0xff] %vm726, %v9166
    %9231 = vst.msk [vmem:[#allocation15 + $0x180] sm:$0xff] %vm726, %v9167
    %9232 = vst.msk [vmem:[#allocation15 + $0x188] sm:$0xff] %vm726, %v9168
    %9233 = vst.msk [vmem:[#allocation15 + $0x190] sm:$0xff] %vm726, %v9169
    %9234 = vst.msk [vmem:[#allocation15 + $0x198] sm:$0xff] %vm726, %v9170
    %9235 = vst.msk [vmem:[#allocation15 + $0x1a0] sm:$0xff] %vm726, %v9171
    %9236 = vst.msk [vmem:[#allocation15 + $0x1a8] sm:$0xff] %vm726, %v9172
    %9237 = vst.msk [vmem:[#allocation15 + $0x1b0] sm:$0xff] %vm726, %v9173
    %9238 = vst.msk [vmem:[#allocation15 + $0x1b8] sm:$0xff] %vm726, %v9174
    %9239 = vst.msk [vmem:[#allocation15 + $0x1c0] sm:$0xff] %vm726, %v9175
    %9240 = vst.msk [vmem:[#allocation15 + $0x1c8] sm:$0xff] %vm726, %v9176
    %9241 = vst.msk [vmem:[#allocation15 + $0x1d0] sm:$0xff] %vm726, %v9177
    %9242 = vst.msk [vmem:[#allocation15 + $0x1d8] sm:$0xff] %vm726, %v9178
    %9243 = vst.msk [vmem:[#allocation15 + $0x1e0] sm:$0xff] %vm726, %v9179
    %9244 = vst.msk [vmem:[#allocation15 + $0x1e8] sm:$0xff] %vm726, %v9180
    %9245 = vst.msk [vmem:[#allocation15 + $0x1f0] sm:$0xff] %vm726, %v9181
    %9246 = vst.msk [vmem:[#allocation15 + $0x1f8] sm:$0xff] %vm726, %v9182
    // Predicated region
    $region58: #{double_conv_apply.1} parent=1 // pred_check
      _
    $region59: #{double_conv_apply.1} parent=1 // pred_check_branch
      %9248 = sbr.rel (0) target = $region61
    $region60: #{double_conv_apply.1} parent=1 // pred_region
      %s9250 = ssub.s32 8192, 8192
      %9251 = vsyncadd [#allocation5], %s9250
      %s9252 = sshll.u32 [#allocation15], 4
      %s9253 = int_to_ptr.vmem [resolvable:$true] %s9252
      %9258 = dma.vmem_to_hbm [thread:$0]  %s9253, 8192, %s7, [#allocation5], 128, 128, 8
    $region61: #{double_conv_apply.1} parent=1 // pred_fallthru
      _
    // Predicated region
    $region62: #{double_conv_apply.1} parent=1 // pred_check
      _
    $region63: #{double_conv_apply.1} parent=1 // pred_check_branch
      %9260 = sbr.rel (0) target = $region65
    $region64: #{double_conv_apply.1} parent=1 // pred_region
      %9261 = dma.done [#allocation5], 8192
    $region65: #{double_conv_apply.1} parent=1 // pred_fallthru
      _
    %9262 = vsyncpa [#allocation4], 1
    %9263 = vsyncpa [#allocation7], 1
    %9264 = vsyncpa [#allocation10], 1
    %9265 = vsyncpa [#allocation13], 1
    %9266 = vsyncpa [#allocation5], 1

</llo_original>
